<compile_context>
chip_gen: v7x
topology: tpu7x:2x2x1
jax: 0.10.0
libtpu: 0.0.40
codegen_flags: <defaults>
</compile_context>

<pallas_src>
from functools import partial

import numpy as np
import jax
import jax.numpy as jnp
from jax.experimental import pallas as pl
from jax.experimental.pallas import tpu as pltpu

# ----------------------------- configuration ------------------------------ #
IMG = (32, 32)          # (height, width)
CHANNELS = 2
TIME_WIN = 3
S_PATCH = 16
T_PATCH = 1
ENC_DEPTH = 2
DEC_DEPTH = 2
NUM_HEADS = 2
EMBED_DIM = 64
MLP_RATIO = 4
EXTRACTION_LAYER = 1    # < DEC_DEPTH
BATCH = 2

NUM_PATCHES_H = IMG[0] // S_PATCH
NUM_PATCHES_W = IMG[1] // S_PATCH
NUM_PATCHES_T = TIME_WIN // T_PATCH
NUM_PATCHES_S = NUM_PATCHES_H * NUM_PATCHES_W
NUM_PATCHES = NUM_PATCHES_T * NUM_PATCHES_S

PDIM_OBS = CHANNELS * T_PATCH * S_PATCH * S_PATCH
PDIM_MASK = 1 * 1 * S_PATCH * S_PATCH
PDIM_OUT = T_PATCH * CHANNELS * S_PATCH * S_PATCH
MLP_HIDDEN = MLP_RATIO * EMBED_DIM
LN_EPS = 1e-6   # reference uses nn.LayerNorm(eps=1e-06) everywhere

BLOCK_KEYS = ("ln1_w", "ln1_b", "qkv_w", "qkv_b", "proj_w", "proj_b",
              "ln2_w", "ln2_b", "fc1_w", "fc1_b", "fc2_w", "fc2_b")

assert EXTRACTION_LAYER < DEC_DEPTH


# --------------------------- in-kernel math helpers ------------------------ #
def _mxu(a, b):
    """bf16 MXU matmul with f32 accumulation."""
    return jnp.dot(a.astype(jnp.bfloat16), b.astype(jnp.bfloat16),
                   preferred_element_type=jnp.float32)


def _ln(x, g, b):
    mean = jnp.mean(x, axis=-1, keepdims=True)
    var = jnp.mean((x - mean) ** 2, axis=-1, keepdims=True)
    return (x - mean) * jax.lax.rsqrt(var + LN_EPS) * g + b


def _block_diag(n_total, n_per, batch):
    """Compile-time block-diagonal (same-batch) attention mask, iota-built."""
    ri = jax.lax.broadcasted_iota(jnp.int32, (n_total, n_total), 0)
    ci = jax.lax.broadcasted_iota(jnp.int32, (n_total, n_total), 1)
    same = None
    for b in range(batch):
        in_r = (ri >= b * n_per) & (ri < (b + 1) * n_per)
        in_c = (ci >= b * n_per) & (ci < (b + 1) * n_per)
        blk = in_r & in_c
        same = blk if same is None else (same | blk)
    return same


def _attn(x_bf, qkv_w, qkv_b, proj_w, proj_b, *, num_heads, same_batch):
    """Self-attention on (N, D) tokens (all batches merged, block-diag masked).

    q/k/v are lane sub-slices of the fused qkv activation; the head-merge is
    folded into the output projection via per-head partial matmul accumulation
    (no stack / concatenate, no cross-lane relayout traffic).
    """
    n, d = x_bf.shape
    hd = d // num_heads
    scale = float(hd) ** -0.5

    qkv = jnp.dot(x_bf, qkv_w, preferred_element_type=jnp.float32) + qkv_b
    qkv_bf = qkv.astype(jnp.bfloat16)                     # cast once, slice per head

    out = None
    for h in range(num_heads):
        q = qkv_bf[:, h * hd:(h + 1) * hd]
        k = qkv_bf[:, d + h * hd: d + (h + 1) * hd]
        v = qkv_bf[:, 2 * d + h * hd: 2 * d + (h + 1) * hd]
        s = jnp.dot(q, k.T, preferred_element_type=jnp.float32) * scale   # (N, N)
        s = jnp.where(same_batch, s, jnp.float32(-1e30))
        s = s - jnp.max(s, axis=-1, keepdims=True)
        p = jnp.exp(s)
        p = p * pl.reciprocal(jnp.sum(p, axis=-1, keepdims=True), approx=True)
        o = jnp.dot(p.astype(jnp.bfloat16), v, preferred_element_type=jnp.float32)
        part = jnp.dot(o.astype(jnp.bfloat16), proj_w[h * hd:(h + 1) * hd, :],
                       preferred_element_type=jnp.float32)                 # (N, D)
        out = part if out is None else out + part
    return out + proj_b


def _vit_block(x, blk, l, *, num_heads, same_batch):
    """Pre-norm ViT block: x + MHSA(LN(x)); x + MLP(LN(x)). x is f32 (N, D)."""
    (ln1w, ln1b, qkvw, qkvb, projw, projb,
     ln2w, ln2b, fc1w, fc1b, fc2w, fc2b) = blk
    h = _ln(x, ln1w[l], ln1b[l]).astype(jnp.bfloat16)          # cast hoisted once
    x = x + _attn(h, qkvw[l], qkvb[l], projw[l], projb[l],
                  num_heads=num_heads, same_batch=same_batch)
    h2 = _ln(x, ln2w[l], ln2b[l]).astype(jnp.bfloat16)
    # TODO(synk): tanh-approx GELU (exact erf GELU has no clean Mosaic lowering);
    # differs from torch.nn.GELU() by ~1e-3.
    h2 = jax.nn.gelu(jnp.dot(h2, fc1w[l], preferred_element_type=jnp.float32)
                     + fc1b[l], approximate=True)
    return x + jnp.dot(h2.astype(jnp.bfloat16), fc2w[l],
                       preferred_element_type=jnp.float32) + fc2b[l]


# ------------------------------ fused kernel -------------------------------- #
def crm_kernel(*refs, batch, n_ctx, n_all, num_heads, enc_depth, dec_depth,
               extraction_layer, ctx_runs, rec_runs):
    (patch_ref, mpatch_ref, epos_ref, dpos_ref,
     pw_ref, pb_ref, mw_ref, mb_ref) = refs[0:8]
    eblk = refs[8:20]
    e_nw, e_nb = refs[20:22]
    dblk = refs[22:34]
    d_nw, d_nb = refs[34:36]
    lw_ref, lb_ref = refs[36:38]
    out_ref, ext_ref = refs[38:40]
    tok_buf, mtok_buf, ctx_buf, dec_buf = refs[40:44]

    P = n_all

    # ---- patch / mask embedding (+ pre-tiled positional embedding) ----
    tok_buf[...] = (_mxu(patch_ref[...], pw_ref[...]) + pb_ref[...]
                    + epos_ref[...])                                  # (B*P, D)
    mtok_buf[...] = _mxu(mpatch_ref[...], mw_ref[...]) + mb_ref[...]  # (nS, D)

    # ---- static ctx gather + mask-token scatter (compile-time runs) ----
    for b in range(batch):
        for (orig_s, ctx_s, length) in ctx_runs:
            ctx_buf[pl.ds(b * n_ctx + ctx_s, length), :] = \
                tok_buf[pl.ds(b * P + orig_s, length), :]
        for (orig_s, mask_s, length) in rec_runs:
            dec_buf[pl.ds(b * P + orig_s, length), :] = (
                tok_buf[pl.ds(b * P + orig_s, length), :]
                + mtok_buf[pl.ds(mask_s, length), :])

    # ---- encoder blocks over merged (B*n_ctx) context tokens ----
    enc_mask = _block_diag(batch * n_ctx, n_ctx, batch)
    x = ctx_buf[...]
    for l in range(enc_depth):                                        # unrolled
        x = _vit_block(x, eblk, l, num_heads=num_heads, same_batch=enc_mask)
    x = _ln(x, e_nw[...], e_nb[...])
    ctx_buf[...] = x

    # ---- ids_restore un-shuffle == scatter encoded ctx back in place ----
    for b in range(batch):
        for (orig_s, ctx_s, length) in ctx_runs:
            dec_buf[pl.ds(b * P + orig_s, length), :] = \
                ctx_buf[pl.ds(b * n_ctx + ctx_s, length), :]

    # ---- decoder blocks over merged (B*P) tokens ----
    dec_mask = _block_diag(batch * P, P, batch)
    y = dec_buf[...] + dpos_ref[...]
    for l in range(dec_depth):                                        # unrolled
        y = _vit_block(y, dblk, l, num_heads=num_heads, same_batch=dec_mask)
        if l == extraction_layer:
            # Extraction tap.  Last dim is 64 (<128 lanes) -> masked store; at
            # ~6 KiB the 64->128 relayout needed to make it lane-dense would
            # cost more than it saves, so it is emitted as-is.
            ext_ref[...] = y
    y = _ln(y, d_nw[...], d_nb[...])
    out_ref[...] = _mxu(y, lw_ref[...]) + lb_ref[...]       # lane-dense (B*P, 512)


# ------------------------------ pallas wrapper ------------------------------ #
def _block_flops(n, d, hidden, heads):
    hd = d // heads
    return (2 * n * d * 3 * d            # qkv
            + 4 * heads * n * n * hd     # q@k^T and p@v
            + 2 * n * d * d              # proj
            + 4 * n * d * hidden)        # fc1 + fc2


def _cost_estimate(flops, transcendentals, arrays, out_shapes):
    nbytes = sum(int(np.prod(a.shape)) * a.dtype.itemsize for a in arrays)
    nbytes += sum(int(np.prod(s.shape)) * np.dtype(s.dtype).itemsize
                  for s in out_shapes)
    return pl.CostEstimate(flops=int(flops), transcendentals=int(transcendentals),
                           bytes_accessed=int(nbytes))


def crm_call(params, runs, patches2d, mpatches):
    """Single fused pallas_call for the whole CRM forward pass."""
    B = patches2d.shape[0] // NUM_PATCHES
    D = EMBED_DIM
    n_ctx = runs["n_ctx"]
    eb, db = params["enc_blocks"], params["dec_blocks"]

    epos = jnp.tile(params["enc_pos"], (B, 1))   # (B*P, D) - batch folded into rows
    dpos = jnp.tile(params["dec_pos"], (B, 1))

    args = [patches2d, mpatches, epos, dpos,
            params["enc_patch_w"], params["enc_patch_b"],
            params["enc_mask_w"], params["enc_mask_b"],
            *[eb[k] for k in BLOCK_KEYS],
            params["enc_norm_w"], params["enc_norm_b"],
            *[db[k] for k in BLOCK_KEYS],
            params["dec_norm_w"], params["dec_norm_b"],
            params["dec_lin_w"], params["dec_lin_b"]]

    out_shape = (jax.ShapeDtypeStruct((B * NUM_PATCHES, PDIM_OUT), jnp.float32),
                 jax.ShapeDtypeStruct((B * NUM_PATCHES, D), jnp.float32))

    kernel = partial(crm_kernel, batch=B, n_ctx=n_ctx, n_all=NUM_PATCHES,
                     num_heads=NUM_HEADS, enc_depth=ENC_DEPTH,
                     dec_depth=DEC_DEPTH, extraction_layer=EXTRACTION_LAYER,
                     ctx_runs=runs["ctx_runs"], rec_runs=runs["rec_runs"])

    n_enc, n_dec = B * n_ctx, B * NUM_PATCHES
    flops = (2 * B * NUM_PATCHES * PDIM_OBS * D
             + 2 * NUM_PATCHES_S * PDIM_MASK * D
             + ENC_DEPTH * _block_flops(n_enc, D, MLP_HIDDEN, NUM_HEADS)
             + DEC_DEPTH * _block_flops(n_dec, D, MLP_HIDDEN, NUM_HEADS)
             + 2 * n_dec * D * PDIM_OUT)
    transc = (ENC_DEPTH * (NUM_HEADS * n_enc * n_enc + n_enc * MLP_HIDDEN)
              + DEC_DEPTH * (NUM_HEADS * n_dec * n_dec + n_dec * MLP_HIDDEN))

    vmem_spec = pl.BlockSpec(memory_space=pltpu.MemorySpace.VMEM)
    return pl.pallas_call(
        kernel,
        out_shape=out_shape,
        in_specs=[vmem_spec] * len(args),
        out_specs=(vmem_spec, vmem_spec),
        scratch_shapes=[pltpu.VMEM((B * NUM_PATCHES, D), jnp.float32),   # tok_buf
                        pltpu.VMEM((NUM_PATCHES_S, D), jnp.float32),     # mtok_buf
                        pltpu.VMEM((B * n_ctx, D), jnp.float32),         # ctx_buf
                        pltpu.VMEM((B * NUM_PATCHES, D), jnp.float32)],  # dec_buf
        cost_estimate=_cost_estimate(flops, transc, args, out_shape),
    )(*args)


# ------------------------------ JAX / numpy glue ---------------------------- #
def patchify(x, t_patch, s_patch):
    """(B, C, T, H, W) -> (B, nT, nH*nW, C*t_patch*s_patch*s_patch)."""
    B, C, T, H, W = x.shape
    nT, nH, nW = T // t_patch, H // s_patch, W // s_patch
    x = x.reshape(B, C, nT, t_patch, nH, s_patch, nW, s_patch)
    x = jnp.transpose(x, (0, 2, 4, 6, 1, 3, 5, 7))
    return x.reshape(B, nT, nH * nW, C * t_patch * s_patch * s_patch)


def unpatchify(x):
    B = x.shape[0]
    x = x.reshape(B, NUM_PATCHES_T, NUM_PATCHES_H, NUM_PATCHES_W,
                  T_PATCH, S_PATCH, S_PATCH, CHANNELS)
    x = jnp.einsum("nthwupqc->nctuhpwq", x)
    return x.reshape(B, CHANNELS, TIME_WIN, IMG[0], IMG[1])


def get_rec_indices_np(mask_np, patch_size):
    """numpy equivalent of _get_rec_indices (mask is a concrete eager input)."""
    nh, nw = mask_np.shape[0] // patch_size, mask_np.shape[1] // patch_size
    rm = mask_np.reshape(nh, patch_size, nw, patch_size)
    mins = rm.min(axis=(1, 3))
    idxs = np.argwhere(mins == 0)
    return (idxs[:, 0] * nw + idxs[:, 1]).astype(np.int64)


def _contiguous_runs(sorted_ids):
    """[(orig_start, list_start, length), ...] for a sorted index list."""
    runs, i, n = [], 0, len(sorted_ids)
    while i < n:
        j = i
        while j + 1 < n and sorted_ids[j + 1] == sorted_ids[j] + 1:
            j += 1
        runs.append((int(sorted_ids[i]), i, j - i + 1))
        i = j + 1
    return tuple(runs)


def build_indices(mask_np, s_patch):
    """Static index bookkeeping: ctx/rec splits as compile-time contiguous runs."""
    ids_rec_mask = get_rec_indices_np(mask_np, s_patch)
    t_off = (NUM_PATCHES_T // 2) * NUM_PATCHES_S
    ids_rec = ids_rec_mask + t_off
    assert len(ids_rec) > 0, "mask must contain at least one fully-missing patch"
    rec_set = set(int(i) for i in ids_rec)
    ids_context = np.array([i for i in range(NUM_PATCHES) if i not in rec_set],
                           dtype=np.int64)
    ids_shuffle = np.concatenate([ids_context, ids_rec])
    ids_restore = np.argsort(ids_shuffle)

    ctx_runs = _contiguous_runs(ids_context)                  # (orig, ctx_pos, len)
    rec_runs_abs = _contiguous_runs(ids_rec)
    rec_runs = tuple((o, o - t_off, l) for (o, _r, l) in rec_runs_abs)  # (orig, mask_pos, len)

    runs = dict(n_ctx=len(ids_context), n_rec=len(ids_rec),
                ctx_runs=ctx_runs, rec_runs=rec_runs)
    ids = dict(ids_rec_mask=ids_rec_mask, ids_rec=ids_rec,
               ids_context=ids_context, ids_restore=ids_restore)
    return runs, ids


def crm_forward(params, observation, mask, metadata, runs):
    B = observation.shape[0]
    t_mid = metadata["time_win"] // 2
    meas = metadata["feat_to_idx"]["measurement"]

    obs = observation.at[:, t_mid, meas, :, :].multiply(mask)
    obs = jnp.transpose(obs, (0, 2, 1, 3, 4))                    # (B, C, T, H, W)
    patches = patchify(obs, T_PATCH, S_PATCH).reshape(B * NUM_PATCHES, PDIM_OBS)
    mpatches = patchify(mask.reshape(1, 1, 1, IMG[0], IMG[1]),
                        T_PATCH, S_PATCH).reshape(NUM_PATCHES_S, PDIM_MASK)

    patches_all, ext = crm_call(params, runs, patches, mpatches)
    patches_all = patches_all.reshape(B, NUM_PATCHES, PDIM_OUT)
    ext = ext.reshape(B, NUM_PATCHES, EMBED_DIM)

    rec_img = unpatchify(patches_all)                            # (B, C, T, H, W)
    rec_img = jnp.transpose(rec_img, (0, 2, 1, 3, 4))            # (B, T, C, H, W)
    return rec_img[:, t_mid, meas, :, :], ext


# ----------------------- frozen 3D sin-cos positional embed ----------------- #
def _get_1d_sincos(embed_dim, pos):
    assert embed_dim % 2 == 0
    omega = np.arange(embed_dim // 2, dtype=np.float64)
    omega /= embed_dim / 2.0
    omega = 1.0 / 10000 ** omega
    out = np.einsum("m,d->md", pos.reshape(-1).astype(np.float64), omega)
    return np.concatenate([np.sin(out), np.cos(out)], axis=1)


def get_3d_sincos_pos_embed(embed_dim, grid_h, grid_w, grid_t):
    """MAE-ST style 3D sin-cos pos embed (3/4 spatial, 1/4 temporal)."""
    assert embed_dim % 4 == 0
    dim_spatial = embed_dim // 4 * 3
    dim_temporal = embed_dim // 4
    gw, gh = np.meshgrid(np.arange(grid_w, dtype=np.float32),
                         np.arange(grid_h, dtype=np.float32))
    emb_h = _get_1d_sincos(dim_spatial // 2, gh)
    emb_w = _get_1d_sincos(dim_spatial // 2, gw)
    pos_spatial = np.concatenate([emb_h, emb_w], axis=1)
    pos_temporal = _get_1d_sincos(dim_temporal,
                                  np.arange(grid_t, dtype=np.float32))
    pos_spatial = np.tile(pos_spatial[None], (grid_t, 1, 1))
    pos_temporal = np.repeat(pos_temporal[:, None, :], grid_h * grid_w, axis=1)
    pos = np.concatenate([pos_temporal, pos_spatial], axis=-1)
    return pos.reshape(-1, embed_dim).astype(np.float32)


# ----------------------------- parameter init ------------------------------ #
def xavier_uniform(key, shape):
    fan_in, fan_out = shape
    limit = float(np.sqrt(6.0 / (fan_in + fan_out)))
    return jax.random.uniform(key, shape, jnp.float32, -limit, limit)


def init_block_stack(key, depth, d, hidden):
    """Per-layer ViT block weights stacked on a leading (layer) axis."""
    ks = jax.random.split(key, depth * 4)
    def xs(i, shape):
        return jnp.stack([xavier_uniform(ks[l * 4 + i], shape) for l in range(depth)])
    ones = jnp.ones((depth, 1, d), jnp.float32)
    zeros_d = jnp.zeros((depth, 1, d), jnp.float32)
    return dict(
        ln1_w=ones, ln1_b=zeros_d,
        qkv_w=xs(0, (d, 3 * d)).astype(jnp.bfloat16),
        qkv_b=jnp.zeros((depth, 1, 3 * d), jnp.float32),
        proj_w=xs(1, (d, d)).astype(jnp.bfloat16), proj_b=zeros_d,
        ln2_w=ones, ln2_b=zeros_d,
        fc1_w=xs(2, (d, hidden)).astype(jnp.bfloat16),
        fc1_b=jnp.zeros((depth, 1, hidden), jnp.float32),
        fc2_w=xs(3, (hidden, d)).astype(jnp.bfloat16), fc2_b=zeros_d,
    )


def init_params(key):
    D = EMBED_DIM
    k = jax.random.split(key, 8)
    pos = jnp.asarray(get_3d_sincos_pos_embed(D, NUM_PATCHES_H, NUM_PATCHES_W,
                                              NUM_PATCHES_T))   # (P, D), frozen
    return dict(
        enc_patch_w=xavier_uniform(k[0], (PDIM_OBS, D)).astype(jnp.bfloat16),
        enc_patch_b=jnp.zeros((1, D), jnp.float32),
        enc_mask_w=xavier_uniform(k[1], (PDIM_MASK, D)).astype(jnp.bfloat16),
        enc_mask_b=jnp.zeros((1, D), jnp.float32),
        enc_pos=pos,
        enc_blocks=init_block_stack(k[2], ENC_DEPTH, D, MLP_HIDDEN),
        enc_norm_w=jnp.ones((1, D), jnp.float32),
        enc_norm_b=jnp.zeros((1, D), jnp.float32),
        dec_pos=pos,
        dec_blocks=init_block_stack(k[3], DEC_DEPTH, D, MLP_HIDDEN),
        dec_norm_w=jnp.ones((1, D), jnp.float32),
        dec_norm_b=jnp.zeros((1, D), jnp.float32),
        dec_lin_w=xavier_uniform(k[4], (D, PDIM_OUT)).astype(jnp.bfloat16),
        dec_lin_b=jnp.zeros((1, PDIM_OUT), jnp.float32),
    )


# ------------------- pure-JAX mixed-precision reference -------------------- #
def _ref_block(x, bp, l, num_heads):
    B, n, d = x.shape
    hd = d // num_heads
    scale = float(hd) ** -0.5
    h = _ln(x, bp["ln1_w"][l], bp["ln1_b"][l])
    qkv = _mxu(h, bp["qkv_w"][l]) + bp["qkv_b"][l]
    qkv = qkv.reshape(B, n, 3, num_heads, hd)
    q, k, v = [jnp.transpose(qkv[:, :, i], (0, 2, 1, 3)) for i in range(3)]
    s = jnp.einsum("bhqd,bhkd->bhqk", q.astype(jnp.bfloat16), k.astype(jnp.bfloat16),
                   preferred_element_type=jnp.float32) * scale
    s = s - jnp.max(s, axis=-1, keepdims=True)
    p = jnp.exp(s)
    p = p / jnp.sum(p, axis=-1, keepdims=True)
    o = jnp.einsum("bhqk,bhkd->bhqd", p.astype(jnp.bfloat16), v.astype(jnp.bfloat16),
                   preferred_element_type=jnp.float32)
    o = jnp.transpose(o, (0, 2, 1, 3)).reshape(B, n, d)
    x = x + _mxu(o, bp["proj_w"][l]) + bp["proj_b"][l]
    h2 = _ln(x, bp["ln2_w"][l], bp["ln2_b"][l])
    h2 = jax.nn.gelu(_mxu(h2, bp["fc1_w"][l]) + bp["fc1_b"][l], approximate=True)
    return x + _mxu(h2, bp["fc2_w"][l]) + bp["fc2_b"][l]


def ref_forward(params, observation, mask, metadata, ids):
    t_mid = metadata["time_win"] // 2
    meas = metadata["feat_to_idx"]["measurement"]
    obs = observation.at[:, t_mid, meas, :, :].multiply(mask)
    obs = jnp.transpose(obs, (0, 2, 1, 3, 4))
    patches = patchify(obs, T_PATCH, S_PATCH).reshape(obs.shape[0], NUM_PATCHES, PDIM_OBS)
    mpatch = patchify(mask.reshape(1, 1, 1, IMG[0], IMG[1]),
                      T_PATCH, S_PATCH).reshape(NUM_PATCHES_S, PDIM_MASK)

    toks = _mxu(patches, params["enc_patch_w"]) + params["enc_patch_b"]
    mtoks = _mxu(mpatch, params["enc_mask_w"]) + params["enc_mask_b"]
    toks = toks.at[:, ids["ids_rec"], :].add(mtoks[ids["ids_rec_mask"]])
    toks = toks + params["enc_pos"]
    ctx = toks[:, ids["ids_context"]]
    rec_toks = toks[:, ids["ids_rec"]]
    for l in range(ENC_DEPTH):
        ctx = _ref_block(ctx, params["enc_blocks"], l, NUM_HEADS)
    ctx = _ln(ctx, params["enc_norm_w"], params["enc_norm_b"])

    allt = jnp.concatenate([ctx, rec_toks], axis=1)[:, ids["ids_restore"]]
    allt = allt + params["dec_pos"]
    ext = None
    for l in range(DEC_DEPTH):
        allt = _ref_block(allt, params["dec_blocks"], l, NUM_HEADS)
        if l == EXTRACTION_LAYER:
            ext = allt
    allt = _ln(allt, params["dec_norm_w"], params["dec_norm_b"])
    pall = _mxu(allt, params["dec_lin_w"]) + params["dec_lin_b"]
    rec_img = unpatchify(pall)
    rec_img = jnp.transpose(rec_img, (0, 2, 1, 3, 4))[:, t_mid, meas, :, :]
    return rec_img, ext


# ---------------------------------- main ----------------------------------- #
if __name__ == "__main__":
    key = jax.random.PRNGKey(0)
    pkey, okey = jax.random.split(key)

    params = init_params(pkey)
    observation = jax.random.normal(
        okey, (BATCH, TIME_WIN, CHANNELS, IMG[0], IMG[1]), jnp.float32)

    # deterministic mask with two fully-missing patches -> 2 reconstruction tokens
    mask_np = np.ones(IMG, np.float32)
    mask_np[0:S_PATCH, S_PATCH:2 * S_PATCH] = 0.0
    mask_np[S_PATCH:2 * S_PATCH, 0:S_PATCH] = 0.0
    mask = jnp.asarray(mask_np)
    runs, ids = build_indices(mask_np, S_PATCH)

    metadata = {"time_win": TIME_WIN, "feat_to_idx": {"measurement": 0}}

    fwd = jax.jit(lambda p, o, m: crm_forward(p, o, m, metadata, runs))
    rec, toks_extracted = fwd(params, observation, mask)
    rec = jax.block_until_ready(rec)
    toks_extracted = jax.block_until_ready(toks_extracted)

    assert rec.shape == (BATCH, IMG[0], IMG[1]), rec.shape
    assert toks_extracted.shape == (BATCH, NUM_PATCHES, EMBED_DIM), toks_extracted.shape
    assert np.isfinite(np.asarray(rec)).all()
    assert np.isfinite(np.asarray(toks_extracted)).all()

    # correctness check vs a pure-JAX mixed-precision reference of the same model
    rec_ref, ext_ref = ref_forward(params, observation, mask, metadata, ids)
    np.testing.assert_allclose(np.asarray(rec), np.asarray(rec_ref),
                               rtol=5e-2, atol=5e-2)
    np.testing.assert_allclose(np.asarray(toks_extracted), np.asarray(ext_ref),
                               rtol=5e-2, atol=5e-2)

    print("KERNEL_OK")
</pallas_src>

<mosaic_0001>
module attributes {stable_mosaic.version = 11 : i64} {
  func.func @crm_kernel(%arg0: memref<24x512xf32, #tpu.memory_space<vmem>>, %arg1: memref<4x256xf32, #tpu.memory_space<vmem>>, %arg2: memref<24x64xf32, #tpu.memory_space<vmem>>, %arg3: memref<24x64xf32, #tpu.memory_space<vmem>>, %arg4: memref<512x64xbf16, #tpu.memory_space<vmem>>, %arg5: memref<1x64xf32, #tpu.memory_space<vmem>>, %arg6: memref<256x64xbf16, #tpu.memory_space<vmem>>, %arg7: memref<1x64xf32, #tpu.memory_space<vmem>>, %arg8: memref<2x1x64xf32, #tpu.memory_space<vmem>>, %arg9: memref<2x1x64xf32, #tpu.memory_space<vmem>>, %arg10: memref<2x64x192xbf16, #tpu.memory_space<vmem>>, %arg11: memref<2x1x192xf32, #tpu.memory_space<vmem>>, %arg12: memref<2x64x64xbf16, #tpu.memory_space<vmem>>, %arg13: memref<2x1x64xf32, #tpu.memory_space<vmem>>, %arg14: memref<2x1x64xf32, #tpu.memory_space<vmem>>, %arg15: memref<2x1x64xf32, #tpu.memory_space<vmem>>, %arg16: memref<2x64x256xbf16, #tpu.memory_space<vmem>>, %arg17: memref<2x1x256xf32, #tpu.memory_space<vmem>>, %arg18: memref<2x256x64xbf16, #tpu.memory_space<vmem>>, %arg19: memref<2x1x64xf32, #tpu.memory_space<vmem>>, %arg20: memref<1x64xf32, #tpu.memory_space<vmem>>, %arg21: memref<1x64xf32, #tpu.memory_space<vmem>>, %arg22: memref<2x1x64xf32, #tpu.memory_space<vmem>>, %arg23: memref<2x1x64xf32, #tpu.memory_space<vmem>>, %arg24: memref<2x64x192xbf16, #tpu.memory_space<vmem>>, %arg25: memref<2x1x192xf32, #tpu.memory_space<vmem>>, %arg26: memref<2x64x64xbf16, #tpu.memory_space<vmem>>, %arg27: memref<2x1x64xf32, #tpu.memory_space<vmem>>, %arg28: memref<2x1x64xf32, #tpu.memory_space<vmem>>, %arg29: memref<2x1x64xf32, #tpu.memory_space<vmem>>, %arg30: memref<2x64x256xbf16, #tpu.memory_space<vmem>>, %arg31: memref<2x1x256xf32, #tpu.memory_space<vmem>>, %arg32: memref<2x256x64xbf16, #tpu.memory_space<vmem>>, %arg33: memref<2x1x64xf32, #tpu.memory_space<vmem>>, %arg34: memref<1x64xf32, #tpu.memory_space<vmem>>, %arg35: memref<1x64xf32, #tpu.memory_space<vmem>>, %arg36: memref<64x512xbf16, #tpu.memory_space<vmem>>, %arg37: memref<1x512xf32, #tpu.memory_space<vmem>>, %arg38: memref<24x512xf32, #tpu.memory_space<vmem>>, %arg39: memref<24x64xf32, #tpu.memory_space<vmem>>, %arg40: memref<24x64xf32, #tpu.memory_space<vmem>>, %arg41: memref<4x64xf32, #tpu.memory_space<vmem>>, %arg42: memref<20x64xf32, #tpu.memory_space<vmem>>, %arg43: memref<24x64xf32, #tpu.memory_space<vmem>>) attributes {dimension_semantics = [], scalar_prefetch = 0 : i64, scratch_operands = 4 : i64, tpu.core_type = #tpu.core_type<tc>} {
    %c0 = arith.constant 0 : index
    %c0_0 = arith.constant 0 : index
    %0 = vector.load %arg0[%c0, %c0_0] : memref<24x512xf32, #tpu.memory_space<vmem>>, vector<24x512xf32>
    %c0_1 = arith.constant 0 : index
    %c0_2 = arith.constant 0 : index
    %1 = vector.load %arg4[%c0_1, %c0_2] : memref<512x64xbf16, #tpu.memory_space<vmem>>, vector<512x64xbf16>
    %2 = arith.truncf %0 : vector<24x512xf32> to vector<24x512xbf16>
    %cst = arith.constant dense<0.000000e+00> : vector<24x64xf32>
    %3 = tpu.matmul %2, %1, %cst {dimension_numbers = #tpu.dot_dimension_numbers<[1], [0], [0], [1], [0, 0, 1, 1], [], []>} : vector<24x512xbf16>, vector<512x64xbf16>, vector<24x64xf32> -> vector<24x64xf32>
    %c0_3 = arith.constant 0 : index
    %c0_4 = arith.constant 0 : index
    %4 = vector.load %arg5[%c0_3, %c0_4] : memref<1x64xf32, #tpu.memory_space<vmem>>, vector<1x64xf32>
    %5 = vector.broadcast %4 : vector<1x64xf32> to vector<24x64xf32>
    %6 = arith.addf %3, %5 : vector<24x64xf32>
    %c0_5 = arith.constant 0 : index
    %c0_6 = arith.constant 0 : index
    %7 = vector.load %arg2[%c0_5, %c0_6] : memref<24x64xf32, #tpu.memory_space<vmem>>, vector<24x64xf32>
    %8 = arith.addf %6, %7 : vector<24x64xf32>
    %c0_7 = arith.constant 0 : index
    %c0_8 = arith.constant 0 : index
    %9 = vector.load %arg40[%c0_7, %c0_8] : memref<24x64xf32, #tpu.memory_space<vmem>>, vector<24x64xf32>
    tpu.vector_store %arg40[%c0_7, %c0_8], %8 {strides = array<i32>} : memref<24x64xf32, #tpu.memory_space<vmem>>, vector<24x64xf32>,
    %c0_9 = arith.constant 0 : index
    %c0_10 = arith.constant 0 : index
    %10 = vector.load %arg1[%c0_9, %c0_10] : memref<4x256xf32, #tpu.memory_space<vmem>>, vector<4x256xf32>
    %c0_11 = arith.constant 0 : index
    %c0_12 = arith.constant 0 : index
    %11 = vector.load %arg6[%c0_11, %c0_12] : memref<256x64xbf16, #tpu.memory_space<vmem>>, vector<256x64xbf16>
    %12 = arith.truncf %10 : vector<4x256xf32> to vector<4x256xbf16>
    %cst_13 = arith.constant dense<0.000000e+00> : vector<4x64xf32>
    %13 = tpu.matmul %12, %11, %cst_13 {dimension_numbers = #tpu.dot_dimension_numbers<[1], [0], [0], [1], [0, 0, 1, 1], [], []>} : vector<4x256xbf16>, vector<256x64xbf16>, vector<4x64xf32> -> vector<4x64xf32>
    %c0_14 = arith.constant 0 : index
    %c0_15 = arith.constant 0 : index
    %14 = vector.load %arg7[%c0_14, %c0_15] : memref<1x64xf32, #tpu.memory_space<vmem>>, vector<1x64xf32>
    %15 = vector.broadcast %14 : vector<1x64xf32> to vector<4x64xf32>
    %16 = arith.addf %13, %15 : vector<4x64xf32>
    %c0_16 = arith.constant 0 : index
    %c0_17 = arith.constant 0 : index
    %17 = vector.load %arg41[%c0_16, %c0_17] : memref<4x64xf32, #tpu.memory_space<vmem>>, vector<4x64xf32>
    tpu.vector_store %arg41[%c0_16, %c0_17], %16 {strides = array<i32>} : memref<4x64xf32, #tpu.memory_space<vmem>>, vector<4x64xf32>,
    %c0_18 = arith.constant 0 : index
    %c0_19 = arith.constant 0 : index
    %18 = vector.load %arg40[%c0_18, %c0_19] : memref<24x64xf32, #tpu.memory_space<vmem>>, vector<5x64xf32>
    %c0_20 = arith.constant 0 : index
    %c0_21 = arith.constant 0 : index
    %19 = vector.load %arg42[%c0_20, %c0_21] : memref<20x64xf32, #tpu.memory_space<vmem>>, vector<5x64xf32>
    tpu.vector_store %arg42[%c0_20, %c0_21], %18 {strides = array<i32>} : memref<20x64xf32, #tpu.memory_space<vmem>>, vector<5x64xf32>,
    %c7 = arith.constant 7 : index
    %c0_22 = arith.constant 0 : index
    %20 = vector.load %arg40[%c7, %c0_22] : memref<24x64xf32, #tpu.memory_space<vmem>>, vector<5x64xf32>
    %c5 = arith.constant 5 : index
    %c0_23 = arith.constant 0 : index
    %21 = vector.load %arg42[%c5, %c0_23] : memref<20x64xf32, #tpu.memory_space<vmem>>, vector<5x64xf32>
    tpu.vector_store %arg42[%c5, %c0_23], %20 {strides = array<i32>} : memref<20x64xf32, #tpu.memory_space<vmem>>, vector<5x64xf32>,
    %c5_24 = arith.constant 5 : index
    %c0_25 = arith.constant 0 : index
    %22 = vector.load %arg40[%c5_24, %c0_25] : memref<24x64xf32, #tpu.memory_space<vmem>>, vector<2x64xf32>
    %c1 = arith.constant 1 : index
    %c0_26 = arith.constant 0 : index
    %23 = vector.load %arg41[%c1, %c0_26] : memref<4x64xf32, #tpu.memory_space<vmem>>, vector<2x64xf32>
    %24 = arith.addf %22, %23 : vector<2x64xf32>
    %c5_27 = arith.constant 5 : index
    %c0_28 = arith.constant 0 : index
    %25 = vector.load %arg43[%c5_27, %c0_28] : memref<24x64xf32, #tpu.memory_space<vmem>>, vector<2x64xf32>
    tpu.vector_store %arg43[%c5_27, %c0_28], %24 {strides = array<i32>} : memref<24x64xf32, #tpu.memory_space<vmem>>, vector<2x64xf32>,
    %c12 = arith.constant 12 : index
    %c0_29 = arith.constant 0 : index
    %26 = vector.load %arg40[%c12, %c0_29] : memref<24x64xf32, #tpu.memory_space<vmem>>, vector<5x64xf32>
    %c10 = arith.constant 10 : index
    %c0_30 = arith.constant 0 : index
    %27 = vector.load %arg42[%c10, %c0_30] : memref<20x64xf32, #tpu.memory_space<vmem>>, vector<5x64xf32>
    tpu.vector_store %arg42[%c10, %c0_30], %26 {strides = array<i32>} : memref<20x64xf32, #tpu.memory_space<vmem>>, vector<5x64xf32>,
    %c19 = arith.constant 19 : index
    %c0_31 = arith.constant 0 : index
    %28 = vector.load %arg40[%c19, %c0_31] : memref<24x64xf32, #tpu.memory_space<vmem>>, vector<5x64xf32>
    %c15 = arith.constant 15 : index
    %c0_32 = arith.constant 0 : index
    %29 = vector.load %arg42[%c15, %c0_32] : memref<20x64xf32, #tpu.memory_space<vmem>>, vector<5x64xf32>
    tpu.vector_store %arg42[%c15, %c0_32], %28 {strides = array<i32>} : memref<20x64xf32, #tpu.memory_space<vmem>>, vector<5x64xf32>,
    %c17 = arith.constant 17 : index
    %c0_33 = arith.constant 0 : index
    %30 = vector.load %arg40[%c17, %c0_33] : memref<24x64xf32, #tpu.memory_space<vmem>>, vector<2x64xf32>
    %c1_34 = arith.constant 1 : index
    %c0_35 = arith.constant 0 : index
    %31 = vector.load %arg41[%c1_34, %c0_35] : memref<4x64xf32, #tpu.memory_space<vmem>>, vector<2x64xf32>
    %32 = arith.addf %30, %31 : vector<2x64xf32>
    %c17_36 = arith.constant 17 : index
    %c0_37 = arith.constant 0 : index
    %33 = vector.load %arg43[%c17_36, %c0_37] : memref<24x64xf32, #tpu.memory_space<vmem>>, vector<2x64xf32>
    tpu.vector_store %arg43[%c17_36, %c0_37], %32 {strides = array<i32>} : memref<24x64xf32, #tpu.memory_space<vmem>>, vector<2x64xf32>,
    %34 = tpu.iota {dimensions = array<i32: 0>} : vector<20x20xi32>
    %35 = tpu.iota {dimensions = array<i32: 1>} : vector<20x20xi32>
    %c0_i32 = arith.constant 0 : i32
    %36 = vector.broadcast %c0_i32 : i32 to vector<20x20xi32>
    %37 = arith.cmpi sge, %34, %36 : vector<20x20xi32>
    %c10_i32 = arith.constant 10 : i32
    %38 = vector.broadcast %c10_i32 : i32 to vector<20x20xi32>
    %39 = arith.cmpi slt, %34, %38 : vector<20x20xi32>
    %40 = arith.andi %37, %39 : vector<20x20xi1>
    %c0_i32_38 = arith.constant 0 : i32
    %41 = vector.broadcast %c0_i32_38 : i32 to vector<20x20xi32>
    %42 = arith.cmpi sge, %35, %41 : vector<20x20xi32>
    %c10_i32_39 = arith.constant 10 : i32
    %43 = vector.broadcast %c10_i32_39 : i32 to vector<20x20xi32>
    %44 = arith.cmpi slt, %35, %43 : vector<20x20xi32>
    %45 = arith.andi %42, %44 : vector<20x20xi1>
    %46 = arith.andi %40, %45 : vector<20x20xi1>
    %c10_i32_40 = arith.constant 10 : i32
    %47 = vector.broadcast %c10_i32_40 : i32 to vector<20x20xi32>
    %48 = arith.cmpi sge, %34, %47 : vector<20x20xi32>
    %c20_i32 = arith.constant 20 : i32
    %49 = vector.broadcast %c20_i32 : i32 to vector<20x20xi32>
    %50 = arith.cmpi slt, %34, %49 : vector<20x20xi32>
    %51 = arith.andi %48, %50 : vector<20x20xi1>
    %c10_i32_41 = arith.constant 10 : i32
    %52 = vector.broadcast %c10_i32_41 : i32 to vector<20x20xi32>
    %53 = arith.cmpi sge, %35, %52 : vector<20x20xi32>
    %c20_i32_42 = arith.constant 20 : i32
    %54 = vector.broadcast %c20_i32_42 : i32 to vector<20x20xi32>
    %55 = arith.cmpi slt, %35, %54 : vector<20x20xi32>
    %56 = arith.andi %53, %55 : vector<20x20xi1>
    %57 = arith.andi %51, %56 : vector<20x20xi1>
    %58 = arith.ori %46, %57 : vector<20x20xi1>
    %c0_43 = arith.constant 0 : index
    %c0_44 = arith.constant 0 : index
    %59 = vector.load %arg42[%c0_43, %c0_44] : memref<20x64xf32, #tpu.memory_space<vmem>>, vector<20x64xf32>
    %c0_45 = arith.constant 0 : index
    %c0_46 = arith.constant 0 : index
    %c0_47 = arith.constant 0 : index
    %60 = vector.load %arg8[%c0_45, %c0_46, %c0_47] : memref<2x1x64xf32, #tpu.memory_space<vmem>>, vector<1x1x64xf32>
    %61 = vector.shape_cast %60 : vector<1x1x64xf32> to vector<1x64xf32>
    %c0_48 = arith.constant 0 : index
    %c0_49 = arith.constant 0 : index
    %c0_50 = arith.constant 0 : index
    %62 = vector.load %arg9[%c0_48, %c0_49, %c0_50] : memref<2x1x64xf32, #tpu.memory_space<vmem>>, vector<1x1x64xf32>
    %63 = vector.shape_cast %62 : vector<1x1x64xf32> to vector<1x64xf32>
    %cst_51 = arith.constant dense<0.000000e+00> : vector<20xf32>
    %64 = vector.multi_reduction <add>, %59, %cst_51 [1] : vector<20x64xf32> to vector<20xf32>
    %65 = vector.shape_cast %64 : vector<20xf32> to vector<20x1xf32>
    %cst_52 = arith.constant 6.400000e+01 : f32
    %66 = vector.broadcast %cst_52 : f32 to vector<20x1xf32>
    %67 = arith.divf %65, %66 : vector<20x1xf32>
    %68 = vector.broadcast %67 : vector<20x1xf32> to vector<20x64xf32>
    %69 = arith.subf %59, %68 : vector<20x64xf32>
    %70 = arith.mulf %69, %69 : vector<20x64xf32>
    %cst_53 = arith.constant dense<0.000000e+00> : vector<20xf32>
    %71 = vector.multi_reduction <add>, %70, %cst_53 [1] : vector<20x64xf32> to vector<20xf32>
    %72 = vector.shape_cast %71 : vector<20xf32> to vector<20x1xf32>
    %cst_54 = arith.constant 6.400000e+01 : f32
    %73 = vector.broadcast %cst_54 : f32 to vector<20x1xf32>
    %74 = arith.divf %72, %73 : vector<20x1xf32>
    %75 = vector.broadcast %67 : vector<20x1xf32> to vector<20x64xf32>
    %76 = arith.subf %59, %75 : vector<20x64xf32>
    %cst_55 = arith.constant 9.99999997E-7 : f32
    %77 = vector.broadcast %cst_55 : f32 to vector<20x1xf32>
    %78 = arith.addf %74, %77 : vector<20x1xf32>
    %79 = math.rsqrt %78 : vector<20x1xf32>
    %80 = vector.broadcast %79 : vector<20x1xf32> to vector<20x64xf32>
    %81 = arith.mulf %76, %80 : vector<20x64xf32>
    %82 = vector.broadcast %61 : vector<1x64xf32> to vector<20x64xf32>
    %83 = arith.mulf %81, %82 : vector<20x64xf32>
    %84 = vector.broadcast %63 : vector<1x64xf32> to vector<20x64xf32>
    %85 = arith.addf %83, %84 : vector<20x64xf32>
    %86 = arith.truncf %85 : vector<20x64xf32> to vector<20x64xbf16>
    %c0_56 = arith.constant 0 : index
    %c0_57 = arith.constant 0 : index
    %c0_58 = arith.constant 0 : index
    %87 = vector.load %arg10[%c0_56, %c0_57, %c0_58] : memref<2x64x192xbf16, #tpu.memory_space<vmem>>, vector<1x64x192xbf16>
    %88 = vector.shape_cast %87 : vector<1x64x192xbf16> to vector<64x192xbf16>
    %c0_59 = arith.constant 0 : index
    %c0_60 = arith.constant 0 : index
    %c0_61 = arith.constant 0 : index
    %89 = vector.load %arg11[%c0_59, %c0_60, %c0_61] : memref<2x1x192xf32, #tpu.memory_space<vmem>>, vector<1x1x192xf32>
    %90 = vector.shape_cast %89 : vector<1x1x192xf32> to vector<1x192xf32>
    %c0_62 = arith.constant 0 : index
    %c0_63 = arith.constant 0 : index
    %c0_64 = arith.constant 0 : index
    %91 = vector.load %arg12[%c0_62, %c0_63, %c0_64] : memref<2x64x64xbf16, #tpu.memory_space<vmem>>, vector<1x64x64xbf16>
    %92 = vector.shape_cast %91 : vector<1x64x64xbf16> to vector<64x64xbf16>
    %c0_65 = arith.constant 0 : index
    %c0_66 = arith.constant 0 : index
    %c0_67 = arith.constant 0 : index
    %93 = vector.load %arg13[%c0_65, %c0_66, %c0_67] : memref<2x1x64xf32, #tpu.memory_space<vmem>>, vector<1x1x64xf32>
    %94 = vector.shape_cast %93 : vector<1x1x64xf32> to vector<1x64xf32>
    %cst_68 = arith.constant dense<0.000000e+00> : vector<20x192xf32>
    %95 = tpu.matmul %86, %88, %cst_68 {dimension_numbers = #tpu.dot_dimension_numbers<[1], [0], [0], [1], [0, 0, 1, 1], [], []>} : vector<20x64xbf16>, vector<64x192xbf16>, vector<20x192xf32> -> vector<20x192xf32>
    %96 = vector.broadcast %90 : vector<1x192xf32> to vector<20x192xf32>
    %97 = arith.addf %95, %96 : vector<20x192xf32>
    %98 = arith.truncf %97 : vector<20x192xf32> to vector<20x192xbf16>
    %99 = vector.extract_strided_slice %98 {offsets = [0, 0], sizes = [20, 32], strides = [1, 1]} : vector<20x192xbf16> to vector<20x32xbf16>
    %100 = vector.extract_strided_slice %98 {offsets = [0, 64], sizes = [20, 32], strides = [1, 1]} : vector<20x192xbf16> to vector<20x32xbf16>
    %101 = vector.extract_strided_slice %98 {offsets = [0, 128], sizes = [20, 32], strides = [1, 1]} : vector<20x192xbf16> to vector<20x32xbf16>
    %102 = tpu.transpose %100, [1, 0] : vector<20x32xbf16> -> vector<32x20xbf16>
    %cst_69 = arith.constant dense<0.000000e+00> : vector<20x20xf32>
    %103 = tpu.matmul %99, %102, %cst_69 {dimension_numbers = #tpu.dot_dimension_numbers<[1], [0], [0], [1], [0, 0, 1, 1], [], []>} : vector<20x32xbf16>, vector<32x20xbf16>, vector<20x20xf32> -> vector<20x20xf32>
    %cst_70 = arith.constant 0.176776692 : f32
    %104 = vector.broadcast %cst_70 : f32 to vector<20x20xf32>
    %105 = arith.mulf %103, %104 : vector<20x20xf32>
    %cst_71 = arith.constant -1.000000e+30 : f32
    %106 = vector.broadcast %cst_71 : f32 to vector<20x20xf32>
    %107 = arith.select %58, %105, %106 : vector<20x20xi1>, vector<20x20xf32>
    %cst_72 = arith.constant dense<0xFF800000> : vector<20xf32>
    %108 = vector.multi_reduction <maximumf>, %107, %cst_72 [1] : vector<20x20xf32> to vector<20xf32>
    %109 = vector.shape_cast %108 : vector<20xf32> to vector<20x1xf32>
    %110 = vector.broadcast %109 : vector<20x1xf32> to vector<20x20xf32>
    %111 = arith.subf %107, %110 : vector<20x20xf32>
    %112 = math.exp %111 : vector<20x20xf32>
    %cst_73 = arith.constant dense<0.000000e+00> : vector<20xf32>
    %113 = vector.multi_reduction <add>, %112, %cst_73 [1] : vector<20x20xf32> to vector<20xf32>
    %114 = vector.shape_cast %113 : vector<20xf32> to vector<20x1xf32>
    %115 = tpu.reciprocal %114 {approx = true} : vector<20x1xf32> -> vector<20x1xf32>
    %116 = vector.broadcast %115 : vector<20x1xf32> to vector<20x20xf32>
    %117 = arith.mulf %112, %116 : vector<20x20xf32>
    %118 = arith.truncf %117 : vector<20x20xf32> to vector<20x20xbf16>
    %cst_74 = arith.constant dense<0.000000e+00> : vector<20x32xf32>
    %119 = tpu.matmul %118, %101, %cst_74 {dimension_numbers = #tpu.dot_dimension_numbers<[1], [0], [0], [1], [0, 0, 1, 1], [], []>} : vector<20x20xbf16>, vector<20x32xbf16>, vector<20x32xf32> -> vector<20x32xf32>
    %120 = arith.truncf %119 : vector<20x32xf32> to vector<20x32xbf16>
    %121 = vector.extract_strided_slice %92 {offsets = [0, 0], sizes = [32, 64], strides = [1, 1]} : vector<64x64xbf16> to vector<32x64xbf16>
    %cst_75 = arith.constant dense<0.000000e+00> : vector<20x64xf32>
    %122 = tpu.matmul %120, %121, %cst_75 {dimension_numbers = #tpu.dot_dimension_numbers<[1], [0], [0], [1], [0, 0, 1, 1], [], []>} : vector<20x32xbf16>, vector<32x64xbf16>, vector<20x64xf32> -> vector<20x64xf32>
    %123 = vector.extract_strided_slice %98 {offsets = [0, 32], sizes = [20, 32], strides = [1, 1]} : vector<20x192xbf16> to vector<20x32xbf16>
    %124 = vector.extract_strided_slice %98 {offsets = [0, 96], sizes = [20, 32], strides = [1, 1]} : vector<20x192xbf16> to vector<20x32xbf16>
    %125 = vector.extract_strided_slice %98 {offsets = [0, 160], sizes = [20, 32], strides = [1, 1]} : vector<20x192xbf16> to vector<20x32xbf16>
    %126 = tpu.transpose %124, [1, 0] : vector<20x32xbf16> -> vector<32x20xbf16>
    %cst_76 = arith.constant dense<0.000000e+00> : vector<20x20xf32>
    %127 = tpu.matmul %123, %126, %cst_76 {dimension_numbers = #tpu.dot_dimension_numbers<[1], [0], [0], [1], [0, 0, 1, 1], [], []>} : vector<20x32xbf16>, vector<32x20xbf16>, vector<20x20xf32> -> vector<20x20xf32>
    %cst_77 = arith.constant 0.176776692 : f32
    %128 = vector.broadcast %cst_77 : f32 to vector<20x20xf32>
    %129 = arith.mulf %127, %128 : vector<20x20xf32>
    %cst_78 = arith.constant -1.000000e+30 : f32
    %130 = vector.broadcast %cst_78 : f32 to vector<20x20xf32>
    %131 = arith.select %58, %129, %130 : vector<20x20xi1>, vector<20x20xf32>
    %cst_79 = arith.constant dense<0xFF800000> : vector<20xf32>
    %132 = vector.multi_reduction <maximumf>, %131, %cst_79 [1] : vector<20x20xf32> to vector<20xf32>
    %133 = vector.shape_cast %132 : vector<20xf32> to vector<20x1xf32>
    %134 = vector.broadcast %133 : vector<20x1xf32> to vector<20x20xf32>
    %135 = arith.subf %131, %134 : vector<20x20xf32>
    %136 = math.exp %135 : vector<20x20xf32>
    %cst_80 = arith.constant dense<0.000000e+00> : vector<20xf32>
    %137 = vector.multi_reduction <add>, %136, %cst_80 [1] : vector<20x20xf32> to vector<20xf32>
    %138 = vector.shape_cast %137 : vector<20xf32> to vector<20x1xf32>
    %139 = tpu.reciprocal %138 {approx = true} : vector<20x1xf32> -> vector<20x1xf32>
    %140 = vector.broadcast %139 : vector<20x1xf32> to vector<20x20xf32>
    %141 = arith.mulf %136, %140 : vector<20x20xf32>
    %142 = arith.truncf %141 : vector<20x20xf32> to vector<20x20xbf16>
    %cst_81 = arith.constant dense<0.000000e+00> : vector<20x32xf32>
    %143 = tpu.matmul %142, %125, %cst_81 {dimension_numbers = #tpu.dot_dimension_numbers<[1], [0], [0], [1], [0, 0, 1, 1], [], []>} : vector<20x20xbf16>, vector<20x32xbf16>, vector<20x32xf32> -> vector<20x32xf32>
    %144 = arith.truncf %143 : vector<20x32xf32> to vector<20x32xbf16>
    %145 = vector.extract_strided_slice %92 {offsets = [32, 0], sizes = [32, 64], strides = [1, 1]} : vector<64x64xbf16> to vector<32x64xbf16>
    %cst_82 = arith.constant dense<0.000000e+00> : vector<20x64xf32>
    %146 = tpu.matmul %144, %145, %cst_82 {dimension_numbers = #tpu.dot_dimension_numbers<[1], [0], [0], [1], [0, 0, 1, 1], [], []>} : vector<20x32xbf16>, vector<32x64xbf16>, vector<20x64xf32> -> vector<20x64xf32>
    %147 = arith.addf %122, %146 : vector<20x64xf32>
    %148 = vector.broadcast %94 : vector<1x64xf32> to vector<20x64xf32>
    %149 = arith.addf %147, %148 : vector<20x64xf32>
    %150 = arith.addf %59, %149 : vector<20x64xf32>
    %c0_83 = arith.constant 0 : index
    %c0_84 = arith.constant 0 : index
    %c0_85 = arith.constant 0 : index
    %151 = vector.load %arg14[%c0_83, %c0_84, %c0_85] : memref<2x1x64xf32, #tpu.memory_space<vmem>>, vector<1x1x64xf32>
    %152 = vector.shape_cast %151 : vector<1x1x64xf32> to vector<1x64xf32>
    %c0_86 = arith.constant 0 : index
    %c0_87 = arith.constant 0 : index
    %c0_88 = arith.constant 0 : index
    %153 = vector.load %arg15[%c0_86, %c0_87, %c0_88] : memref<2x1x64xf32, #tpu.memory_space<vmem>>, vector<1x1x64xf32>
    %154 = vector.shape_cast %153 : vector<1x1x64xf32> to vector<1x64xf32>
    %cst_89 = arith.constant dense<0.000000e+00> : vector<20xf32>
    %155 = vector.multi_reduction <add>, %150, %cst_89 [1] : vector<20x64xf32> to vector<20xf32>
    %156 = vector.shape_cast %155 : vector<20xf32> to vector<20x1xf32>
    %cst_90 = arith.constant 6.400000e+01 : f32
    %157 = vector.broadcast %cst_90 : f32 to vector<20x1xf32>
    %158 = arith.divf %156, %157 : vector<20x1xf32>
    %159 = vector.broadcast %158 : vector<20x1xf32> to vector<20x64xf32>
    %160 = arith.subf %150, %159 : vector<20x64xf32>
    %161 = arith.mulf %160, %160 : vector<20x64xf32>
    %cst_91 = arith.constant dense<0.000000e+00> : vector<20xf32>
    %162 = vector.multi_reduction <add>, %161, %cst_91 [1] : vector<20x64xf32> to vector<20xf32>
    %163 = vector.shape_cast %162 : vector<20xf32> to vector<20x1xf32>
    %cst_92 = arith.constant 6.400000e+01 : f32
    %164 = vector.broadcast %cst_92 : f32 to vector<20x1xf32>
    %165 = arith.divf %163, %164 : vector<20x1xf32>
    %166 = vector.broadcast %158 : vector<20x1xf32> to vector<20x64xf32>
    %167 = arith.subf %150, %166 : vector<20x64xf32>
    %cst_93 = arith.constant 9.99999997E-7 : f32
    %168 = vector.broadcast %cst_93 : f32 to vector<20x1xf32>
    %169 = arith.addf %165, %168 : vector<20x1xf32>
    %170 = math.rsqrt %169 : vector<20x1xf32>
    %171 = vector.broadcast %170 : vector<20x1xf32> to vector<20x64xf32>
    %172 = arith.mulf %167, %171 : vector<20x64xf32>
    %173 = vector.broadcast %152 : vector<1x64xf32> to vector<20x64xf32>
    %174 = arith.mulf %172, %173 : vector<20x64xf32>
    %175 = vector.broadcast %154 : vector<1x64xf32> to vector<20x64xf32>
    %176 = arith.addf %174, %175 : vector<20x64xf32>
    %177 = arith.truncf %176 : vector<20x64xf32> to vector<20x64xbf16>
    %c0_94 = arith.constant 0 : index
    %c0_95 = arith.constant 0 : index
    %c0_96 = arith.constant 0 : index
    %178 = vector.load %arg16[%c0_94, %c0_95, %c0_96] : memref<2x64x256xbf16, #tpu.memory_space<vmem>>, vector<1x64x256xbf16>
    %179 = vector.shape_cast %178 : vector<1x64x256xbf16> to vector<64x256xbf16>
    %cst_97 = arith.constant dense<0.000000e+00> : vector<20x256xf32>
    %180 = tpu.matmul %177, %179, %cst_97 {dimension_numbers = #tpu.dot_dimension_numbers<[1], [0], [0], [1], [0, 0, 1, 1], [], []>} : vector<20x64xbf16>, vector<64x256xbf16>, vector<20x256xf32> -> vector<20x256xf32>
    %c0_98 = arith.constant 0 : index
    %c0_99 = arith.constant 0 : index
    %c0_100 = arith.constant 0 : index
    %181 = vector.load %arg17[%c0_98, %c0_99, %c0_100] : memref<2x1x256xf32, #tpu.memory_space<vmem>>, vector<1x1x256xf32>
    %182 = vector.shape_cast %181 : vector<1x1x256xf32> to vector<1x256xf32>
    %183 = vector.broadcast %182 : vector<1x256xf32> to vector<20x256xf32>
    %184 = arith.addf %180, %183 : vector<20x256xf32>
    %185 = arith.mulf %184, %184 : vector<20x256xf32>
    %186 = arith.mulf %184, %185 : vector<20x256xf32>
    %cst_101 = arith.constant 4.471500e-02 : f32
    %187 = vector.broadcast %cst_101 : f32 to vector<20x256xf32>
    %188 = arith.mulf %187, %186 : vector<20x256xf32>
    %189 = arith.addf %184, %188 : vector<20x256xf32>
    %cst_102 = arith.constant 0.797884583 : f32
    %190 = vector.broadcast %cst_102 : f32 to vector<20x256xf32>
    %191 = arith.mulf %190, %189 : vector<20x256xf32>
    %192 = math.tanh %191 : vector<20x256xf32>
    %cst_103 = arith.constant 1.000000e+00 : f32
    %193 = vector.broadcast %cst_103 : f32 to vector<20x256xf32>
    %194 = arith.addf %193, %192 : vector<20x256xf32>
    %cst_104 = arith.constant 5.000000e-01 : f32
    %195 = vector.broadcast %cst_104 : f32 to vector<20x256xf32>
    %196 = arith.mulf %195, %194 : vector<20x256xf32>
    %197 = arith.mulf %184, %196 : vector<20x256xf32>
    %198 = arith.truncf %197 : vector<20x256xf32> to vector<20x256xbf16>
    %c0_105 = arith.constant 0 : index
    %c0_106 = arith.constant 0 : index
    %c0_107 = arith.constant 0 : index
    %199 = vector.load %arg18[%c0_105, %c0_106, %c0_107] : memref<2x256x64xbf16, #tpu.memory_space<vmem>>, vector<1x256x64xbf16>
    %200 = vector.shape_cast %199 : vector<1x256x64xbf16> to vector<256x64xbf16>
    %cst_108 = arith.constant dense<0.000000e+00> : vector<20x64xf32>
    %201 = tpu.matmul %198, %200, %cst_108 {dimension_numbers = #tpu.dot_dimension_numbers<[1], [0], [0], [1], [0, 0, 1, 1], [], []>} : vector<20x256xbf16>, vector<256x64xbf16>, vector<20x64xf32> -> vector<20x64xf32>
    %202 = arith.addf %150, %201 : vector<20x64xf32>
    %c0_109 = arith.constant 0 : index
    %c0_110 = arith.constant 0 : index
    %c0_111 = arith.constant 0 : index
    %203 = vector.load %arg19[%c0_109, %c0_110, %c0_111] : memref<2x1x64xf32, #tpu.memory_space<vmem>>, vector<1x1x64xf32>
    %204 = vector.shape_cast %203 : vector<1x1x64xf32> to vector<1x64xf32>
    %205 = vector.broadcast %204 : vector<1x64xf32> to vector<20x64xf32>
    %206 = arith.addf %202, %205 : vector<20x64xf32>
    %c1_112 = arith.constant 1 : index
    %c0_113 = arith.constant 0 : index
    %c0_114 = arith.constant 0 : index
    %207 = vector.load %arg8[%c1_112, %c0_113, %c0_114] : memref<2x1x64xf32, #tpu.memory_space<vmem>>, vector<1x1x64xf32>
    %208 = vector.shape_cast %207 : vector<1x1x64xf32> to vector<1x64xf32>
    %c1_115 = arith.constant 1 : index
    %c0_116 = arith.constant 0 : index
    %c0_117 = arith.constant 0 : index
    %209 = vector.load %arg9[%c1_115, %c0_116, %c0_117] : memref<2x1x64xf32, #tpu.memory_space<vmem>>, vector<1x1x64xf32>
    %210 = vector.shape_cast %209 : vector<1x1x64xf32> to vector<1x64xf32>
    %cst_118 = arith.constant dense<0.000000e+00> : vector<20xf32>
    %211 = vector.multi_reduction <add>, %206, %cst_118 [1] : vector<20x64xf32> to vector<20xf32>
    %212 = vector.shape_cast %211 : vector<20xf32> to vector<20x1xf32>
    %cst_119 = arith.constant 6.400000e+01 : f32
    %213 = vector.broadcast %cst_119 : f32 to vector<20x1xf32>
    %214 = arith.divf %212, %213 : vector<20x1xf32>
    %215 = vector.broadcast %214 : vector<20x1xf32> to vector<20x64xf32>
    %216 = arith.subf %206, %215 : vector<20x64xf32>
    %217 = arith.mulf %216, %216 : vector<20x64xf32>
    %cst_120 = arith.constant dense<0.000000e+00> : vector<20xf32>
    %218 = vector.multi_reduction <add>, %217, %cst_120 [1] : vector<20x64xf32> to vector<20xf32>
    %219 = vector.shape_cast %218 : vector<20xf32> to vector<20x1xf32>
    %cst_121 = arith.constant 6.400000e+01 : f32
    %220 = vector.broadcast %cst_121 : f32 to vector<20x1xf32>
    %221 = arith.divf %219, %220 : vector<20x1xf32>
    %222 = vector.broadcast %214 : vector<20x1xf32> to vector<20x64xf32>
    %223 = arith.subf %206, %222 : vector<20x64xf32>
    %cst_122 = arith.constant 9.99999997E-7 : f32
    %224 = vector.broadcast %cst_122 : f32 to vector<20x1xf32>
    %225 = arith.addf %221, %224 : vector<20x1xf32>
    %226 = math.rsqrt %225 : vector<20x1xf32>
    %227 = vector.broadcast %226 : vector<20x1xf32> to vector<20x64xf32>
    %228 = arith.mulf %223, %227 : vector<20x64xf32>
    %229 = vector.broadcast %208 : vector<1x64xf32> to vector<20x64xf32>
    %230 = arith.mulf %228, %229 : vector<20x64xf32>
    %231 = vector.broadcast %210 : vector<1x64xf32> to vector<20x64xf32>
    %232 = arith.addf %230, %231 : vector<20x64xf32>
    %233 = arith.truncf %232 : vector<20x64xf32> to vector<20x64xbf16>
    %c1_123 = arith.constant 1 : index
    %c0_124 = arith.constant 0 : index
    %c0_125 = arith.constant 0 : index
    %234 = vector.load %arg10[%c1_123, %c0_124, %c0_125] : memref<2x64x192xbf16, #tpu.memory_space<vmem>>, vector<1x64x192xbf16>
    %235 = vector.shape_cast %234 : vector<1x64x192xbf16> to vector<64x192xbf16>
    %c1_126 = arith.constant 1 : index
    %c0_127 = arith.constant 0 : index
    %c0_128 = arith.constant 0 : index
    %236 = vector.load %arg11[%c1_126, %c0_127, %c0_128] : memref<2x1x192xf32, #tpu.memory_space<vmem>>, vector<1x1x192xf32>
    %237 = vector.shape_cast %236 : vector<1x1x192xf32> to vector<1x192xf32>
    %c1_129 = arith.constant 1 : index
    %c0_130 = arith.constant 0 : index
    %c0_131 = arith.constant 0 : index
    %238 = vector.load %arg12[%c1_129, %c0_130, %c0_131] : memref<2x64x64xbf16, #tpu.memory_space<vmem>>, vector<1x64x64xbf16>
    %239 = vector.shape_cast %238 : vector<1x64x64xbf16> to vector<64x64xbf16>
    %c1_132 = arith.constant 1 : index
    %c0_133 = arith.constant 0 : index
    %c0_134 = arith.constant 0 : index
    %240 = vector.load %arg13[%c1_132, %c0_133, %c0_134] : memref<2x1x64xf32, #tpu.memory_space<vmem>>, vector<1x1x64xf32>
    %241 = vector.shape_cast %240 : vector<1x1x64xf32> to vector<1x64xf32>
    %cst_135 = arith.constant dense<0.000000e+00> : vector<20x192xf32>
    %242 = tpu.matmul %233, %235, %cst_135 {dimension_numbers = #tpu.dot_dimension_numbers<[1], [0], [0], [1], [0, 0, 1, 1], [], []>} : vector<20x64xbf16>, vector<64x192xbf16>, vector<20x192xf32> -> vector<20x192xf32>
    %243 = vector.broadcast %237 : vector<1x192xf32> to vector<20x192xf32>
    %244 = arith.addf %242, %243 : vector<20x192xf32>
    %245 = arith.truncf %244 : vector<20x192xf32> to vector<20x192xbf16>
    %246 = vector.extract_strided_slice %245 {offsets = [0, 0], sizes = [20, 32], strides = [1, 1]} : vector<20x192xbf16> to vector<20x32xbf16>
    %247 = vector.extract_strided_slice %245 {offsets = [0, 64], sizes = [20, 32], strides = [1, 1]} : vector<20x192xbf16> to vector<20x32xbf16>
    %248 = vector.extract_strided_slice %245 {offsets = [0, 128], sizes = [20, 32], strides = [1, 1]} : vector<20x192xbf16> to vector<20x32xbf16>
    %249 = tpu.transpose %247, [1, 0] : vector<20x32xbf16> -> vector<32x20xbf16>
    %cst_136 = arith.constant dense<0.000000e+00> : vector<20x20xf32>
    %250 = tpu.matmul %246, %249, %cst_136 {dimension_numbers = #tpu.dot_dimension_numbers<[1], [0], [0], [1], [0, 0, 1, 1], [], []>} : vector<20x32xbf16>, vector<32x20xbf16>, vector<20x20xf32> -> vector<20x20xf32>
    %cst_137 = arith.constant 0.176776692 : f32
    %251 = vector.broadcast %cst_137 : f32 to vector<20x20xf32>
    %252 = arith.mulf %250, %251 : vector<20x20xf32>
    %cst_138 = arith.constant -1.000000e+30 : f32
    %253 = vector.broadcast %cst_138 : f32 to vector<20x20xf32>
    %254 = arith.select %58, %252, %253 : vector<20x20xi1>, vector<20x20xf32>
    %cst_139 = arith.constant dense<0xFF800000> : vector<20xf32>
    %255 = vector.multi_reduction <maximumf>, %254, %cst_139 [1] : vector<20x20xf32> to vector<20xf32>
    %256 = vector.shape_cast %255 : vector<20xf32> to vector<20x1xf32>
    %257 = vector.broadcast %256 : vector<20x1xf32> to vector<20x20xf32>
    %258 = arith.subf %254, %257 : vector<20x20xf32>
    %259 = math.exp %258 : vector<20x20xf32>
    %cst_140 = arith.constant dense<0.000000e+00> : vector<20xf32>
    %260 = vector.multi_reduction <add>, %259, %cst_140 [1] : vector<20x20xf32> to vector<20xf32>
    %261 = vector.shape_cast %260 : vector<20xf32> to vector<20x1xf32>
    %262 = tpu.reciprocal %261 {approx = true} : vector<20x1xf32> -> vector<20x1xf32>
    %263 = vector.broadcast %262 : vector<20x1xf32> to vector<20x20xf32>
    %264 = arith.mulf %259, %263 : vector<20x20xf32>
    %265 = arith.truncf %264 : vector<20x20xf32> to vector<20x20xbf16>
    %cst_141 = arith.constant dense<0.000000e+00> : vector<20x32xf32>
    %266 = tpu.matmul %265, %248, %cst_141 {dimension_numbers = #tpu.dot_dimension_numbers<[1], [0], [0], [1], [0, 0, 1, 1], [], []>} : vector<20x20xbf16>, vector<20x32xbf16>, vector<20x32xf32> -> vector<20x32xf32>
    %267 = arith.truncf %266 : vector<20x32xf32> to vector<20x32xbf16>
    %268 = vector.extract_strided_slice %239 {offsets = [0, 0], sizes = [32, 64], strides = [1, 1]} : vector<64x64xbf16> to vector<32x64xbf16>
    %cst_142 = arith.constant dense<0.000000e+00> : vector<20x64xf32>
    %269 = tpu.matmul %267, %268, %cst_142 {dimension_numbers = #tpu.dot_dimension_numbers<[1], [0], [0], [1], [0, 0, 1, 1], [], []>} : vector<20x32xbf16>, vector<32x64xbf16>, vector<20x64xf32> -> vector<20x64xf32>
    %270 = vector.extract_strided_slice %245 {offsets = [0, 32], sizes = [20, 32], strides = [1, 1]} : vector<20x192xbf16> to vector<20x32xbf16>
    %271 = vector.extract_strided_slice %245 {offsets = [0, 96], sizes = [20, 32], strides = [1, 1]} : vector<20x192xbf16> to vector<20x32xbf16>
    %272 = vector.extract_strided_slice %245 {offsets = [0, 160], sizes = [20, 32], strides = [1, 1]} : vector<20x192xbf16> to vector<20x32xbf16>
    %273 = tpu.transpose %271, [1, 0] : vector<20x32xbf16> -> vector<32x20xbf16>
    %cst_143 = arith.constant dense<0.000000e+00> : vector<20x20xf32>
    %274 = tpu.matmul %270, %273, %cst_143 {dimension_numbers = #tpu.dot_dimension_numbers<[1], [0], [0], [1], [0, 0, 1, 1], [], []>} : vector<20x32xbf16>, vector<32x20xbf16>, vector<20x20xf32> -> vector<20x20xf32>
    %cst_144 = arith.constant 0.176776692 : f32
    %275 = vector.broadcast %cst_144 : f32 to vector<20x20xf32>
    %276 = arith.mulf %274, %275 : vector<20x20xf32>
    %cst_145 = arith.constant -1.000000e+30 : f32
    %277 = vector.broadcast %cst_145 : f32 to vector<20x20xf32>
    %278 = arith.select %58, %276, %277 : vector<20x20xi1>, vector<20x20xf32>
    %cst_146 = arith.constant dense<0xFF800000> : vector<20xf32>
    %279 = vector.multi_reduction <maximumf>, %278, %cst_146 [1] : vector<20x20xf32> to vector<20xf32>
    %280 = vector.shape_cast %279 : vector<20xf32> to vector<20x1xf32>
    %281 = vector.broadcast %280 : vector<20x1xf32> to vector<20x20xf32>
    %282 = arith.subf %278, %281 : vector<20x20xf32>
    %283 = math.exp %282 : vector<20x20xf32>
    %cst_147 = arith.constant dense<0.000000e+00> : vector<20xf32>
    %284 = vector.multi_reduction <add>, %283, %cst_147 [1] : vector<20x20xf32> to vector<20xf32>
    %285 = vector.shape_cast %284 : vector<20xf32> to vector<20x1xf32>
    %286 = tpu.reciprocal %285 {approx = true} : vector<20x1xf32> -> vector<20x1xf32>
    %287 = vector.broadcast %286 : vector<20x1xf32> to vector<20x20xf32>
    %288 = arith.mulf %283, %287 : vector<20x20xf32>
    %289 = arith.truncf %288 : vector<20x20xf32> to vector<20x20xbf16>
    %cst_148 = arith.constant dense<0.000000e+00> : vector<20x32xf32>
    %290 = tpu.matmul %289, %272, %cst_148 {dimension_numbers = #tpu.dot_dimension_numbers<[1], [0], [0], [1], [0, 0, 1, 1], [], []>} : vector<20x20xbf16>, vector<20x32xbf16>, vector<20x32xf32> -> vector<20x32xf32>
    %291 = arith.truncf %290 : vector<20x32xf32> to vector<20x32xbf16>
    %292 = vector.extract_strided_slice %239 {offsets = [32, 0], sizes = [32, 64], strides = [1, 1]} : vector<64x64xbf16> to vector<32x64xbf16>
    %cst_149 = arith.constant dense<0.000000e+00> : vector<20x64xf32>
    %293 = tpu.matmul %291, %292, %cst_149 {dimension_numbers = #tpu.dot_dimension_numbers<[1], [0], [0], [1], [0, 0, 1, 1], [], []>} : vector<20x32xbf16>, vector<32x64xbf16>, vector<20x64xf32> -> vector<20x64xf32>
    %294 = arith.addf %269, %293 : vector<20x64xf32>
    %295 = vector.broadcast %241 : vector<1x64xf32> to vector<20x64xf32>
    %296 = arith.addf %294, %295 : vector<20x64xf32>
    %297 = arith.addf %206, %296 : vector<20x64xf32>
    %c1_150 = arith.constant 1 : index
    %c0_151 = arith.constant 0 : index
    %c0_152 = arith.constant 0 : index
    %298 = vector.load %arg14[%c1_150, %c0_151, %c0_152] : memref<2x1x64xf32, #tpu.memory_space<vmem>>, vector<1x1x64xf32>
    %299 = vector.shape_cast %298 : vector<1x1x64xf32> to vector<1x64xf32>
    %c1_153 = arith.constant 1 : index
    %c0_154 = arith.constant 0 : index
    %c0_155 = arith.constant 0 : index
    %300 = vector.load %arg15[%c1_153, %c0_154, %c0_155] : memref<2x1x64xf32, #tpu.memory_space<vmem>>, vector<1x1x64xf32>
    %301 = vector.shape_cast %300 : vector<1x1x64xf32> to vector<1x64xf32>
    %cst_156 = arith.constant dense<0.000000e+00> : vector<20xf32>
    %302 = vector.multi_reduction <add>, %297, %cst_156 [1] : vector<20x64xf32> to vector<20xf32>
    %303 = vector.shape_cast %302 : vector<20xf32> to vector<20x1xf32>
    %cst_157 = arith.constant 6.400000e+01 : f32
    %304 = vector.broadcast %cst_157 : f32 to vector<20x1xf32>
    %305 = arith.divf %303, %304 : vector<20x1xf32>
    %306 = vector.broadcast %305 : vector<20x1xf32> to vector<20x64xf32>
    %307 = arith.subf %297, %306 : vector<20x64xf32>
    %308 = arith.mulf %307, %307 : vector<20x64xf32>
    %cst_158 = arith.constant dense<0.000000e+00> : vector<20xf32>
    %309 = vector.multi_reduction <add>, %308, %cst_158 [1] : vector<20x64xf32> to vector<20xf32>
    %310 = vector.shape_cast %309 : vector<20xf32> to vector<20x1xf32>
    %cst_159 = arith.constant 6.400000e+01 : f32
    %311 = vector.broadcast %cst_159 : f32 to vector<20x1xf32>
    %312 = arith.divf %310, %311 : vector<20x1xf32>
    %313 = vector.broadcast %305 : vector<20x1xf32> to vector<20x64xf32>
    %314 = arith.subf %297, %313 : vector<20x64xf32>
    %cst_160 = arith.constant 9.99999997E-7 : f32
    %315 = vector.broadcast %cst_160 : f32 to vector<20x1xf32>
    %316 = arith.addf %312, %315 : vector<20x1xf32>
    %317 = math.rsqrt %316 : vector<20x1xf32>
    %318 = vector.broadcast %317 : vector<20x1xf32> to vector<20x64xf32>
    %319 = arith.mulf %314, %318 : vector<20x64xf32>
    %320 = vector.broadcast %299 : vector<1x64xf32> to vector<20x64xf32>
    %321 = arith.mulf %319, %320 : vector<20x64xf32>
    %322 = vector.broadcast %301 : vector<1x64xf32> to vector<20x64xf32>
    %323 = arith.addf %321, %322 : vector<20x64xf32>
    %324 = arith.truncf %323 : vector<20x64xf32> to vector<20x64xbf16>
    %c1_161 = arith.constant 1 : index
    %c0_162 = arith.constant 0 : index
    %c0_163 = arith.constant 0 : index
    %325 = vector.load %arg16[%c1_161, %c0_162, %c0_163] : memref<2x64x256xbf16, #tpu.memory_space<vmem>>, vector<1x64x256xbf16>
    %326 = vector.shape_cast %325 : vector<1x64x256xbf16> to vector<64x256xbf16>
    %cst_164 = arith.constant dense<0.000000e+00> : vector<20x256xf32>
    %327 = tpu.matmul %324, %326, %cst_164 {dimension_numbers = #tpu.dot_dimension_numbers<[1], [0], [0], [1], [0, 0, 1, 1], [], []>} : vector<20x64xbf16>, vector<64x256xbf16>, vector<20x256xf32> -> vector<20x256xf32>
    %c1_165 = arith.constant 1 : index
    %c0_166 = arith.constant 0 : index
    %c0_167 = arith.constant 0 : index
    %328 = vector.load %arg17[%c1_165, %c0_166, %c0_167] : memref<2x1x256xf32, #tpu.memory_space<vmem>>, vector<1x1x256xf32>
    %329 = vector.shape_cast %328 : vector<1x1x256xf32> to vector<1x256xf32>
    %330 = vector.broadcast %329 : vector<1x256xf32> to vector<20x256xf32>
    %331 = arith.addf %327, %330 : vector<20x256xf32>
    %332 = arith.mulf %331, %331 : vector<20x256xf32>
    %333 = arith.mulf %331, %332 : vector<20x256xf32>
    %cst_168 = arith.constant 4.471500e-02 : f32
    %334 = vector.broadcast %cst_168 : f32 to vector<20x256xf32>
    %335 = arith.mulf %334, %333 : vector<20x256xf32>
    %336 = arith.addf %331, %335 : vector<20x256xf32>
    %cst_169 = arith.constant 0.797884583 : f32
    %337 = vector.broadcast %cst_169 : f32 to vector<20x256xf32>
    %338 = arith.mulf %337, %336 : vector<20x256xf32>
    %339 = math.tanh %338 : vector<20x256xf32>
    %cst_170 = arith.constant 1.000000e+00 : f32
    %340 = vector.broadcast %cst_170 : f32 to vector<20x256xf32>
    %341 = arith.addf %340, %339 : vector<20x256xf32>
    %cst_171 = arith.constant 5.000000e-01 : f32
    %342 = vector.broadcast %cst_171 : f32 to vector<20x256xf32>
    %343 = arith.mulf %342, %341 : vector<20x256xf32>
    %344 = arith.mulf %331, %343 : vector<20x256xf32>
    %345 = arith.truncf %344 : vector<20x256xf32> to vector<20x256xbf16>
    %c1_172 = arith.constant 1 : index
    %c0_173 = arith.constant 0 : index
    %c0_174 = arith.constant 0 : index
    %346 = vector.load %arg18[%c1_172, %c0_173, %c0_174] : memref<2x256x64xbf16, #tpu.memory_space<vmem>>, vector<1x256x64xbf16>
    %347 = vector.shape_cast %346 : vector<1x256x64xbf16> to vector<256x64xbf16>
    %cst_175 = arith.constant dense<0.000000e+00> : vector<20x64xf32>
    %348 = tpu.matmul %345, %347, %cst_175 {dimension_numbers = #tpu.dot_dimension_numbers<[1], [0], [0], [1], [0, 0, 1, 1], [], []>} : vector<20x256xbf16>, vector<256x64xbf16>, vector<20x64xf32> -> vector<20x64xf32>
    %349 = arith.addf %297, %348 : vector<20x64xf32>
    %c1_176 = arith.constant 1 : index
    %c0_177 = arith.constant 0 : index
    %c0_178 = arith.constant 0 : index
    %350 = vector.load %arg19[%c1_176, %c0_177, %c0_178] : memref<2x1x64xf32, #tpu.memory_space<vmem>>, vector<1x1x64xf32>
    %351 = vector.shape_cast %350 : vector<1x1x64xf32> to vector<1x64xf32>
    %352 = vector.broadcast %351 : vector<1x64xf32> to vector<20x64xf32>
    %353 = arith.addf %349, %352 : vector<20x64xf32>
    %c0_179 = arith.constant 0 : index
    %c0_180 = arith.constant 0 : index
    %354 = vector.load %arg20[%c0_179, %c0_180] : memref<1x64xf32, #tpu.memory_space<vmem>>, vector<1x64xf32>
    %c0_181 = arith.constant 0 : index
    %c0_182 = arith.constant 0 : index
    %355 = vector.load %arg21[%c0_181, %c0_182] : memref<1x64xf32, #tpu.memory_space<vmem>>, vector<1x64xf32>
    %cst_183 = arith.constant dense<0.000000e+00> : vector<20xf32>
    %356 = vector.multi_reduction <add>, %353, %cst_183 [1] : vector<20x64xf32> to vector<20xf32>
    %357 = vector.shape_cast %356 : vector<20xf32> to vector<20x1xf32>
    %cst_184 = arith.constant 6.400000e+01 : f32
    %358 = vector.broadcast %cst_184 : f32 to vector<20x1xf32>
    %359 = arith.divf %357, %358 : vector<20x1xf32>
    %360 = vector.broadcast %359 : vector<20x1xf32> to vector<20x64xf32>
    %361 = arith.subf %353, %360 : vector<20x64xf32>
    %362 = arith.mulf %361, %361 : vector<20x64xf32>
    %cst_185 = arith.constant dense<0.000000e+00> : vector<20xf32>
    %363 = vector.multi_reduction <add>, %362, %cst_185 [1] : vector<20x64xf32> to vector<20xf32>
    %364 = vector.shape_cast %363 : vector<20xf32> to vector<20x1xf32>
    %cst_186 = arith.constant 6.400000e+01 : f32
    %365 = vector.broadcast %cst_186 : f32 to vector<20x1xf32>
    %366 = arith.divf %364, %365 : vector<20x1xf32>
    %367 = vector.broadcast %359 : vector<20x1xf32> to vector<20x64xf32>
    %368 = arith.subf %353, %367 : vector<20x64xf32>
    %cst_187 = arith.constant 9.99999997E-7 : f32
    %369 = vector.broadcast %cst_187 : f32 to vector<20x1xf32>
    %370 = arith.addf %366, %369 : vector<20x1xf32>
    %371 = math.rsqrt %370 : vector<20x1xf32>
    %372 = vector.broadcast %371 : vector<20x1xf32> to vector<20x64xf32>
    %373 = arith.mulf %368, %372 : vector<20x64xf32>
    %374 = vector.broadcast %354 : vector<1x64xf32> to vector<20x64xf32>
    %375 = arith.mulf %373, %374 : vector<20x64xf32>
    %376 = vector.broadcast %355 : vector<1x64xf32> to vector<20x64xf32>
    %377 = arith.addf %375, %376 : vector<20x64xf32>
    %c0_188 = arith.constant 0 : index
    %c0_189 = arith.constant 0 : index
    %378 = vector.load %arg42[%c0_188, %c0_189] : memref<20x64xf32, #tpu.memory_space<vmem>>, vector<20x64xf32>
    tpu.vector_store %arg42[%c0_188, %c0_189], %377 {strides = array<i32>} : memref<20x64xf32, #tpu.memory_space<vmem>>, vector<20x64xf32>,
    %c0_190 = arith.constant 0 : index
    %c0_191 = arith.constant 0 : index
    %379 = vector.load %arg42[%c0_190, %c0_191] : memref<20x64xf32, #tpu.memory_space<vmem>>, vector<5x64xf32>
    %c0_192 = arith.constant 0 : index
    %c0_193 = arith.constant 0 : index
    %380 = vector.load %arg43[%c0_192, %c0_193] : memref<24x64xf32, #tpu.memory_space<vmem>>, vector<5x64xf32>
    tpu.vector_store %arg43[%c0_192, %c0_193], %379 {strides = array<i32>} : memref<24x64xf32, #tpu.memory_space<vmem>>, vector<5x64xf32>,
    %c5_194 = arith.constant 5 : index
    %c0_195 = arith.constant 0 : index
    %381 = vector.load %arg42[%c5_194, %c0_195] : memref<20x64xf32, #tpu.memory_space<vmem>>, vector<5x64xf32>
    %c7_196 = arith.constant 7 : index
    %c0_197 = arith.constant 0 : index
    %382 = vector.load %arg43[%c7_196, %c0_197] : memref<24x64xf32, #tpu.memory_space<vmem>>, vector<5x64xf32>
    tpu.vector_store %arg43[%c7_196, %c0_197], %381 {strides = array<i32>} : memref<24x64xf32, #tpu.memory_space<vmem>>, vector<5x64xf32>,
    %c10_198 = arith.constant 10 : index
    %c0_199 = arith.constant 0 : index
    %383 = vector.load %arg42[%c10_198, %c0_199] : memref<20x64xf32, #tpu.memory_space<vmem>>, vector<5x64xf32>
    %c12_200 = arith.constant 12 : index
    %c0_201 = arith.constant 0 : index
    %384 = vector.load %arg43[%c12_200, %c0_201] : memref<24x64xf32, #tpu.memory_space<vmem>>, vector<5x64xf32>
    tpu.vector_store %arg43[%c12_200, %c0_201], %383 {strides = array<i32>} : memref<24x64xf32, #tpu.memory_space<vmem>>, vector<5x64xf32>,
    %c15_202 = arith.constant 15 : index
    %c0_203 = arith.constant 0 : index
    %385 = vector.load %arg42[%c15_202, %c0_203] : memref<20x64xf32, #tpu.memory_space<vmem>>, vector<5x64xf32>
    %c19_204 = arith.constant 19 : index
    %c0_205 = arith.constant 0 : index
    %386 = vector.load %arg43[%c19_204, %c0_205] : memref<24x64xf32, #tpu.memory_space<vmem>>, vector<5x64xf32>
    tpu.vector_store %arg43[%c19_204, %c0_205], %385 {strides = array<i32>} : memref<24x64xf32, #tpu.memory_space<vmem>>, vector<5x64xf32>,
    %387 = tpu.iota {dimensions = array<i32: 0>} : vector<24x24xi32>
    %388 = tpu.iota {dimensions = array<i32: 1>} : vector<24x24xi32>
    %c0_i32_206 = arith.constant 0 : i32
    %389 = vector.broadcast %c0_i32_206 : i32 to vector<24x24xi32>
    %390 = arith.cmpi sge, %387, %389 : vector<24x24xi32>
    %c12_i32 = arith.constant 12 : i32
    %391 = vector.broadcast %c12_i32 : i32 to vector<24x24xi32>
    %392 = arith.cmpi slt, %387, %391 : vector<24x24xi32>
    %393 = arith.andi %390, %392 : vector<24x24xi1>
    %c0_i32_207 = arith.constant 0 : i32
    %394 = vector.broadcast %c0_i32_207 : i32 to vector<24x24xi32>
    %395 = arith.cmpi sge, %388, %394 : vector<24x24xi32>
    %c12_i32_208 = arith.constant 12 : i32
    %396 = vector.broadcast %c12_i32_208 : i32 to vector<24x24xi32>
    %397 = arith.cmpi slt, %388, %396 : vector<24x24xi32>
    %398 = arith.andi %395, %397 : vector<24x24xi1>
    %399 = arith.andi %393, %398 : vector<24x24xi1>
    %c12_i32_209 = arith.constant 12 : i32
    %400 = vector.broadcast %c12_i32_209 : i32 to vector<24x24xi32>
    %401 = arith.cmpi sge, %387, %400 : vector<24x24xi32>
    %c24_i32 = arith.constant 24 : i32
    %402 = vector.broadcast %c24_i32 : i32 to vector<24x24xi32>
    %403 = arith.cmpi slt, %387, %402 : vector<24x24xi32>
    %404 = arith.andi %401, %403 : vector<24x24xi1>
    %c12_i32_210 = arith.constant 12 : i32
    %405 = vector.broadcast %c12_i32_210 : i32 to vector<24x24xi32>
    %406 = arith.cmpi sge, %388, %405 : vector<24x24xi32>
    %c24_i32_211 = arith.constant 24 : i32
    %407 = vector.broadcast %c24_i32_211 : i32 to vector<24x24xi32>
    %408 = arith.cmpi slt, %388, %407 : vector<24x24xi32>
    %409 = arith.andi %406, %408 : vector<24x24xi1>
    %410 = arith.andi %404, %409 : vector<24x24xi1>
    %411 = arith.ori %399, %410 : vector<24x24xi1>
    %c0_212 = arith.constant 0 : index
    %c0_213 = arith.constant 0 : index
    %412 = vector.load %arg43[%c0_212, %c0_213] : memref<24x64xf32, #tpu.memory_space<vmem>>, vector<24x64xf32>
    %c0_214 = arith.constant 0 : index
    %c0_215 = arith.constant 0 : index
    %413 = vector.load %arg3[%c0_214, %c0_215] : memref<24x64xf32, #tpu.memory_space<vmem>>, vector<24x64xf32>
    %414 = arith.addf %412, %413 : vector<24x64xf32>
    %c0_216 = arith.constant 0 : index
    %c0_217 = arith.constant 0 : index
    %c0_218 = arith.constant 0 : index
    %415 = vector.load %arg22[%c0_216, %c0_217, %c0_218] : memref<2x1x64xf32, #tpu.memory_space<vmem>>, vector<1x1x64xf32>
    %416 = vector.shape_cast %415 : vector<1x1x64xf32> to vector<1x64xf32>
    %c0_219 = arith.constant 0 : index
    %c0_220 = arith.constant 0 : index
    %c0_221 = arith.constant 0 : index
    %417 = vector.load %arg23[%c0_219, %c0_220, %c0_221] : memref<2x1x64xf32, #tpu.memory_space<vmem>>, vector<1x1x64xf32>
    %418 = vector.shape_cast %417 : vector<1x1x64xf32> to vector<1x64xf32>
    %cst_222 = arith.constant dense<0.000000e+00> : vector<24xf32>
    %419 = vector.multi_reduction <add>, %414, %cst_222 [1] : vector<24x64xf32> to vector<24xf32>
    %420 = vector.shape_cast %419 : vector<24xf32> to vector<24x1xf32>
    %cst_223 = arith.constant 6.400000e+01 : f32
    %421 = vector.broadcast %cst_223 : f32 to vector<24x1xf32>
    %422 = arith.divf %420, %421 : vector<24x1xf32>
    %423 = vector.broadcast %422 : vector<24x1xf32> to vector<24x64xf32>
    %424 = arith.subf %414, %423 : vector<24x64xf32>
    %425 = arith.mulf %424, %424 : vector<24x64xf32>
    %cst_224 = arith.constant dense<0.000000e+00> : vector<24xf32>
    %426 = vector.multi_reduction <add>, %425, %cst_224 [1] : vector<24x64xf32> to vector<24xf32>
    %427 = vector.shape_cast %426 : vector<24xf32> to vector<24x1xf32>
    %cst_225 = arith.constant 6.400000e+01 : f32
    %428 = vector.broadcast %cst_225 : f32 to vector<24x1xf32>
    %429 = arith.divf %427, %428 : vector<24x1xf32>
    %430 = vector.broadcast %422 : vector<24x1xf32> to vector<24x64xf32>
    %431 = arith.subf %414, %430 : vector<24x64xf32>
    %cst_226 = arith.constant 9.99999997E-7 : f32
    %432 = vector.broadcast %cst_226 : f32 to vector<24x1xf32>
    %433 = arith.addf %429, %432 : vector<24x1xf32>
    %434 = math.rsqrt %433 : vector<24x1xf32>
    %435 = vector.broadcast %434 : vector<24x1xf32> to vector<24x64xf32>
    %436 = arith.mulf %431, %435 : vector<24x64xf32>
    %437 = vector.broadcast %416 : vector<1x64xf32> to vector<24x64xf32>
    %438 = arith.mulf %436, %437 : vector<24x64xf32>
    %439 = vector.broadcast %418 : vector<1x64xf32> to vector<24x64xf32>
    %440 = arith.addf %438, %439 : vector<24x64xf32>
    %441 = arith.truncf %440 : vector<24x64xf32> to vector<24x64xbf16>
    %c0_227 = arith.constant 0 : index
    %c0_228 = arith.constant 0 : index
    %c0_229 = arith.constant 0 : index
    %442 = vector.load %arg24[%c0_227, %c0_228, %c0_229] : memref<2x64x192xbf16, #tpu.memory_space<vmem>>, vector<1x64x192xbf16>
    %443 = vector.shape_cast %442 : vector<1x64x192xbf16> to vector<64x192xbf16>
    %c0_230 = arith.constant 0 : index
    %c0_231 = arith.constant 0 : index
    %c0_232 = arith.constant 0 : index
    %444 = vector.load %arg25[%c0_230, %c0_231, %c0_232] : memref<2x1x192xf32, #tpu.memory_space<vmem>>, vector<1x1x192xf32>
    %445 = vector.shape_cast %444 : vector<1x1x192xf32> to vector<1x192xf32>
    %c0_233 = arith.constant 0 : index
    %c0_234 = arith.constant 0 : index
    %c0_235 = arith.constant 0 : index
    %446 = vector.load %arg26[%c0_233, %c0_234, %c0_235] : memref<2x64x64xbf16, #tpu.memory_space<vmem>>, vector<1x64x64xbf16>
    %447 = vector.shape_cast %446 : vector<1x64x64xbf16> to vector<64x64xbf16>
    %c0_236 = arith.constant 0 : index
    %c0_237 = arith.constant 0 : index
    %c0_238 = arith.constant 0 : index
    %448 = vector.load %arg27[%c0_236, %c0_237, %c0_238] : memref<2x1x64xf32, #tpu.memory_space<vmem>>, vector<1x1x64xf32>
    %449 = vector.shape_cast %448 : vector<1x1x64xf32> to vector<1x64xf32>
    %cst_239 = arith.constant dense<0.000000e+00> : vector<24x192xf32>
    %450 = tpu.matmul %441, %443, %cst_239 {dimension_numbers = #tpu.dot_dimension_numbers<[1], [0], [0], [1], [0, 0, 1, 1], [], []>} : vector<24x64xbf16>, vector<64x192xbf16>, vector<24x192xf32> -> vector<24x192xf32>
    %451 = vector.broadcast %445 : vector<1x192xf32> to vector<24x192xf32>
    %452 = arith.addf %450, %451 : vector<24x192xf32>
    %453 = arith.truncf %452 : vector<24x192xf32> to vector<24x192xbf16>
    %454 = vector.extract_strided_slice %453 {offsets = [0, 0], sizes = [24, 32], strides = [1, 1]} : vector<24x192xbf16> to vector<24x32xbf16>
    %455 = vector.extract_strided_slice %453 {offsets = [0, 64], sizes = [24, 32], strides = [1, 1]} : vector<24x192xbf16> to vector<24x32xbf16>
    %456 = vector.extract_strided_slice %453 {offsets = [0, 128], sizes = [24, 32], strides = [1, 1]} : vector<24x192xbf16> to vector<24x32xbf16>
    %457 = tpu.transpose %455, [1, 0] : vector<24x32xbf16> -> vector<32x24xbf16>
    %cst_240 = arith.constant dense<0.000000e+00> : vector<24x24xf32>
    %458 = tpu.matmul %454, %457, %cst_240 {dimension_numbers = #tpu.dot_dimension_numbers<[1], [0], [0], [1], [0, 0, 1, 1], [], []>} : vector<24x32xbf16>, vector<32x24xbf16>, vector<24x24xf32> -> vector<24x24xf32>
    %cst_241 = arith.constant 0.176776692 : f32
    %459 = vector.broadcast %cst_241 : f32 to vector<24x24xf32>
    %460 = arith.mulf %458, %459 : vector<24x24xf32>
    %cst_242 = arith.constant -1.000000e+30 : f32
    %461 = vector.broadcast %cst_242 : f32 to vector<24x24xf32>
    %462 = arith.select %411, %460, %461 : vector<24x24xi1>, vector<24x24xf32>
    %cst_243 = arith.constant dense<0xFF800000> : vector<24xf32>
    %463 = vector.multi_reduction <maximumf>, %462, %cst_243 [1] : vector<24x24xf32> to vector<24xf32>
    %464 = vector.shape_cast %463 : vector<24xf32> to vector<24x1xf32>
    %465 = vector.broadcast %464 : vector<24x1xf32> to vector<24x24xf32>
    %466 = arith.subf %462, %465 : vector<24x24xf32>
    %467 = math.exp %466 : vector<24x24xf32>
    %cst_244 = arith.constant dense<0.000000e+00> : vector<24xf32>
    %468 = vector.multi_reduction <add>, %467, %cst_244 [1] : vector<24x24xf32> to vector<24xf32>
    %469 = vector.shape_cast %468 : vector<24xf32> to vector<24x1xf32>
    %470 = tpu.reciprocal %469 {approx = true} : vector<24x1xf32> -> vector<24x1xf32>
    %471 = vector.broadcast %470 : vector<24x1xf32> to vector<24x24xf32>
    %472 = arith.mulf %467, %471 : vector<24x24xf32>
    %473 = arith.truncf %472 : vector<24x24xf32> to vector<24x24xbf16>
    %cst_245 = arith.constant dense<0.000000e+00> : vector<24x32xf32>
    %474 = tpu.matmul %473, %456, %cst_245 {dimension_numbers = #tpu.dot_dimension_numbers<[1], [0], [0], [1], [0, 0, 1, 1], [], []>} : vector<24x24xbf16>, vector<24x32xbf16>, vector<24x32xf32> -> vector<24x32xf32>
    %475 = arith.truncf %474 : vector<24x32xf32> to vector<24x32xbf16>
    %476 = vector.extract_strided_slice %447 {offsets = [0, 0], sizes = [32, 64], strides = [1, 1]} : vector<64x64xbf16> to vector<32x64xbf16>
    %cst_246 = arith.constant dense<0.000000e+00> : vector<24x64xf32>
    %477 = tpu.matmul %475, %476, %cst_246 {dimension_numbers = #tpu.dot_dimension_numbers<[1], [0], [0], [1], [0, 0, 1, 1], [], []>} : vector<24x32xbf16>, vector<32x64xbf16>, vector<24x64xf32> -> vector<24x64xf32>
    %478 = vector.extract_strided_slice %453 {offsets = [0, 32], sizes = [24, 32], strides = [1, 1]} : vector<24x192xbf16> to vector<24x32xbf16>
    %479 = vector.extract_strided_slice %453 {offsets = [0, 96], sizes = [24, 32], strides = [1, 1]} : vector<24x192xbf16> to vector<24x32xbf16>
    %480 = vector.extract_strided_slice %453 {offsets = [0, 160], sizes = [24, 32], strides = [1, 1]} : vector<24x192xbf16> to vector<24x32xbf16>
    %481 = tpu.transpose %479, [1, 0] : vector<24x32xbf16> -> vector<32x24xbf16>
    %cst_247 = arith.constant dense<0.000000e+00> : vector<24x24xf32>
    %482 = tpu.matmul %478, %481, %cst_247 {dimension_numbers = #tpu.dot_dimension_numbers<[1], [0], [0], [1], [0, 0, 1, 1], [], []>} : vector<24x32xbf16>, vector<32x24xbf16>, vector<24x24xf32> -> vector<24x24xf32>
    %cst_248 = arith.constant 0.176776692 : f32
    %483 = vector.broadcast %cst_248 : f32 to vector<24x24xf32>
    %484 = arith.mulf %482, %483 : vector<24x24xf32>
    %cst_249 = arith.constant -1.000000e+30 : f32
    %485 = vector.broadcast %cst_249 : f32 to vector<24x24xf32>
    %486 = arith.select %411, %484, %485 : vector<24x24xi1>, vector<24x24xf32>
    %cst_250 = arith.constant dense<0xFF800000> : vector<24xf32>
    %487 = vector.multi_reduction <maximumf>, %486, %cst_250 [1] : vector<24x24xf32> to vector<24xf32>
    %488 = vector.shape_cast %487 : vector<24xf32> to vector<24x1xf32>
    %489 = vector.broadcast %488 : vector<24x1xf32> to vector<24x24xf32>
    %490 = arith.subf %486, %489 : vector<24x24xf32>
    %491 = math.exp %490 : vector<24x24xf32>
    %cst_251 = arith.constant dense<0.000000e+00> : vector<24xf32>
    %492 = vector.multi_reduction <add>, %491, %cst_251 [1] : vector<24x24xf32> to vector<24xf32>
    %493 = vector.shape_cast %492 : vector<24xf32> to vector<24x1xf32>
    %494 = tpu.reciprocal %493 {approx = true} : vector<24x1xf32> -> vector<24x1xf32>
    %495 = vector.broadcast %494 : vector<24x1xf32> to vector<24x24xf32>
    %496 = arith.mulf %491, %495 : vector<24x24xf32>
    %497 = arith.truncf %496 : vector<24x24xf32> to vector<24x24xbf16>
    %cst_252 = arith.constant dense<0.000000e+00> : vector<24x32xf32>
    %498 = tpu.matmul %497, %480, %cst_252 {dimension_numbers = #tpu.dot_dimension_numbers<[1], [0], [0], [1], [0, 0, 1, 1], [], []>} : vector<24x24xbf16>, vector<24x32xbf16>, vector<24x32xf32> -> vector<24x32xf32>
    %499 = arith.truncf %498 : vector<24x32xf32> to vector<24x32xbf16>
    %500 = vector.extract_strided_slice %447 {offsets = [32, 0], sizes = [32, 64], strides = [1, 1]} : vector<64x64xbf16> to vector<32x64xbf16>
    %cst_253 = arith.constant dense<0.000000e+00> : vector<24x64xf32>
    %501 = tpu.matmul %499, %500, %cst_253 {dimension_numbers = #tpu.dot_dimension_numbers<[1], [0], [0], [1], [0, 0, 1, 1], [], []>} : vector<24x32xbf16>, vector<32x64xbf16>, vector<24x64xf32> -> vector<24x64xf32>
    %502 = arith.addf %477, %501 : vector<24x64xf32>
    %503 = vector.broadcast %449 : vector<1x64xf32> to vector<24x64xf32>
    %504 = arith.addf %502, %503 : vector<24x64xf32>
    %505 = arith.addf %414, %504 : vector<24x64xf32>
    %c0_254 = arith.constant 0 : index
    %c0_255 = arith.constant 0 : index
    %c0_256 = arith.constant 0 : index
    %506 = vector.load %arg28[%c0_254, %c0_255, %c0_256] : memref<2x1x64xf32, #tpu.memory_space<vmem>>, vector<1x1x64xf32>
    %507 = vector.shape_cast %506 : vector<1x1x64xf32> to vector<1x64xf32>
    %c0_257 = arith.constant 0 : index
    %c0_258 = arith.constant 0 : index
    %c0_259 = arith.constant 0 : index
    %508 = vector.load %arg29[%c0_257, %c0_258, %c0_259] : memref<2x1x64xf32, #tpu.memory_space<vmem>>, vector<1x1x64xf32>
    %509 = vector.shape_cast %508 : vector<1x1x64xf32> to vector<1x64xf32>
    %cst_260 = arith.constant dense<0.000000e+00> : vector<24xf32>
    %510 = vector.multi_reduction <add>, %505, %cst_260 [1] : vector<24x64xf32> to vector<24xf32>
    %511 = vector.shape_cast %510 : vector<24xf32> to vector<24x1xf32>
    %cst_261 = arith.constant 6.400000e+01 : f32
    %512 = vector.broadcast %cst_261 : f32 to vector<24x1xf32>
    %513 = arith.divf %511, %512 : vector<24x1xf32>
    %514 = vector.broadcast %513 : vector<24x1xf32> to vector<24x64xf32>
    %515 = arith.subf %505, %514 : vector<24x64xf32>
    %516 = arith.mulf %515, %515 : vector<24x64xf32>
    %cst_262 = arith.constant dense<0.000000e+00> : vector<24xf32>
    %517 = vector.multi_reduction <add>, %516, %cst_262 [1] : vector<24x64xf32> to vector<24xf32>
    %518 = vector.shape_cast %517 : vector<24xf32> to vector<24x1xf32>
    %cst_263 = arith.constant 6.400000e+01 : f32
    %519 = vector.broadcast %cst_263 : f32 to vector<24x1xf32>
    %520 = arith.divf %518, %519 : vector<24x1xf32>
    %521 = vector.broadcast %513 : vector<24x1xf32> to vector<24x64xf32>
    %522 = arith.subf %505, %521 : vector<24x64xf32>
    %cst_264 = arith.constant 9.99999997E-7 : f32
    %523 = vector.broadcast %cst_264 : f32 to vector<24x1xf32>
    %524 = arith.addf %520, %523 : vector<24x1xf32>
    %525 = math.rsqrt %524 : vector<24x1xf32>
    %526 = vector.broadcast %525 : vector<24x1xf32> to vector<24x64xf32>
    %527 = arith.mulf %522, %526 : vector<24x64xf32>
    %528 = vector.broadcast %507 : vector<1x64xf32> to vector<24x64xf32>
    %529 = arith.mulf %527, %528 : vector<24x64xf32>
    %530 = vector.broadcast %509 : vector<1x64xf32> to vector<24x64xf32>
    %531 = arith.addf %529, %530 : vector<24x64xf32>
    %532 = arith.truncf %531 : vector<24x64xf32> to vector<24x64xbf16>
    %c0_265 = arith.constant 0 : index
    %c0_266 = arith.constant 0 : index
    %c0_267 = arith.constant 0 : index
    %533 = vector.load %arg30[%c0_265, %c0_266, %c0_267] : memref<2x64x256xbf16, #tpu.memory_space<vmem>>, vector<1x64x256xbf16>
    %534 = vector.shape_cast %533 : vector<1x64x256xbf16> to vector<64x256xbf16>
    %cst_268 = arith.constant dense<0.000000e+00> : vector<24x256xf32>
    %535 = tpu.matmul %532, %534, %cst_268 {dimension_numbers = #tpu.dot_dimension_numbers<[1], [0], [0], [1], [0, 0, 1, 1], [], []>} : vector<24x64xbf16>, vector<64x256xbf16>, vector<24x256xf32> -> vector<24x256xf32>
    %c0_269 = arith.constant 0 : index
    %c0_270 = arith.constant 0 : index
    %c0_271 = arith.constant 0 : index
    %536 = vector.load %arg31[%c0_269, %c0_270, %c0_271] : memref<2x1x256xf32, #tpu.memory_space<vmem>>, vector<1x1x256xf32>
    %537 = vector.shape_cast %536 : vector<1x1x256xf32> to vector<1x256xf32>
    %538 = vector.broadcast %537 : vector<1x256xf32> to vector<24x256xf32>
    %539 = arith.addf %535, %538 : vector<24x256xf32>
    %540 = arith.mulf %539, %539 : vector<24x256xf32>
    %541 = arith.mulf %539, %540 : vector<24x256xf32>
    %cst_272 = arith.constant 4.471500e-02 : f32
    %542 = vector.broadcast %cst_272 : f32 to vector<24x256xf32>
    %543 = arith.mulf %542, %541 : vector<24x256xf32>
    %544 = arith.addf %539, %543 : vector<24x256xf32>
    %cst_273 = arith.constant 0.797884583 : f32
    %545 = vector.broadcast %cst_273 : f32 to vector<24x256xf32>
    %546 = arith.mulf %545, %544 : vector<24x256xf32>
    %547 = math.tanh %546 : vector<24x256xf32>
    %cst_274 = arith.constant 1.000000e+00 : f32
    %548 = vector.broadcast %cst_274 : f32 to vector<24x256xf32>
    %549 = arith.addf %548, %547 : vector<24x256xf32>
    %cst_275 = arith.constant 5.000000e-01 : f32
    %550 = vector.broadcast %cst_275 : f32 to vector<24x256xf32>
    %551 = arith.mulf %550, %549 : vector<24x256xf32>
    %552 = arith.mulf %539, %551 : vector<24x256xf32>
    %553 = arith.truncf %552 : vector<24x256xf32> to vector<24x256xbf16>
    %c0_276 = arith.constant 0 : index
    %c0_277 = arith.constant 0 : index
    %c0_278 = arith.constant 0 : index
    %554 = vector.load %arg32[%c0_276, %c0_277, %c0_278] : memref<2x256x64xbf16, #tpu.memory_space<vmem>>, vector<1x256x64xbf16>
    %555 = vector.shape_cast %554 : vector<1x256x64xbf16> to vector<256x64xbf16>
    %cst_279 = arith.constant dense<0.000000e+00> : vector<24x64xf32>
    %556 = tpu.matmul %553, %555, %cst_279 {dimension_numbers = #tpu.dot_dimension_numbers<[1], [0], [0], [1], [0, 0, 1, 1], [], []>} : vector<24x256xbf16>, vector<256x64xbf16>, vector<24x64xf32> -> vector<24x64xf32>
    %557 = arith.addf %505, %556 : vector<24x64xf32>
    %c0_280 = arith.constant 0 : index
    %c0_281 = arith.constant 0 : index
    %c0_282 = arith.constant 0 : index
    %558 = vector.load %arg33[%c0_280, %c0_281, %c0_282] : memref<2x1x64xf32, #tpu.memory_space<vmem>>, vector<1x1x64xf32>
    %559 = vector.shape_cast %558 : vector<1x1x64xf32> to vector<1x64xf32>
    %560 = vector.broadcast %559 : vector<1x64xf32> to vector<24x64xf32>
    %561 = arith.addf %557, %560 : vector<24x64xf32>
    %c1_283 = arith.constant 1 : index
    %c0_284 = arith.constant 0 : index
    %c0_285 = arith.constant 0 : index
    %562 = vector.load %arg22[%c1_283, %c0_284, %c0_285] : memref<2x1x64xf32, #tpu.memory_space<vmem>>, vector<1x1x64xf32>
    %563 = vector.shape_cast %562 : vector<1x1x64xf32> to vector<1x64xf32>
    %c1_286 = arith.constant 1 : index
    %c0_287 = arith.constant 0 : index
    %c0_288 = arith.constant 0 : index
    %564 = vector.load %arg23[%c1_286, %c0_287, %c0_288] : memref<2x1x64xf32, #tpu.memory_space<vmem>>, vector<1x1x64xf32>
    %565 = vector.shape_cast %564 : vector<1x1x64xf32> to vector<1x64xf32>
    %cst_289 = arith.constant dense<0.000000e+00> : vector<24xf32>
    %566 = vector.multi_reduction <add>, %561, %cst_289 [1] : vector<24x64xf32> to vector<24xf32>
    %567 = vector.shape_cast %566 : vector<24xf32> to vector<24x1xf32>
    %cst_290 = arith.constant 6.400000e+01 : f32
    %568 = vector.broadcast %cst_290 : f32 to vector<24x1xf32>
    %569 = arith.divf %567, %568 : vector<24x1xf32>
    %570 = vector.broadcast %569 : vector<24x1xf32> to vector<24x64xf32>
    %571 = arith.subf %561, %570 : vector<24x64xf32>
    %572 = arith.mulf %571, %571 : vector<24x64xf32>
    %cst_291 = arith.constant dense<0.000000e+00> : vector<24xf32>
    %573 = vector.multi_reduction <add>, %572, %cst_291 [1] : vector<24x64xf32> to vector<24xf32>
    %574 = vector.shape_cast %573 : vector<24xf32> to vector<24x1xf32>
    %cst_292 = arith.constant 6.400000e+01 : f32
    %575 = vector.broadcast %cst_292 : f32 to vector<24x1xf32>
    %576 = arith.divf %574, %575 : vector<24x1xf32>
    %577 = vector.broadcast %569 : vector<24x1xf32> to vector<24x64xf32>
    %578 = arith.subf %561, %577 : vector<24x64xf32>
    %cst_293 = arith.constant 9.99999997E-7 : f32
    %579 = vector.broadcast %cst_293 : f32 to vector<24x1xf32>
    %580 = arith.addf %576, %579 : vector<24x1xf32>
    %581 = math.rsqrt %580 : vector<24x1xf32>
    %582 = vector.broadcast %581 : vector<24x1xf32> to vector<24x64xf32>
    %583 = arith.mulf %578, %582 : vector<24x64xf32>
    %584 = vector.broadcast %563 : vector<1x64xf32> to vector<24x64xf32>
    %585 = arith.mulf %583, %584 : vector<24x64xf32>
    %586 = vector.broadcast %565 : vector<1x64xf32> to vector<24x64xf32>
    %587 = arith.addf %585, %586 : vector<24x64xf32>
    %588 = arith.truncf %587 : vector<24x64xf32> to vector<24x64xbf16>
    %c1_294 = arith.constant 1 : index
    %c0_295 = arith.constant 0 : index
    %c0_296 = arith.constant 0 : index
    %589 = vector.load %arg24[%c1_294, %c0_295, %c0_296] : memref<2x64x192xbf16, #tpu.memory_space<vmem>>, vector<1x64x192xbf16>
    %590 = vector.shape_cast %589 : vector<1x64x192xbf16> to vector<64x192xbf16>
    %c1_297 = arith.constant 1 : index
    %c0_298 = arith.constant 0 : index
    %c0_299 = arith.constant 0 : index
    %591 = vector.load %arg25[%c1_297, %c0_298, %c0_299] : memref<2x1x192xf32, #tpu.memory_space<vmem>>, vector<1x1x192xf32>
    %592 = vector.shape_cast %591 : vector<1x1x192xf32> to vector<1x192xf32>
    %c1_300 = arith.constant 1 : index
    %c0_301 = arith.constant 0 : index
    %c0_302 = arith.constant 0 : index
    %593 = vector.load %arg26[%c1_300, %c0_301, %c0_302] : memref<2x64x64xbf16, #tpu.memory_space<vmem>>, vector<1x64x64xbf16>
    %594 = vector.shape_cast %593 : vector<1x64x64xbf16> to vector<64x64xbf16>
    %c1_303 = arith.constant 1 : index
    %c0_304 = arith.constant 0 : index
    %c0_305 = arith.constant 0 : index
    %595 = vector.load %arg27[%c1_303, %c0_304, %c0_305] : memref<2x1x64xf32, #tpu.memory_space<vmem>>, vector<1x1x64xf32>
    %596 = vector.shape_cast %595 : vector<1x1x64xf32> to vector<1x64xf32>
    %cst_306 = arith.constant dense<0.000000e+00> : vector<24x192xf32>
    %597 = tpu.matmul %588, %590, %cst_306 {dimension_numbers = #tpu.dot_dimension_numbers<[1], [0], [0], [1], [0, 0, 1, 1], [], []>} : vector<24x64xbf16>, vector<64x192xbf16>, vector<24x192xf32> -> vector<24x192xf32>
    %598 = vector.broadcast %592 : vector<1x192xf32> to vector<24x192xf32>
    %599 = arith.addf %597, %598 : vector<24x192xf32>
    %600 = arith.truncf %599 : vector<24x192xf32> to vector<24x192xbf16>
    %601 = vector.extract_strided_slice %600 {offsets = [0, 0], sizes = [24, 32], strides = [1, 1]} : vector<24x192xbf16> to vector<24x32xbf16>
    %602 = vector.extract_strided_slice %600 {offsets = [0, 64], sizes = [24, 32], strides = [1, 1]} : vector<24x192xbf16> to vector<24x32xbf16>
    %603 = vector.extract_strided_slice %600 {offsets = [0, 128], sizes = [24, 32], strides = [1, 1]} : vector<24x192xbf16> to vector<24x32xbf16>
    %604 = tpu.transpose %602, [1, 0] : vector<24x32xbf16> -> vector<32x24xbf16>
    %cst_307 = arith.constant dense<0.000000e+00> : vector<24x24xf32>
    %605 = tpu.matmul %601, %604, %cst_307 {dimension_numbers = #tpu.dot_dimension_numbers<[1], [0], [0], [1], [0, 0, 1, 1], [], []>} : vector<24x32xbf16>, vector<32x24xbf16>, vector<24x24xf32> -> vector<24x24xf32>
    %cst_308 = arith.constant 0.176776692 : f32
    %606 = vector.broadcast %cst_308 : f32 to vector<24x24xf32>
    %607 = arith.mulf %605, %606 : vector<24x24xf32>
    %cst_309 = arith.constant -1.000000e+30 : f32
    %608 = vector.broadcast %cst_309 : f32 to vector<24x24xf32>
    %609 = arith.select %411, %607, %608 : vector<24x24xi1>, vector<24x24xf32>
    %cst_310 = arith.constant dense<0xFF800000> : vector<24xf32>
    %610 = vector.multi_reduction <maximumf>, %609, %cst_310 [1] : vector<24x24xf32> to vector<24xf32>
    %611 = vector.shape_cast %610 : vector<24xf32> to vector<24x1xf32>
    %612 = vector.broadcast %611 : vector<24x1xf32> to vector<24x24xf32>
    %613 = arith.subf %609, %612 : vector<24x24xf32>
    %614 = math.exp %613 : vector<24x24xf32>
    %cst_311 = arith.constant dense<0.000000e+00> : vector<24xf32>
    %615 = vector.multi_reduction <add>, %614, %cst_311 [1] : vector<24x24xf32> to vector<24xf32>
    %616 = vector.shape_cast %615 : vector<24xf32> to vector<24x1xf32>
    %617 = tpu.reciprocal %616 {approx = true} : vector<24x1xf32> -> vector<24x1xf32>
    %618 = vector.broadcast %617 : vector<24x1xf32> to vector<24x24xf32>
    %619 = arith.mulf %614, %618 : vector<24x24xf32>
    %620 = arith.truncf %619 : vector<24x24xf32> to vector<24x24xbf16>
    %cst_312 = arith.constant dense<0.000000e+00> : vector<24x32xf32>
    %621 = tpu.matmul %620, %603, %cst_312 {dimension_numbers = #tpu.dot_dimension_numbers<[1], [0], [0], [1], [0, 0, 1, 1], [], []>} : vector<24x24xbf16>, vector<24x32xbf16>, vector<24x32xf32> -> vector<24x32xf32>
    %622 = arith.truncf %621 : vector<24x32xf32> to vector<24x32xbf16>
    %623 = vector.extract_strided_slice %594 {offsets = [0, 0], sizes = [32, 64], strides = [1, 1]} : vector<64x64xbf16> to vector<32x64xbf16>
    %cst_313 = arith.constant dense<0.000000e+00> : vector<24x64xf32>
    %624 = tpu.matmul %622, %623, %cst_313 {dimension_numbers = #tpu.dot_dimension_numbers<[1], [0], [0], [1], [0, 0, 1, 1], [], []>} : vector<24x32xbf16>, vector<32x64xbf16>, vector<24x64xf32> -> vector<24x64xf32>
    %625 = vector.extract_strided_slice %600 {offsets = [0, 32], sizes = [24, 32], strides = [1, 1]} : vector<24x192xbf16> to vector<24x32xbf16>
    %626 = vector.extract_strided_slice %600 {offsets = [0, 96], sizes = [24, 32], strides = [1, 1]} : vector<24x192xbf16> to vector<24x32xbf16>
    %627 = vector.extract_strided_slice %600 {offsets = [0, 160], sizes = [24, 32], strides = [1, 1]} : vector<24x192xbf16> to vector<24x32xbf16>
    %628 = tpu.transpose %626, [1, 0] : vector<24x32xbf16> -> vector<32x24xbf16>
    %cst_314 = arith.constant dense<0.000000e+00> : vector<24x24xf32>
    %629 = tpu.matmul %625, %628, %cst_314 {dimension_numbers = #tpu.dot_dimension_numbers<[1], [0], [0], [1], [0, 0, 1, 1], [], []>} : vector<24x32xbf16>, vector<32x24xbf16>, vector<24x24xf32> -> vector<24x24xf32>
    %cst_315 = arith.constant 0.176776692 : f32
    %630 = vector.broadcast %cst_315 : f32 to vector<24x24xf32>
    %631 = arith.mulf %629, %630 : vector<24x24xf32>
    %cst_316 = arith.constant -1.000000e+30 : f32
    %632 = vector.broadcast %cst_316 : f32 to vector<24x24xf32>
    %633 = arith.select %411, %631, %632 : vector<24x24xi1>, vector<24x24xf32>
    %cst_317 = arith.constant dense<0xFF800000> : vector<24xf32>
    %634 = vector.multi_reduction <maximumf>, %633, %cst_317 [1] : vector<24x24xf32> to vector<24xf32>
    %635 = vector.shape_cast %634 : vector<24xf32> to vector<24x1xf32>
    %636 = vector.broadcast %635 : vector<24x1xf32> to vector<24x24xf32>
    %637 = arith.subf %633, %636 : vector<24x24xf32>
    %638 = math.exp %637 : vector<24x24xf32>
    %cst_318 = arith.constant dense<0.000000e+00> : vector<24xf32>
    %639 = vector.multi_reduction <add>, %638, %cst_318 [1] : vector<24x24xf32> to vector<24xf32>
    %640 = vector.shape_cast %639 : vector<24xf32> to vector<24x1xf32>
    %641 = tpu.reciprocal %640 {approx = true} : vector<24x1xf32> -> vector<24x1xf32>
    %642 = vector.broadcast %641 : vector<24x1xf32> to vector<24x24xf32>
    %643 = arith.mulf %638, %642 : vector<24x24xf32>
    %644 = arith.truncf %643 : vector<24x24xf32> to vector<24x24xbf16>
    %cst_319 = arith.constant dense<0.000000e+00> : vector<24x32xf32>
    %645 = tpu.matmul %644, %627, %cst_319 {dimension_numbers = #tpu.dot_dimension_numbers<[1], [0], [0], [1], [0, 0, 1, 1], [], []>} : vector<24x24xbf16>, vector<24x32xbf16>, vector<24x32xf32> -> vector<24x32xf32>
    %646 = arith.truncf %645 : vector<24x32xf32> to vector<24x32xbf16>
    %647 = vector.extract_strided_slice %594 {offsets = [32, 0], sizes = [32, 64], strides = [1, 1]} : vector<64x64xbf16> to vector<32x64xbf16>
    %cst_320 = arith.constant dense<0.000000e+00> : vector<24x64xf32>
    %648 = tpu.matmul %646, %647, %cst_320 {dimension_numbers = #tpu.dot_dimension_numbers<[1], [0], [0], [1], [0, 0, 1, 1], [], []>} : vector<24x32xbf16>, vector<32x64xbf16>, vector<24x64xf32> -> vector<24x64xf32>
    %649 = arith.addf %624, %648 : vector<24x64xf32>
    %650 = vector.broadcast %596 : vector<1x64xf32> to vector<24x64xf32>
    %651 = arith.addf %649, %650 : vector<24x64xf32>
    %652 = arith.addf %561, %651 : vector<24x64xf32>
    %c1_321 = arith.constant 1 : index
    %c0_322 = arith.constant 0 : index
    %c0_323 = arith.constant 0 : index
    %653 = vector.load %arg28[%c1_321, %c0_322, %c0_323] : memref<2x1x64xf32, #tpu.memory_space<vmem>>, vector<1x1x64xf32>
    %654 = vector.shape_cast %653 : vector<1x1x64xf32> to vector<1x64xf32>
    %c1_324 = arith.constant 1 : index
    %c0_325 = arith.constant 0 : index
    %c0_326 = arith.constant 0 : index
    %655 = vector.load %arg29[%c1_324, %c0_325, %c0_326] : memref<2x1x64xf32, #tpu.memory_space<vmem>>, vector<1x1x64xf32>
    %656 = vector.shape_cast %655 : vector<1x1x64xf32> to vector<1x64xf32>
    %cst_327 = arith.constant dense<0.000000e+00> : vector<24xf32>
    %657 = vector.multi_reduction <add>, %652, %cst_327 [1] : vector<24x64xf32> to vector<24xf32>
    %658 = vector.shape_cast %657 : vector<24xf32> to vector<24x1xf32>
    %cst_328 = arith.constant 6.400000e+01 : f32
    %659 = vector.broadcast %cst_328 : f32 to vector<24x1xf32>
    %660 = arith.divf %658, %659 : vector<24x1xf32>
    %661 = vector.broadcast %660 : vector<24x1xf32> to vector<24x64xf32>
    %662 = arith.subf %652, %661 : vector<24x64xf32>
    %663 = arith.mulf %662, %662 : vector<24x64xf32>
    %cst_329 = arith.constant dense<0.000000e+00> : vector<24xf32>
    %664 = vector.multi_reduction <add>, %663, %cst_329 [1] : vector<24x64xf32> to vector<24xf32>
    %665 = vector.shape_cast %664 : vector<24xf32> to vector<24x1xf32>
    %cst_330 = arith.constant 6.400000e+01 : f32
    %666 = vector.broadcast %cst_330 : f32 to vector<24x1xf32>
    %667 = arith.divf %665, %666 : vector<24x1xf32>
    %668 = vector.broadcast %660 : vector<24x1xf32> to vector<24x64xf32>
    %669 = arith.subf %652, %668 : vector<24x64xf32>
    %cst_331 = arith.constant 9.99999997E-7 : f32
    %670 = vector.broadcast %cst_331 : f32 to vector<24x1xf32>
    %671 = arith.addf %667, %670 : vector<24x1xf32>
    %672 = math.rsqrt %671 : vector<24x1xf32>
    %673 = vector.broadcast %672 : vector<24x1xf32> to vector<24x64xf32>
    %674 = arith.mulf %669, %673 : vector<24x64xf32>
    %675 = vector.broadcast %654 : vector<1x64xf32> to vector<24x64xf32>
    %676 = arith.mulf %674, %675 : vector<24x64xf32>
    %677 = vector.broadcast %656 : vector<1x64xf32> to vector<24x64xf32>
    %678 = arith.addf %676, %677 : vector<24x64xf32>
    %679 = arith.truncf %678 : vector<24x64xf32> to vector<24x64xbf16>
    %c1_332 = arith.constant 1 : index
    %c0_333 = arith.constant 0 : index
    %c0_334 = arith.constant 0 : index
    %680 = vector.load %arg30[%c1_332, %c0_333, %c0_334] : memref<2x64x256xbf16, #tpu.memory_space<vmem>>, vector<1x64x256xbf16>
    %681 = vector.shape_cast %680 : vector<1x64x256xbf16> to vector<64x256xbf16>
    %cst_335 = arith.constant dense<0.000000e+00> : vector<24x256xf32>
    %682 = tpu.matmul %679, %681, %cst_335 {dimension_numbers = #tpu.dot_dimension_numbers<[1], [0], [0], [1], [0, 0, 1, 1], [], []>} : vector<24x64xbf16>, vector<64x256xbf16>, vector<24x256xf32> -> vector<24x256xf32>
    %c1_336 = arith.constant 1 : index
    %c0_337 = arith.constant 0 : index
    %c0_338 = arith.constant 0 : index
    %683 = vector.load %arg31[%c1_336, %c0_337, %c0_338] : memref<2x1x256xf32, #tpu.memory_space<vmem>>, vector<1x1x256xf32>
    %684 = vector.shape_cast %683 : vector<1x1x256xf32> to vector<1x256xf32>
    %685 = vector.broadcast %684 : vector<1x256xf32> to vector<24x256xf32>
    %686 = arith.addf %682, %685 : vector<24x256xf32>
    %687 = arith.mulf %686, %686 : vector<24x256xf32>
    %688 = arith.mulf %686, %687 : vector<24x256xf32>
    %cst_339 = arith.constant 4.471500e-02 : f32
    %689 = vector.broadcast %cst_339 : f32 to vector<24x256xf32>
    %690 = arith.mulf %689, %688 : vector<24x256xf32>
    %691 = arith.addf %686, %690 : vector<24x256xf32>
    %cst_340 = arith.constant 0.797884583 : f32
    %692 = vector.broadcast %cst_340 : f32 to vector<24x256xf32>
    %693 = arith.mulf %692, %691 : vector<24x256xf32>
    %694 = math.tanh %693 : vector<24x256xf32>
    %cst_341 = arith.constant 1.000000e+00 : f32
    %695 = vector.broadcast %cst_341 : f32 to vector<24x256xf32>
    %696 = arith.addf %695, %694 : vector<24x256xf32>
    %cst_342 = arith.constant 5.000000e-01 : f32
    %697 = vector.broadcast %cst_342 : f32 to vector<24x256xf32>
    %698 = arith.mulf %697, %696 : vector<24x256xf32>
    %699 = arith.mulf %686, %698 : vector<24x256xf32>
    %700 = arith.truncf %699 : vector<24x256xf32> to vector<24x256xbf16>
    %c1_343 = arith.constant 1 : index
    %c0_344 = arith.constant 0 : index
    %c0_345 = arith.constant 0 : index
    %701 = vector.load %arg32[%c1_343, %c0_344, %c0_345] : memref<2x256x64xbf16, #tpu.memory_space<vmem>>, vector<1x256x64xbf16>
    %702 = vector.shape_cast %701 : vector<1x256x64xbf16> to vector<256x64xbf16>
    %cst_346 = arith.constant dense<0.000000e+00> : vector<24x64xf32>
    %703 = tpu.matmul %700, %702, %cst_346 {dimension_numbers = #tpu.dot_dimension_numbers<[1], [0], [0], [1], [0, 0, 1, 1], [], []>} : vector<24x256xbf16>, vector<256x64xbf16>, vector<24x64xf32> -> vector<24x64xf32>
    %704 = arith.addf %652, %703 : vector<24x64xf32>
    %c1_347 = arith.constant 1 : index
    %c0_348 = arith.constant 0 : index
    %c0_349 = arith.constant 0 : index
    %705 = vector.load %arg33[%c1_347, %c0_348, %c0_349] : memref<2x1x64xf32, #tpu.memory_space<vmem>>, vector<1x1x64xf32>
    %706 = vector.shape_cast %705 : vector<1x1x64xf32> to vector<1x64xf32>
    %707 = vector.broadcast %706 : vector<1x64xf32> to vector<24x64xf32>
    %708 = arith.addf %704, %707 : vector<24x64xf32>
    %c0_350 = arith.constant 0 : index
    %c0_351 = arith.constant 0 : index
    %709 = vector.load %arg39[%c0_350, %c0_351] : memref<24x64xf32, #tpu.memory_space<vmem>>, vector<24x64xf32>
    tpu.vector_store %arg39[%c0_350, %c0_351], %708 {strides = array<i32>} : memref<24x64xf32, #tpu.memory_space<vmem>>, vector<24x64xf32>,
    %c0_352 = arith.constant 0 : index
    %c0_353 = arith.constant 0 : index
    %710 = vector.load %arg34[%c0_352, %c0_353] : memref<1x64xf32, #tpu.memory_space<vmem>>, vector<1x64xf32>
    %c0_354 = arith.constant 0 : index
    %c0_355 = arith.constant 0 : index
    %711 = vector.load %arg35[%c0_354, %c0_355] : memref<1x64xf32, #tpu.memory_space<vmem>>, vector<1x64xf32>
    %cst_356 = arith.constant dense<0.000000e+00> : vector<24xf32>
    %712 = vector.multi_reduction <add>, %708, %cst_356 [1] : vector<24x64xf32> to vector<24xf32>
    %713 = vector.shape_cast %712 : vector<24xf32> to vector<24x1xf32>
    %cst_357 = arith.constant 6.400000e+01 : f32
    %714 = vector.broadcast %cst_357 : f32 to vector<24x1xf32>
    %715 = arith.divf %713, %714 : vector<24x1xf32>
    %716 = vector.broadcast %715 : vector<24x1xf32> to vector<24x64xf32>
    %717 = arith.subf %708, %716 : vector<24x64xf32>
    %718 = arith.mulf %717, %717 : vector<24x64xf32>
    %cst_358 = arith.constant dense<0.000000e+00> : vector<24xf32>
    %719 = vector.multi_reduction <add>, %718, %cst_358 [1] : vector<24x64xf32> to vector<24xf32>
    %720 = vector.shape_cast %719 : vector<24xf32> to vector<24x1xf32>
    %cst_359 = arith.constant 6.400000e+01 : f32
    %721 = vector.broadcast %cst_359 : f32 to vector<24x1xf32>
    %722 = arith.divf %720, %721 : vector<24x1xf32>
    %723 = vector.broadcast %715 : vector<24x1xf32> to vector<24x64xf32>
    %724 = arith.subf %708, %723 : vector<24x64xf32>
    %cst_360 = arith.constant 9.99999997E-7 : f32
    %725 = vector.broadcast %cst_360 : f32 to vector<24x1xf32>
    %726 = arith.addf %722, %725 : vector<24x1xf32>
    %727 = math.rsqrt %726 : vector<24x1xf32>
    %728 = vector.broadcast %727 : vector<24x1xf32> to vector<24x64xf32>
    %729 = arith.mulf %724, %728 : vector<24x64xf32>
    %730 = vector.broadcast %710 : vector<1x64xf32> to vector<24x64xf32>
    %731 = arith.mulf %729, %730 : vector<24x64xf32>
    %732 = vector.broadcast %711 : vector<1x64xf32> to vector<24x64xf32>
    %733 = arith.addf %731, %732 : vector<24x64xf32>
    %c0_361 = arith.constant 0 : index
    %c0_362 = arith.constant 0 : index
    %734 = vector.load %arg36[%c0_361, %c0_362] : memref<64x512xbf16, #tpu.memory_space<vmem>>, vector<64x512xbf16>
    %735 = arith.truncf %733 : vector<24x64xf32> to vector<24x64xbf16>
    %cst_363 = arith.constant dense<0.000000e+00> : vector<24x512xf32>
    %736 = tpu.matmul %735, %734, %cst_363 {dimension_numbers = #tpu.dot_dimension_numbers<[1], [0], [0], [1], [0, 0, 1, 1], [], []>} : vector<24x64xbf16>, vector<64x512xbf16>, vector<24x512xf32> -> vector<24x512xf32>
    %c0_364 = arith.constant 0 : index
    %c0_365 = arith.constant 0 : index
    %737 = vector.load %arg37[%c0_364, %c0_365] : memref<1x512xf32, #tpu.memory_space<vmem>>, vector<1x512xf32>
    %738 = vector.broadcast %737 : vector<1x512xf32> to vector<24x512xf32>
    %739 = arith.addf %736, %738 : vector<24x512xf32>
    %c0_366 = arith.constant 0 : index
    %c0_367 = arith.constant 0 : index
    %740 = vector.load %arg38[%c0_366, %c0_367] : memref<24x512xf32, #tpu.memory_space<vmem>>, vector<24x512xf32>
    tpu.vector_store %arg38[%c0_366, %c0_367], %739 {strides = array<i32>} : memref<24x512xf32, #tpu.memory_space<vmem>>, vector<24x512xf32>,
    return
  }
}

</mosaic_0001>

<llo_original>
// kernel: tile.19
$region0: #{tile.19}
  %s0 = inlined_call_operand.vmem [shape: f32[2,12,64], index: 0, kind: input, shape index: {}]
  %s1 = inlined_call_operand.vmem [shape: f32[24,64], index: 1, kind: output, shape index: {}]
  %v2 = vld [vmem:[%s0] sm:$0xff]
  %vm3 = vcmask 523264
  %4 = vst.msk [vmem:[%s1] sm:$0xff] %vm3, %v2
  %s5 = scalar_lea.vmem %s0, 8
  %v6 = vld [vmem:[%s5] sm:$0xf]
  %vm7 = vcmask 523264
  %s8 = scalar_lea.vmem %s1, 8
  %9 = vst.msk [vmem:[%s8] sm:$0xf] %vm7, %v6
  %s10 = scalar_lea.vmem %s0, 16
  %v11 = vld [vmem:[%s10] sm:$0xff]
  %vm12 = vcmask 523264
  %s13 = scalar_lea.vmem %s1, 12
  %14 = vst.msk [vmem:[%s13] sm:$0xff] %vm12, %v11
  %s15 = scalar_lea.vmem %s0, 24
  %v16 = vld [vmem:[%s15] sm:$0xf]
  %vm17 = vcmask 523264
  %s18 = scalar_lea.vmem %s1, 20
  %19 = vst.msk [vmem:[%s18] sm:$0xf] %vm17, %v16

// kernel: _lambda_.1
$region0: #{_lambda_.1}
  #allocation0 [shape = 'u32[]', space=smem, size = 0x4, offset = 0x4, fixed_abs, tag = 'smem constant byte address 0x4 - core index']
  #allocation1 [shape = 'u32[144,128]{1,0:T(1,128)}', space=vmem, size = 0x12000, scoped, tag = 'internal scratch']
  #allocation2 [shape = 'f32[24,64]{1,0:T(8,128)}', space=vmem, size = 0x3000, scoped, tag = 'scratch operand']
  #allocation3 [shape = 'f32[4,64]{1,0:T(4,128)}', space=vmem, size = 0x800, scoped, tag = 'scratch operand']
  #allocation4 [shape = 'f32[20,64]{1,0:T(8,128)}', space=vmem, size = 0x3000, scoped, tag = 'scratch operand']
  #allocation5 [shape = 'f32[24,64]{1,0:T(8,128)}', space=vmem, size = 0x3000, scoped, tag = 'scratch operand']
  %s0 = inlined_call_operand.smem [shape: u32[40], index: -1, kind: input, shape index: {}]
  %s1 = sld [smem:[%s0]]
  %s2 = scalar_lea.smem %s0, 1
  %s3 = sld [smem:[%s2]]
  %s4 = scalar_lea.smem %s0, 2
  %s5 = sld [smem:[%s4]]
  %s6 = scalar_lea.smem %s0, 3
  %s7 = sld [smem:[%s6]]
  %s8 = scalar_lea.smem %s0, 4
  %s9 = sld [smem:[%s8]]
  %s10 = scalar_lea.smem %s0, 5
  %s11 = sld [smem:[%s10]]
  %s12 = scalar_lea.smem %s0, 6
  %s13 = sld [smem:[%s12]]
  %s14 = scalar_lea.smem %s0, 7
  %s15 = sld [smem:[%s14]]
  %s16 = scalar_lea.smem %s0, 8
  %s17 = sld [smem:[%s16]]
  %s18 = scalar_lea.smem %s0, 9
  %s19 = sld [smem:[%s18]]
  %s20 = scalar_lea.smem %s0, 10
  %s21 = sld [smem:[%s20]]
  %s22 = scalar_lea.smem %s0, 11
  %s23 = sld [smem:[%s22]]
  %s24 = scalar_lea.smem %s0, 12
  %s25 = sld [smem:[%s24]]
  %s26 = scalar_lea.smem %s0, 13
  %s27 = sld [smem:[%s26]]
  %s28 = scalar_lea.smem %s0, 14
  %s29 = sld [smem:[%s28]]
  %s30 = scalar_lea.smem %s0, 15
  %s31 = sld [smem:[%s30]]
  %s32 = scalar_lea.smem %s0, 16
  %s33 = sld [smem:[%s32]]
  %s34 = scalar_lea.smem %s0, 17
  %s35 = sld [smem:[%s34]]
  %s36 = scalar_lea.smem %s0, 18
  %s37 = sld [smem:[%s36]]
  %s38 = scalar_lea.smem %s0, 19
  %s39 = sld [smem:[%s38]]
  %s40 = scalar_lea.smem %s0, 20
  %s41 = sld [smem:[%s40]]
  %s42 = scalar_lea.smem %s0, 21
  %s43 = sld [smem:[%s42]]
  %s44 = scalar_lea.smem %s0, 22
  %s45 = sld [smem:[%s44]]
  %s46 = scalar_lea.smem %s0, 23
  %s47 = sld [smem:[%s46]]
  %s48 = scalar_lea.smem %s0, 24
  %s49 = sld [smem:[%s48]]
  %s50 = scalar_lea.smem %s0, 25
  %s51 = sld [smem:[%s50]]
  %s52 = scalar_lea.smem %s0, 26
  %s53 = sld [smem:[%s52]]
  %s54 = scalar_lea.smem %s0, 27
  %s55 = sld [smem:[%s54]]
  %s56 = scalar_lea.smem %s0, 28
  %s57 = sld [smem:[%s56]]
  %s58 = scalar_lea.smem %s0, 29
  %s59 = sld [smem:[%s58]]
  %s60 = scalar_lea.smem %s0, 30
  %s61 = sld [smem:[%s60]]
  %s62 = scalar_lea.smem %s0, 31
  %s63 = sld [smem:[%s62]]
  %s64 = scalar_lea.smem %s0, 32
  %s65 = sld [smem:[%s64]]
  %s66 = scalar_lea.smem %s0, 33
  %s67 = sld [smem:[%s66]]
  %s68 = scalar_lea.smem %s0, 34
  %s69 = sld [smem:[%s68]]
  %s70 = scalar_lea.smem %s0, 35
  %s71 = sld [smem:[%s70]]
  %s72 = scalar_lea.smem %s0, 36
  %s73 = sld [smem:[%s72]]
  %s74 = scalar_lea.smem %s0, 37
  %s75 = sld [smem:[%s74]]
  %s76 = scalar_lea.smem %s0, 38
  %s77 = sld [smem:[%s76]]
  %s78 = scalar_lea.smem %s0, 39
  %s79 = sld [smem:[%s78]]
  %80 = xla_tuple %s77, %s79
  %s81 = sld [smem:[#allocation0]]
  $region170: #{_lambda_.1} parent=0
    _
  %s83 = ssub.s32 1, %s81
  %s84 = scalar_select 0, %s83, %s81
  // Predicated region
  $region2: #{_lambda_.1} parent=0 // pred_check
    _
  $region3: #{_lambda_.1} parent=0 // pred_check_branch
    %86 = sbr.rel (0) target = $region5
  $region4: #{_lambda_.1} parent=0 // pred_region
    _
  $region5: #{_lambda_.1} parent=0 // pred_fallthru
    _
  // Predicated region
  $region6: #{_lambda_.1} parent=0 // pred_check
    _
  $region7: #{_lambda_.1} parent=0 // pred_check_branch
    %88 = sbr.rel (0) target = $region9
  $region8: #{_lambda_.1} parent=0 // pred_region
    _
  $region9: #{_lambda_.1} parent=0 // pred_fallthru
    _
  // Predicated region
  $region10: #{_lambda_.1} parent=0 // pred_check
    _
  $region11: #{_lambda_.1} parent=0 // pred_check_branch
    %90 = sbr.rel (0) target = $region13
  $region12: #{_lambda_.1} parent=0 // pred_region
    _
  $region13: #{_lambda_.1} parent=0 // pred_fallthru
    _
  // Predicated region
  $region14: #{_lambda_.1} parent=0 // pred_check
    _
  $region15: #{_lambda_.1} parent=0 // pred_check_branch
    %92 = sbr.rel (0) target = $region17
  $region16: #{_lambda_.1} parent=0 // pred_region
    _
  $region17: #{_lambda_.1} parent=0 // pred_fallthru
    _
  // Predicated region
  $region18: #{_lambda_.1} parent=0 // pred_check
    _
  $region19: #{_lambda_.1} parent=0 // pred_check_branch
    %94 = sbr.rel (0) target = $region21
  $region20: #{_lambda_.1} parent=0 // pred_region
    _
  $region21: #{_lambda_.1} parent=0 // pred_fallthru
    _
  // Predicated region
  $region22: #{_lambda_.1} parent=0 // pred_check
    _
  $region23: #{_lambda_.1} parent=0 // pred_check_branch
    %96 = sbr.rel (0) target = $region25
  $region24: #{_lambda_.1} parent=0 // pred_region
    _
  $region25: #{_lambda_.1} parent=0 // pred_fallthru
    _
  // Predicated region
  $region26: #{_lambda_.1} parent=0 // pred_check
    _
  $region27: #{_lambda_.1} parent=0 // pred_check_branch
    %98 = sbr.rel (0) target = $region29
  $region28: #{_lambda_.1} parent=0 // pred_region
    _
  $region29: #{_lambda_.1} parent=0 // pred_fallthru
    _
  // Predicated region
  $region30: #{_lambda_.1} parent=0 // pred_check
    _
  $region31: #{_lambda_.1} parent=0 // pred_check_branch
    %100 = sbr.rel (0) target = $region33
  $region32: #{_lambda_.1} parent=0 // pred_region
    _
  $region33: #{_lambda_.1} parent=0 // pred_fallthru
    _
  // Predicated region
  $region34: #{_lambda_.1} parent=0 // pred_check
    _
  $region35: #{_lambda_.1} parent=0 // pred_check_branch
    %102 = sbr.rel (0) target = $region37
  $region36: #{_lambda_.1} parent=0 // pred_region
    _
  $region37: #{_lambda_.1} parent=0 // pred_fallthru
    _
  // Predicated region
  $region38: #{_lambda_.1} parent=0 // pred_check
    _
  $region39: #{_lambda_.1} parent=0 // pred_check_branch
    %104 = sbr.rel (0) target = $region41
  $region40: #{_lambda_.1} parent=0 // pred_region
    _
  $region41: #{_lambda_.1} parent=0 // pred_fallthru
    _
  // Predicated region
  $region42: #{_lambda_.1} parent=0 // pred_check
    _
  $region43: #{_lambda_.1} parent=0 // pred_check_branch
    %106 = sbr.rel (0) target = $region45
  $region44: #{_lambda_.1} parent=0 // pred_region
    _
  $region45: #{_lambda_.1} parent=0 // pred_fallthru
    _
  // Predicated region
  $region46: #{_lambda_.1} parent=0 // pred_check
    _
  $region47: #{_lambda_.1} parent=0 // pred_check_branch
    %108 = sbr.rel (0) target = $region49
  $region48: #{_lambda_.1} parent=0 // pred_region
    _
  $region49: #{_lambda_.1} parent=0 // pred_fallthru
    _
  // Predicated region
  $region50: #{_lambda_.1} parent=0 // pred_check
    _
  $region51: #{_lambda_.1} parent=0 // pred_check_branch
    %110 = sbr.rel (0) target = $region53
  $region52: #{_lambda_.1} parent=0 // pred_region
    _
  $region53: #{_lambda_.1} parent=0 // pred_fallthru
    _
  // Predicated region
  $region54: #{_lambda_.1} parent=0 // pred_check
    _
  $region55: #{_lambda_.1} parent=0 // pred_check_branch
    %112 = sbr.rel (0) target = $region57
  $region56: #{_lambda_.1} parent=0 // pred_region
    _
  $region57: #{_lambda_.1} parent=0 // pred_fallthru
    _
  // Predicated region
  $region58: #{_lambda_.1} parent=0 // pred_check
    _
  $region59: #{_lambda_.1} parent=0 // pred_check_branch
    %114 = sbr.rel (0) target = $region61
  $region60: #{_lambda_.1} parent=0 // pred_region
    _
  $region61: #{_lambda_.1} parent=0 // pred_fallthru
    _
  // Predicated region
  $region62: #{_lambda_.1} parent=0 // pred_check
    _
  $region63: #{_lambda_.1} parent=0 // pred_check_branch
    %116 = sbr.rel (0) target = $region65
  $region64: #{_lambda_.1} parent=0 // pred_region
    _
  $region65: #{_lambda_.1} parent=0 // pred_fallthru
    _
  // Predicated region
  $region66: #{_lambda_.1} parent=0 // pred_check
    _
  $region67: #{_lambda_.1} parent=0 // pred_check_branch
    %118 = sbr.rel (0) target = $region69
  $region68: #{_lambda_.1} parent=0 // pred_region
    _
  $region69: #{_lambda_.1} parent=0 // pred_fallthru
    _
  // Predicated region
  $region70: #{_lambda_.1} parent=0 // pred_check
    _
  $region71: #{_lambda_.1} parent=0 // pred_check_branch
    %120 = sbr.rel (0) target = $region73
  $region72: #{_lambda_.1} parent=0 // pred_region
    _
  $region73: #{_lambda_.1} parent=0 // pred_fallthru
    _
  // Predicated region
  $region74: #{_lambda_.1} parent=0 // pred_check
    _
  $region75: #{_lambda_.1} parent=0 // pred_check_branch
    %122 = sbr.rel (0) target = $region77
  $region76: #{_lambda_.1} parent=0 // pred_region
    _
  $region77: #{_lambda_.1} parent=0 // pred_fallthru
    _
  // Predicated region
  $region78: #{_lambda_.1} parent=0 // pred_check
    _
  $region79: #{_lambda_.1} parent=0 // pred_check_branch
    %124 = sbr.rel (0) target = $region81
  $region80: #{_lambda_.1} parent=0 // pred_region
    _
  $region81: #{_lambda_.1} parent=0 // pred_fallthru
    _
  // Predicated region
  $region82: #{_lambda_.1} parent=0 // pred_check
    _
  $region83: #{_lambda_.1} parent=0 // pred_check_branch
    %126 = sbr.rel (0) target = $region85
  $region84: #{_lambda_.1} parent=0 // pred_region
    _
  $region85: #{_lambda_.1} parent=0 // pred_fallthru
    _
  // Predicated region
  $region86: #{_lambda_.1} parent=0 // pred_check
    _
  $region87: #{_lambda_.1} parent=0 // pred_check_branch
    %128 = sbr.rel (0) target = $region89
  $region88: #{_lambda_.1} parent=0 // pred_region
    _
  $region89: #{_lambda_.1} parent=0 // pred_fallthru
    _
  // Predicated region
  $region90: #{_lambda_.1} parent=0 // pred_check
    _
  $region91: #{_lambda_.1} parent=0 // pred_check_branch
    %130 = sbr.rel (0) target = $region93
  $region92: #{_lambda_.1} parent=0 // pred_region
    _
  $region93: #{_lambda_.1} parent=0 // pred_fallthru
    _
  // Predicated region
  $region94: #{_lambda_.1} parent=0 // pred_check
    _
  $region95: #{_lambda_.1} parent=0 // pred_check_branch
    %132 = sbr.rel (0) target = $region97
  $region96: #{_lambda_.1} parent=0 // pred_region
    _
  $region97: #{_lambda_.1} parent=0 // pred_fallthru
    _
  // Predicated region
  $region98: #{_lambda_.1} parent=0 // pred_check
    _
  $region99: #{_lambda_.1} parent=0 // pred_check_branch
    %134 = sbr.rel (0) target = $region101
  $region100: #{_lambda_.1} parent=0 // pred_region
    _
  $region101: #{_lambda_.1} parent=0 // pred_fallthru
    _
  // Predicated region
  $region102: #{_lambda_.1} parent=0 // pred_check
    _
  $region103: #{_lambda_.1} parent=0 // pred_check_branch
    %136 = sbr.rel (0) target = $region105
  $region104: #{_lambda_.1} parent=0 // pred_region
    _
  $region105: #{_lambda_.1} parent=0 // pred_fallthru
    _
  // Predicated region
  $region106: #{_lambda_.1} parent=0 // pred_check
    _
  $region107: #{_lambda_.1} parent=0 // pred_check_branch
    %138 = sbr.rel (0) target = $region109
  $region108: #{_lambda_.1} parent=0 // pred_region
    _
  $region109: #{_lambda_.1} parent=0 // pred_fallthru
    _
  // Predicated region
  $region110: #{_lambda_.1} parent=0 // pred_check
    _
  $region111: #{_lambda_.1} parent=0 // pred_check_branch
    %140 = sbr.rel (0) target = $region113
  $region112: #{_lambda_.1} parent=0 // pred_region
    _
  $region113: #{_lambda_.1} parent=0 // pred_fallthru
    _
  // Predicated region
  $region114: #{_lambda_.1} parent=0 // pred_check
    _
  $region115: #{_lambda_.1} parent=0 // pred_check_branch
    %142 = sbr.rel (0) target = $region117
  $region116: #{_lambda_.1} parent=0 // pred_region
    _
  $region117: #{_lambda_.1} parent=0 // pred_fallthru
    _
  // Predicated region
  $region118: #{_lambda_.1} parent=0 // pred_check
    _
  $region119: #{_lambda_.1} parent=0 // pred_check_branch
    %144 = sbr.rel (0) target = $region121
  $region120: #{_lambda_.1} parent=0 // pred_region
    _
  $region121: #{_lambda_.1} parent=0 // pred_fallthru
    _
  // Predicated region
  $region122: #{_lambda_.1} parent=0 // pred_check
    _
  $region123: #{_lambda_.1} parent=0 // pred_check_branch
    %146 = sbr.rel (0) target = $region125
  $region124: #{_lambda_.1} parent=0 // pred_region
    _
  $region125: #{_lambda_.1} parent=0 // pred_fallthru
    _
  // Predicated region
  $region126: #{_lambda_.1} parent=0 // pred_check
    _
  $region127: #{_lambda_.1} parent=0 // pred_check_branch
    %148 = sbr.rel (0) target = $region129
  $region128: #{_lambda_.1} parent=0 // pred_region
    _
  $region129: #{_lambda_.1} parent=0 // pred_fallthru
    _
  // Predicated region
  $region130: #{_lambda_.1} parent=0 // pred_check
    _
  $region131: #{_lambda_.1} parent=0 // pred_check_branch
    %150 = sbr.rel (0) target = $region133
  $region132: #{_lambda_.1} parent=0 // pred_region
    _
  $region133: #{_lambda_.1} parent=0 // pred_fallthru
    _
  // Predicated region
  $region134: #{_lambda_.1} parent=0 // pred_check
    _
  $region135: #{_lambda_.1} parent=0 // pred_check_branch
    %152 = sbr.rel (0) target = $region137
  $region136: #{_lambda_.1} parent=0 // pred_region
    _
  $region137: #{_lambda_.1} parent=0 // pred_fallthru
    _
  // Predicated region
  $region138: #{_lambda_.1} parent=0 // pred_check
    _
  $region139: #{_lambda_.1} parent=0 // pred_check_branch
    %154 = sbr.rel (0) target = $region141
  $region140: #{_lambda_.1} parent=0 // pred_region
    _
  $region141: #{_lambda_.1} parent=0 // pred_fallthru
    _
  // Predicated region
  $region142: #{_lambda_.1} parent=0 // pred_check
    _
  $region143: #{_lambda_.1} parent=0 // pred_check_branch
    %156 = sbr.rel (0) target = $region145
  $region144: #{_lambda_.1} parent=0 // pred_region
    _
  $region145: #{_lambda_.1} parent=0 // pred_fallthru
    _
  // Predicated region
  $region146: #{_lambda_.1} parent=0 // pred_check
    _
  $region147: #{_lambda_.1} parent=0 // pred_check_branch
    %158 = sbr.rel (0) target = $region149
  $region148: #{_lambda_.1} parent=0 // pred_region
    _
  $region149: #{_lambda_.1} parent=0 // pred_fallthru
    _
  // Predicated region
  $region150: #{_lambda_.1} parent=0 // pred_check
    _
  $region151: #{_lambda_.1} parent=0 // pred_check_branch
    %160 = sbr.rel (0) target = $region153
  $region152: #{_lambda_.1} parent=0 // pred_region
    _
  $region153: #{_lambda_.1} parent=0 // pred_fallthru
    _
  %v162 = vld [vmem:[%s1] sm:$0xff]
  %v163 = vld [vmem:[%s1 + $0x8] sm:$0xff]
  %v164 = vld [vmem:[%s1 + $0x10] sm:$0xff]
  %v165 = vld [vmem:[%s1 + $0x18] sm:$0xff]
  %v166 = vld [vmem:[%s1 + $0x20] sm:$0xff]
  %v167 = vld [vmem:[%s1 + $0x28] sm:$0xff]
  %v168 = vld [vmem:[%s1 + $0x30] sm:$0xff]
  %v169 = vld [vmem:[%s1 + $0x38] sm:$0xff]
  %v170 = vld [vmem:[%s1 + $0x40] sm:$0xff]
  %v171 = vld [vmem:[%s1 + $0x48] sm:$0xff]
  %v172 = vld [vmem:[%s1 + $0x50] sm:$0xff]
  %v173 = vld [vmem:[%s1 + $0x58] sm:$0xff]
  %v174 = vld [vmem:[%s9] sm:$0xf]
  %v175 = vld [vmem:[%s9 + $0x4] sm:$0xf]
  %v176 = vld [vmem:[%s9 + $0x8] sm:$0xf]
  %v177 = vld [vmem:[%s9 + $0xc] sm:$0xf]
  %v178 = vld [vmem:[%s9 + $0x10] sm:$0xf]
  %v179 = vld [vmem:[%s9 + $0x14] sm:$0xf]
  %v180 = vld [vmem:[%s9 + $0x18] sm:$0xf]
  %v181 = vld [vmem:[%s9 + $0x1c] sm:$0xf]
  %v182 = vld [vmem:[%s9 + $0x20] sm:$0xf]
  %v183 = vld [vmem:[%s9 + $0x24] sm:$0xf]
  %v184 = vld [vmem:[%s9 + $0x28] sm:$0xf]
  %v185 = vld [vmem:[%s9 + $0x2c] sm:$0xf]
  %v186 = vld [vmem:[%s9 + $0x30] sm:$0xf]
  %v187 = vld [vmem:[%s9 + $0x34] sm:$0xf]
  %v188 = vld [vmem:[%s9 + $0x38] sm:$0xf]
  %v189 = vld [vmem:[%s9 + $0x3c] sm:$0xf]
  %v190 = vld [vmem:[%s9 + $0x40] sm:$0xf]
  %v191 = vld [vmem:[%s9 + $0x44] sm:$0xf]
  %v192 = vld [vmem:[%s9 + $0x48] sm:$0xf]
  %v193 = vld [vmem:[%s9 + $0x4c] sm:$0xf]
  %v194 = vld [vmem:[%s9 + $0x50] sm:$0xf]
  %v195 = vld [vmem:[%s9 + $0x54] sm:$0xf]
  %v196 = vld [vmem:[%s9 + $0x58] sm:$0xf]
  %v197 = vld [vmem:[%s9 + $0x5c] sm:$0xf]
  %v198 = vld [vmem:[%s9 + $0x60] sm:$0xf]
  %v199 = vld [vmem:[%s9 + $0x64] sm:$0xf]
  %v200 = vld [vmem:[%s9 + $0x68] sm:$0xf]
  %v201 = vld [vmem:[%s9 + $0x6c] sm:$0xf]
  %v202 = vld [vmem:[%s9 + $0x70] sm:$0xf]
  %v203 = vld [vmem:[%s9 + $0x74] sm:$0xf]
  %v204 = vld [vmem:[%s9 + $0x78] sm:$0xf]
  %v205 = vld [vmem:[%s9 + $0x7c] sm:$0xf]
  %v206 = vld [vmem:[%s9 + $0x80] sm:$0xf]
  %v207 = vld [vmem:[%s9 + $0x84] sm:$0xf]
  %v208 = vld [vmem:[%s9 + $0x88] sm:$0xf]
  %v209 = vld [vmem:[%s9 + $0x8c] sm:$0xf]
  %v210 = vld [vmem:[%s9 + $0x90] sm:$0xf]
  %v211 = vld [vmem:[%s9 + $0x94] sm:$0xf]
  %v212 = vld [vmem:[%s9 + $0x98] sm:$0xf]
  %v213 = vld [vmem:[%s9 + $0x9c] sm:$0xf]
  %v214 = vld [vmem:[%s9 + $0xa0] sm:$0xf]
  %v215 = vld [vmem:[%s9 + $0xa4] sm:$0xf]
  %v216 = vld [vmem:[%s9 + $0xa8] sm:$0xf]
  %v217 = vld [vmem:[%s9 + $0xac] sm:$0xf]
  %v218 = vld [vmem:[%s9 + $0xb0] sm:$0xf]
  %v219 = vld [vmem:[%s9 + $0xb4] sm:$0xf]
  %v220 = vld [vmem:[%s9 + $0xb8] sm:$0xf]
  %v221 = vld [vmem:[%s9 + $0xbc] sm:$0xf]
  %v222 = vld [vmem:[%s9 + $0xc0] sm:$0xf]
  %v223 = vld [vmem:[%s9 + $0xc4] sm:$0xf]
  %v224 = vld [vmem:[%s9 + $0xc8] sm:$0xf]
  %v225 = vld [vmem:[%s9 + $0xcc] sm:$0xf]
  %v226 = vld [vmem:[%s9 + $0xd0] sm:$0xf]
  %v227 = vld [vmem:[%s9 + $0xd4] sm:$0xf]
  %v228 = vld [vmem:[%s9 + $0xd8] sm:$0xf]
  %v229 = vld [vmem:[%s9 + $0xdc] sm:$0xf]
  %v230 = vld [vmem:[%s9 + $0xe0] sm:$0xf]
  %v231 = vld [vmem:[%s9 + $0xe4] sm:$0xf]
  %v232 = vld [vmem:[%s9 + $0xe8] sm:$0xf]
  %v233 = vld [vmem:[%s9 + $0xec] sm:$0xf]
  %v234 = vld [vmem:[%s9 + $0xf0] sm:$0xf]
  %v235 = vld [vmem:[%s9 + $0xf4] sm:$0xf]
  %v236 = vld [vmem:[%s9 + $0xf8] sm:$0xf]
  %v237 = vld [vmem:[%s9 + $0xfc] sm:$0xf]
  %v238 = vpack.c.bf16 %v166, %v162
  %v239 = vpack.c.bf16 %v167, %v163
  %v240 = vpack.c.bf16 %v168, %v164
  %v241 = vpack.c.bf16 %v169, %v165
  %v242 = vpack.c.bf16 %v170, %v170
  %v243 = vpack.c.bf16 %v171, %v171
  %v244 = vpack.c.bf16 %v172, %v172
  %v245 = vpack.c.bf16 %v173, %v173
  %v246 = vld [vmem:[%s11] sm:$0x1]
  %v248 = vlaneseq
  %v249 = vshrl.u32 %v248, 7
  %v250 = vsub.s32 0, %v249
  %v251 = vrot.slane %v246, %v250
  %v317 = vunpack.c.l.b16 %v174
  %v318 = vunpack.c.l.b16 %v175
  %v319 = vunpack.c.l.b16 %v176
  %v320 = vunpack.c.l.b16 %v177
  %v321 = vunpack.c.l.b16 %v178
  %v322 = vunpack.c.l.b16 %v179
  %v323 = vunpack.c.l.b16 %v180
  %v324 = vunpack.c.l.b16 %v181
  %v325 = vunpack.c.l.b16 %v182
  %v326 = vunpack.c.l.b16 %v183
  %v327 = vunpack.c.l.b16 %v184
  %v328 = vunpack.c.l.b16 %v185
  %v329 = vunpack.c.l.b16 %v186
  %v330 = vunpack.c.l.b16 %v187
  %v331 = vunpack.c.l.b16 %v188
  %v332 = vunpack.c.l.b16 %v189
  %v333 = vunpack.c.l.b16 %v190
  %v334 = vunpack.c.l.b16 %v191
  %v335 = vunpack.c.l.b16 %v192
  %v336 = vunpack.c.l.b16 %v193
  %v337 = vunpack.c.l.b16 %v194
  %v338 = vunpack.c.l.b16 %v195
  %v339 = vunpack.c.l.b16 %v196
  %v340 = vunpack.c.l.b16 %v197
  %v341 = vunpack.c.l.b16 %v198
  %v342 = vunpack.c.l.b16 %v199
  %v343 = vunpack.c.l.b16 %v200
  %v344 = vunpack.c.l.b16 %v201
  %v345 = vunpack.c.l.b16 %v202
  %v346 = vunpack.c.l.b16 %v203
  %v347 = vunpack.c.l.b16 %v204
  %v348 = vunpack.c.l.b16 %v205
  %v349 = vunpack.c.l.b16 %v206
  %v350 = vunpack.c.l.b16 %v207
  %v351 = vunpack.c.l.b16 %v208
  %v352 = vunpack.c.l.b16 %v209
  %v353 = vunpack.c.l.b16 %v210
  %v354 = vunpack.c.l.b16 %v211
  %v355 = vunpack.c.l.b16 %v212
  %v356 = vunpack.c.l.b16 %v213
  %v357 = vunpack.c.l.b16 %v214
  %v358 = vunpack.c.l.b16 %v215
  %v359 = vunpack.c.l.b16 %v216
  %v360 = vunpack.c.l.b16 %v217
  %v361 = vunpack.c.l.b16 %v218
  %v362 = vunpack.c.l.b16 %v219
  %v363 = vunpack.c.l.b16 %v220
  %v364 = vunpack.c.l.b16 %v221
  %v365 = vunpack.c.l.b16 %v222
  %v366 = vunpack.c.l.b16 %v223
  %v367 = vunpack.c.l.b16 %v224
  %v368 = vunpack.c.l.b16 %v225
  %v369 = vunpack.c.l.b16 %v226
  %v370 = vunpack.c.l.b16 %v227
  %v371 = vunpack.c.l.b16 %v228
  %v372 = vunpack.c.l.b16 %v229
  %v373 = vunpack.c.l.b16 %v230
  %v374 = vunpack.c.l.b16 %v231
  %v375 = vunpack.c.l.b16 %v232
  %v376 = vunpack.c.l.b16 %v233
  %v377 = vunpack.c.l.b16 %v234
  %v378 = vunpack.c.l.b16 %v235
  %v379 = vunpack.c.l.b16 %v236
  %v380 = vunpack.c.l.b16 %v237
  %v381 = vpack.c.b16 %v318, %v317
  %v382 = vpack.c.b16 %v320, %v319
  %v383 = vpack.c.b16 %v322, %v321
  %v384 = vpack.c.b16 %v324, %v323
  %v385 = vpack.c.b16 %v326, %v325
  %v386 = vpack.c.b16 %v328, %v327
  %v387 = vpack.c.b16 %v330, %v329
  %v388 = vpack.c.b16 %v332, %v331
  %v389 = vpack.c.b16 %v334, %v333
  %v390 = vpack.c.b16 %v336, %v335
  %v391 = vpack.c.b16 %v338, %v337
  %v392 = vpack.c.b16 %v340, %v339
  %v393 = vpack.c.b16 %v342, %v341
  %v394 = vpack.c.b16 %v344, %v343
  %v395 = vpack.c.b16 %v346, %v345
  %v396 = vpack.c.b16 %v348, %v347
  %v397 = vpack.c.b16 %v350, %v349
  %v398 = vpack.c.b16 %v352, %v351
  %v399 = vpack.c.b16 %v354, %v353
  %v400 = vpack.c.b16 %v356, %v355
  %v401 = vpack.c.b16 %v358, %v357
  %v402 = vpack.c.b16 %v360, %v359
  %v403 = vpack.c.b16 %v362, %v361
  %v404 = vpack.c.b16 %v364, %v363
  %v405 = vpack.c.b16 %v366, %v365
  %v406 = vpack.c.b16 %v368, %v367
  %v407 = vpack.c.b16 %v370, %v369
  %v408 = vpack.c.b16 %v372, %v371
  %v409 = vpack.c.b16 %v374, %v373
  %v410 = vpack.c.b16 %v376, %v375
  %v411 = vpack.c.b16 %v378, %v377
  %v412 = vpack.c.b16 %v380, %v379
  %445 = vmatprep.subr.bf16.mxu0 0
  %446 = vmatpush1.bf16.msra.mxu0 %v381
  %447 = vmatprep.subr.bf16.mxu0 0
  %448 = vmatpush1.bf16.msra.mxu0 %v382
  %449 = vmatprep.subr.bf16.mxu0 0
  %450 = vmatpush1.bf16.msra.mxu0 %v383
  %451 = vmatprep.subr.bf16.mxu0 0
  %452 = vmatpush1.bf16.msra.mxu0 %v384
  %453 = vmatprep.subr.bf16.mxu0 0
  %454 = vmatpush1.bf16.msra.mxu0 %v385
  %455 = vmatprep.subr.bf16.mxu0 0
  %456 = vmatpush1.bf16.msra.mxu0 %v386
  %457 = vmatprep.subr.bf16.mxu0 0
  %458 = vmatpush1.bf16.msra.mxu0 %v387
  %459 = vmatprep.subr.bf16.mxu0 0
  %460 = vmatpush1.bf16.msra.mxu0 %v388
  %461 = vmatprep.subr.bf16.mxu0 0
  %462 = vmatpush1.bf16.msra.mxu0 %v389
  %463 = vmatprep.subr.bf16.mxu0 0
  %464 = vmatpush1.bf16.msra.mxu0 %v390
  %465 = vmatprep.subr.bf16.mxu0 0
  %466 = vmatpush1.bf16.msra.mxu0 %v391
  %467 = vmatprep.subr.bf16.mxu0 0
  %468 = vmatpush1.bf16.msra.mxu0 %v392
  %469 = vmatprep.subr.bf16.mxu0 0
  %470 = vmatpush1.bf16.msra.mxu0 %v393
  %471 = vmatprep.subr.bf16.mxu0 0
  %472 = vmatpush1.bf16.msra.mxu0 %v394
  %473 = vmatprep.subr.bf16.mxu0 0
  %474 = vmatpush1.bf16.msra.mxu0 %v395
  %475 = vmatprep.subr.bf16.mxu0 0
  %476 = vmatpush1.bf16.msra.mxu0 %v396
  %477 = vmatprep.mubr.bf16.mxu0 %v239
  %478 = vmatmul.mubr.bf16.gmra.mrb[0].mxu0 %v238
  %v479 = vpop.f32.mrb[0].mxu0
  %v480 = vadd.f32 %v251, %v479
  %v481 = vpop.f32.mrb[0].mxu0
  %v482 = vpop.f32.mrb[0].mxu0
  %v483 = vadd.f32 %v251, %v482
  %v484 = vpop.f32.mrb[0].mxu0
  %485 = vmatprep.mubr.bf16.mxu0 %v243
  %486 = vmatmul.mubr.bf16.gmra.mrb[0].mxu0 %v242
  %v487 = vpop.f32.mrb[0].mxu0
  %v488 = vadd.f32 %v251, %v487
  %v489 = vpop.f32.mrb[0].mxu0
  %v490 = vpop.f32.mrb[0].mxu0
  %v491 = vpop.f32.mrb[0].mxu0
  %492 = vdwg.mxu0
  %493 = vmatprep.subr.bf16.mxu0 0
  %494 = vmatpush1.bf16.msra.mxu0 %v397
  %495 = vmatprep.subr.bf16.mxu0 0
  %496 = vmatpush1.bf16.msra.mxu0 %v398
  %497 = vmatprep.subr.bf16.mxu0 0
  %498 = vmatpush1.bf16.msra.mxu0 %v399
  %499 = vmatprep.subr.bf16.mxu0 0
  %500 = vmatpush1.bf16.msra.mxu0 %v400
  %501 = vmatprep.subr.bf16.mxu0 0
  %502 = vmatpush1.bf16.msra.mxu0 %v401
  %503 = vmatprep.subr.bf16.mxu0 0
  %504 = vmatpush1.bf16.msra.mxu0 %v402
  %505 = vmatprep.subr.bf16.mxu0 0
  %506 = vmatpush1.bf16.msra.mxu0 %v403
  %507 = vmatprep.subr.bf16.mxu0 0
  %508 = vmatpush1.bf16.msra.mxu0 %v404
  %509 = vmatprep.subr.bf16.mxu0 0
  %510 = vmatpush1.bf16.msra.mxu0 %v405
  %511 = vmatprep.subr.bf16.mxu0 0
  %512 = vmatpush1.bf16.msra.mxu0 %v406
  %513 = vmatprep.subr.bf16.mxu0 0
  %514 = vmatpush1.bf16.msra.mxu0 %v407
  %515 = vmatprep.subr.bf16.mxu0 0
  %516 = vmatpush1.bf16.msra.mxu0 %v408
  %517 = vmatprep.subr.bf16.mxu0 0
  %518 = vmatpush1.bf16.msra.mxu0 %v409
  %519 = vmatprep.subr.bf16.mxu0 0
  %520 = vmatpush1.bf16.msra.mxu0 %v410
  %521 = vmatprep.subr.bf16.mxu0 0
  %522 = vmatpush1.bf16.msra.mxu0 %v411
  %523 = vmatprep.subr.bf16.mxu0 0
  %524 = vmatpush1.bf16.msra.mxu0 %v412
  %525 = vmatprep.mubr.bf16.mxu0 %v241
  %526 = vmatmul.mubr.bf16.gmra.mrb[0].mxu0 %v240
  %v527 = vpop.f32.mrb[0].mxu0
  %v528 = vadd.f32 %v480, %v527
  %v529 = vpop.f32.mrb[0].mxu0
  %v530 = vpop.f32.mrb[0].mxu0
  %v531 = vadd.f32 %v483, %v530
  %v532 = vpop.f32.mrb[0].mxu0
  %533 = vmatprep.mubr.bf16.mxu0 %v245
  %534 = vmatmul.mubr.bf16.gmra.mrb[0].mxu0 %v244
  %v535 = vpop.f32.mrb[0].mxu0
  %v536 = vadd.f32 %v488, %v535
  %v537 = vpop.f32.mrb[0].mxu0
  %v538 = vpop.f32.mrb[0].mxu0
  %v539 = vpop.f32.mrb[0].mxu0
  %540 = vdwg.mxu0
  %v541 = vld [vmem:[%s5] sm:$0xff]
  %v542 = vld [vmem:[%s5 + $0x8] sm:$0xff]
  %v543 = vld [vmem:[%s5 + $0x10] sm:$0xff]
  %v544 = vadd.f32 %v528, %v541
  %v545 = vadd.f32 %v531, %v542
  %v546 = vadd.f32 %v536, %v543
  %vm547 = vcmask 523264
  %548 = vst.msk [vmem:[#allocation2] sm:$0xff] %vm547, %v544
  %549 = vst.msk [vmem:[#allocation2 + $0x8] sm:$0xff] %vm547, %v545
  %550 = vst.msk [vmem:[#allocation2 + $0x10] sm:$0xff] %vm547, %v546
  %v551 = vld [vmem:[%s3] sm:$0xff]
  %v552 = vld [vmem:[%s13] sm:$0xf]
  %v553 = vld [vmem:[%s13 + $0x4] sm:$0xf]
  %v554 = vld [vmem:[%s13 + $0x8] sm:$0xf]
  %v555 = vld [vmem:[%s13 + $0xc] sm:$0xf]
  %v556 = vld [vmem:[%s13 + $0x10] sm:$0xf]
  %v557 = vld [vmem:[%s13 + $0x14] sm:$0xf]
  %v558 = vld [vmem:[%s13 + $0x18] sm:$0xf]
  %v559 = vld [vmem:[%s13 + $0x1c] sm:$0xf]
  %v560 = vld [vmem:[%s13 + $0x20] sm:$0xf]
  %v561 = vld [vmem:[%s13 + $0x24] sm:$0xf]
  %v562 = vld [vmem:[%s13 + $0x28] sm:$0xf]
  %v563 = vld [vmem:[%s13 + $0x2c] sm:$0xf]
  %v564 = vld [vmem:[%s13 + $0x30] sm:$0xf]
  %v565 = vld [vmem:[%s13 + $0x34] sm:$0xf]
  %v566 = vld [vmem:[%s13 + $0x38] sm:$0xf]
  %v567 = vld [vmem:[%s13 + $0x3c] sm:$0xf]
  %v568 = vld [vmem:[%s13 + $0x40] sm:$0xf]
  %v569 = vld [vmem:[%s13 + $0x44] sm:$0xf]
  %v570 = vld [vmem:[%s13 + $0x48] sm:$0xf]
  %v571 = vld [vmem:[%s13 + $0x4c] sm:$0xf]
  %v572 = vld [vmem:[%s13 + $0x50] sm:$0xf]
  %v573 = vld [vmem:[%s13 + $0x54] sm:$0xf]
  %v574 = vld [vmem:[%s13 + $0x58] sm:$0xf]
  %v575 = vld [vmem:[%s13 + $0x5c] sm:$0xf]
  %v576 = vld [vmem:[%s13 + $0x60] sm:$0xf]
  %v577 = vld [vmem:[%s13 + $0x64] sm:$0xf]
  %v578 = vld [vmem:[%s13 + $0x68] sm:$0xf]
  %v579 = vld [vmem:[%s13 + $0x6c] sm:$0xf]
  %v580 = vld [vmem:[%s13 + $0x70] sm:$0xf]
  %v581 = vld [vmem:[%s13 + $0x74] sm:$0xf]
  %v582 = vld [vmem:[%s13 + $0x78] sm:$0xf]
  %v583 = vld [vmem:[%s13 + $0x7c] sm:$0xf]
  %v585 = vcombine.high %v551, %v551
  %v587 = vpack.c.bf16 %v551, %v551
  %v588 = vpack.c.bf16 %v585, %v585
  %v589 = vld [vmem:[%s15] sm:$0x1]
  %v591 = vlaneseq
  %v592 = vshrl.u32 %v591, 7
  %v593 = vsub.s32 0, %v592
  %v594 = vrot.slane %v589, %v593
  %v628 = vunpack.c.l.b16 %v552
  %v629 = vunpack.c.l.b16 %v553
  %v630 = vunpack.c.l.b16 %v554
  %v631 = vunpack.c.l.b16 %v555
  %v632 = vunpack.c.l.b16 %v556
  %v633 = vunpack.c.l.b16 %v557
  %v634 = vunpack.c.l.b16 %v558
  %v635 = vunpack.c.l.b16 %v559
  %v636 = vunpack.c.l.b16 %v560
  %v637 = vunpack.c.l.b16 %v561
  %v638 = vunpack.c.l.b16 %v562
  %v639 = vunpack.c.l.b16 %v563
  %v640 = vunpack.c.l.b16 %v564
  %v641 = vunpack.c.l.b16 %v565
  %v642 = vunpack.c.l.b16 %v566
  %v643 = vunpack.c.l.b16 %v567
  %v644 = vunpack.c.l.b16 %v568
  %v645 = vunpack.c.l.b16 %v569
  %v646 = vunpack.c.l.b16 %v570
  %v647 = vunpack.c.l.b16 %v571
  %v648 = vunpack.c.l.b16 %v572
  %v649 = vunpack.c.l.b16 %v573
  %v650 = vunpack.c.l.b16 %v574
  %v651 = vunpack.c.l.b16 %v575
  %v652 = vunpack.c.l.b16 %v576
  %v653 = vunpack.c.l.b16 %v577
  %v654 = vunpack.c.l.b16 %v578
  %v655 = vunpack.c.l.b16 %v579
  %v656 = vunpack.c.l.b16 %v580
  %v657 = vunpack.c.l.b16 %v581
  %v658 = vunpack.c.l.b16 %v582
  %v659 = vunpack.c.l.b16 %v583
  %v660 = vpack.c.b16 %v629, %v628
  %v661 = vpack.c.b16 %v631, %v630
  %v662 = vpack.c.b16 %v633, %v632
  %v663 = vpack.c.b16 %v635, %v634
  %v664 = vpack.c.b16 %v637, %v636
  %v665 = vpack.c.b16 %v639, %v638
  %v666 = vpack.c.b16 %v641, %v640
  %v667 = vpack.c.b16 %v643, %v642
  %v668 = vpack.c.b16 %v645, %v644
  %v669 = vpack.c.b16 %v647, %v646
  %v670 = vpack.c.b16 %v649, %v648
  %v671 = vpack.c.b16 %v651, %v650
  %v672 = vpack.c.b16 %v653, %v652
  %v673 = vpack.c.b16 %v655, %v654
  %v674 = vpack.c.b16 %v657, %v656
  %v675 = vpack.c.b16 %v659, %v658
  %692 = vmatprep.subr.bf16.mxu0 0
  %693 = vmatpush1.bf16.msra.mxu0 %v660
  %694 = vmatprep.subr.bf16.mxu0 0
  %695 = vmatpush1.bf16.msra.mxu0 %v661
  %696 = vmatprep.subr.bf16.mxu0 0
  %697 = vmatpush1.bf16.msra.mxu0 %v662
  %698 = vmatprep.subr.bf16.mxu0 0
  %699 = vmatpush1.bf16.msra.mxu0 %v663
  %700 = vmatprep.subr.bf16.mxu0 0
  %701 = vmatpush1.bf16.msra.mxu0 %v664
  %702 = vmatprep.subr.bf16.mxu0 0
  %703 = vmatpush1.bf16.msra.mxu0 %v665
  %704 = vmatprep.subr.bf16.mxu0 0
  %705 = vmatpush1.bf16.msra.mxu0 %v666
  %706 = vmatprep.subr.bf16.mxu0 0
  %707 = vmatpush1.bf16.msra.mxu0 %v667
  %708 = vmatprep.subr.bf16.mxu0 0
  %709 = vmatpush1.bf16.msra.mxu0 %v668
  %710 = vmatprep.subr.bf16.mxu0 0
  %711 = vmatpush1.bf16.msra.mxu0 %v669
  %712 = vmatprep.subr.bf16.mxu0 0
  %713 = vmatpush1.bf16.msra.mxu0 %v670
  %714 = vmatprep.subr.bf16.mxu0 0
  %715 = vmatpush1.bf16.msra.mxu0 %v671
  %716 = vmatprep.subr.bf16.mxu0 0
  %717 = vmatpush1.bf16.msra.mxu0 %v672
  %718 = vmatprep.subr.bf16.mxu0 0
  %719 = vmatpush1.bf16.msra.mxu0 %v673
  %720 = vmatprep.subr.bf16.mxu0 0
  %721 = vmatpush1.bf16.msra.mxu0 %v674
  %722 = vmatprep.subr.bf16.mxu0 0
  %723 = vmatpush1.bf16.msra.mxu0 %v675
  %724 = vmatprep.mubr.bf16.mxu0 %v588
  %725 = vmatmul.mubr.bf16.gmra.mrb[0].mxu0 %v587
  %v726 = vpop.f32.mrb[0].mxu0
  %v727 = vadd.f32 %v594, %v726
  %v728 = vpop.f32.mrb[0].mxu0
  %v729 = vpop.f32.mrb[0].mxu0
  %v730 = vpop.f32.mrb[0].mxu0
  %731 = vdwg.mxu0
  %vm732 = vcmask 519168
  %733 = vst.msk [vmem:[#allocation3] sm:$0xf] %vm732, %v727
  %v734 = vld [vmem:[#allocation2] sm:$0x1f]
  %vm735 = vcmask 520192
  %736 = vst.msk [vmem:[#allocation4] sm:$0x1f] %vm735, %v734
  %v737 = vld [vmem:[#allocation2 + $0x7] sm:$0x1f]
  %738 = vst.msk [vmem:[#allocation4 + $0x5] sm:$0x1f] %vm735, %v737
  %v739 = vld [vmem:[#allocation2 + $0x5] sm:$0x3]
  %v740 = vld [vmem:[#allocation3 + $0x1] sm:$0x3]
  %v741 = vadd.f32 %v739, %v740
  %vm742 = vcmask 517120
  %743 = vst.msk [vmem:[#allocation5 + $0x5] sm:$0x3] %vm742, %v741
  %v744 = vld [vmem:[#allocation2 + $0xc] sm:$0x1f]
  %745 = vst.msk [vmem:[#allocation4 + $0xa] sm:$0x1f] %vm735, %v744
  %v746 = vld [vmem:[#allocation2 + $0x13] sm:$0x1f]
  %747 = vst.msk [vmem:[#allocation4 + $0xf] sm:$0x1f] %vm735, %v746
  %v748 = vld [vmem:[#allocation2 + $0x11] sm:$0x3]
  %v749 = vld [vmem:[#allocation3 + $0x1] sm:$0x3]
  %v750 = vadd.f32 %v748, %v749
  %751 = vst.msk [vmem:[#allocation5 + $0x11] sm:$0x3] %vm742, %v750
  %v752 = vlaneseq
  %v753 = vshrl.u32 %v752, 7
  %v754 = vadd.s32 %v753, 8
  %v755 = vadd.s32 %v753, 16
  %v756 = vlaneseq
  %v757 = vand.u32 %v756, 127
  %vm758 = vcmp.ge.s32.totalorder %v753, 0
  %vm759 = vcmp.ge.s32.totalorder %v754, 0
  %vm760 = vcmp.ge.s32.totalorder %v755, 0
  %vm761 = vcmp.lt.s32.totalorder %v753, 10
  %vm762 = vcmp.lt.s32.totalorder %v754, 10
  %vm763 = vcmp.lt.s32.totalorder %v755, 10
  %vm764 = vmand %vm758, %vm761
  %vm765 = vmand %vm759, %vm762
  %vm766 = vmand %vm760, %vm763
  %vm767 = vcmp.ge.s32.totalorder %v757, 0
  %vm768 = vcmp.lt.s32.totalorder %v757, 10
  %vm769 = vmand %vm767, %vm768
  %vm770 = vmand %vm764, %vm769
  %vm771 = vmand %vm765, %vm769
  %vm772 = vmand %vm766, %vm769
  %vm773 = vcmp.ge.s32.totalorder %v753, 10
  %vm774 = vcmp.ge.s32.totalorder %v754, 10
  %vm775 = vcmp.ge.s32.totalorder %v755, 10
  %vm776 = vcmp.lt.s32.totalorder %v753, 20
  %vm777 = vcmp.lt.s32.totalorder %v754, 20
  %vm778 = vcmp.lt.s32.totalorder %v755, 20
  %vm779 = vmand %vm773, %vm776
  %vm780 = vmand %vm774, %vm777
  %vm781 = vmand %vm775, %vm778
  %vm782 = vcmp.ge.s32.totalorder %v757, 10
  %vm783 = vcmp.lt.s32.totalorder %v757, 20
  %vm784 = vmand %vm782, %vm783
  %vm785 = vmand %vm779, %vm784
  %vm786 = vmand %vm780, %vm784
  %vm787 = vmand %vm781, %vm784
  %vm788 = vmor %vm770, %vm785
  %vm789 = vmor %vm771, %vm786
  %vm790 = vmor %vm772, %vm787
  %v791 = vld [vmem:[#allocation4] sm:$0xff]
  %v792 = vld [vmem:[#allocation4 + $0x8] sm:$0xff]
  %v793 = vld [vmem:[#allocation4 + $0x10] sm:$0xf]
  %v794 = vld [vmem:[%s17] sm:$0x1]
  %v795 = vld [vmem:[%s19] sm:$0x1]
  %v796 = vsel %vm547, %v791, 0.0
  %797 = vadd.xlane.f32.xlu0 %v796
  %v798 = vpop.xlane.xlu0 %797
  %v799 = vsel %vm547, %v792, 0.0
  %800 = vadd.xlane.f32.xlu0 %v799
  %v801 = vpop.xlane.xlu0 %800
  %v802 = vsel %vm732, %v793, 0.0
  %803 = vadd.xlane.f32.xlu0 %v802
  %v804 = vpop.xlane.xlu0 %803
  %v805 = vrcp.pop 64.0
  %v806 = vmul.f32 %v798, %v805
  %v807 = vmul.f32 %v801, %v805
  %v808 = vmul.f32 %v804, %v805
  %v809 = vsub.f32 %v791, %v806
  %v810 = vsub.f32 %v792, %v807
  %v811 = vsub.f32 %v793, %v808
  %v812 = vmul.f32 %v809, %v809
  %v813 = vmul.f32 %v810, %v810
  %v814 = vmul.f32 %v811, %v811
  %v815 = vsel %vm547, %v812, 0.0
  %816 = vadd.xlane.f32.xlu0 %v815
  %v817 = vpop.xlane.xlu0 %816
  %v818 = vsel %vm547, %v813, 0.0
  %819 = vadd.xlane.f32.xlu0 %v818
  %v820 = vpop.xlane.xlu0 %819
  %v821 = vsel %vm732, %v814, 0.0
  %822 = vadd.xlane.f32.xlu0 %v821
  %v823 = vpop.xlane.xlu0 %822
  %v824 = vmul.f32 %v817, %v805
  %v825 = vmul.f32 %v820, %v805
  %v826 = vmul.f32 %v823, %v805
  %v827 = vadd.f32 %v824, 1e-06
  %v828 = vadd.f32 %v825, 1e-06
  %v829 = vadd.f32 %v826, 1e-06
  %v830 = vrsqrt.pop %v827
  %v831 = vrsqrt.pop %v828
  %v832 = vrsqrt.pop %v829
  %v833 = vmul.f32 %v809, %v830
  %v834 = vmul.f32 %v810, %v831
  %v835 = vmul.f32 %v811, %v832
  %v837 = vlaneseq
  %v838 = vshrl.u32 %v837, 7
  %v839 = vsub.s32 0, %v838
  %v840 = vrot.slane %v794, %v839
  %v842 = vmul.f32 %v833, %v840
  %v843 = vmul.f32 %v834, %v840
  %v844 = vmul.f32 %v835, %v840
  %v846 = vlaneseq
  %v847 = vshrl.u32 %v846, 7
  %v848 = vsub.s32 0, %v847
  %v849 = vrot.slane %v795, %v848
  %v851 = vadd.f32 %v842, %v849
  %v852 = vadd.f32 %v843, %v849
  %v853 = vadd.f32 %v844, %v849
  %v854 = vpack.c.bf16 %v852, %v851
  %v855 = vpack.c.bf16 %v853, %v853
  %v856 = vld [vmem:[%s21] sm:$0xff]
  %v857 = vld [vmem:[%s21 + $0x8] sm:$0xff]
  %v858 = vld [vmem:[%s21 + $0x10] sm:$0xff]
  %v859 = vld [vmem:[%s21 + $0x18] sm:$0xff]
  %v860 = vld [vmem:[%s21 + $0x20] sm:$0xff]
  %v861 = vld [vmem:[%s21 + $0x28] sm:$0xff]
  %v862 = vld [vmem:[%s21 + $0x30] sm:$0xff]
  %v863 = vld [vmem:[%s21 + $0x38] sm:$0xff]
  %v864 = vld [vmem:[%s23] sm:$0x3]
  %v865 = vld [vmem:[%s25] sm:$0xf]
  %v866 = vld [vmem:[%s25 + $0x4] sm:$0xf]
  %v867 = vld [vmem:[%s25 + $0x8] sm:$0xf]
  %v868 = vld [vmem:[%s25 + $0xc] sm:$0xf]
  %v869 = vld [vmem:[%s25 + $0x10] sm:$0xf]
  %v870 = vld [vmem:[%s25 + $0x14] sm:$0xf]
  %v871 = vld [vmem:[%s25 + $0x18] sm:$0xf]
  %v872 = vld [vmem:[%s25 + $0x1c] sm:$0xf]
  %v873 = vld [vmem:[%s27] sm:$0x1]
  %v875 = vlaneseq
  %v876 = vshrl.u32 %v875, 7
  %v877 = vsub.s32 0, %v876
  %v878 = vrot.slane %v864, %v877
  %v879 = vlaneseq
  %v880 = vshrl.u32 %v879, 7
  %v881 = vsub.s32 1, %v880
  %v882 = vrot.slane %v864, %v881
  %v893 = vunpack.c.l.b16 %v856
  %v894 = vunpack.c.h.b16 %v856
  %v895 = vunpack.c.l.b16 %v857
  %v896 = vunpack.c.h.b16 %v857
  %v897 = vunpack.c.l.b16 %v858
  %v898 = vunpack.c.h.b16 %v858
  %v899 = vunpack.c.l.b16 %v859
  %v900 = vunpack.c.h.b16 %v859
  %v901 = vunpack.c.l.b16 %v860
  %v902 = vunpack.c.h.b16 %v860
  %v903 = vunpack.c.l.b16 %v861
  %v904 = vunpack.c.h.b16 %v861
  %v905 = vunpack.c.l.b16 %v862
  %v906 = vunpack.c.h.b16 %v862
  %v907 = vunpack.c.l.b16 %v863
  %v908 = vunpack.c.h.b16 %v863
  %v909 = vpack.c.b16 %v895, %v893
  %v910 = vpack.c.b16 %v896, %v894
  %v911 = vpack.c.b16 %v899, %v897
  %v912 = vpack.c.b16 %v900, %v898
  %v913 = vpack.c.b16 %v903, %v901
  %v914 = vpack.c.b16 %v904, %v902
  %v915 = vpack.c.b16 %v907, %v905
  %v916 = vpack.c.b16 %v908, %v906
  %v926 = vsel %vm547, %v854, 0
  %v929 = vsel %vm547, %v855, 0
  %931 = vmatprep.subr.bf16.mxu0 %v910
  %932 = vmatpush1.bf16.msra.mxu0 %v909
  %933 = vmatprep.subr.bf16.mxu0 %v912
  %934 = vmatpush1.bf16.msra.mxu0 %v911
  %935 = vmatprep.subr.bf16.mxu0 %v914
  %936 = vmatpush1.bf16.msra.mxu0 %v913
  %937 = vmatprep.subr.bf16.mxu0 %v916
  %938 = vmatpush1.bf16.msra.mxu0 %v915
  %939 = vmatprep.subr.bf16.mxu0 0
  %940 = vmatpush1.bf16.msra.mxu0 0
  %941 = vmatprep.subr.bf16.mxu0 0
  %942 = vmatpush1.bf16.msra.mxu0 0
  %943 = vmatprep.subr.bf16.mxu0 0
  %944 = vmatpush1.bf16.msra.mxu0 0
  %945 = vmatprep.subr.bf16.mxu0 0
  %946 = vmatpush1.bf16.msra.mxu0 0
  %947 = vmatprep.subr.bf16.mxu0 0
  %948 = vmatpush1.bf16.msra.mxu0 0
  %949 = vmatprep.subr.bf16.mxu0 0
  %950 = vmatpush1.bf16.msra.mxu0 0
  %951 = vmatprep.subr.bf16.mxu0 0
  %952 = vmatpush1.bf16.msra.mxu0 0
  %953 = vmatprep.subr.bf16.mxu0 0
  %954 = vmatpush1.bf16.msra.mxu0 0
  %955 = vmatprep.subr.bf16.mxu0 0
  %956 = vmatpush1.bf16.msra.mxu0 0
  %957 = vmatprep.subr.bf16.mxu0 0
  %958 = vmatpush1.bf16.msra.mxu0 0
  %959 = vmatprep.subr.bf16.mxu0 0
  %960 = vmatpush1.bf16.msra.mxu0 0
  %961 = vmatprep.subr.bf16.mxu0 0
  %962 = vmatpush1.bf16.msra.mxu0 0
  %963 = vmatprep.mubr.bf16.mxu0 0
  %964 = vmatmul.mubr.bf16.gmra.mrb[0].mxu0 %v926
  %v965 = vpop.f32.mrb[0].mxu0
  %v966 = vadd.f32 %v878, %v965
  %v967 = vpop.f32.mrb[0].mxu0
  %v968 = vadd.f32 %v882, %v967
  %v969 = vpop.f32.mrb[0].mxu0
  %v970 = vadd.f32 %v878, %v969
  %v971 = vpop.f32.mrb[0].mxu0
  %v972 = vadd.f32 %v882, %v971
  %973 = vmatprep.mubr.bf16.mxu0 0
  %974 = vmatmul.mubr.bf16.gmra.mrb[0].mxu0 %v929
  %v975 = vpop.f32.mrb[0].mxu0
  %v976 = vadd.f32 %v878, %v975
  %v977 = vpop.f32.mrb[0].mxu0
  %v978 = vadd.f32 %v882, %v977
  %v979 = vpop.f32.mrb[0].mxu0
  %v980 = vpop.f32.mrb[0].mxu0
  %981 = vdwg.mxu0
  %v982 = vpack.c.bf16 %v970, %v966
  %v983 = vpack.c.bf16 %v972, %v968
  %v984 = vpack.c.bf16 %v976, %v976
  %v985 = vpack.c.bf16 %v978, %v978
  %988 = vrot.lane.b32.xlu0 %v982, 64
  %v989 = vpop.permute.xlu0 %988
  %990 = vrot.lane.b32.xlu0 %v984, 64
  %v991 = vpop.permute.xlu0 %990
  %vm992 = vcmask 261120
  %v994 = vsel %vm992, %v982, 0
  %v997 = vsel %vm992, %v984, 0
  %v1000 = vsel %vm992, %v989, 0
  %v1003 = vsel %vm992, %v991, 0
  %1005 = vmatprep.subr.bf16.mxu0 0
  %1006 = vmatpush1.bf16.xpose.msra.mxu0 %v1000
  %1007 = vmatprep.subr.bf16.mxu0 0
  %1008 = vmatpush1.bf16.xpose.msra.mxu0 %v1003
  %1009 = vmatprep.subr.bf16.mxu0 0
  %1010 = vmatpush1.bf16.xpose.msra.mxu0 0
  %1011 = vmatprep.subr.bf16.mxu0 0
  %1012 = vmatpush1.bf16.xpose.msra.mxu0 0
  %1013 = vmatprep.subr.bf16.mxu0 0
  %1014 = vmatpush1.bf16.xpose.msra.mxu0 0
  %1015 = vmatprep.subr.bf16.mxu0 0
  %1016 = vmatpush1.bf16.xpose.msra.mxu0 0
  %1017 = vmatprep.subr.bf16.mxu0 0
  %1018 = vmatpush1.bf16.xpose.msra.mxu0 0
  %1019 = vmatprep.subr.bf16.mxu0 0
  %1020 = vmatpush1.bf16.xpose.msra.mxu0 0
  %1021 = vmatprep.subr.bf16.mxu0 0
  %1022 = vmatpush1.bf16.xpose.msra.mxu0 0
  %1023 = vmatprep.subr.bf16.mxu0 0
  %1024 = vmatpush1.bf16.xpose.msra.mxu0 0
  %1025 = vmatprep.subr.bf16.mxu0 0
  %1026 = vmatpush1.bf16.xpose.msra.mxu0 0
  %1027 = vmatprep.subr.bf16.mxu0 0
  %1028 = vmatpush1.bf16.xpose.msra.mxu0 0
  %1029 = vmatprep.subr.bf16.mxu0 0
  %1030 = vmatpush1.bf16.xpose.msra.mxu0 0
  %1031 = vmatprep.subr.bf16.mxu0 0
  %1032 = vmatpush1.bf16.xpose.msra.mxu0 0
  %1033 = vmatprep.subr.bf16.mxu0 0
  %1034 = vmatpush1.bf16.xpose.msra.mxu0 0
  %1035 = vmatprep.subr.bf16.mxu0 0
  %1036 = vmatpush1.bf16.xpose.msra.mxu0 0
  %1037 = vmatprep.mubr.bf16.mxu0 0
  %1038 = vmatmul.mubr.bf16.gmra.mrb[0].mxu0 %v994
  %v1039 = vpop.f32.mrb[0].mxu0
  %v1040 = vadd.f32 0.0, %v1039
  %v1041 = vpop.f32.mrb[0].mxu0
  %v1042 = vpop.f32.mrb[0].mxu0
  %v1043 = vadd.f32 0.0, %v1042
  %v1044 = vpop.f32.mrb[0].mxu0
  %1045 = vmatprep.mubr.bf16.mxu0 0
  %1046 = vmatmul.mubr.bf16.gmra.mrb[0].mxu0 %v997
  %v1047 = vpop.f32.mrb[0].mxu0
  %v1048 = vadd.f32 0.0, %v1047
  %v1049 = vpop.f32.mrb[0].mxu0
  %v1050 = vpop.f32.mrb[0].mxu0
  %v1051 = vpop.f32.mrb[0].mxu0
  %1052 = vdwg.mxu0
  %v1053 = vmul.f32 %v1040, 0.17677669
  %v1054 = vmul.f32 %v1043, 0.17677669
  %v1055 = vmul.f32 %v1048, 0.17677669
  %v1056 = vsel %vm788, %v1053, -1e+30
  %v1057 = vsel %vm789, %v1054, -1e+30
  %v1058 = vsel %vm790, %v1055, -1e+30
  %vm1059 = vcmask 162816
  %v1060 = vsel %vm1059, %v1056, -inf
  %1061 = vmax.xlane.f32.xlu0 %v1060
  %v1062 = vpop.xlane.xlu0 %1061
  %v1063 = vsel %vm1059, %v1057, -inf
  %1064 = vmax.xlane.f32.xlu0 %v1063
  %v1065 = vpop.xlane.xlu0 %1064
  %vm1066 = vcmask 158720
  %v1067 = vsel %vm1066, %v1058, -inf
  %1068 = vmax.xlane.f32.xlu0 %v1067
  %v1069 = vpop.xlane.xlu0 %1068
  %v1070 = vsub.f32 %v1056, %v1062
  %v1071 = vsub.f32 %v1057, %v1065
  %v1072 = vsub.f32 %v1058, %v1069
  %v1073 = vmul.f32 %v1070, 1.442695
  %v1074 = vpow.pop %v1073
  %v1075 = vmul.f32 %v1071, 1.442695
  %v1076 = vpow.pop %v1075
  %v1077 = vmul.f32 %v1072, 1.442695
  %v1078 = vpow.pop %v1077
  %v1079 = vsel %vm1059, %v1074, 0.0
  %1080 = vadd.xlane.f32.xlu0 %v1079
  %v1081 = vpop.xlane.xlu0 %1080
  %v1082 = vsel %vm1059, %v1076, 0.0
  %1083 = vadd.xlane.f32.xlu0 %v1082
  %v1084 = vpop.xlane.xlu0 %1083
  %v1085 = vsel %vm1066, %v1078, 0.0
  %1086 = vadd.xlane.f32.xlu0 %v1085
  %v1087 = vpop.xlane.xlu0 %1086
  %v1088 = vrcp.pop %v1081
  %v1089 = vrcp.pop %v1084
  %v1090 = vrcp.pop %v1087
  %v1091 = vmul.f32 %v1074, %v1088
  %v1092 = vmul.f32 %v1076, %v1089
  %v1093 = vmul.f32 %v1078, %v1090
  %v1094 = vpack.c.bf16 %v1092, %v1091
  %v1095 = vpack.c.bf16 %v1093, %v1093
  %v1097 = vsel %vm1059, %v1094, 0
  %v1100 = vsel %vm1059, %v1095, 0
  %vm1102 = vcmask 1041408
  %v1104 = vsel %vm1102, %v985, 0
  %1106 = vmatprep.subr.bf16.mxu0 0
  %1107 = vmatpush1.bf16.msra.mxu0 %v983
  %1108 = vmatprep.subr.bf16.mxu0 0
  %1109 = vmatpush1.bf16.msra.mxu0 %v1104
  %1110 = vmatprep.subr.bf16.mxu0 0
  %1111 = vmatpush1.bf16.msra.mxu0 0
  %1112 = vmatprep.subr.bf16.mxu0 0
  %1113 = vmatpush1.bf16.msra.mxu0 0
  %1114 = vmatprep.subr.bf16.mxu0 0
  %1115 = vmatpush1.bf16.msra.mxu0 0
  %1116 = vmatprep.subr.bf16.mxu0 0
  %1117 = vmatpush1.bf16.msra.mxu0 0
  %1118 = vmatprep.subr.bf16.mxu0 0
  %1119 = vmatpush1.bf16.msra.mxu0 0
  %1120 = vmatprep.subr.bf16.mxu0 0
  %1121 = vmatpush1.bf16.msra.mxu0 0
  %1122 = vmatprep.subr.bf16.mxu0 0
  %1123 = vmatpush1.bf16.msra.mxu0 0
  %1124 = vmatprep.subr.bf16.mxu0 0
  %1125 = vmatpush1.bf16.msra.mxu0 0
  %1126 = vmatprep.subr.bf16.mxu0 0
  %1127 = vmatpush1.bf16.msra.mxu0 0
  %1128 = vmatprep.subr.bf16.mxu0 0
  %1129 = vmatpush1.bf16.msra.mxu0 0
  %1130 = vmatprep.subr.bf16.mxu0 0
  %1131 = vmatpush1.bf16.msra.mxu0 0
  %1132 = vmatprep.subr.bf16.mxu0 0
  %1133 = vmatpush1.bf16.msra.mxu0 0
  %1134 = vmatprep.subr.bf16.mxu0 0
  %1135 = vmatpush1.bf16.msra.mxu0 0
  %1136 = vmatprep.subr.bf16.mxu0 0
  %1137 = vmatpush1.bf16.msra.mxu0 0
  %1138 = vmatprep.mubr.bf16.mxu0 0
  %1139 = vmatmul.mubr.bf16.gmra.mrb[0].mxu0 %v1097
  %v1140 = vpop.f32.mrb[0].mxu0
  %v1141 = vadd.f32 0.0, %v1140
  %v1142 = vpop.f32.mrb[0].mxu0
  %v1143 = vpop.f32.mrb[0].mxu0
  %v1144 = vadd.f32 0.0, %v1143
  %v1145 = vpop.f32.mrb[0].mxu0
  %1146 = vmatprep.mubr.bf16.mxu0 0
  %1147 = vmatmul.mubr.bf16.gmra.mrb[0].mxu0 %v1100
  %v1148 = vpop.f32.mrb[0].mxu0
  %v1149 = vadd.f32 0.0, %v1148
  %v1150 = vpop.f32.mrb[0].mxu0
  %v1151 = vpop.f32.mrb[0].mxu0
  %v1152 = vpop.f32.mrb[0].mxu0
  %1153 = vdwg.mxu0
  %v1154 = vpack.c.bf16 %v1144, %v1141
  %v1155 = vpack.c.bf16 %v1149, %v1149
  %1156 = vrot.lane.b32.xlu0 %v982, 96
  %v1157 = vpop.permute.xlu0 %1156
  %1158 = vrot.lane.b32.xlu0 %v984, 96
  %v1159 = vpop.permute.xlu0 %1158
  %1160 = vrot.lane.b32.xlu0 %v982, 32
  %v1161 = vpop.permute.xlu0 %1160
  %1162 = vrot.lane.b32.xlu0 %v984, 32
  %v1163 = vpop.permute.xlu0 %1162
  %v1165 = vsel %vm992, %v1157, 0
  %v1168 = vsel %vm992, %v1159, 0
  %v1171 = vsel %vm992, %v1161, 0
  %v1174 = vsel %vm992, %v1163, 0
  %1176 = vmatprep.subr.bf16.mxu0 0
  %1177 = vmatpush1.bf16.xpose.msra.mxu0 %v1171
  %1178 = vmatprep.subr.bf16.mxu0 0
  %1179 = vmatpush1.bf16.xpose.msra.mxu0 %v1174
  %1180 = vmatprep.subr.bf16.mxu0 0
  %1181 = vmatpush1.bf16.xpose.msra.mxu0 0
  %1182 = vmatprep.subr.bf16.mxu0 0
  %1183 = vmatpush1.bf16.xpose.msra.mxu0 0
  %1184 = vmatprep.subr.bf16.mxu0 0
  %1185 = vmatpush1.bf16.xpose.msra.mxu0 0
  %1186 = vmatprep.subr.bf16.mxu0 0
  %1187 = vmatpush1.bf16.xpose.msra.mxu0 0
  %1188 = vmatprep.subr.bf16.mxu0 0
  %1189 = vmatpush1.bf16.xpose.msra.mxu0 0
  %1190 = vmatprep.subr.bf16.mxu0 0
  %1191 = vmatpush1.bf16.xpose.msra.mxu0 0
  %1192 = vmatprep.subr.bf16.mxu0 0
  %1193 = vmatpush1.bf16.xpose.msra.mxu0 0
  %1194 = vmatprep.subr.bf16.mxu0 0
  %1195 = vmatpush1.bf16.xpose.msra.mxu0 0
  %1196 = vmatprep.subr.bf16.mxu0 0
  %1197 = vmatpush1.bf16.xpose.msra.mxu0 0
  %1198 = vmatprep.subr.bf16.mxu0 0
  %1199 = vmatpush1.bf16.xpose.msra.mxu0 0
  %1200 = vmatprep.subr.bf16.mxu0 0
  %1201 = vmatpush1.bf16.xpose.msra.mxu0 0
  %1202 = vmatprep.subr.bf16.mxu0 0
  %1203 = vmatpush1.bf16.xpose.msra.mxu0 0
  %1204 = vmatprep.subr.bf16.mxu0 0
  %1205 = vmatpush1.bf16.xpose.msra.mxu0 0
  %1206 = vmatprep.subr.bf16.mxu0 0
  %1207 = vmatpush1.bf16.xpose.msra.mxu0 0
  %1208 = vmatprep.mubr.bf16.mxu0 0
  %1209 = vmatmul.mubr.bf16.gmra.mrb[0].mxu0 %v1165
  %v1210 = vpop.f32.mrb[0].mxu0
  %v1211 = vadd.f32 0.0, %v1210
  %v1212 = vpop.f32.mrb[0].mxu0
  %v1213 = vpop.f32.mrb[0].mxu0
  %v1214 = vadd.f32 0.0, %v1213
  %v1215 = vpop.f32.mrb[0].mxu0
  %1216 = vmatprep.mubr.bf16.mxu0 0
  %1217 = vmatmul.mubr.bf16.gmra.mrb[0].mxu0 %v1168
  %v1218 = vpop.f32.mrb[0].mxu0
  %v1219 = vadd.f32 0.0, %v1218
  %v1220 = vpop.f32.mrb[0].mxu0
  %v1221 = vpop.f32.mrb[0].mxu0
  %v1222 = vpop.f32.mrb[0].mxu0
  %1223 = vdwg.mxu0
  %v1224 = vmul.f32 %v1211, 0.17677669
  %v1225 = vmul.f32 %v1214, 0.17677669
  %v1226 = vmul.f32 %v1219, 0.17677669
  %v1227 = vsel %vm788, %v1224, -1e+30
  %v1228 = vsel %vm789, %v1225, -1e+30
  %v1229 = vsel %vm790, %v1226, -1e+30
  %v1230 = vsel %vm1059, %v1227, -inf
  %1231 = vmax.xlane.f32.xlu0 %v1230
  %v1232 = vpop.xlane.xlu0 %1231
  %v1233 = vsel %vm1059, %v1228, -inf
  %1234 = vmax.xlane.f32.xlu0 %v1233
  %v1235 = vpop.xlane.xlu0 %1234
  %v1236 = vsel %vm1066, %v1229, -inf
  %1237 = vmax.xlane.f32.xlu0 %v1236
  %v1238 = vpop.xlane.xlu0 %1237
  %v1239 = vsub.f32 %v1227, %v1232
  %v1240 = vsub.f32 %v1228, %v1235
  %v1241 = vsub.f32 %v1229, %v1238
  %v1242 = vmul.f32 %v1239, 1.442695
  %v1243 = vpow.pop %v1242
  %v1244 = vmul.f32 %v1240, 1.442695
  %v1245 = vpow.pop %v1244
  %v1246 = vmul.f32 %v1241, 1.442695
  %v1247 = vpow.pop %v1246
  %v1248 = vsel %vm1059, %v1243, 0.0
  %1249 = vadd.xlane.f32.xlu0 %v1248
  %v1250 = vpop.xlane.xlu0 %1249
  %v1251 = vsel %vm1059, %v1245, 0.0
  %1252 = vadd.xlane.f32.xlu0 %v1251
  %v1253 = vpop.xlane.xlu0 %1252
  %v1254 = vsel %vm1066, %v1247, 0.0
  %1255 = vadd.xlane.f32.xlu0 %v1254
  %v1256 = vpop.xlane.xlu0 %1255
  %v1257 = vrcp.pop %v1250
  %v1258 = vrcp.pop %v1253
  %v1259 = vrcp.pop %v1256
  %v1260 = vmul.f32 %v1243, %v1257
  %v1261 = vmul.f32 %v1245, %v1258
  %v1262 = vmul.f32 %v1247, %v1259
  %v1263 = vpack.c.bf16 %v1261, %v1260
  %v1264 = vpack.c.bf16 %v1262, %v1262
  %1267 = vrot.lane.b32.xlu0 %v983, 96
  %v1268 = vpop.permute.xlu0 %1267
  %1269 = vrot.lane.b32.xlu0 %v985, 96
  %v1270 = vpop.permute.xlu0 %1269
  %v1273 = vsel %vm1059, %v1263, 0
  %v1276 = vsel %vm1059, %v1264, 0
  %v1279 = vsel %vm1102, %v1270, 0
  %1281 = vmatprep.subr.bf16.mxu0 0
  %1282 = vmatpush1.bf16.msra.mxu0 %v1268
  %1283 = vmatprep.subr.bf16.mxu0 0
  %1284 = vmatpush1.bf16.msra.mxu0 %v1279
  %1285 = vmatprep.subr.bf16.mxu0 0
  %1286 = vmatpush1.bf16.msra.mxu0 0
  %1287 = vmatprep.subr.bf16.mxu0 0
  %1288 = vmatpush1.bf16.msra.mxu0 0
  %1289 = vmatprep.subr.bf16.mxu0 0
  %1290 = vmatpush1.bf16.msra.mxu0 0
  %1291 = vmatprep.subr.bf16.mxu0 0
  %1292 = vmatpush1.bf16.msra.mxu0 0
  %1293 = vmatprep.subr.bf16.mxu0 0
  %1294 = vmatpush1.bf16.msra.mxu0 0
  %1295 = vmatprep.subr.bf16.mxu0 0
  %1296 = vmatpush1.bf16.msra.mxu0 0
  %1297 = vmatprep.subr.bf16.mxu0 0
  %1298 = vmatpush1.bf16.msra.mxu0 0
  %1299 = vmatprep.subr.bf16.mxu0 0
  %1300 = vmatpush1.bf16.msra.mxu0 0
  %1301 = vmatprep.subr.bf16.mxu0 0
  %1302 = vmatpush1.bf16.msra.mxu0 0
  %1303 = vmatprep.subr.bf16.mxu0 0
  %1304 = vmatpush1.bf16.msra.mxu0 0
  %1305 = vmatprep.subr.bf16.mxu0 0
  %1306 = vmatpush1.bf16.msra.mxu0 0
  %1307 = vmatprep.subr.bf16.mxu0 0
  %1308 = vmatpush1.bf16.msra.mxu0 0
  %1309 = vmatprep.subr.bf16.mxu0 0
  %1310 = vmatpush1.bf16.msra.mxu0 0
  %1311 = vmatprep.subr.bf16.mxu0 0
  %1312 = vmatpush1.bf16.msra.mxu0 0
  %1313 = vmatprep.mubr.bf16.mxu0 0
  %1314 = vmatmul.mubr.bf16.gmra.mrb[0].mxu0 %v1273
  %v1315 = vpop.f32.mrb[0].mxu0
  %v1316 = vadd.f32 0.0, %v1315
  %v1317 = vpop.f32.mrb[0].mxu0
  %v1318 = vpop.f32.mrb[0].mxu0
  %v1319 = vadd.f32 0.0, %v1318
  %v1320 = vpop.f32.mrb[0].mxu0
  %1321 = vmatprep.mubr.bf16.mxu0 0
  %1322 = vmatmul.mubr.bf16.gmra.mrb[0].mxu0 %v1276
  %v1323 = vpop.f32.mrb[0].mxu0
  %v1324 = vadd.f32 0.0, %v1323
  %v1325 = vpop.f32.mrb[0].mxu0
  %v1326 = vpop.f32.mrb[0].mxu0
  %v1327 = vpop.f32.mrb[0].mxu0
  %1328 = vdwg.mxu0
  %v1329 = vpack.c.bf16 %v1319, %v1316
  %v1330 = vpack.c.bf16 %v1324, %v1324
  %v1335 = vunpack.c.l.b16 %v869
  %v1336 = vunpack.c.l.b16 %v870
  %v1337 = vunpack.c.l.b16 %v871
  %v1338 = vunpack.c.l.b16 %v872
  %v1339 = vpack.c.b16 %v1336, %v1335
  %v1340 = vpack.c.b16 %v1338, %v1337
  %v1344 = vsel %vm992, %v1329, 0
  %v1347 = vsel %vm992, %v1330, 0
  %1349 = vmatprep.subr.bf16.mxu0 0
  %1350 = vmatpush1.bf16.msra.mxu0 %v1339
  %1351 = vmatprep.subr.bf16.mxu0 0
  %1352 = vmatpush1.bf16.msra.mxu0 %v1340
  %1353 = vmatprep.subr.bf16.mxu0 0
  %1354 = vmatpush1.bf16.msra.mxu0 0
  %1355 = vmatprep.subr.bf16.mxu0 0
  %1356 = vmatpush1.bf16.msra.mxu0 0
  %1357 = vmatprep.subr.bf16.mxu0 0
  %1358 = vmatpush1.bf16.msra.mxu0 0
  %1359 = vmatprep.subr.bf16.mxu0 0
  %1360 = vmatpush1.bf16.msra.mxu0 0
  %1361 = vmatprep.subr.bf16.mxu0 0
  %1362 = vmatpush1.bf16.msra.mxu0 0
  %1363 = vmatprep.subr.bf16.mxu0 0
  %1364 = vmatpush1.bf16.msra.mxu0 0
  %1365 = vmatprep.subr.bf16.mxu0 0
  %1366 = vmatpush1.bf16.msra.mxu0 0
  %1367 = vmatprep.subr.bf16.mxu0 0
  %1368 = vmatpush1.bf16.msra.mxu0 0
  %1369 = vmatprep.subr.bf16.mxu0 0
  %1370 = vmatpush1.bf16.msra.mxu0 0
  %1371 = vmatprep.subr.bf16.mxu0 0
  %1372 = vmatpush1.bf16.msra.mxu0 0
  %1373 = vmatprep.subr.bf16.mxu0 0
  %1374 = vmatpush1.bf16.msra.mxu0 0
  %1375 = vmatprep.subr.bf16.mxu0 0
  %1376 = vmatpush1.bf16.msra.mxu0 0
  %1377 = vmatprep.subr.bf16.mxu0 0
  %1378 = vmatpush1.bf16.msra.mxu0 0
  %1379 = vmatprep.subr.bf16.mxu0 0
  %1380 = vmatpush1.bf16.msra.mxu0 0
  %1381 = vmatprep.mubr.bf16.mxu0 0
  %1382 = vmatmul.mubr.bf16.gmra.mrb[0].mxu0 %v1344
  %v1383 = vpop.f32.mrb[0].mxu0
  %v1384 = vadd.f32 0.0, %v1383
  %v1385 = vpop.f32.mrb[0].mxu0
  %v1386 = vpop.f32.mrb[0].mxu0
  %v1387 = vadd.f32 0.0, %v1386
  %v1388 = vpop.f32.mrb[0].mxu0
  %1389 = vmatprep.mubr.bf16.mxu0 0
  %1390 = vmatmul.mubr.bf16.gmra.mrb[0].mxu0 %v1347
  %v1391 = vpop.f32.mrb[0].mxu0
  %v1392 = vadd.f32 0.0, %v1391
  %v1393 = vpop.f32.mrb[0].mxu0
  %v1394 = vpop.f32.mrb[0].mxu0
  %v1395 = vpop.f32.mrb[0].mxu0
  %1396 = vdwg.mxu0
  %v1401 = vunpack.c.l.b16 %v865
  %v1402 = vunpack.c.l.b16 %v866
  %v1403 = vunpack.c.l.b16 %v867
  %v1404 = vunpack.c.l.b16 %v868
  %v1405 = vpack.c.b16 %v1402, %v1401
  %v1406 = vpack.c.b16 %v1404, %v1403
  %v1410 = vsel %vm992, %v1154, 0
  %v1413 = vsel %vm992, %v1155, 0
  %1415 = vmatprep.subr.bf16.mxu0 0
  %1416 = vmatpush1.bf16.msra.mxu0 %v1405
  %1417 = vmatprep.subr.bf16.mxu0 0
  %1418 = vmatpush1.bf16.msra.mxu0 %v1406
  %1419 = vmatprep.subr.bf16.mxu0 0
  %1420 = vmatpush1.bf16.msra.mxu0 0
  %1421 = vmatprep.subr.bf16.mxu0 0
  %1422 = vmatpush1.bf16.msra.mxu0 0
  %1423 = vmatprep.subr.bf16.mxu0 0
  %1424 = vmatpush1.bf16.msra.mxu0 0
  %1425 = vmatprep.subr.bf16.mxu0 0
  %1426 = vmatpush1.bf16.msra.mxu0 0
  %1427 = vmatprep.subr.bf16.mxu0 0
  %1428 = vmatpush1.bf16.msra.mxu0 0
  %1429 = vmatprep.subr.bf16.mxu0 0
  %1430 = vmatpush1.bf16.msra.mxu0 0
  %1431 = vmatprep.subr.bf16.mxu0 0
  %1432 = vmatpush1.bf16.msra.mxu0 0
  %1433 = vmatprep.subr.bf16.mxu0 0
  %1434 = vmatpush1.bf16.msra.mxu0 0
  %1435 = vmatprep.subr.bf16.mxu0 0
  %1436 = vmatpush1.bf16.msra.mxu0 0
  %1437 = vmatprep.subr.bf16.mxu0 0
  %1438 = vmatpush1.bf16.msra.mxu0 0
  %1439 = vmatprep.subr.bf16.mxu0 0
  %1440 = vmatpush1.bf16.msra.mxu0 0
  %1441 = vmatprep.subr.bf16.mxu0 0
  %1442 = vmatpush1.bf16.msra.mxu0 0
  %1443 = vmatprep.subr.bf16.mxu0 0
  %1444 = vmatpush1.bf16.msra.mxu0 0
  %1445 = vmatprep.subr.bf16.mxu0 0
  %1446 = vmatpush1.bf16.msra.mxu0 0
  %1447 = vmatprep.mubr.bf16.mxu0 0
  %1448 = vmatmul.mubr.bf16.gmra.mrb[0].mxu0 %v1410
  %v1449 = vpop.f32.mrb[0].mxu0
  %v1450 = vadd.f32 %v1384, %v1449
  %v1451 = vpop.f32.mrb[0].mxu0
  %v1452 = vpop.f32.mrb[0].mxu0
  %v1453 = vadd.f32 %v1387, %v1452
  %v1454 = vpop.f32.mrb[0].mxu0
  %1455 = vmatprep.mubr.bf16.mxu0 0
  %1456 = vmatmul.mubr.bf16.gmra.mrb[0].mxu0 %v1413
  %v1457 = vpop.f32.mrb[0].mxu0
  %v1458 = vadd.f32 %v1392, %v1457
  %v1459 = vpop.f32.mrb[0].mxu0
  %v1460 = vpop.f32.mrb[0].mxu0
  %v1461 = vpop.f32.mrb[0].mxu0
  %1462 = vdwg.mxu0
  %v1464 = vlaneseq
  %v1465 = vshrl.u32 %v1464, 7
  %v1466 = vsub.s32 0, %v1465
  %v1467 = vrot.slane %v873, %v1466
  %v1469 = vadd.f32 %v1450, %v1467
  %v1470 = vadd.f32 %v1453, %v1467
  %v1471 = vadd.f32 %v1458, %v1467
  %v1472 = vadd.f32 %v791, %v1469
  %v1473 = vadd.f32 %v792, %v1470
  %v1474 = vadd.f32 %v793, %v1471
  %v1475 = vld [vmem:[%s29] sm:$0x1]
  %v1476 = vld [vmem:[%s31] sm:$0x1]
  %v1477 = vsel %vm547, %v1472, 0.0
  %1478 = vadd.xlane.f32.xlu0 %v1477
  %v1479 = vpop.xlane.xlu0 %1478
  %v1480 = vsel %vm547, %v1473, 0.0
  %1481 = vadd.xlane.f32.xlu0 %v1480
  %v1482 = vpop.xlane.xlu0 %1481
  %v1483 = vsel %vm732, %v1474, 0.0
  %1484 = vadd.xlane.f32.xlu0 %v1483
  %v1485 = vpop.xlane.xlu0 %1484
  %v1486 = vmul.f32 %v1479, %v805
  %v1487 = vmul.f32 %v1482, %v805
  %v1488 = vmul.f32 %v1485, %v805
  %v1489 = vsub.f32 %v1472, %v1486
  %v1490 = vsub.f32 %v1473, %v1487
  %v1491 = vsub.f32 %v1474, %v1488
  %v1492 = vmul.f32 %v1489, %v1489
  %v1493 = vmul.f32 %v1490, %v1490
  %v1494 = vmul.f32 %v1491, %v1491
  %v1495 = vsel %vm547, %v1492, 0.0
  %1496 = vadd.xlane.f32.xlu0 %v1495
  %v1497 = vpop.xlane.xlu0 %1496
  %v1498 = vsel %vm547, %v1493, 0.0
  %1499 = vadd.xlane.f32.xlu0 %v1498
  %v1500 = vpop.xlane.xlu0 %1499
  %v1501 = vsel %vm732, %v1494, 0.0
  %1502 = vadd.xlane.f32.xlu0 %v1501
  %v1503 = vpop.xlane.xlu0 %1502
  %v1504 = vmul.f32 %v1497, %v805
  %v1505 = vmul.f32 %v1500, %v805
  %v1506 = vmul.f32 %v1503, %v805
  %v1507 = vadd.f32 %v1504, 1e-06
  %v1508 = vadd.f32 %v1505, 1e-06
  %v1509 = vadd.f32 %v1506, 1e-06
  %v1510 = vrsqrt.pop %v1507
  %v1511 = vrsqrt.pop %v1508
  %v1512 = vrsqrt.pop %v1509
  %v1513 = vmul.f32 %v1489, %v1510
  %v1514 = vmul.f32 %v1490, %v1511
  %v1515 = vmul.f32 %v1491, %v1512
  %v1517 = vlaneseq
  %v1518 = vshrl.u32 %v1517, 7
  %v1519 = vsub.s32 0, %v1518
  %v1520 = vrot.slane %v1475, %v1519
  %v1522 = vmul.f32 %v1513, %v1520
  %v1523 = vmul.f32 %v1514, %v1520
  %v1524 = vmul.f32 %v1515, %v1520
  %v1526 = vlaneseq
  %v1527 = vshrl.u32 %v1526, 7
  %v1528 = vsub.s32 0, %v1527
  %v1529 = vrot.slane %v1476, %v1528
  %v1531 = vadd.f32 %v1522, %v1529
  %v1532 = vadd.f32 %v1523, %v1529
  %v1533 = vadd.f32 %v1524, %v1529
  %v1534 = vpack.c.bf16 %v1532, %v1531
  %v1535 = vpack.c.bf16 %v1533, %v1533
  %v1536 = vld [vmem:[%s33] sm:$0xff]
  %v1537 = vld [vmem:[%s33 + $0x8] sm:$0xff]
  %v1538 = vld [vmem:[%s33 + $0x10] sm:$0xff]
  %v1539 = vld [vmem:[%s33 + $0x18] sm:$0xff]
  %v1540 = vld [vmem:[%s33 + $0x20] sm:$0xff]
  %v1541 = vld [vmem:[%s33 + $0x28] sm:$0xff]
  %v1542 = vld [vmem:[%s33 + $0x30] sm:$0xff]
  %v1543 = vld [vmem:[%s33 + $0x38] sm:$0xff]
  %v1544 = vld [vmem:[%s35] sm:$0x3]
  %v1546 = vlaneseq
  %v1547 = vshrl.u32 %v1546, 7
  %v1548 = vsub.s32 0, %v1547
  %v1549 = vrot.slane %v1544, %v1548
  %v1550 = vlaneseq
  %v1551 = vshrl.u32 %v1550, 7
  %v1552 = vsub.s32 1, %v1551
  %v1553 = vrot.slane %v1544, %v1552
  %v1564 = vunpack.c.l.b16 %v1536
  %v1565 = vunpack.c.h.b16 %v1536
  %v1566 = vunpack.c.l.b16 %v1537
  %v1567 = vunpack.c.h.b16 %v1537
  %v1568 = vunpack.c.l.b16 %v1538
  %v1569 = vunpack.c.h.b16 %v1538
  %v1570 = vunpack.c.l.b16 %v1539
  %v1571 = vunpack.c.h.b16 %v1539
  %v1572 = vunpack.c.l.b16 %v1540
  %v1573 = vunpack.c.h.b16 %v1540
  %v1574 = vunpack.c.l.b16 %v1541
  %v1575 = vunpack.c.h.b16 %v1541
  %v1576 = vunpack.c.l.b16 %v1542
  %v1577 = vunpack.c.h.b16 %v1542
  %v1578 = vunpack.c.l.b16 %v1543
  %v1579 = vunpack.c.h.b16 %v1543
  %v1580 = vpack.c.b16 %v1566, %v1564
  %v1581 = vpack.c.b16 %v1567, %v1565
  %v1582 = vpack.c.b16 %v1570, %v1568
  %v1583 = vpack.c.b16 %v1571, %v1569
  %v1584 = vpack.c.b16 %v1574, %v1572
  %v1585 = vpack.c.b16 %v1575, %v1573
  %v1586 = vpack.c.b16 %v1578, %v1576
  %v1587 = vpack.c.b16 %v1579, %v1577
  %v1597 = vsel %vm547, %v1534, 0
  %v1600 = vsel %vm547, %v1535, 0
  %1602 = vmatprep.subr.bf16.mxu0 %v1581
  %1603 = vmatpush1.bf16.msra.mxu0 %v1580
  %1604 = vmatprep.subr.bf16.mxu0 %v1583
  %1605 = vmatpush1.bf16.msra.mxu0 %v1582
  %1606 = vmatprep.subr.bf16.mxu0 %v1585
  %1607 = vmatpush1.bf16.msra.mxu0 %v1584
  %1608 = vmatprep.subr.bf16.mxu0 %v1587
  %1609 = vmatpush1.bf16.msra.mxu0 %v1586
  %1610 = vmatprep.subr.bf16.mxu0 0
  %1611 = vmatpush1.bf16.msra.mxu0 0
  %1612 = vmatprep.subr.bf16.mxu0 0
  %1613 = vmatpush1.bf16.msra.mxu0 0
  %1614 = vmatprep.subr.bf16.mxu0 0
  %1615 = vmatpush1.bf16.msra.mxu0 0
  %1616 = vmatprep.subr.bf16.mxu0 0
  %1617 = vmatpush1.bf16.msra.mxu0 0
  %1618 = vmatprep.subr.bf16.mxu0 0
  %1619 = vmatpush1.bf16.msra.mxu0 0
  %1620 = vmatprep.subr.bf16.mxu0 0
  %1621 = vmatpush1.bf16.msra.mxu0 0
  %1622 = vmatprep.subr.bf16.mxu0 0
  %1623 = vmatpush1.bf16.msra.mxu0 0
  %1624 = vmatprep.subr.bf16.mxu0 0
  %1625 = vmatpush1.bf16.msra.mxu0 0
  %1626 = vmatprep.subr.bf16.mxu0 0
  %1627 = vmatpush1.bf16.msra.mxu0 0
  %1628 = vmatprep.subr.bf16.mxu0 0
  %1629 = vmatpush1.bf16.msra.mxu0 0
  %1630 = vmatprep.subr.bf16.mxu0 0
  %1631 = vmatpush1.bf16.msra.mxu0 0
  %1632 = vmatprep.subr.bf16.mxu0 0
  %1633 = vmatpush1.bf16.msra.mxu0 0
  %1634 = vmatprep.mubr.bf16.mxu0 0
  %1635 = vmatmul.mubr.bf16.gmra.mrb[0].mxu0 %v1597
  %v1636 = vpop.f32.mrb[0].mxu0
  %v1637 = vadd.f32 %v1549, %v1636
  %v1638 = vpop.f32.mrb[0].mxu0
  %v1639 = vadd.f32 %v1553, %v1638
  %v1640 = vpop.f32.mrb[0].mxu0
  %v1641 = vadd.f32 %v1549, %v1640
  %v1642 = vpop.f32.mrb[0].mxu0
  %v1643 = vadd.f32 %v1553, %v1642
  %1644 = vmatprep.mubr.bf16.mxu0 0
  %1645 = vmatmul.mubr.bf16.gmra.mrb[0].mxu0 %v1600
  %v1646 = vpop.f32.mrb[0].mxu0
  %v1647 = vadd.f32 %v1549, %v1646
  %v1648 = vpop.f32.mrb[0].mxu0
  %v1649 = vadd.f32 %v1553, %v1648
  %v1650 = vpop.f32.mrb[0].mxu0
  %v1651 = vpop.f32.mrb[0].mxu0
  %1652 = vdwg.mxu0
  %v1653 = vmul.f32 %v1637, %v1637
  %v1654 = vmul.f32 %v1639, %v1639
  %v1655 = vmul.f32 %v1641, %v1641
  %v1656 = vmul.f32 %v1643, %v1643
  %v1657 = vmul.f32 %v1647, %v1647
  %v1658 = vmul.f32 %v1649, %v1649
  %v1659 = vmul.f32 %v1637, %v1653
  %v1660 = vmul.f32 %v1639, %v1654
  %v1661 = vmul.f32 %v1641, %v1655
  %v1662 = vmul.f32 %v1643, %v1656
  %v1663 = vmul.f32 %v1647, %v1657
  %v1664 = vmul.f32 %v1649, %v1658
  %v1665 = vmul.f32 %v1659, 0.044715
  %v1666 = vmul.f32 %v1660, 0.044715
  %v1667 = vmul.f32 %v1661, 0.044715
  %v1668 = vmul.f32 %v1662, 0.044715
  %v1669 = vmul.f32 %v1663, 0.044715
  %v1670 = vmul.f32 %v1664, 0.044715
  %v1671 = vadd.f32 %v1637, %v1665
  %v1672 = vadd.f32 %v1639, %v1666
  %v1673 = vadd.f32 %v1641, %v1667
  %v1674 = vadd.f32 %v1643, %v1668
  %v1675 = vadd.f32 %v1647, %v1669
  %v1676 = vadd.f32 %v1649, %v1670
  %v1677 = vmul.f32 %v1671, 0.7978846
  %v1678 = vmul.f32 %v1672, 0.7978846
  %v1679 = vmul.f32 %v1673, 0.7978846
  %v1680 = vmul.f32 %v1674, 0.7978846
  %v1681 = vmul.f32 %v1675, 0.7978846
  %v1682 = vmul.f32 %v1676, 0.7978846
  %v1683 = vtanh.pop %v1677
  %v1684 = vtanh.pop %v1678
  %v1685 = vtanh.pop %v1679
  %v1686 = vtanh.pop %v1680
  %v1687 = vtanh.pop %v1681
  %v1688 = vtanh.pop %v1682
  %v1689 = vadd.f32 %v1683, 1.0
  %v1690 = vadd.f32 %v1684, 1.0
  %v1691 = vadd.f32 %v1685, 1.0
  %v1692 = vadd.f32 %v1686, 1.0
  %v1693 = vadd.f32 %v1687, 1.0
  %v1694 = vadd.f32 %v1688, 1.0
  %v1695 = vmul.f32 %v1689, 0.5
  %v1696 = vmul.f32 %v1690, 0.5
  %v1697 = vmul.f32 %v1691, 0.5
  %v1698 = vmul.f32 %v1692, 0.5
  %v1699 = vmul.f32 %v1693, 0.5
  %v1700 = vmul.f32 %v1694, 0.5
  %v1701 = vmul.f32 %v1637, %v1695
  %v1702 = vmul.f32 %v1639, %v1696
  %v1703 = vmul.f32 %v1641, %v1697
  %v1704 = vmul.f32 %v1643, %v1698
  %v1705 = vmul.f32 %v1647, %v1699
  %v1706 = vmul.f32 %v1649, %v1700
  %v1707 = vpack.c.bf16 %v1703, %v1701
  %v1708 = vpack.c.bf16 %v1704, %v1702
  %v1709 = vpack.c.bf16 %v1705, %v1705
  %v1710 = vpack.c.bf16 %v1706, %v1706
  %v1711 = vld [vmem:[%s37] sm:$0xf]
  %v1712 = vld [vmem:[%s37 + $0x4] sm:$0xf]
  %v1713 = vld [vmem:[%s37 + $0x8] sm:$0xf]
  %v1714 = vld [vmem:[%s37 + $0xc] sm:$0xf]
  %v1715 = vld [vmem:[%s37 + $0x10] sm:$0xf]
  %v1716 = vld [vmem:[%s37 + $0x14] sm:$0xf]
  %v1717 = vld [vmem:[%s37 + $0x18] sm:$0xf]
  %v1718 = vld [vmem:[%s37 + $0x1c] sm:$0xf]
  %v1719 = vld [vmem:[%s37 + $0x20] sm:$0xf]
  %v1720 = vld [vmem:[%s37 + $0x24] sm:$0xf]
  %v1721 = vld [vmem:[%s37 + $0x28] sm:$0xf]
  %v1722 = vld [vmem:[%s37 + $0x2c] sm:$0xf]
  %v1723 = vld [vmem:[%s37 + $0x30] sm:$0xf]
  %v1724 = vld [vmem:[%s37 + $0x34] sm:$0xf]
  %v1725 = vld [vmem:[%s37 + $0x38] sm:$0xf]
  %v1726 = vld [vmem:[%s37 + $0x3c] sm:$0xf]
  %v1727 = vld [vmem:[%s37 + $0x40] sm:$0xf]
  %v1728 = vld [vmem:[%s37 + $0x44] sm:$0xf]
  %v1729 = vld [vmem:[%s37 + $0x48] sm:$0xf]
  %v1730 = vld [vmem:[%s37 + $0x4c] sm:$0xf]
  %v1731 = vld [vmem:[%s37 + $0x50] sm:$0xf]
  %v1732 = vld [vmem:[%s37 + $0x54] sm:$0xf]
  %v1733 = vld [vmem:[%s37 + $0x58] sm:$0xf]
  %v1734 = vld [vmem:[%s37 + $0x5c] sm:$0xf]
  %v1735 = vld [vmem:[%s37 + $0x60] sm:$0xf]
  %v1736 = vld [vmem:[%s37 + $0x64] sm:$0xf]
  %v1737 = vld [vmem:[%s37 + $0x68] sm:$0xf]
  %v1738 = vld [vmem:[%s37 + $0x6c] sm:$0xf]
  %v1739 = vld [vmem:[%s37 + $0x70] sm:$0xf]
  %v1740 = vld [vmem:[%s37 + $0x74] sm:$0xf]
  %v1741 = vld [vmem:[%s37 + $0x78] sm:$0xf]
  %v1742 = vld [vmem:[%s37 + $0x7c] sm:$0xf]
  %v1775 = vunpack.c.l.b16 %v1711
  %v1776 = vunpack.c.l.b16 %v1712
  %v1777 = vunpack.c.l.b16 %v1713
  %v1778 = vunpack.c.l.b16 %v1714
  %v1779 = vunpack.c.l.b16 %v1715
  %v1780 = vunpack.c.l.b16 %v1716
  %v1781 = vunpack.c.l.b16 %v1717
  %v1782 = vunpack.c.l.b16 %v1718
  %v1783 = vunpack.c.l.b16 %v1719
  %v1784 = vunpack.c.l.b16 %v1720
  %v1785 = vunpack.c.l.b16 %v1721
  %v1786 = vunpack.c.l.b16 %v1722
  %v1787 = vunpack.c.l.b16 %v1723
  %v1788 = vunpack.c.l.b16 %v1724
  %v1789 = vunpack.c.l.b16 %v1725
  %v1790 = vunpack.c.l.b16 %v1726
  %v1791 = vunpack.c.l.b16 %v1727
  %v1792 = vunpack.c.l.b16 %v1728
  %v1793 = vunpack.c.l.b16 %v1729
  %v1794 = vunpack.c.l.b16 %v1730
  %v1795 = vunpack.c.l.b16 %v1731
  %v1796 = vunpack.c.l.b16 %v1732
  %v1797 = vunpack.c.l.b16 %v1733
  %v1798 = vunpack.c.l.b16 %v1734
  %v1799 = vunpack.c.l.b16 %v1735
  %v1800 = vunpack.c.l.b16 %v1736
  %v1801 = vunpack.c.l.b16 %v1737
  %v1802 = vunpack.c.l.b16 %v1738
  %v1803 = vunpack.c.l.b16 %v1739
  %v1804 = vunpack.c.l.b16 %v1740
  %v1805 = vunpack.c.l.b16 %v1741
  %v1806 = vunpack.c.l.b16 %v1742
  %v1807 = vpack.c.b16 %v1776, %v1775
  %v1808 = vpack.c.b16 %v1778, %v1777
  %v1809 = vpack.c.b16 %v1780, %v1779
  %v1810 = vpack.c.b16 %v1782, %v1781
  %v1811 = vpack.c.b16 %v1784, %v1783
  %v1812 = vpack.c.b16 %v1786, %v1785
  %v1813 = vpack.c.b16 %v1788, %v1787
  %v1814 = vpack.c.b16 %v1790, %v1789
  %v1815 = vpack.c.b16 %v1792, %v1791
  %v1816 = vpack.c.b16 %v1794, %v1793
  %v1817 = vpack.c.b16 %v1796, %v1795
  %v1818 = vpack.c.b16 %v1798, %v1797
  %v1819 = vpack.c.b16 %v1800, %v1799
  %v1820 = vpack.c.b16 %v1802, %v1801
  %v1821 = vpack.c.b16 %v1804, %v1803
  %v1822 = vpack.c.b16 %v1806, %v1805
  %1839 = vmatprep.subr.bf16.mxu0 0
  %1840 = vmatpush1.bf16.msra.mxu0 %v1807
  %1841 = vmatprep.subr.bf16.mxu0 0
  %1842 = vmatpush1.bf16.msra.mxu0 %v1808
  %1843 = vmatprep.subr.bf16.mxu0 0
  %1844 = vmatpush1.bf16.msra.mxu0 %v1809
  %1845 = vmatprep.subr.bf16.mxu0 0
  %1846 = vmatpush1.bf16.msra.mxu0 %v1810
  %1847 = vmatprep.subr.bf16.mxu0 0
  %1848 = vmatpush1.bf16.msra.mxu0 %v1811
  %1849 = vmatprep.subr.bf16.mxu0 0
  %1850 = vmatpush1.bf16.msra.mxu0 %v1812
  %1851 = vmatprep.subr.bf16.mxu0 0
  %1852 = vmatpush1.bf16.msra.mxu0 %v1813
  %1853 = vmatprep.subr.bf16.mxu0 0
  %1854 = vmatpush1.bf16.msra.mxu0 %v1814
  %1855 = vmatprep.subr.bf16.mxu0 0
  %1856 = vmatpush1.bf16.msra.mxu0 %v1815
  %1857 = vmatprep.subr.bf16.mxu0 0
  %1858 = vmatpush1.bf16.msra.mxu0 %v1816
  %1859 = vmatprep.subr.bf16.mxu0 0
  %1860 = vmatpush1.bf16.msra.mxu0 %v1817
  %1861 = vmatprep.subr.bf16.mxu0 0
  %1862 = vmatpush1.bf16.msra.mxu0 %v1818
  %1863 = vmatprep.subr.bf16.mxu0 0
  %1864 = vmatpush1.bf16.msra.mxu0 %v1819
  %1865 = vmatprep.subr.bf16.mxu0 0
  %1866 = vmatpush1.bf16.msra.mxu0 %v1820
  %1867 = vmatprep.subr.bf16.mxu0 0
  %1868 = vmatpush1.bf16.msra.mxu0 %v1821
  %1869 = vmatprep.subr.bf16.mxu0 0
  %1870 = vmatpush1.bf16.msra.mxu0 %v1822
  %1871 = vmatprep.mubr.bf16.mxu0 %v1708
  %1872 = vmatmul.mubr.bf16.gmra.mrb[0].mxu0 %v1707
  %v1873 = vpop.f32.mrb[0].mxu0
  %v1874 = vadd.f32 0.0, %v1873
  %v1875 = vpop.f32.mrb[0].mxu0
  %v1876 = vpop.f32.mrb[0].mxu0
  %v1877 = vadd.f32 0.0, %v1876
  %v1878 = vpop.f32.mrb[0].mxu0
  %1879 = vmatprep.mubr.bf16.mxu0 %v1710
  %1880 = vmatmul.mubr.bf16.gmra.mrb[0].mxu0 %v1709
  %v1881 = vpop.f32.mrb[0].mxu0
  %v1882 = vadd.f32 0.0, %v1881
  %v1883 = vpop.f32.mrb[0].mxu0
  %v1884 = vpop.f32.mrb[0].mxu0
  %v1885 = vpop.f32.mrb[0].mxu0
  %1886 = vdwg.mxu0
  %v1887 = vadd.f32 %v1472, %v1874
  %v1888 = vadd.f32 %v1473, %v1877
  %v1889 = vadd.f32 %v1474, %v1882
  %v1890 = vld [vmem:[%s39] sm:$0x1]
  %v1892 = vlaneseq
  %v1893 = vshrl.u32 %v1892, 7
  %v1894 = vsub.s32 0, %v1893
  %v1895 = vrot.slane %v1890, %v1894
  %v1897 = vadd.f32 %v1887, %v1895
  %v1898 = vadd.f32 %v1888, %v1895
  %v1899 = vadd.f32 %v1889, %v1895
  %s1900 = scalar_lea.vmem %s17, 1
  %v1901 = vld [vmem:[%s1900] sm:$0x1]
  %s1902 = scalar_lea.vmem %s19, 1
  %v1903 = vld [vmem:[%s1902] sm:$0x1]
  %v1904 = vsel %vm547, %v1897, 0.0
  %1905 = vadd.xlane.f32.xlu0 %v1904
  %v1906 = vpop.xlane.xlu0 %1905
  %v1907 = vsel %vm547, %v1898, 0.0
  %1908 = vadd.xlane.f32.xlu0 %v1907
  %v1909 = vpop.xlane.xlu0 %1908
  %v1910 = vsel %vm732, %v1899, 0.0
  %1911 = vadd.xlane.f32.xlu0 %v1910
  %v1912 = vpop.xlane.xlu0 %1911
  %v1913 = vmul.f32 %v1906, %v805
  %v1914 = vmul.f32 %v1909, %v805
  %v1915 = vmul.f32 %v1912, %v805
  %v1916 = vsub.f32 %v1897, %v1913
  %v1917 = vsub.f32 %v1898, %v1914
  %v1918 = vsub.f32 %v1899, %v1915
  %v1919 = vmul.f32 %v1916, %v1916
  %v1920 = vmul.f32 %v1917, %v1917
  %v1921 = vmul.f32 %v1918, %v1918
  %v1922 = vsel %vm547, %v1919, 0.0
  %1923 = vadd.xlane.f32.xlu0 %v1922
  %v1924 = vpop.xlane.xlu0 %1923
  %v1925 = vsel %vm547, %v1920, 0.0
  %1926 = vadd.xlane.f32.xlu0 %v1925
  %v1927 = vpop.xlane.xlu0 %1926
  %v1928 = vsel %vm732, %v1921, 0.0
  %1929 = vadd.xlane.f32.xlu0 %v1928
  %v1930 = vpop.xlane.xlu0 %1929
  %v1931 = vmul.f32 %v1924, %v805
  %v1932 = vmul.f32 %v1927, %v805
  %v1933 = vmul.f32 %v1930, %v805
  %v1934 = vadd.f32 %v1931, 1e-06
  %v1935 = vadd.f32 %v1932, 1e-06
  %v1936 = vadd.f32 %v1933, 1e-06
  %v1937 = vrsqrt.pop %v1934
  %v1938 = vrsqrt.pop %v1935
  %v1939 = vrsqrt.pop %v1936
  %v1940 = vmul.f32 %v1916, %v1937
  %v1941 = vmul.f32 %v1917, %v1938
  %v1942 = vmul.f32 %v1918, %v1939
  %v1944 = vlaneseq
  %v1945 = vshrl.u32 %v1944, 7
  %v1946 = vsub.s32 0, %v1945
  %v1947 = vrot.slane %v1901, %v1946
  %v1949 = vmul.f32 %v1940, %v1947
  %v1950 = vmul.f32 %v1941, %v1947
  %v1951 = vmul.f32 %v1942, %v1947
  %v1953 = vlaneseq
  %v1954 = vshrl.u32 %v1953, 7
  %v1955 = vsub.s32 0, %v1954
  %v1956 = vrot.slane %v1903, %v1955
  %v1958 = vadd.f32 %v1949, %v1956
  %v1959 = vadd.f32 %v1950, %v1956
  %v1960 = vadd.f32 %v1951, %v1956
  %v1961 = vpack.c.bf16 %v1959, %v1958
  %v1962 = vpack.c.bf16 %v1960, %v1960
  %s1963 = scalar_lea.vmem %s21, 64
  %v1964 = vld [vmem:[%s1963] sm:$0xff]
  %v1965 = vld [vmem:[%s1963 + $0x8] sm:$0xff]
  %v1966 = vld [vmem:[%s1963 + $0x10] sm:$0xff]
  %v1967 = vld [vmem:[%s1963 + $0x18] sm:$0xff]
  %v1968 = vld [vmem:[%s1963 + $0x20] sm:$0xff]
  %v1969 = vld [vmem:[%s1963 + $0x28] sm:$0xff]
  %v1970 = vld [vmem:[%s1963 + $0x30] sm:$0xff]
  %v1971 = vld [vmem:[%s1963 + $0x38] sm:$0xff]
  %s1972 = scalar_lea.vmem %s23, 2
  %v1973 = vld [vmem:[%s1972] sm:$0x3]
  %s1974 = scalar_lea.vmem %s25, 32
  %v1975 = vld [vmem:[%s1974] sm:$0xf]
  %v1976 = vld [vmem:[%s1974 + $0x4] sm:$0xf]
  %v1977 = vld [vmem:[%s1974 + $0x8] sm:$0xf]
  %v1978 = vld [vmem:[%s1974 + $0xc] sm:$0xf]
  %v1979 = vld [vmem:[%s1974 + $0x10] sm:$0xf]
  %v1980 = vld [vmem:[%s1974 + $0x14] sm:$0xf]
  %v1981 = vld [vmem:[%s1974 + $0x18] sm:$0xf]
  %v1982 = vld [vmem:[%s1974 + $0x1c] sm:$0xf]
  %s1983 = scalar_lea.vmem %s27, 1
  %v1984 = vld [vmem:[%s1983] sm:$0x1]
  %v1986 = vlaneseq
  %v1987 = vshrl.u32 %v1986, 7
  %v1988 = vsub.s32 0, %v1987
  %v1989 = vrot.slane %v1973, %v1988
  %v1990 = vlaneseq
  %v1991 = vshrl.u32 %v1990, 7
  %v1992 = vsub.s32 1, %v1991
  %v1993 = vrot.slane %v1973, %v1992
  %v2004 = vunpack.c.l.b16 %v1964
  %v2005 = vunpack.c.h.b16 %v1964
  %v2006 = vunpack.c.l.b16 %v1965
  %v2007 = vunpack.c.h.b16 %v1965
  %v2008 = vunpack.c.l.b16 %v1966
  %v2009 = vunpack.c.h.b16 %v1966
  %v2010 = vunpack.c.l.b16 %v1967
  %v2011 = vunpack.c.h.b16 %v1967
  %v2012 = vunpack.c.l.b16 %v1968
  %v2013 = vunpack.c.h.b16 %v1968
  %v2014 = vunpack.c.l.b16 %v1969
  %v2015 = vunpack.c.h.b16 %v1969
  %v2016 = vunpack.c.l.b16 %v1970
  %v2017 = vunpack.c.h.b16 %v1970
  %v2018 = vunpack.c.l.b16 %v1971
  %v2019 = vunpack.c.h.b16 %v1971
  %v2020 = vpack.c.b16 %v2006, %v2004
  %v2021 = vpack.c.b16 %v2007, %v2005
  %v2022 = vpack.c.b16 %v2010, %v2008
  %v2023 = vpack.c.b16 %v2011, %v2009
  %v2024 = vpack.c.b16 %v2014, %v2012
  %v2025 = vpack.c.b16 %v2015, %v2013
  %v2026 = vpack.c.b16 %v2018, %v2016
  %v2027 = vpack.c.b16 %v2019, %v2017
  %v2037 = vsel %vm547, %v1961, 0
  %v2040 = vsel %vm547, %v1962, 0
  %2042 = vmatprep.subr.bf16.mxu0 %v2021
  %2043 = vmatpush1.bf16.msra.mxu0 %v2020
  %2044 = vmatprep.subr.bf16.mxu0 %v2023
  %2045 = vmatpush1.bf16.msra.mxu0 %v2022
  %2046 = vmatprep.subr.bf16.mxu0 %v2025
  %2047 = vmatpush1.bf16.msra.mxu0 %v2024
  %2048 = vmatprep.subr.bf16.mxu0 %v2027
  %2049 = vmatpush1.bf16.msra.mxu0 %v2026
  %2050 = vmatprep.subr.bf16.mxu0 0
  %2051 = vmatpush1.bf16.msra.mxu0 0
  %2052 = vmatprep.subr.bf16.mxu0 0
  %2053 = vmatpush1.bf16.msra.mxu0 0
  %2054 = vmatprep.subr.bf16.mxu0 0
  %2055 = vmatpush1.bf16.msra.mxu0 0
  %2056 = vmatprep.subr.bf16.mxu0 0
  %2057 = vmatpush1.bf16.msra.mxu0 0
  %2058 = vmatprep.subr.bf16.mxu0 0
  %2059 = vmatpush1.bf16.msra.mxu0 0
  %2060 = vmatprep.subr.bf16.mxu0 0
  %2061 = vmatpush1.bf16.msra.mxu0 0
  %2062 = vmatprep.subr.bf16.mxu0 0
  %2063 = vmatpush1.bf16.msra.mxu0 0
  %2064 = vmatprep.subr.bf16.mxu0 0
  %2065 = vmatpush1.bf16.msra.mxu0 0
  %2066 = vmatprep.subr.bf16.mxu0 0
  %2067 = vmatpush1.bf16.msra.mxu0 0
  %2068 = vmatprep.subr.bf16.mxu0 0
  %2069 = vmatpush1.bf16.msra.mxu0 0
  %2070 = vmatprep.subr.bf16.mxu0 0
  %2071 = vmatpush1.bf16.msra.mxu0 0
  %2072 = vmatprep.subr.bf16.mxu0 0
  %2073 = vmatpush1.bf16.msra.mxu0 0
  %2074 = vmatprep.mubr.bf16.mxu0 0
  %2075 = vmatmul.mubr.bf16.gmra.mrb[0].mxu0 %v2037
  %v2076 = vpop.f32.mrb[0].mxu0
  %v2077 = vadd.f32 %v1989, %v2076
  %v2078 = vpop.f32.mrb[0].mxu0
  %v2079 = vadd.f32 %v1993, %v2078
  %v2080 = vpop.f32.mrb[0].mxu0
  %v2081 = vadd.f32 %v1989, %v2080
  %v2082 = vpop.f32.mrb[0].mxu0
  %v2083 = vadd.f32 %v1993, %v2082
  %2084 = vmatprep.mubr.bf16.mxu0 0
  %2085 = vmatmul.mubr.bf16.gmra.mrb[0].mxu0 %v2040
  %v2086 = vpop.f32.mrb[0].mxu0
  %v2087 = vadd.f32 %v1989, %v2086
  %v2088 = vpop.f32.mrb[0].mxu0
  %v2089 = vadd.f32 %v1993, %v2088
  %v2090 = vpop.f32.mrb[0].mxu0
  %v2091 = vpop.f32.mrb[0].mxu0
  %2092 = vdwg.mxu0
  %v2093 = vpack.c.bf16 %v2081, %v2077
  %v2094 = vpack.c.bf16 %v2083, %v2079
  %v2095 = vpack.c.bf16 %v2087, %v2087
  %v2096 = vpack.c.bf16 %v2089, %v2089
  %2099 = vrot.lane.b32.xlu0 %v2093, 64
  %v2100 = vpop.permute.xlu0 %2099
  %2101 = vrot.lane.b32.xlu0 %v2095, 64
  %v2102 = vpop.permute.xlu0 %2101
  %v2104 = vsel %vm992, %v2093, 0
  %v2107 = vsel %vm992, %v2095, 0
  %v2110 = vsel %vm992, %v2100, 0
  %v2113 = vsel %vm992, %v2102, 0
  %2115 = vmatprep.subr.bf16.mxu0 0
  %2116 = vmatpush1.bf16.xpose.msra.mxu0 %v2110
  %2117 = vmatprep.subr.bf16.mxu0 0
  %2118 = vmatpush1.bf16.xpose.msra.mxu0 %v2113
  %2119 = vmatprep.subr.bf16.mxu0 0
  %2120 = vmatpush1.bf16.xpose.msra.mxu0 0
  %2121 = vmatprep.subr.bf16.mxu0 0
  %2122 = vmatpush1.bf16.xpose.msra.mxu0 0
  %2123 = vmatprep.subr.bf16.mxu0 0
  %2124 = vmatpush1.bf16.xpose.msra.mxu0 0
  %2125 = vmatprep.subr.bf16.mxu0 0
  %2126 = vmatpush1.bf16.xpose.msra.mxu0 0
  %2127 = vmatprep.subr.bf16.mxu0 0
  %2128 = vmatpush1.bf16.xpose.msra.mxu0 0
  %2129 = vmatprep.subr.bf16.mxu0 0
  %2130 = vmatpush1.bf16.xpose.msra.mxu0 0
  %2131 = vmatprep.subr.bf16.mxu0 0
  %2132 = vmatpush1.bf16.xpose.msra.mxu0 0
  %2133 = vmatprep.subr.bf16.mxu0 0
  %2134 = vmatpush1.bf16.xpose.msra.mxu0 0
  %2135 = vmatprep.subr.bf16.mxu0 0
  %2136 = vmatpush1.bf16.xpose.msra.mxu0 0
  %2137 = vmatprep.subr.bf16.mxu0 0
  %2138 = vmatpush1.bf16.xpose.msra.mxu0 0
  %2139 = vmatprep.subr.bf16.mxu0 0
  %2140 = vmatpush1.bf16.xpose.msra.mxu0 0
  %2141 = vmatprep.subr.bf16.mxu0 0
  %2142 = vmatpush1.bf16.xpose.msra.mxu0 0
  %2143 = vmatprep.subr.bf16.mxu0 0
  %2144 = vmatpush1.bf16.xpose.msra.mxu0 0
  %2145 = vmatprep.subr.bf16.mxu0 0
  %2146 = vmatpush1.bf16.xpose.msra.mxu0 0
  %2147 = vmatprep.mubr.bf16.mxu0 0
  %2148 = vmatmul.mubr.bf16.gmra.mrb[0].mxu0 %v2104
  %v2149 = vpop.f32.mrb[0].mxu0
  %v2150 = vadd.f32 0.0, %v2149
  %v2151 = vpop.f32.mrb[0].mxu0
  %v2152 = vpop.f32.mrb[0].mxu0
  %v2153 = vadd.f32 0.0, %v2152
  %v2154 = vpop.f32.mrb[0].mxu0
  %2155 = vmatprep.mubr.bf16.mxu0 0
  %2156 = vmatmul.mubr.bf16.gmra.mrb[0].mxu0 %v2107
  %v2157 = vpop.f32.mrb[0].mxu0
  %v2158 = vadd.f32 0.0, %v2157
  %v2159 = vpop.f32.mrb[0].mxu0
  %v2160 = vpop.f32.mrb[0].mxu0
  %v2161 = vpop.f32.mrb[0].mxu0
  %2162 = vdwg.mxu0
  %v2163 = vmul.f32 %v2150, 0.17677669
  %v2164 = vmul.f32 %v2153, 0.17677669
  %v2165 = vmul.f32 %v2158, 0.17677669
  %v2166 = vsel %vm788, %v2163, -1e+30
  %v2167 = vsel %vm789, %v2164, -1e+30
  %v2168 = vsel %vm790, %v2165, -1e+30
  %v2169 = vsel %vm1059, %v2166, -inf
  %2170 = vmax.xlane.f32.xlu0 %v2169
  %v2171 = vpop.xlane.xlu0 %2170
  %v2172 = vsel %vm1059, %v2167, -inf
  %2173 = vmax.xlane.f32.xlu0 %v2172
  %v2174 = vpop.xlane.xlu0 %2173
  %v2175 = vsel %vm1066, %v2168, -inf
  %2176 = vmax.xlane.f32.xlu0 %v2175
  %v2177 = vpop.xlane.xlu0 %2176
  %v2178 = vsub.f32 %v2166, %v2171
  %v2179 = vsub.f32 %v2167, %v2174
  %v2180 = vsub.f32 %v2168, %v2177
  %v2181 = vmul.f32 %v2178, 1.442695
  %v2182 = vpow.pop %v2181
  %v2183 = vmul.f32 %v2179, 1.442695
  %v2184 = vpow.pop %v2183
  %v2185 = vmul.f32 %v2180, 1.442695
  %v2186 = vpow.pop %v2185
  %v2187 = vsel %vm1059, %v2182, 0.0
  %2188 = vadd.xlane.f32.xlu0 %v2187
  %v2189 = vpop.xlane.xlu0 %2188
  %v2190 = vsel %vm1059, %v2184, 0.0
  %2191 = vadd.xlane.f32.xlu0 %v2190
  %v2192 = vpop.xlane.xlu0 %2191
  %v2193 = vsel %vm1066, %v2186, 0.0
  %2194 = vadd.xlane.f32.xlu0 %v2193
  %v2195 = vpop.xlane.xlu0 %2194
  %v2196 = vrcp.pop %v2189
  %v2197 = vrcp.pop %v2192
  %v2198 = vrcp.pop %v2195
  %v2199 = vmul.f32 %v2182, %v2196
  %v2200 = vmul.f32 %v2184, %v2197
  %v2201 = vmul.f32 %v2186, %v2198
  %v2202 = vpack.c.bf16 %v2200, %v2199
  %v2203 = vpack.c.bf16 %v2201, %v2201
  %v2205 = vsel %vm1059, %v2202, 0
  %v2208 = vsel %vm1059, %v2203, 0
  %v2211 = vsel %vm1102, %v2096, 0
  %2213 = vmatprep.subr.bf16.mxu0 0
  %2214 = vmatpush1.bf16.msra.mxu0 %v2094
  %2215 = vmatprep.subr.bf16.mxu0 0
  %2216 = vmatpush1.bf16.msra.mxu0 %v2211
  %2217 = vmatprep.subr.bf16.mxu0 0
  %2218 = vmatpush1.bf16.msra.mxu0 0
  %2219 = vmatprep.subr.bf16.mxu0 0
  %2220 = vmatpush1.bf16.msra.mxu0 0
  %2221 = vmatprep.subr.bf16.mxu0 0
  %2222 = vmatpush1.bf16.msra.mxu0 0
  %2223 = vmatprep.subr.bf16.mxu0 0
  %2224 = vmatpush1.bf16.msra.mxu0 0
  %2225 = vmatprep.subr.bf16.mxu0 0
  %2226 = vmatpush1.bf16.msra.mxu0 0
  %2227 = vmatprep.subr.bf16.mxu0 0
  %2228 = vmatpush1.bf16.msra.mxu0 0
  %2229 = vmatprep.subr.bf16.mxu0 0
  %2230 = vmatpush1.bf16.msra.mxu0 0
  %2231 = vmatprep.subr.bf16.mxu0 0
  %2232 = vmatpush1.bf16.msra.mxu0 0
  %2233 = vmatprep.subr.bf16.mxu0 0
  %2234 = vmatpush1.bf16.msra.mxu0 0
  %2235 = vmatprep.subr.bf16.mxu0 0
  %2236 = vmatpush1.bf16.msra.mxu0 0
  %2237 = vmatprep.subr.bf16.mxu0 0
  %2238 = vmatpush1.bf16.msra.mxu0 0
  %2239 = vmatprep.subr.bf16.mxu0 0
  %2240 = vmatpush1.bf16.msra.mxu0 0
  %2241 = vmatprep.subr.bf16.mxu0 0
  %2242 = vmatpush1.bf16.msra.mxu0 0
  %2243 = vmatprep.subr.bf16.mxu0 0
  %2244 = vmatpush1.bf16.msra.mxu0 0
  %2245 = vmatprep.mubr.bf16.mxu0 0
  %2246 = vmatmul.mubr.bf16.gmra.mrb[0].mxu0 %v2205
  %v2247 = vpop.f32.mrb[0].mxu0
  %v2248 = vadd.f32 0.0, %v2247
  %v2249 = vpop.f32.mrb[0].mxu0
  %v2250 = vpop.f32.mrb[0].mxu0
  %v2251 = vadd.f32 0.0, %v2250
  %v2252 = vpop.f32.mrb[0].mxu0
  %2253 = vmatprep.mubr.bf16.mxu0 0
  %2254 = vmatmul.mubr.bf16.gmra.mrb[0].mxu0 %v2208
  %v2255 = vpop.f32.mrb[0].mxu0
  %v2256 = vadd.f32 0.0, %v2255
  %v2257 = vpop.f32.mrb[0].mxu0
  %v2258 = vpop.f32.mrb[0].mxu0
  %v2259 = vpop.f32.mrb[0].mxu0
  %2260 = vdwg.mxu0
  %v2261 = vpack.c.bf16 %v2251, %v2248
  %v2262 = vpack.c.bf16 %v2256, %v2256
  %2263 = vrot.lane.b32.xlu0 %v2093, 96
  %v2264 = vpop.permute.xlu0 %2263
  %2265 = vrot.lane.b32.xlu0 %v2095, 96
  %v2266 = vpop.permute.xlu0 %2265
  %2267 = vrot.lane.b32.xlu0 %v2093, 32
  %v2268 = vpop.permute.xlu0 %2267
  %2269 = vrot.lane.b32.xlu0 %v2095, 32
  %v2270 = vpop.permute.xlu0 %2269
  %v2272 = vsel %vm992, %v2264, 0
  %v2275 = vsel %vm992, %v2266, 0
  %v2278 = vsel %vm992, %v2268, 0
  %v2281 = vsel %vm992, %v2270, 0
  %2283 = vmatprep.subr.bf16.mxu0 0
  %2284 = vmatpush1.bf16.xpose.msra.mxu0 %v2278
  %2285 = vmatprep.subr.bf16.mxu0 0
  %2286 = vmatpush1.bf16.xpose.msra.mxu0 %v2281
  %2287 = vmatprep.subr.bf16.mxu0 0
  %2288 = vmatpush1.bf16.xpose.msra.mxu0 0
  %2289 = vmatprep.subr.bf16.mxu0 0
  %2290 = vmatpush1.bf16.xpose.msra.mxu0 0
  %2291 = vmatprep.subr.bf16.mxu0 0
  %2292 = vmatpush1.bf16.xpose.msra.mxu0 0
  %2293 = vmatprep.subr.bf16.mxu0 0
  %2294 = vmatpush1.bf16.xpose.msra.mxu0 0
  %2295 = vmatprep.subr.bf16.mxu0 0
  %2296 = vmatpush1.bf16.xpose.msra.mxu0 0
  %2297 = vmatprep.subr.bf16.mxu0 0
  %2298 = vmatpush1.bf16.xpose.msra.mxu0 0
  %2299 = vmatprep.subr.bf16.mxu0 0
  %2300 = vmatpush1.bf16.xpose.msra.mxu0 0
  %2301 = vmatprep.subr.bf16.mxu0 0
  %2302 = vmatpush1.bf16.xpose.msra.mxu0 0
  %2303 = vmatprep.subr.bf16.mxu0 0
  %2304 = vmatpush1.bf16.xpose.msra.mxu0 0
  %2305 = vmatprep.subr.bf16.mxu0 0
  %2306 = vmatpush1.bf16.xpose.msra.mxu0 0
  %2307 = vmatprep.subr.bf16.mxu0 0
  %2308 = vmatpush1.bf16.xpose.msra.mxu0 0
  %2309 = vmatprep.subr.bf16.mxu0 0
  %2310 = vmatpush1.bf16.xpose.msra.mxu0 0
  %2311 = vmatprep.subr.bf16.mxu0 0
  %2312 = vmatpush1.bf16.xpose.msra.mxu0 0
  %2313 = vmatprep.subr.bf16.mxu0 0
  %2314 = vmatpush1.bf16.xpose.msra.mxu0 0
  %2315 = vmatprep.mubr.bf16.mxu0 0
  %2316 = vmatmul.mubr.bf16.gmra.mrb[0].mxu0 %v2272
  %v2317 = vpop.f32.mrb[0].mxu0
  %v2318 = vadd.f32 0.0, %v2317
  %v2319 = vpop.f32.mrb[0].mxu0
  %v2320 = vpop.f32.mrb[0].mxu0
  %v2321 = vadd.f32 0.0, %v2320
  %v2322 = vpop.f32.mrb[0].mxu0
  %2323 = vmatprep.mubr.bf16.mxu0 0
  %2324 = vmatmul.mubr.bf16.gmra.mrb[0].mxu0 %v2275
  %v2325 = vpop.f32.mrb[0].mxu0
  %v2326 = vadd.f32 0.0, %v2325
  %v2327 = vpop.f32.mrb[0].mxu0
  %v2328 = vpop.f32.mrb[0].mxu0
  %v2329 = vpop.f32.mrb[0].mxu0
  %2330 = vdwg.mxu0
  %v2331 = vmul.f32 %v2318, 0.17677669
  %v2332 = vmul.f32 %v2321, 0.17677669
  %v2333 = vmul.f32 %v2326, 0.17677669
  %v2334 = vsel %vm788, %v2331, -1e+30
  %v2335 = vsel %vm789, %v2332, -1e+30
  %v2336 = vsel %vm790, %v2333, -1e+30
  %v2337 = vsel %vm1059, %v2334, -inf
  %2338 = vmax.xlane.f32.xlu0 %v2337
  %v2339 = vpop.xlane.xlu0 %2338
  %v2340 = vsel %vm1059, %v2335, -inf
  %2341 = vmax.xlane.f32.xlu0 %v2340
  %v2342 = vpop.xlane.xlu0 %2341
  %v2343 = vsel %vm1066, %v2336, -inf
  %2344 = vmax.xlane.f32.xlu0 %v2343
  %v2345 = vpop.xlane.xlu0 %2344
  %v2346 = vsub.f32 %v2334, %v2339
  %v2347 = vsub.f32 %v2335, %v2342
  %v2348 = vsub.f32 %v2336, %v2345
  %v2349 = vmul.f32 %v2346, 1.442695
  %v2350 = vpow.pop %v2349
  %v2351 = vmul.f32 %v2347, 1.442695
  %v2352 = vpow.pop %v2351
  %v2353 = vmul.f32 %v2348, 1.442695
  %v2354 = vpow.pop %v2353
  %v2355 = vsel %vm1059, %v2350, 0.0
  %2356 = vadd.xlane.f32.xlu0 %v2355
  %v2357 = vpop.xlane.xlu0 %2356
  %v2358 = vsel %vm1059, %v2352, 0.0
  %2359 = vadd.xlane.f32.xlu0 %v2358
  %v2360 = vpop.xlane.xlu0 %2359
  %v2361 = vsel %vm1066, %v2354, 0.0
  %2362 = vadd.xlane.f32.xlu0 %v2361
  %v2363 = vpop.xlane.xlu0 %2362
  %v2364 = vrcp.pop %v2357
  %v2365 = vrcp.pop %v2360
  %v2366 = vrcp.pop %v2363
  %v2367 = vmul.f32 %v2350, %v2364
  %v2368 = vmul.f32 %v2352, %v2365
  %v2369 = vmul.f32 %v2354, %v2366
  %v2370 = vpack.c.bf16 %v2368, %v2367
  %v2371 = vpack.c.bf16 %v2369, %v2369
  %2374 = vrot.lane.b32.xlu0 %v2094, 96
  %v2375 = vpop.permute.xlu0 %2374
  %2376 = vrot.lane.b32.xlu0 %v2096, 96
  %v2377 = vpop.permute.xlu0 %2376
  %v2380 = vsel %vm1059, %v2370, 0
  %v2383 = vsel %vm1059, %v2371, 0
  %v2386 = vsel %vm1102, %v2377, 0
  %2388 = vmatprep.subr.bf16.mxu0 0
  %2389 = vmatpush1.bf16.msra.mxu0 %v2375
  %2390 = vmatprep.subr.bf16.mxu0 0
  %2391 = vmatpush1.bf16.msra.mxu0 %v2386
  %2392 = vmatprep.subr.bf16.mxu0 0
  %2393 = vmatpush1.bf16.msra.mxu0 0
  %2394 = vmatprep.subr.bf16.mxu0 0
  %2395 = vmatpush1.bf16.msra.mxu0 0
  %2396 = vmatprep.subr.bf16.mxu0 0
  %2397 = vmatpush1.bf16.msra.mxu0 0
  %2398 = vmatprep.subr.bf16.mxu0 0
  %2399 = vmatpush1.bf16.msra.mxu0 0
  %2400 = vmatprep.subr.bf16.mxu0 0
  %2401 = vmatpush1.bf16.msra.mxu0 0
  %2402 = vmatprep.subr.bf16.mxu0 0
  %2403 = vmatpush1.bf16.msra.mxu0 0
  %2404 = vmatprep.subr.bf16.mxu0 0
  %2405 = vmatpush1.bf16.msra.mxu0 0
  %2406 = vmatprep.subr.bf16.mxu0 0
  %2407 = vmatpush1.bf16.msra.mxu0 0
  %2408 = vmatprep.subr.bf16.mxu0 0
  %2409 = vmatpush1.bf16.msra.mxu0 0
  %2410 = vmatprep.subr.bf16.mxu0 0
  %2411 = vmatpush1.bf16.msra.mxu0 0
  %2412 = vmatprep.subr.bf16.mxu0 0
  %2413 = vmatpush1.bf16.msra.mxu0 0
  %2414 = vmatprep.subr.bf16.mxu0 0
  %2415 = vmatpush1.bf16.msra.mxu0 0
  %2416 = vmatprep.subr.bf16.mxu0 0
  %2417 = vmatpush1.bf16.msra.mxu0 0
  %2418 = vmatprep.subr.bf16.mxu0 0
  %2419 = vmatpush1.bf16.msra.mxu0 0
  %2420 = vmatprep.mubr.bf16.mxu0 0
  %2421 = vmatmul.mubr.bf16.gmra.mrb[0].mxu0 %v2380
  %v2422 = vpop.f32.mrb[0].mxu0
  %v2423 = vadd.f32 0.0, %v2422
  %v2424 = vpop.f32.mrb[0].mxu0
  %v2425 = vpop.f32.mrb[0].mxu0
  %v2426 = vadd.f32 0.0, %v2425
  %v2427 = vpop.f32.mrb[0].mxu0
  %2428 = vmatprep.mubr.bf16.mxu0 0
  %2429 = vmatmul.mubr.bf16.gmra.mrb[0].mxu0 %v2383
  %v2430 = vpop.f32.mrb[0].mxu0
  %v2431 = vadd.f32 0.0, %v2430
  %v2432 = vpop.f32.mrb[0].mxu0
  %v2433 = vpop.f32.mrb[0].mxu0
  %v2434 = vpop.f32.mrb[0].mxu0
  %2435 = vdwg.mxu0
  %v2436 = vpack.c.bf16 %v2426, %v2423
  %v2437 = vpack.c.bf16 %v2431, %v2431
  %v2442 = vunpack.c.l.b16 %v1979
  %v2443 = vunpack.c.l.b16 %v1980
  %v2444 = vunpack.c.l.b16 %v1981
  %v2445 = vunpack.c.l.b16 %v1982
  %v2446 = vpack.c.b16 %v2443, %v2442
  %v2447 = vpack.c.b16 %v2445, %v2444
  %v2451 = vsel %vm992, %v2436, 0
  %v2454 = vsel %vm992, %v2437, 0
  %2456 = vmatprep.subr.bf16.mxu0 0
  %2457 = vmatpush1.bf16.msra.mxu0 %v2446
  %2458 = vmatprep.subr.bf16.mxu0 0
  %2459 = vmatpush1.bf16.msra.mxu0 %v2447
  %2460 = vmatprep.subr.bf16.mxu0 0
  %2461 = vmatpush1.bf16.msra.mxu0 0
  %2462 = vmatprep.subr.bf16.mxu0 0
  %2463 = vmatpush1.bf16.msra.mxu0 0
  %2464 = vmatprep.subr.bf16.mxu0 0
  %2465 = vmatpush1.bf16.msra.mxu0 0
  %2466 = vmatprep.subr.bf16.mxu0 0
  %2467 = vmatpush1.bf16.msra.mxu0 0
  %2468 = vmatprep.subr.bf16.mxu0 0
  %2469 = vmatpush1.bf16.msra.mxu0 0
  %2470 = vmatprep.subr.bf16.mxu0 0
  %2471 = vmatpush1.bf16.msra.mxu0 0
  %2472 = vmatprep.subr.bf16.mxu0 0
  %2473 = vmatpush1.bf16.msra.mxu0 0
  %2474 = vmatprep.subr.bf16.mxu0 0
  %2475 = vmatpush1.bf16.msra.mxu0 0
  %2476 = vmatprep.subr.bf16.mxu0 0
  %2477 = vmatpush1.bf16.msra.mxu0 0
  %2478 = vmatprep.subr.bf16.mxu0 0
  %2479 = vmatpush1.bf16.msra.mxu0 0
  %2480 = vmatprep.subr.bf16.mxu0 0
  %2481 = vmatpush1.bf16.msra.mxu0 0
  %2482 = vmatprep.subr.bf16.mxu0 0
  %2483 = vmatpush1.bf16.msra.mxu0 0
  %2484 = vmatprep.subr.bf16.mxu0 0
  %2485 = vmatpush1.bf16.msra.mxu0 0
  %2486 = vmatprep.subr.bf16.mxu0 0
  %2487 = vmatpush1.bf16.msra.mxu0 0
  %2488 = vmatprep.mubr.bf16.mxu0 0
  %2489 = vmatmul.mubr.bf16.gmra.mrb[0].mxu0 %v2451
  %v2490 = vpop.f32.mrb[0].mxu0
  %v2491 = vadd.f32 0.0, %v2490
  %v2492 = vpop.f32.mrb[0].mxu0
  %v2493 = vpop.f32.mrb[0].mxu0
  %v2494 = vadd.f32 0.0, %v2493
  %v2495 = vpop.f32.mrb[0].mxu0
  %2496 = vmatprep.mubr.bf16.mxu0 0
  %2497 = vmatmul.mubr.bf16.gmra.mrb[0].mxu0 %v2454
  %v2498 = vpop.f32.mrb[0].mxu0
  %v2499 = vadd.f32 0.0, %v2498
  %v2500 = vpop.f32.mrb[0].mxu0
  %v2501 = vpop.f32.mrb[0].mxu0
  %v2502 = vpop.f32.mrb[0].mxu0
  %2503 = vdwg.mxu0
  %v2508 = vunpack.c.l.b16 %v1975
  %v2509 = vunpack.c.l.b16 %v1976
  %v2510 = vunpack.c.l.b16 %v1977
  %v2511 = vunpack.c.l.b16 %v1978
  %v2512 = vpack.c.b16 %v2509, %v2508
  %v2513 = vpack.c.b16 %v2511, %v2510
  %v2517 = vsel %vm992, %v2261, 0
  %v2520 = vsel %vm992, %v2262, 0
  %2522 = vmatprep.subr.bf16.mxu0 0
  %2523 = vmatpush1.bf16.msra.mxu0 %v2512
  %2524 = vmatprep.subr.bf16.mxu0 0
  %2525 = vmatpush1.bf16.msra.mxu0 %v2513
  %2526 = vmatprep.subr.bf16.mxu0 0
  %2527 = vmatpush1.bf16.msra.mxu0 0
  %2528 = vmatprep.subr.bf16.mxu0 0
  %2529 = vmatpush1.bf16.msra.mxu0 0
  %2530 = vmatprep.subr.bf16.mxu0 0
  %2531 = vmatpush1.bf16.msra.mxu0 0
  %2532 = vmatprep.subr.bf16.mxu0 0
  %2533 = vmatpush1.bf16.msra.mxu0 0
  %2534 = vmatprep.subr.bf16.mxu0 0
  %2535 = vmatpush1.bf16.msra.mxu0 0
  %2536 = vmatprep.subr.bf16.mxu0 0
  %2537 = vmatpush1.bf16.msra.mxu0 0
  %2538 = vmatprep.subr.bf16.mxu0 0
  %2539 = vmatpush1.bf16.msra.mxu0 0
  %2540 = vmatprep.subr.bf16.mxu0 0
  %2541 = vmatpush1.bf16.msra.mxu0 0
  %2542 = vmatprep.subr.bf16.mxu0 0
  %2543 = vmatpush1.bf16.msra.mxu0 0
  %2544 = vmatprep.subr.bf16.mxu0 0
  %2545 = vmatpush1.bf16.msra.mxu0 0
  %2546 = vmatprep.subr.bf16.mxu0 0
  %2547 = vmatpush1.bf16.msra.mxu0 0
  %2548 = vmatprep.subr.bf16.mxu0 0
  %2549 = vmatpush1.bf16.msra.mxu0 0
  %2550 = vmatprep.subr.bf16.mxu0 0
  %2551 = vmatpush1.bf16.msra.mxu0 0
  %2552 = vmatprep.subr.bf16.mxu0 0
  %2553 = vmatpush1.bf16.msra.mxu0 0
  %2554 = vmatprep.mubr.bf16.mxu0 0
  %2555 = vmatmul.mubr.bf16.gmra.mrb[0].mxu0 %v2517
  %v2556 = vpop.f32.mrb[0].mxu0
  %v2557 = vadd.f32 %v2491, %v2556
  %v2558 = vpop.f32.mrb[0].mxu0
  %v2559 = vpop.f32.mrb[0].mxu0
  %v2560 = vadd.f32 %v2494, %v2559
  %v2561 = vpop.f32.mrb[0].mxu0
  %2562 = vmatprep.mubr.bf16.mxu0 0
  %2563 = vmatmul.mubr.bf16.gmra.mrb[0].mxu0 %v2520
  %v2564 = vpop.f32.mrb[0].mxu0
  %v2565 = vadd.f32 %v2499, %v2564
  %v2566 = vpop.f32.mrb[0].mxu0
  %v2567 = vpop.f32.mrb[0].mxu0
  %v2568 = vpop.f32.mrb[0].mxu0
  %2569 = vdwg.mxu0
  %v2571 = vlaneseq
  %v2572 = vshrl.u32 %v2571, 7
  %v2573 = vsub.s32 0, %v2572
  %v2574 = vrot.slane %v1984, %v2573
  %v2576 = vadd.f32 %v2557, %v2574
  %v2577 = vadd.f32 %v2560, %v2574
  %v2578 = vadd.f32 %v2565, %v2574
  %v2579 = vadd.f32 %v1897, %v2576
  %v2580 = vadd.f32 %v1898, %v2577
  %v2581 = vadd.f32 %v1899, %v2578
  %s2582 = scalar_lea.vmem %s29, 1
  %v2583 = vld [vmem:[%s2582] sm:$0x1]
  %s2584 = scalar_lea.vmem %s31, 1
  %v2585 = vld [vmem:[%s2584] sm:$0x1]
  %v2586 = vsel %vm547, %v2579, 0.0
  %2587 = vadd.xlane.f32.xlu0 %v2586
  %v2588 = vpop.xlane.xlu0 %2587
  %v2589 = vsel %vm547, %v2580, 0.0
  %2590 = vadd.xlane.f32.xlu0 %v2589
  %v2591 = vpop.xlane.xlu0 %2590
  %v2592 = vsel %vm732, %v2581, 0.0
  %2593 = vadd.xlane.f32.xlu0 %v2592
  %v2594 = vpop.xlane.xlu0 %2593
  %v2595 = vmul.f32 %v2588, %v805
  %v2596 = vmul.f32 %v2591, %v805
  %v2597 = vmul.f32 %v2594, %v805
  %v2598 = vsub.f32 %v2579, %v2595
  %v2599 = vsub.f32 %v2580, %v2596
  %v2600 = vsub.f32 %v2581, %v2597
  %v2601 = vmul.f32 %v2598, %v2598
  %v2602 = vmul.f32 %v2599, %v2599
  %v2603 = vmul.f32 %v2600, %v2600
  %v2604 = vsel %vm547, %v2601, 0.0
  %2605 = vadd.xlane.f32.xlu0 %v2604
  %v2606 = vpop.xlane.xlu0 %2605
  %v2607 = vsel %vm547, %v2602, 0.0
  %2608 = vadd.xlane.f32.xlu0 %v2607
  %v2609 = vpop.xlane.xlu0 %2608
  %v2610 = vsel %vm732, %v2603, 0.0
  %2611 = vadd.xlane.f32.xlu0 %v2610
  %v2612 = vpop.xlane.xlu0 %2611
  %v2613 = vmul.f32 %v2606, %v805
  %v2614 = vmul.f32 %v2609, %v805
  %v2615 = vmul.f32 %v2612, %v805
  %v2616 = vadd.f32 %v2613, 1e-06
  %v2617 = vadd.f32 %v2614, 1e-06
  %v2618 = vadd.f32 %v2615, 1e-06
  %v2619 = vrsqrt.pop %v2616
  %v2620 = vrsqrt.pop %v2617
  %v2621 = vrsqrt.pop %v2618
  %v2622 = vmul.f32 %v2598, %v2619
  %v2623 = vmul.f32 %v2599, %v2620
  %v2624 = vmul.f32 %v2600, %v2621
  %v2626 = vlaneseq
  %v2627 = vshrl.u32 %v2626, 7
  %v2628 = vsub.s32 0, %v2627
  %v2629 = vrot.slane %v2583, %v2628
  %v2631 = vmul.f32 %v2622, %v2629
  %v2632 = vmul.f32 %v2623, %v2629
  %v2633 = vmul.f32 %v2624, %v2629
  %v2635 = vlaneseq
  %v2636 = vshrl.u32 %v2635, 7
  %v2637 = vsub.s32 0, %v2636
  %v2638 = vrot.slane %v2585, %v2637
  %v2640 = vadd.f32 %v2631, %v2638
  %v2641 = vadd.f32 %v2632, %v2638
  %v2642 = vadd.f32 %v2633, %v2638
  %v2643 = vpack.c.bf16 %v2641, %v2640
  %v2644 = vpack.c.bf16 %v2642, %v2642
  %s2645 = scalar_lea.vmem %s33, 64
  %v2646 = vld [vmem:[%s2645] sm:$0xff]
  %v2647 = vld [vmem:[%s2645 + $0x8] sm:$0xff]
  %v2648 = vld [vmem:[%s2645 + $0x10] sm:$0xff]
  %v2649 = vld [vmem:[%s2645 + $0x18] sm:$0xff]
  %v2650 = vld [vmem:[%s2645 + $0x20] sm:$0xff]
  %v2651 = vld [vmem:[%s2645 + $0x28] sm:$0xff]
  %v2652 = vld [vmem:[%s2645 + $0x30] sm:$0xff]
  %v2653 = vld [vmem:[%s2645 + $0x38] sm:$0xff]
  %s2654 = scalar_lea.vmem %s35, 2
  %v2655 = vld [vmem:[%s2654] sm:$0x3]
  %v2657 = vlaneseq
  %v2658 = vshrl.u32 %v2657, 7
  %v2659 = vsub.s32 0, %v2658
  %v2660 = vrot.slane %v2655, %v2659
  %v2661 = vlaneseq
  %v2662 = vshrl.u32 %v2661, 7
  %v2663 = vsub.s32 1, %v2662
  %v2664 = vrot.slane %v2655, %v2663
  %v2675 = vunpack.c.l.b16 %v2646
  %v2676 = vunpack.c.h.b16 %v2646
  %v2677 = vunpack.c.l.b16 %v2647
  %v2678 = vunpack.c.h.b16 %v2647
  %v2679 = vunpack.c.l.b16 %v2648
  %v2680 = vunpack.c.h.b16 %v2648
  %v2681 = vunpack.c.l.b16 %v2649
  %v2682 = vunpack.c.h.b16 %v2649
  %v2683 = vunpack.c.l.b16 %v2650
  %v2684 = vunpack.c.h.b16 %v2650
  %v2685 = vunpack.c.l.b16 %v2651
  %v2686 = vunpack.c.h.b16 %v2651
  %v2687 = vunpack.c.l.b16 %v2652
  %v2688 = vunpack.c.h.b16 %v2652
  %v2689 = vunpack.c.l.b16 %v2653
  %v2690 = vunpack.c.h.b16 %v2653
  %v2691 = vpack.c.b16 %v2677, %v2675
  %v2692 = vpack.c.b16 %v2678, %v2676
  %v2693 = vpack.c.b16 %v2681, %v2679
  %v2694 = vpack.c.b16 %v2682, %v2680
  %v2695 = vpack.c.b16 %v2685, %v2683
  %v2696 = vpack.c.b16 %v2686, %v2684
  %v2697 = vpack.c.b16 %v2689, %v2687
  %v2698 = vpack.c.b16 %v2690, %v2688
  %v2708 = vsel %vm547, %v2643, 0
  %v2711 = vsel %vm547, %v2644, 0
  %2713 = vmatprep.subr.bf16.mxu0 %v2692
  %2714 = vmatpush1.bf16.msra.mxu0 %v2691
  %2715 = vmatprep.subr.bf16.mxu0 %v2694
  %2716 = vmatpush1.bf16.msra.mxu0 %v2693
  %2717 = vmatprep.subr.bf16.mxu0 %v2696
  %2718 = vmatpush1.bf16.msra.mxu0 %v2695
  %2719 = vmatprep.subr.bf16.mxu0 %v2698
  %2720 = vmatpush1.bf16.msra.mxu0 %v2697
  %2721 = vmatprep.subr.bf16.mxu0 0
  %2722 = vmatpush1.bf16.msra.mxu0 0
  %2723 = vmatprep.subr.bf16.mxu0 0
  %2724 = vmatpush1.bf16.msra.mxu0 0
  %2725 = vmatprep.subr.bf16.mxu0 0
  %2726 = vmatpush1.bf16.msra.mxu0 0
  %2727 = vmatprep.subr.bf16.mxu0 0
  %2728 = vmatpush1.bf16.msra.mxu0 0
  %2729 = vmatprep.subr.bf16.mxu0 0
  %2730 = vmatpush1.bf16.msra.mxu0 0
  %2731 = vmatprep.subr.bf16.mxu0 0
  %2732 = vmatpush1.bf16.msra.mxu0 0
  %2733 = vmatprep.subr.bf16.mxu0 0
  %2734 = vmatpush1.bf16.msra.mxu0 0
  %2735 = vmatprep.subr.bf16.mxu0 0
  %2736 = vmatpush1.bf16.msra.mxu0 0
  %2737 = vmatprep.subr.bf16.mxu0 0
  %2738 = vmatpush1.bf16.msra.mxu0 0
  %2739 = vmatprep.subr.bf16.mxu0 0
  %2740 = vmatpush1.bf16.msra.mxu0 0
  %2741 = vmatprep.subr.bf16.mxu0 0
  %2742 = vmatpush1.bf16.msra.mxu0 0
  %2743 = vmatprep.subr.bf16.mxu0 0
  %2744 = vmatpush1.bf16.msra.mxu0 0
  %2745 = vmatprep.mubr.bf16.mxu0 0
  %2746 = vmatmul.mubr.bf16.gmra.mrb[0].mxu0 %v2708
  %v2747 = vpop.f32.mrb[0].mxu0
  %v2748 = vadd.f32 %v2660, %v2747
  %v2749 = vpop.f32.mrb[0].mxu0
  %v2750 = vadd.f32 %v2664, %v2749
  %v2751 = vpop.f32.mrb[0].mxu0
  %v2752 = vadd.f32 %v2660, %v2751
  %v2753 = vpop.f32.mrb[0].mxu0
  %v2754 = vadd.f32 %v2664, %v2753
  %2755 = vmatprep.mubr.bf16.mxu0 0
  %2756 = vmatmul.mubr.bf16.gmra.mrb[0].mxu0 %v2711
  %v2757 = vpop.f32.mrb[0].mxu0
  %v2758 = vadd.f32 %v2660, %v2757
  %v2759 = vpop.f32.mrb[0].mxu0
  %v2760 = vadd.f32 %v2664, %v2759
  %v2761 = vpop.f32.mrb[0].mxu0
  %v2762 = vpop.f32.mrb[0].mxu0
  %2763 = vdwg.mxu0
  %v2764 = vmul.f32 %v2748, %v2748
  %v2765 = vmul.f32 %v2750, %v2750
  %v2766 = vmul.f32 %v2752, %v2752
  %v2767 = vmul.f32 %v2754, %v2754
  %v2768 = vmul.f32 %v2758, %v2758
  %v2769 = vmul.f32 %v2760, %v2760
  %v2770 = vmul.f32 %v2748, %v2764
  %v2771 = vmul.f32 %v2750, %v2765
  %v2772 = vmul.f32 %v2752, %v2766
  %v2773 = vmul.f32 %v2754, %v2767
  %v2774 = vmul.f32 %v2758, %v2768
  %v2775 = vmul.f32 %v2760, %v2769
  %v2776 = vmul.f32 %v2770, 0.044715
  %v2777 = vmul.f32 %v2771, 0.044715
  %v2778 = vmul.f32 %v2772, 0.044715
  %v2779 = vmul.f32 %v2773, 0.044715
  %v2780 = vmul.f32 %v2774, 0.044715
  %v2781 = vmul.f32 %v2775, 0.044715
  %v2782 = vadd.f32 %v2748, %v2776
  %v2783 = vadd.f32 %v2750, %v2777
  %v2784 = vadd.f32 %v2752, %v2778
  %v2785 = vadd.f32 %v2754, %v2779
  %v2786 = vadd.f32 %v2758, %v2780
  %v2787 = vadd.f32 %v2760, %v2781
  %v2788 = vmul.f32 %v2782, 0.7978846
  %v2789 = vmul.f32 %v2783, 0.7978846
  %v2790 = vmul.f32 %v2784, 0.7978846
  %v2791 = vmul.f32 %v2785, 0.7978846
  %v2792 = vmul.f32 %v2786, 0.7978846
  %v2793 = vmul.f32 %v2787, 0.7978846
  %v2794 = vtanh.pop %v2788
  %v2795 = vtanh.pop %v2789
  %v2796 = vtanh.pop %v2790
  %v2797 = vtanh.pop %v2791
  %v2798 = vtanh.pop %v2792
  %v2799 = vtanh.pop %v2793
  %v2800 = vadd.f32 %v2794, 1.0
  %v2801 = vadd.f32 %v2795, 1.0
  %v2802 = vadd.f32 %v2796, 1.0
  %v2803 = vadd.f32 %v2797, 1.0
  %v2804 = vadd.f32 %v2798, 1.0
  %v2805 = vadd.f32 %v2799, 1.0
  %v2806 = vmul.f32 %v2800, 0.5
  %v2807 = vmul.f32 %v2801, 0.5
  %v2808 = vmul.f32 %v2802, 0.5
  %v2809 = vmul.f32 %v2803, 0.5
  %v2810 = vmul.f32 %v2804, 0.5
  %v2811 = vmul.f32 %v2805, 0.5
  %v2812 = vmul.f32 %v2748, %v2806
  %v2813 = vmul.f32 %v2750, %v2807
  %v2814 = vmul.f32 %v2752, %v2808
  %v2815 = vmul.f32 %v2754, %v2809
  %v2816 = vmul.f32 %v2758, %v2810
  %v2817 = vmul.f32 %v2760, %v2811
  %v2818 = vpack.c.bf16 %v2814, %v2812
  %v2819 = vpack.c.bf16 %v2815, %v2813
  %v2820 = vpack.c.bf16 %v2816, %v2816
  %v2821 = vpack.c.bf16 %v2817, %v2817
  %s2822 = scalar_lea.vmem %s37, 128
  %v2823 = vld [vmem:[%s2822] sm:$0xf]
  %v2824 = vld [vmem:[%s2822 + $0x4] sm:$0xf]
  %v2825 = vld [vmem:[%s2822 + $0x8] sm:$0xf]
  %v2826 = vld [vmem:[%s2822 + $0xc] sm:$0xf]
  %v2827 = vld [vmem:[%s2822 + $0x10] sm:$0xf]
  %v2828 = vld [vmem:[%s2822 + $0x14] sm:$0xf]
  %v2829 = vld [vmem:[%s2822 + $0x18] sm:$0xf]
  %v2830 = vld [vmem:[%s2822 + $0x1c] sm:$0xf]
  %v2831 = vld [vmem:[%s2822 + $0x20] sm:$0xf]
  %v2832 = vld [vmem:[%s2822 + $0x24] sm:$0xf]
  %v2833 = vld [vmem:[%s2822 + $0x28] sm:$0xf]
  %v2834 = vld [vmem:[%s2822 + $0x2c] sm:$0xf]
  %v2835 = vld [vmem:[%s2822 + $0x30] sm:$0xf]
  %v2836 = vld [vmem:[%s2822 + $0x34] sm:$0xf]
  %v2837 = vld [vmem:[%s2822 + $0x38] sm:$0xf]
  %v2838 = vld [vmem:[%s2822 + $0x3c] sm:$0xf]
  %v2839 = vld [vmem:[%s2822 + $0x40] sm:$0xf]
  %v2840 = vld [vmem:[%s2822 + $0x44] sm:$0xf]
  %v2841 = vld [vmem:[%s2822 + $0x48] sm:$0xf]
  %v2842 = vld [vmem:[%s2822 + $0x4c] sm:$0xf]
  %v2843 = vld [vmem:[%s2822 + $0x50] sm:$0xf]
  %v2844 = vld [vmem:[%s2822 + $0x54] sm:$0xf]
  %v2845 = vld [vmem:[%s2822 + $0x58] sm:$0xf]
  %v2846 = vld [vmem:[%s2822 + $0x5c] sm:$0xf]
  %v2847 = vld [vmem:[%s2822 + $0x60] sm:$0xf]
  %v2848 = vld [vmem:[%s2822 + $0x64] sm:$0xf]
  %v2849 = vld [vmem:[%s2822 + $0x68] sm:$0xf]
  %v2850 = vld [vmem:[%s2822 + $0x6c] sm:$0xf]
  %v2851 = vld [vmem:[%s2822 + $0x70] sm:$0xf]
  %v2852 = vld [vmem:[%s2822 + $0x74] sm:$0xf]
  %v2853 = vld [vmem:[%s2822 + $0x78] sm:$0xf]
  %v2854 = vld [vmem:[%s2822 + $0x7c] sm:$0xf]
  %v2887 = vunpack.c.l.b16 %v2823
  %v2888 = vunpack.c.l.b16 %v2824
  %v2889 = vunpack.c.l.b16 %v2825
  %v2890 = vunpack.c.l.b16 %v2826
  %v2891 = vunpack.c.l.b16 %v2827
  %v2892 = vunpack.c.l.b16 %v2828
  %v2893 = vunpack.c.l.b16 %v2829
  %v2894 = vunpack.c.l.b16 %v2830
  %v2895 = vunpack.c.l.b16 %v2831
  %v2896 = vunpack.c.l.b16 %v2832
  %v2897 = vunpack.c.l.b16 %v2833
  %v2898 = vunpack.c.l.b16 %v2834
  %v2899 = vunpack.c.l.b16 %v2835
  %v2900 = vunpack.c.l.b16 %v2836
  %v2901 = vunpack.c.l.b16 %v2837
  %v2902 = vunpack.c.l.b16 %v2838
  %v2903 = vunpack.c.l.b16 %v2839
  %v2904 = vunpack.c.l.b16 %v2840
  %v2905 = vunpack.c.l.b16 %v2841
  %v2906 = vunpack.c.l.b16 %v2842
  %v2907 = vunpack.c.l.b16 %v2843
  %v2908 = vunpack.c.l.b16 %v2844
  %v2909 = vunpack.c.l.b16 %v2845
  %v2910 = vunpack.c.l.b16 %v2846
  %v2911 = vunpack.c.l.b16 %v2847
  %v2912 = vunpack.c.l.b16 %v2848
  %v2913 = vunpack.c.l.b16 %v2849
  %v2914 = vunpack.c.l.b16 %v2850
  %v2915 = vunpack.c.l.b16 %v2851
  %v2916 = vunpack.c.l.b16 %v2852
  %v2917 = vunpack.c.l.b16 %v2853
  %v2918 = vunpack.c.l.b16 %v2854
  %v2919 = vpack.c.b16 %v2888, %v2887
  %v2920 = vpack.c.b16 %v2890, %v2889
  %v2921 = vpack.c.b16 %v2892, %v2891
  %v2922 = vpack.c.b16 %v2894, %v2893
  %v2923 = vpack.c.b16 %v2896, %v2895
  %v2924 = vpack.c.b16 %v2898, %v2897
  %v2925 = vpack.c.b16 %v2900, %v2899
  %v2926 = vpack.c.b16 %v2902, %v2901
  %v2927 = vpack.c.b16 %v2904, %v2903
  %v2928 = vpack.c.b16 %v2906, %v2905
  %v2929 = vpack.c.b16 %v2908, %v2907
  %v2930 = vpack.c.b16 %v2910, %v2909
  %v2931 = vpack.c.b16 %v2912, %v2911
  %v2932 = vpack.c.b16 %v2914, %v2913
  %v2933 = vpack.c.b16 %v2916, %v2915
  %v2934 = vpack.c.b16 %v2918, %v2917
  %2951 = vmatprep.subr.bf16.mxu0 0
  %2952 = vmatpush1.bf16.msra.mxu0 %v2919
  %2953 = vmatprep.subr.bf16.mxu0 0
  %2954 = vmatpush1.bf16.msra.mxu0 %v2920
  %2955 = vmatprep.subr.bf16.mxu0 0
  %2956 = vmatpush1.bf16.msra.mxu0 %v2921
  %2957 = vmatprep.subr.bf16.mxu0 0
  %2958 = vmatpush1.bf16.msra.mxu0 %v2922
  %2959 = vmatprep.subr.bf16.mxu0 0
  %2960 = vmatpush1.bf16.msra.mxu0 %v2923
  %2961 = vmatprep.subr.bf16.mxu0 0
  %2962 = vmatpush1.bf16.msra.mxu0 %v2924
  %2963 = vmatprep.subr.bf16.mxu0 0
  %2964 = vmatpush1.bf16.msra.mxu0 %v2925
  %2965 = vmatprep.subr.bf16.mxu0 0
  %2966 = vmatpush1.bf16.msra.mxu0 %v2926
  %2967 = vmatprep.subr.bf16.mxu0 0
  %2968 = vmatpush1.bf16.msra.mxu0 %v2927
  %2969 = vmatprep.subr.bf16.mxu0 0
  %2970 = vmatpush1.bf16.msra.mxu0 %v2928
  %2971 = vmatprep.subr.bf16.mxu0 0
  %2972 = vmatpush1.bf16.msra.mxu0 %v2929
  %2973 = vmatprep.subr.bf16.mxu0 0
  %2974 = vmatpush1.bf16.msra.mxu0 %v2930
  %2975 = vmatprep.subr.bf16.mxu0 0
  %2976 = vmatpush1.bf16.msra.mxu0 %v2931
  %2977 = vmatprep.subr.bf16.mxu0 0
  %2978 = vmatpush1.bf16.msra.mxu0 %v2932
  %2979 = vmatprep.subr.bf16.mxu0 0
  %2980 = vmatpush1.bf16.msra.mxu0 %v2933
  %2981 = vmatprep.subr.bf16.mxu0 0
  %2982 = vmatpush1.bf16.msra.mxu0 %v2934
  %2983 = vmatprep.mubr.bf16.mxu0 %v2819
  %2984 = vmatmul.mubr.bf16.gmra.mrb[0].mxu0 %v2818
  %v2985 = vpop.f32.mrb[0].mxu0
  %v2986 = vadd.f32 0.0, %v2985
  %v2987 = vpop.f32.mrb[0].mxu0
  %v2988 = vpop.f32.mrb[0].mxu0
  %v2989 = vadd.f32 0.0, %v2988
  %v2990 = vpop.f32.mrb[0].mxu0
  %2991 = vmatprep.mubr.bf16.mxu0 %v2821
  %2992 = vmatmul.mubr.bf16.gmra.mrb[0].mxu0 %v2820
  %v2993 = vpop.f32.mrb[0].mxu0
  %v2994 = vadd.f32 0.0, %v2993
  %v2995 = vpop.f32.mrb[0].mxu0
  %v2996 = vpop.f32.mrb[0].mxu0
  %v2997 = vpop.f32.mrb[0].mxu0
  %2998 = vdwg.mxu0
  %v2999 = vadd.f32 %v2579, %v2986
  %v3000 = vadd.f32 %v2580, %v2989
  %v3001 = vadd.f32 %v2581, %v2994
  %s3002 = scalar_lea.vmem %s39, 1
  %v3003 = vld [vmem:[%s3002] sm:$0x1]
  %v3005 = vlaneseq
  %v3006 = vshrl.u32 %v3005, 7
  %v3007 = vsub.s32 0, %v3006
  %v3008 = vrot.slane %v3003, %v3007
  %v3010 = vadd.f32 %v2999, %v3008
  %v3011 = vadd.f32 %v3000, %v3008
  %v3012 = vadd.f32 %v3001, %v3008
  %v3013 = vld [vmem:[%s41] sm:$0x1]
  %v3014 = vld [vmem:[%s43] sm:$0x1]
  %v3015 = vsel %vm547, %v3010, 0.0
  %3016 = vadd.xlane.f32.xlu0 %v3015
  %v3017 = vpop.xlane.xlu0 %3016
  %v3018 = vsel %vm547, %v3011, 0.0
  %3019 = vadd.xlane.f32.xlu0 %v3018
  %v3020 = vpop.xlane.xlu0 %3019
  %v3021 = vsel %vm732, %v3012, 0.0
  %3022 = vadd.xlane.f32.xlu0 %v3021
  %v3023 = vpop.xlane.xlu0 %3022
  %v3024 = vmul.f32 %v3017, %v805
  %v3025 = vmul.f32 %v3020, %v805
  %v3026 = vmul.f32 %v3023, %v805
  %v3027 = vsub.f32 %v3010, %v3024
  %v3028 = vsub.f32 %v3011, %v3025
  %v3029 = vsub.f32 %v3012, %v3026
  %v3030 = vmul.f32 %v3027, %v3027
  %v3031 = vmul.f32 %v3028, %v3028
  %v3032 = vmul.f32 %v3029, %v3029
  %v3033 = vsel %vm547, %v3030, 0.0
  %3034 = vadd.xlane.f32.xlu0 %v3033
  %v3035 = vpop.xlane.xlu0 %3034
  %v3036 = vsel %vm547, %v3031, 0.0
  %3037 = vadd.xlane.f32.xlu0 %v3036
  %v3038 = vpop.xlane.xlu0 %3037
  %v3039 = vsel %vm732, %v3032, 0.0
  %3040 = vadd.xlane.f32.xlu0 %v3039
  %v3041 = vpop.xlane.xlu0 %3040
  %v3042 = vmul.f32 %v3035, %v805
  %v3043 = vmul.f32 %v3038, %v805
  %v3044 = vmul.f32 %v3041, %v805
  %v3045 = vadd.f32 %v3042, 1e-06
  %v3046 = vadd.f32 %v3043, 1e-06
  %v3047 = vadd.f32 %v3044, 1e-06
  %v3048 = vrsqrt.pop %v3045
  %v3049 = vrsqrt.pop %v3046
  %v3050 = vrsqrt.pop %v3047
  %v3051 = vmul.f32 %v3027, %v3048
  %v3052 = vmul.f32 %v3028, %v3049
  %v3053 = vmul.f32 %v3029, %v3050
  %v3055 = vlaneseq
  %v3056 = vshrl.u32 %v3055, 7
  %v3057 = vsub.s32 0, %v3056
  %v3058 = vrot.slane %v3013, %v3057
  %v3060 = vmul.f32 %v3051, %v3058
  %v3061 = vmul.f32 %v3052, %v3058
  %v3062 = vmul.f32 %v3053, %v3058
  %v3064 = vlaneseq
  %v3065 = vshrl.u32 %v3064, 7
  %v3066 = vsub.s32 0, %v3065
  %v3067 = vrot.slane %v3014, %v3066
  %v3069 = vadd.f32 %v3060, %v3067
  %v3070 = vadd.f32 %v3061, %v3067
  %v3071 = vadd.f32 %v3062, %v3067
  %3072 = vst.msk [vmem:[#allocation4] sm:$0xff] %vm547, %v3069
  %3073 = vst.msk [vmem:[#allocation4 + $0x8] sm:$0xff] %vm547, %v3070
  %3074 = vst.msk [vmem:[#allocation4 + $0x10] sm:$0xf] %vm732, %v3071
  %v3075 = vld [vmem:[#allocation4] sm:$0x1f]
  %3076 = vst.msk [vmem:[#allocation5] sm:$0x1f] %vm735, %v3075
  %v3077 = vld [vmem:[#allocation4 + $0x5] sm:$0x1f]
  %3078 = vst.msk [vmem:[#allocation5 + $0x7] sm:$0x1f] %vm735, %v3077
  %v3079 = vld [vmem:[#allocation4 + $0xa] sm:$0x1f]
  %3080 = vst.msk [vmem:[#allocation5 + $0xc] sm:$0x1f] %vm735, %v3079
  %v3081 = vld [vmem:[#allocation4 + $0xf] sm:$0x1f]
  %3082 = vst.msk [vmem:[#allocation5 + $0x13] sm:$0x1f] %vm735, %v3081
  %vm3083 = vcmp.lt.s32.totalorder %v753, 12
  %vm3084 = vcmp.lt.s32.totalorder %v754, 12
  %vm3085 = vcmp.lt.s32.totalorder %v755, 12
  %vm3086 = vmand %vm758, %vm3083
  %vm3087 = vmand %vm759, %vm3084
  %vm3088 = vmand %vm760, %vm3085
  %vm3089 = vcmp.lt.s32.totalorder %v757, 12
  %vm3090 = vmand %vm767, %vm3089
  %vm3091 = vmand %vm3086, %vm3090
  %vm3092 = vmand %vm3087, %vm3090
  %vm3093 = vmand %vm3088, %vm3090
  %vm3094 = vcmp.ge.s32.totalorder %v753, 12
  %vm3095 = vcmp.ge.s32.totalorder %v754, 12
  %vm3096 = vcmp.ge.s32.totalorder %v755, 12
  %vm3097 = vcmp.lt.s32.totalorder %v753, 24
  %vm3098 = vcmp.lt.s32.totalorder %v754, 24
  %vm3099 = vcmp.lt.s32.totalorder %v755, 24
  %vm3100 = vmand %vm3094, %vm3097
  %vm3101 = vmand %vm3095, %vm3098
  %vm3102 = vmand %vm3096, %vm3099
  %vm3103 = vcmp.ge.s32.totalorder %v757, 12
  %vm3104 = vcmp.lt.s32.totalorder %v757, 24
  %vm3105 = vmand %vm3103, %vm3104
  %vm3106 = vmand %vm3100, %vm3105
  %vm3107 = vmand %vm3101, %vm3105
  %vm3108 = vmand %vm3102, %vm3105
  %vm3109 = vmor %vm3091, %vm3106
  %vm3110 = vmor %vm3092, %vm3107
  %vm3111 = vmor %vm3093, %vm3108
  %v3112 = vld [vmem:[#allocation5] sm:$0xff]
  %v3113 = vld [vmem:[#allocation5 + $0x8] sm:$0xff]
  %v3114 = vld [vmem:[#allocation5 + $0x10] sm:$0xff]
  %v3115 = vld [vmem:[%s7] sm:$0xff]
  %v3116 = vld [vmem:[%s7 + $0x8] sm:$0xff]
  %v3117 = vld [vmem:[%s7 + $0x10] sm:$0xff]
  %v3118 = vadd.f32 %v3112, %v3115
  %v3119 = vadd.f32 %v3113, %v3116
  %v3120 = vadd.f32 %v3114, %v3117
  %v3121 = vld [vmem:[%s45] sm:$0x1]
  %v3122 = vld [vmem:[%s47] sm:$0x1]
  %v3123 = vsel %vm547, %v3118, 0.0
  %3124 = vadd.xlane.f32.xlu0 %v3123
  %v3125 = vpop.xlane.xlu0 %3124
  %v3126 = vsel %vm547, %v3119, 0.0
  %3127 = vadd.xlane.f32.xlu0 %v3126
  %v3128 = vpop.xlane.xlu0 %3127
  %v3129 = vsel %vm547, %v3120, 0.0
  %3130 = vadd.xlane.f32.xlu0 %v3129
  %v3131 = vpop.xlane.xlu0 %3130
  %v3132 = vmul.f32 %v3125, %v805
  %v3133 = vmul.f32 %v3128, %v805
  %v3134 = vmul.f32 %v3131, %v805
  %v3135 = vsub.f32 %v3118, %v3132
  %v3136 = vsub.f32 %v3119, %v3133
  %v3137 = vsub.f32 %v3120, %v3134
  %v3138 = vmul.f32 %v3135, %v3135
  %v3139 = vmul.f32 %v3136, %v3136
  %v3140 = vmul.f32 %v3137, %v3137
  %v3141 = vsel %vm547, %v3138, 0.0
  %3142 = vadd.xlane.f32.xlu0 %v3141
  %v3143 = vpop.xlane.xlu0 %3142
  %v3144 = vsel %vm547, %v3139, 0.0
  %3145 = vadd.xlane.f32.xlu0 %v3144
  %v3146 = vpop.xlane.xlu0 %3145
  %v3147 = vsel %vm547, %v3140, 0.0
  %3148 = vadd.xlane.f32.xlu0 %v3147
  %v3149 = vpop.xlane.xlu0 %3148
  %v3150 = vmul.f32 %v3143, %v805
  %v3151 = vmul.f32 %v3146, %v805
  %v3152 = vmul.f32 %v3149, %v805
  %v3153 = vadd.f32 %v3150, 1e-06
  %v3154 = vadd.f32 %v3151, 1e-06
  %v3155 = vadd.f32 %v3152, 1e-06
  %v3156 = vrsqrt.pop %v3153
  %v3157 = vrsqrt.pop %v3154
  %v3158 = vrsqrt.pop %v3155
  %v3159 = vmul.f32 %v3135, %v3156
  %v3160 = vmul.f32 %v3136, %v3157
  %v3161 = vmul.f32 %v3137, %v3158
  %v3163 = vlaneseq
  %v3164 = vshrl.u32 %v3163, 7
  %v3165 = vsub.s32 0, %v3164
  %v3166 = vrot.slane %v3121, %v3165
  %v3168 = vmul.f32 %v3159, %v3166
  %v3169 = vmul.f32 %v3160, %v3166
  %v3170 = vmul.f32 %v3161, %v3166
  %v3172 = vlaneseq
  %v3173 = vshrl.u32 %v3172, 7
  %v3174 = vsub.s32 0, %v3173
  %v3175 = vrot.slane %v3122, %v3174
  %v3177 = vadd.f32 %v3168, %v3175
  %v3178 = vadd.f32 %v3169, %v3175
  %v3179 = vadd.f32 %v3170, %v3175
  %v3180 = vpack.c.bf16 %v3178, %v3177
  %v3181 = vpack.c.bf16 %v3179, %v3179
  %v3182 = vld [vmem:[%s49] sm:$0xff]
  %v3183 = vld [vmem:[%s49 + $0x8] sm:$0xff]
  %v3184 = vld [vmem:[%s49 + $0x10] sm:$0xff]
  %v3185 = vld [vmem:[%s49 + $0x18] sm:$0xff]
  %v3186 = vld [vmem:[%s49 + $0x20] sm:$0xff]
  %v3187 = vld [vmem:[%s49 + $0x28] sm:$0xff]
  %v3188 = vld [vmem:[%s49 + $0x30] sm:$0xff]
  %v3189 = vld [vmem:[%s49 + $0x38] sm:$0xff]
  %v3190 = vld [vmem:[%s51] sm:$0x3]
  %v3191 = vld [vmem:[%s53] sm:$0xf]
  %v3192 = vld [vmem:[%s53 + $0x4] sm:$0xf]
  %v3193 = vld [vmem:[%s53 + $0x8] sm:$0xf]
  %v3194 = vld [vmem:[%s53 + $0xc] sm:$0xf]
  %v3195 = vld [vmem:[%s53 + $0x10] sm:$0xf]
  %v3196 = vld [vmem:[%s53 + $0x14] sm:$0xf]
  %v3197 = vld [vmem:[%s53 + $0x18] sm:$0xf]
  %v3198 = vld [vmem:[%s53 + $0x1c] sm:$0xf]
  %v3199 = vld [vmem:[%s55] sm:$0x1]
  %v3201 = vlaneseq
  %v3202 = vshrl.u32 %v3201, 7
  %v3203 = vsub.s32 0, %v3202
  %v3204 = vrot.slane %v3190, %v3203
  %v3205 = vlaneseq
  %v3206 = vshrl.u32 %v3205, 7
  %v3207 = vsub.s32 1, %v3206
  %v3208 = vrot.slane %v3190, %v3207
  %v3219 = vunpack.c.l.b16 %v3182
  %v3220 = vunpack.c.h.b16 %v3182
  %v3221 = vunpack.c.l.b16 %v3183
  %v3222 = vunpack.c.h.b16 %v3183
  %v3223 = vunpack.c.l.b16 %v3184
  %v3224 = vunpack.c.h.b16 %v3184
  %v3225 = vunpack.c.l.b16 %v3185
  %v3226 = vunpack.c.h.b16 %v3185
  %v3227 = vunpack.c.l.b16 %v3186
  %v3228 = vunpack.c.h.b16 %v3186
  %v3229 = vunpack.c.l.b16 %v3187
  %v3230 = vunpack.c.h.b16 %v3187
  %v3231 = vunpack.c.l.b16 %v3188
  %v3232 = vunpack.c.h.b16 %v3188
  %v3233 = vunpack.c.l.b16 %v3189
  %v3234 = vunpack.c.h.b16 %v3189
  %v3235 = vpack.c.b16 %v3221, %v3219
  %v3236 = vpack.c.b16 %v3222, %v3220
  %v3237 = vpack.c.b16 %v3225, %v3223
  %v3238 = vpack.c.b16 %v3226, %v3224
  %v3239 = vpack.c.b16 %v3229, %v3227
  %v3240 = vpack.c.b16 %v3230, %v3228
  %v3241 = vpack.c.b16 %v3233, %v3231
  %v3242 = vpack.c.b16 %v3234, %v3232
  %v3252 = vsel %vm547, %v3180, 0
  %v3255 = vsel %vm547, %v3181, 0
  %3257 = vmatprep.subr.bf16.mxu0 %v3236
  %3258 = vmatpush1.bf16.msra.mxu0 %v3235
  %3259 = vmatprep.subr.bf16.mxu0 %v3238
  %3260 = vmatpush1.bf16.msra.mxu0 %v3237
  %3261 = vmatprep.subr.bf16.mxu0 %v3240
  %3262 = vmatpush1.bf16.msra.mxu0 %v3239
  %3263 = vmatprep.subr.bf16.mxu0 %v3242
  %3264 = vmatpush1.bf16.msra.mxu0 %v3241
  %3265 = vmatprep.subr.bf16.mxu0 0
  %3266 = vmatpush1.bf16.msra.mxu0 0
  %3267 = vmatprep.subr.bf16.mxu0 0
  %3268 = vmatpush1.bf16.msra.mxu0 0
  %3269 = vmatprep.subr.bf16.mxu0 0
  %3270 = vmatpush1.bf16.msra.mxu0 0
  %3271 = vmatprep.subr.bf16.mxu0 0
  %3272 = vmatpush1.bf16.msra.mxu0 0
  %3273 = vmatprep.subr.bf16.mxu0 0
  %3274 = vmatpush1.bf16.msra.mxu0 0
  %3275 = vmatprep.subr.bf16.mxu0 0
  %3276 = vmatpush1.bf16.msra.mxu0 0
  %3277 = vmatprep.subr.bf16.mxu0 0
  %3278 = vmatpush1.bf16.msra.mxu0 0
  %3279 = vmatprep.subr.bf16.mxu0 0
  %3280 = vmatpush1.bf16.msra.mxu0 0
  %3281 = vmatprep.subr.bf16.mxu0 0
  %3282 = vmatpush1.bf16.msra.mxu0 0
  %3283 = vmatprep.subr.bf16.mxu0 0
  %3284 = vmatpush1.bf16.msra.mxu0 0
  %3285 = vmatprep.subr.bf16.mxu0 0
  %3286 = vmatpush1.bf16.msra.mxu0 0
  %3287 = vmatprep.subr.bf16.mxu0 0
  %3288 = vmatpush1.bf16.msra.mxu0 0
  %3289 = vmatprep.mubr.bf16.mxu0 0
  %3290 = vmatmul.mubr.bf16.gmra.mrb[0].mxu0 %v3252
  %v3291 = vpop.f32.mrb[0].mxu0
  %v3292 = vadd.f32 %v3204, %v3291
  %v3293 = vpop.f32.mrb[0].mxu0
  %v3294 = vadd.f32 %v3208, %v3293
  %v3295 = vpop.f32.mrb[0].mxu0
  %v3296 = vadd.f32 %v3204, %v3295
  %v3297 = vpop.f32.mrb[0].mxu0
  %v3298 = vadd.f32 %v3208, %v3297
  %3299 = vmatprep.mubr.bf16.mxu0 0
  %3300 = vmatmul.mubr.bf16.gmra.mrb[0].mxu0 %v3255
  %v3301 = vpop.f32.mrb[0].mxu0
  %v3302 = vadd.f32 %v3204, %v3301
  %v3303 = vpop.f32.mrb[0].mxu0
  %v3304 = vadd.f32 %v3208, %v3303
  %v3305 = vpop.f32.mrb[0].mxu0
  %v3306 = vpop.f32.mrb[0].mxu0
  %3307 = vdwg.mxu0
  %v3308 = vpack.c.bf16 %v3296, %v3292
  %v3309 = vpack.c.bf16 %v3298, %v3294
  %v3310 = vpack.c.bf16 %v3302, %v3302
  %v3311 = vpack.c.bf16 %v3304, %v3304
  %3314 = vrot.lane.b32.xlu0 %v3308, 64
  %v3315 = vpop.permute.xlu0 %3314
  %3316 = vrot.lane.b32.xlu0 %v3310, 64
  %v3317 = vpop.permute.xlu0 %3316
  %v3319 = vsel %vm992, %v3308, 0
  %v3322 = vsel %vm992, %v3310, 0
  %v3325 = vsel %vm992, %v3315, 0
  %v3328 = vsel %vm992, %v3317, 0
  %3330 = vmatprep.subr.bf16.mxu0 0
  %3331 = vmatpush1.bf16.xpose.msra.mxu0 %v3325
  %3332 = vmatprep.subr.bf16.mxu0 0
  %3333 = vmatpush1.bf16.xpose.msra.mxu0 %v3328
  %3334 = vmatprep.subr.bf16.mxu0 0
  %3335 = vmatpush1.bf16.xpose.msra.mxu0 0
  %3336 = vmatprep.subr.bf16.mxu0 0
  %3337 = vmatpush1.bf16.xpose.msra.mxu0 0
  %3338 = vmatprep.subr.bf16.mxu0 0
  %3339 = vmatpush1.bf16.xpose.msra.mxu0 0
  %3340 = vmatprep.subr.bf16.mxu0 0
  %3341 = vmatpush1.bf16.xpose.msra.mxu0 0
  %3342 = vmatprep.subr.bf16.mxu0 0
  %3343 = vmatpush1.bf16.xpose.msra.mxu0 0
  %3344 = vmatprep.subr.bf16.mxu0 0
  %3345 = vmatpush1.bf16.xpose.msra.mxu0 0
  %3346 = vmatprep.subr.bf16.mxu0 0
  %3347 = vmatpush1.bf16.xpose.msra.mxu0 0
  %3348 = vmatprep.subr.bf16.mxu0 0
  %3349 = vmatpush1.bf16.xpose.msra.mxu0 0
  %3350 = vmatprep.subr.bf16.mxu0 0
  %3351 = vmatpush1.bf16.xpose.msra.mxu0 0
  %3352 = vmatprep.subr.bf16.mxu0 0
  %3353 = vmatpush1.bf16.xpose.msra.mxu0 0
  %3354 = vmatprep.subr.bf16.mxu0 0
  %3355 = vmatpush1.bf16.xpose.msra.mxu0 0
  %3356 = vmatprep.subr.bf16.mxu0 0
  %3357 = vmatpush1.bf16.xpose.msra.mxu0 0
  %3358 = vmatprep.subr.bf16.mxu0 0
  %3359 = vmatpush1.bf16.xpose.msra.mxu0 0
  %3360 = vmatprep.subr.bf16.mxu0 0
  %3361 = vmatpush1.bf16.xpose.msra.mxu0 0
  %3362 = vmatprep.mubr.bf16.mxu0 0
  %3363 = vmatmul.mubr.bf16.gmra.mrb[0].mxu0 %v3319
  %v3364 = vpop.f32.mrb[0].mxu0
  %v3365 = vadd.f32 0.0, %v3364
  %v3366 = vpop.f32.mrb[0].mxu0
  %v3367 = vpop.f32.mrb[0].mxu0
  %v3368 = vadd.f32 0.0, %v3367
  %v3369 = vpop.f32.mrb[0].mxu0
  %3370 = vmatprep.mubr.bf16.mxu0 0
  %3371 = vmatmul.mubr.bf16.gmra.mrb[0].mxu0 %v3322
  %v3372 = vpop.f32.mrb[0].mxu0
  %v3373 = vadd.f32 0.0, %v3372
  %v3374 = vpop.f32.mrb[0].mxu0
  %v3375 = vpop.f32.mrb[0].mxu0
  %v3376 = vpop.f32.mrb[0].mxu0
  %3377 = vdwg.mxu0
  %v3378 = vmul.f32 %v3365, 0.17677669
  %v3379 = vmul.f32 %v3368, 0.17677669
  %v3380 = vmul.f32 %v3373, 0.17677669
  %v3381 = vsel %vm3109, %v3378, -1e+30
  %v3382 = vsel %vm3110, %v3379, -1e+30
  %v3383 = vsel %vm3111, %v3380, -1e+30
  %vm3384 = vcmask 195584
  %v3385 = vsel %vm3384, %v3381, -inf
  %3386 = vmax.xlane.f32.xlu0 %v3385
  %v3387 = vpop.xlane.xlu0 %3386
  %v3388 = vsel %vm3384, %v3382, -inf
  %3389 = vmax.xlane.f32.xlu0 %v3388
  %v3390 = vpop.xlane.xlu0 %3389
  %v3391 = vsel %vm3384, %v3383, -inf
  %3392 = vmax.xlane.f32.xlu0 %v3391
  %v3393 = vpop.xlane.xlu0 %3392
  %v3394 = vsub.f32 %v3381, %v3387
  %v3395 = vsub.f32 %v3382, %v3390
  %v3396 = vsub.f32 %v3383, %v3393
  %v3397 = vmul.f32 %v3394, 1.442695
  %v3398 = vpow.pop %v3397
  %v3399 = vmul.f32 %v3395, 1.442695
  %v3400 = vpow.pop %v3399
  %v3401 = vmul.f32 %v3396, 1.442695
  %v3402 = vpow.pop %v3401
  %v3403 = vsel %vm3384, %v3398, 0.0
  %3404 = vadd.xlane.f32.xlu0 %v3403
  %v3405 = vpop.xlane.xlu0 %3404
  %v3406 = vsel %vm3384, %v3400, 0.0
  %3407 = vadd.xlane.f32.xlu0 %v3406
  %v3408 = vpop.xlane.xlu0 %3407
  %v3409 = vsel %vm3384, %v3402, 0.0
  %3410 = vadd.xlane.f32.xlu0 %v3409
  %v3411 = vpop.xlane.xlu0 %3410
  %v3412 = vrcp.pop %v3405
  %v3413 = vrcp.pop %v3408
  %v3414 = vrcp.pop %v3411
  %v3415 = vmul.f32 %v3398, %v3412
  %v3416 = vmul.f32 %v3400, %v3413
  %v3417 = vmul.f32 %v3402, %v3414
  %v3418 = vpack.c.bf16 %v3416, %v3415
  %v3419 = vpack.c.bf16 %v3417, %v3417
  %v3421 = vsel %vm3384, %v3418, 0
  %v3424 = vsel %vm3384, %v3419, 0
  %vm3426 = vcmask 1043456
  %v3428 = vsel %vm3426, %v3311, 0
  %3430 = vmatprep.subr.bf16.mxu0 0
  %3431 = vmatpush1.bf16.msra.mxu0 %v3309
  %3432 = vmatprep.subr.bf16.mxu0 0
  %3433 = vmatpush1.bf16.msra.mxu0 %v3428
  %3434 = vmatprep.subr.bf16.mxu0 0
  %3435 = vmatpush1.bf16.msra.mxu0 0
  %3436 = vmatprep.subr.bf16.mxu0 0
  %3437 = vmatpush1.bf16.msra.mxu0 0
  %3438 = vmatprep.subr.bf16.mxu0 0
  %3439 = vmatpush1.bf16.msra.mxu0 0
  %3440 = vmatprep.subr.bf16.mxu0 0
  %3441 = vmatpush1.bf16.msra.mxu0 0
  %3442 = vmatprep.subr.bf16.mxu0 0
  %3443 = vmatpush1.bf16.msra.mxu0 0
  %3444 = vmatprep.subr.bf16.mxu0 0
  %3445 = vmatpush1.bf16.msra.mxu0 0
  %3446 = vmatprep.subr.bf16.mxu0 0
  %3447 = vmatpush1.bf16.msra.mxu0 0
  %3448 = vmatprep.subr.bf16.mxu0 0
  %3449 = vmatpush1.bf16.msra.mxu0 0
  %3450 = vmatprep.subr.bf16.mxu0 0
  %3451 = vmatpush1.bf16.msra.mxu0 0
  %3452 = vmatprep.subr.bf16.mxu0 0
  %3453 = vmatpush1.bf16.msra.mxu0 0
  %3454 = vmatprep.subr.bf16.mxu0 0
  %3455 = vmatpush1.bf16.msra.mxu0 0
  %3456 = vmatprep.subr.bf16.mxu0 0
  %3457 = vmatpush1.bf16.msra.mxu0 0
  %3458 = vmatprep.subr.bf16.mxu0 0
  %3459 = vmatpush1.bf16.msra.mxu0 0
  %3460 = vmatprep.subr.bf16.mxu0 0
  %3461 = vmatpush1.bf16.msra.mxu0 0
  %3462 = vmatprep.mubr.bf16.mxu0 0
  %3463 = vmatmul.mubr.bf16.gmra.mrb[0].mxu0 %v3421
  %v3464 = vpop.f32.mrb[0].mxu0
  %v3465 = vadd.f32 0.0, %v3464
  %v3466 = vpop.f32.mrb[0].mxu0
  %v3467 = vpop.f32.mrb[0].mxu0
  %v3468 = vadd.f32 0.0, %v3467
  %v3469 = vpop.f32.mrb[0].mxu0
  %3470 = vmatprep.mubr.bf16.mxu0 0
  %3471 = vmatmul.mubr.bf16.gmra.mrb[0].mxu0 %v3424
  %v3472 = vpop.f32.mrb[0].mxu0
  %v3473 = vadd.f32 0.0, %v3472
  %v3474 = vpop.f32.mrb[0].mxu0
  %v3475 = vpop.f32.mrb[0].mxu0
  %v3476 = vpop.f32.mrb[0].mxu0
  %3477 = vdwg.mxu0
  %v3478 = vpack.c.bf16 %v3468, %v3465
  %v3479 = vpack.c.bf16 %v3473, %v3473
  %3480 = vrot.lane.b32.xlu0 %v3308, 96
  %v3481 = vpop.permute.xlu0 %3480
  %3482 = vrot.lane.b32.xlu0 %v3310, 96
  %v3483 = vpop.permute.xlu0 %3482
  %3484 = vrot.lane.b32.xlu0 %v3308, 32
  %v3485 = vpop.permute.xlu0 %3484
  %3486 = vrot.lane.b32.xlu0 %v3310, 32
  %v3487 = vpop.permute.xlu0 %3486
  %v3489 = vsel %vm992, %v3481, 0
  %v3492 = vsel %vm992, %v3483, 0
  %v3495 = vsel %vm992, %v3485, 0
  %v3498 = vsel %vm992, %v3487, 0
  %3500 = vmatprep.subr.bf16.mxu0 0
  %3501 = vmatpush1.bf16.xpose.msra.mxu0 %v3495
  %3502 = vmatprep.subr.bf16.mxu0 0
  %3503 = vmatpush1.bf16.xpose.msra.mxu0 %v3498
  %3504 = vmatprep.subr.bf16.mxu0 0
  %3505 = vmatpush1.bf16.xpose.msra.mxu0 0
  %3506 = vmatprep.subr.bf16.mxu0 0
  %3507 = vmatpush1.bf16.xpose.msra.mxu0 0
  %3508 = vmatprep.subr.bf16.mxu0 0
  %3509 = vmatpush1.bf16.xpose.msra.mxu0 0
  %3510 = vmatprep.subr.bf16.mxu0 0
  %3511 = vmatpush1.bf16.xpose.msra.mxu0 0
  %3512 = vmatprep.subr.bf16.mxu0 0
  %3513 = vmatpush1.bf16.xpose.msra.mxu0 0
  %3514 = vmatprep.subr.bf16.mxu0 0
  %3515 = vmatpush1.bf16.xpose.msra.mxu0 0
  %3516 = vmatprep.subr.bf16.mxu0 0
  %3517 = vmatpush1.bf16.xpose.msra.mxu0 0
  %3518 = vmatprep.subr.bf16.mxu0 0
  %3519 = vmatpush1.bf16.xpose.msra.mxu0 0
  %3520 = vmatprep.subr.bf16.mxu0 0
  %3521 = vmatpush1.bf16.xpose.msra.mxu0 0
  %3522 = vmatprep.subr.bf16.mxu0 0
  %3523 = vmatpush1.bf16.xpose.msra.mxu0 0
  %3524 = vmatprep.subr.bf16.mxu0 0
  %3525 = vmatpush1.bf16.xpose.msra.mxu0 0
  %3526 = vmatprep.subr.bf16.mxu0 0
  %3527 = vmatpush1.bf16.xpose.msra.mxu0 0
  %3528 = vmatprep.subr.bf16.mxu0 0
  %3529 = vmatpush1.bf16.xpose.msra.mxu0 0
  %3530 = vmatprep.subr.bf16.mxu0 0
  %3531 = vmatpush1.bf16.xpose.msra.mxu0 0
  %3532 = vmatprep.mubr.bf16.mxu0 0
  %3533 = vmatmul.mubr.bf16.gmra.mrb[0].mxu0 %v3489
  %v3534 = vpop.f32.mrb[0].mxu0
  %v3535 = vadd.f32 0.0, %v3534
  %v3536 = vpop.f32.mrb[0].mxu0
  %v3537 = vpop.f32.mrb[0].mxu0
  %v3538 = vadd.f32 0.0, %v3537
  %v3539 = vpop.f32.mrb[0].mxu0
  %3540 = vmatprep.mubr.bf16.mxu0 0
  %3541 = vmatmul.mubr.bf16.gmra.mrb[0].mxu0 %v3492
  %v3542 = vpop.f32.mrb[0].mxu0
  %v3543 = vadd.f32 0.0, %v3542
  %v3544 = vpop.f32.mrb[0].mxu0
  %v3545 = vpop.f32.mrb[0].mxu0
  %v3546 = vpop.f32.mrb[0].mxu0
  %3547 = vdwg.mxu0
  %v3548 = vmul.f32 %v3535, 0.17677669
  %v3549 = vmul.f32 %v3538, 0.17677669
  %v3550 = vmul.f32 %v3543, 0.17677669
  %v3551 = vsel %vm3109, %v3548, -1e+30
  %v3552 = vsel %vm3110, %v3549, -1e+30
  %v3553 = vsel %vm3111, %v3550, -1e+30
  %v3554 = vsel %vm3384, %v3551, -inf
  %3555 = vmax.xlane.f32.xlu0 %v3554
  %v3556 = vpop.xlane.xlu0 %3555
  %v3557 = vsel %vm3384, %v3552, -inf
  %3558 = vmax.xlane.f32.xlu0 %v3557
  %v3559 = vpop.xlane.xlu0 %3558
  %v3560 = vsel %vm3384, %v3553, -inf
  %3561 = vmax.xlane.f32.xlu0 %v3560
  %v3562 = vpop.xlane.xlu0 %3561
  %v3563 = vsub.f32 %v3551, %v3556
  %v3564 = vsub.f32 %v3552, %v3559
  %v3565 = vsub.f32 %v3553, %v3562
  %v3566 = vmul.f32 %v3563, 1.442695
  %v3567 = vpow.pop %v3566
  %v3568 = vmul.f32 %v3564, 1.442695
  %v3569 = vpow.pop %v3568
  %v3570 = vmul.f32 %v3565, 1.442695
  %v3571 = vpow.pop %v3570
  %v3572 = vsel %vm3384, %v3567, 0.0
  %3573 = vadd.xlane.f32.xlu0 %v3572
  %v3574 = vpop.xlane.xlu0 %3573
  %v3575 = vsel %vm3384, %v3569, 0.0
  %3576 = vadd.xlane.f32.xlu0 %v3575
  %v3577 = vpop.xlane.xlu0 %3576
  %v3578 = vsel %vm3384, %v3571, 0.0
  %3579 = vadd.xlane.f32.xlu0 %v3578
  %v3580 = vpop.xlane.xlu0 %3579
  %v3581 = vrcp.pop %v3574
  %v3582 = vrcp.pop %v3577
  %v3583 = vrcp.pop %v3580
  %v3584 = vmul.f32 %v3567, %v3581
  %v3585 = vmul.f32 %v3569, %v3582
  %v3586 = vmul.f32 %v3571, %v3583
  %v3587 = vpack.c.bf16 %v3585, %v3584
  %v3588 = vpack.c.bf16 %v3586, %v3586
  %3591 = vrot.lane.b32.xlu0 %v3309, 96
  %v3592 = vpop.permute.xlu0 %3591
  %3593 = vrot.lane.b32.xlu0 %v3311, 96
  %v3594 = vpop.permute.xlu0 %3593
  %v3597 = vsel %vm3384, %v3587, 0
  %v3600 = vsel %vm3384, %v3588, 0
  %v3603 = vsel %vm3426, %v3594, 0
  %3605 = vmatprep.subr.bf16.mxu0 0
  %3606 = vmatpush1.bf16.msra.mxu0 %v3592
  %3607 = vmatprep.subr.bf16.mxu0 0
  %3608 = vmatpush1.bf16.msra.mxu0 %v3603
  %3609 = vmatprep.subr.bf16.mxu0 0
  %3610 = vmatpush1.bf16.msra.mxu0 0
  %3611 = vmatprep.subr.bf16.mxu0 0
  %3612 = vmatpush1.bf16.msra.mxu0 0
  %3613 = vmatprep.subr.bf16.mxu0 0
  %3614 = vmatpush1.bf16.msra.mxu0 0
  %3615 = vmatprep.subr.bf16.mxu0 0
  %3616 = vmatpush1.bf16.msra.mxu0 0
  %3617 = vmatprep.subr.bf16.mxu0 0
  %3618 = vmatpush1.bf16.msra.mxu0 0
  %3619 = vmatprep.subr.bf16.mxu0 0
  %3620 = vmatpush1.bf16.msra.mxu0 0
  %3621 = vmatprep.subr.bf16.mxu0 0
  %3622 = vmatpush1.bf16.msra.mxu0 0
  %3623 = vmatprep.subr.bf16.mxu0 0
  %3624 = vmatpush1.bf16.msra.mxu0 0
  %3625 = vmatprep.subr.bf16.mxu0 0
  %3626 = vmatpush1.bf16.msra.mxu0 0
  %3627 = vmatprep.subr.bf16.mxu0 0
  %3628 = vmatpush1.bf16.msra.mxu0 0
  %3629 = vmatprep.subr.bf16.mxu0 0
  %3630 = vmatpush1.bf16.msra.mxu0 0
  %3631 = vmatprep.subr.bf16.mxu0 0
  %3632 = vmatpush1.bf16.msra.mxu0 0
  %3633 = vmatprep.subr.bf16.mxu0 0
  %3634 = vmatpush1.bf16.msra.mxu0 0
  %3635 = vmatprep.subr.bf16.mxu0 0
  %3636 = vmatpush1.bf16.msra.mxu0 0
  %3637 = vmatprep.mubr.bf16.mxu0 0
  %3638 = vmatmul.mubr.bf16.gmra.mrb[0].mxu0 %v3597
  %v3639 = vpop.f32.mrb[0].mxu0
  %v3640 = vadd.f32 0.0, %v3639
  %v3641 = vpop.f32.mrb[0].mxu0
  %v3642 = vpop.f32.mrb[0].mxu0
  %v3643 = vadd.f32 0.0, %v3642
  %v3644 = vpop.f32.mrb[0].mxu0
  %3645 = vmatprep.mubr.bf16.mxu0 0
  %3646 = vmatmul.mubr.bf16.gmra.mrb[0].mxu0 %v3600
  %v3647 = vpop.f32.mrb[0].mxu0
  %v3648 = vadd.f32 0.0, %v3647
  %v3649 = vpop.f32.mrb[0].mxu0
  %v3650 = vpop.f32.mrb[0].mxu0
  %v3651 = vpop.f32.mrb[0].mxu0
  %3652 = vdwg.mxu0
  %v3653 = vpack.c.bf16 %v3643, %v3640
  %v3654 = vpack.c.bf16 %v3648, %v3648
  %v3659 = vunpack.c.l.b16 %v3195
  %v3660 = vunpack.c.l.b16 %v3196
  %v3661 = vunpack.c.l.b16 %v3197
  %v3662 = vunpack.c.l.b16 %v3198
  %v3663 = vpack.c.b16 %v3660, %v3659
  %v3664 = vpack.c.b16 %v3662, %v3661
  %v3668 = vsel %vm992, %v3653, 0
  %v3671 = vsel %vm992, %v3654, 0
  %3673 = vmatprep.subr.bf16.mxu0 0
  %3674 = vmatpush1.bf16.msra.mxu0 %v3663
  %3675 = vmatprep.subr.bf16.mxu0 0
  %3676 = vmatpush1.bf16.msra.mxu0 %v3664
  %3677 = vmatprep.subr.bf16.mxu0 0
  %3678 = vmatpush1.bf16.msra.mxu0 0
  %3679 = vmatprep.subr.bf16.mxu0 0
  %3680 = vmatpush1.bf16.msra.mxu0 0
  %3681 = vmatprep.subr.bf16.mxu0 0
  %3682 = vmatpush1.bf16.msra.mxu0 0
  %3683 = vmatprep.subr.bf16.mxu0 0
  %3684 = vmatpush1.bf16.msra.mxu0 0
  %3685 = vmatprep.subr.bf16.mxu0 0
  %3686 = vmatpush1.bf16.msra.mxu0 0
  %3687 = vmatprep.subr.bf16.mxu0 0
  %3688 = vmatpush1.bf16.msra.mxu0 0
  %3689 = vmatprep.subr.bf16.mxu0 0
  %3690 = vmatpush1.bf16.msra.mxu0 0
  %3691 = vmatprep.subr.bf16.mxu0 0
  %3692 = vmatpush1.bf16.msra.mxu0 0
  %3693 = vmatprep.subr.bf16.mxu0 0
  %3694 = vmatpush1.bf16.msra.mxu0 0
  %3695 = vmatprep.subr.bf16.mxu0 0
  %3696 = vmatpush1.bf16.msra.mxu0 0
  %3697 = vmatprep.subr.bf16.mxu0 0
  %3698 = vmatpush1.bf16.msra.mxu0 0
  %3699 = vmatprep.subr.bf16.mxu0 0
  %3700 = vmatpush1.bf16.msra.mxu0 0
  %3701 = vmatprep.subr.bf16.mxu0 0
  %3702 = vmatpush1.bf16.msra.mxu0 0
  %3703 = vmatprep.subr.bf16.mxu0 0
  %3704 = vmatpush1.bf16.msra.mxu0 0
  %3705 = vmatprep.mubr.bf16.mxu0 0
  %3706 = vmatmul.mubr.bf16.gmra.mrb[0].mxu0 %v3668
  %v3707 = vpop.f32.mrb[0].mxu0
  %v3708 = vadd.f32 0.0, %v3707
  %v3709 = vpop.f32.mrb[0].mxu0
  %v3710 = vpop.f32.mrb[0].mxu0
  %v3711 = vadd.f32 0.0, %v3710
  %v3712 = vpop.f32.mrb[0].mxu0
  %3713 = vmatprep.mubr.bf16.mxu0 0
  %3714 = vmatmul.mubr.bf16.gmra.mrb[0].mxu0 %v3671
  %v3715 = vpop.f32.mrb[0].mxu0
  %v3716 = vadd.f32 0.0, %v3715
  %v3717 = vpop.f32.mrb[0].mxu0
  %v3718 = vpop.f32.mrb[0].mxu0
  %v3719 = vpop.f32.mrb[0].mxu0
  %3720 = vdwg.mxu0
  %v3725 = vunpack.c.l.b16 %v3191
  %v3726 = vunpack.c.l.b16 %v3192
  %v3727 = vunpack.c.l.b16 %v3193
  %v3728 = vunpack.c.l.b16 %v3194
  %v3729 = vpack.c.b16 %v3726, %v3725
  %v3730 = vpack.c.b16 %v3728, %v3727
  %v3734 = vsel %vm992, %v3478, 0
  %v3737 = vsel %vm992, %v3479, 0
  %3739 = vmatprep.subr.bf16.mxu0 0
  %3740 = vmatpush1.bf16.msra.mxu0 %v3729
  %3741 = vmatprep.subr.bf16.mxu0 0
  %3742 = vmatpush1.bf16.msra.mxu0 %v3730
  %3743 = vmatprep.subr.bf16.mxu0 0
  %3744 = vmatpush1.bf16.msra.mxu0 0
  %3745 = vmatprep.subr.bf16.mxu0 0
  %3746 = vmatpush1.bf16.msra.mxu0 0
  %3747 = vmatprep.subr.bf16.mxu0 0
  %3748 = vmatpush1.bf16.msra.mxu0 0
  %3749 = vmatprep.subr.bf16.mxu0 0
  %3750 = vmatpush1.bf16.msra.mxu0 0
  %3751 = vmatprep.subr.bf16.mxu0 0
  %3752 = vmatpush1.bf16.msra.mxu0 0
  %3753 = vmatprep.subr.bf16.mxu0 0
  %3754 = vmatpush1.bf16.msra.mxu0 0
  %3755 = vmatprep.subr.bf16.mxu0 0
  %3756 = vmatpush1.bf16.msra.mxu0 0
  %3757 = vmatprep.subr.bf16.mxu0 0
  %3758 = vmatpush1.bf16.msra.mxu0 0
  %3759 = vmatprep.subr.bf16.mxu0 0
  %3760 = vmatpush1.bf16.msra.mxu0 0
  %3761 = vmatprep.subr.bf16.mxu0 0
  %3762 = vmatpush1.bf16.msra.mxu0 0
  %3763 = vmatprep.subr.bf16.mxu0 0
  %3764 = vmatpush1.bf16.msra.mxu0 0
  %3765 = vmatprep.subr.bf16.mxu0 0
  %3766 = vmatpush1.bf16.msra.mxu0 0
  %3767 = vmatprep.subr.bf16.mxu0 0
  %3768 = vmatpush1.bf16.msra.mxu0 0
  %3769 = vmatprep.subr.bf16.mxu0 0
  %3770 = vmatpush1.bf16.msra.mxu0 0
  %3771 = vmatprep.mubr.bf16.mxu0 0
  %3772 = vmatmul.mubr.bf16.gmra.mrb[0].mxu0 %v3734
  %v3773 = vpop.f32.mrb[0].mxu0
  %v3774 = vadd.f32 %v3708, %v3773
  %v3775 = vpop.f32.mrb[0].mxu0
  %v3776 = vpop.f32.mrb[0].mxu0
  %v3777 = vadd.f32 %v3711, %v3776
  %v3778 = vpop.f32.mrb[0].mxu0
  %3779 = vmatprep.mubr.bf16.mxu0 0
  %3780 = vmatmul.mubr.bf16.gmra.mrb[0].mxu0 %v3737
  %v3781 = vpop.f32.mrb[0].mxu0
  %v3782 = vadd.f32 %v3716, %v3781
  %v3783 = vpop.f32.mrb[0].mxu0
  %v3784 = vpop.f32.mrb[0].mxu0
  %v3785 = vpop.f32.mrb[0].mxu0
  %3786 = vdwg.mxu0
  %v3788 = vlaneseq
  %v3789 = vshrl.u32 %v3788, 7
  %v3790 = vsub.s32 0, %v3789
  %v3791 = vrot.slane %v3199, %v3790
  %v3793 = vadd.f32 %v3774, %v3791
  %v3794 = vadd.f32 %v3777, %v3791
  %v3795 = vadd.f32 %v3782, %v3791
  %v3796 = vadd.f32 %v3118, %v3793
  %v3797 = vadd.f32 %v3119, %v3794
  %v3798 = vadd.f32 %v3120, %v3795
  %v3799 = vld [vmem:[%s57] sm:$0x1]
  %v3800 = vld [vmem:[%s59] sm:$0x1]
  %v3801 = vsel %vm547, %v3796, 0.0
  %3802 = vadd.xlane.f32.xlu0 %v3801
  %v3803 = vpop.xlane.xlu0 %3802
  %v3804 = vsel %vm547, %v3797, 0.0
  %3805 = vadd.xlane.f32.xlu0 %v3804
  %v3806 = vpop.xlane.xlu0 %3805
  %v3807 = vsel %vm547, %v3798, 0.0
  %3808 = vadd.xlane.f32.xlu0 %v3807
  %v3809 = vpop.xlane.xlu0 %3808
  %v3810 = vmul.f32 %v3803, %v805
  %v3811 = vmul.f32 %v3806, %v805
  %v3812 = vmul.f32 %v3809, %v805
  %v3813 = vsub.f32 %v3796, %v3810
  %v3814 = vsub.f32 %v3797, %v3811
  %v3815 = vsub.f32 %v3798, %v3812
  %v3816 = vmul.f32 %v3813, %v3813
  %v3817 = vmul.f32 %v3814, %v3814
  %v3818 = vmul.f32 %v3815, %v3815
  %v3819 = vsel %vm547, %v3816, 0.0
  %3820 = vadd.xlane.f32.xlu0 %v3819
  %v3821 = vpop.xlane.xlu0 %3820
  %v3822 = vsel %vm547, %v3817, 0.0
  %3823 = vadd.xlane.f32.xlu0 %v3822
  %v3824 = vpop.xlane.xlu0 %3823
  %v3825 = vsel %vm547, %v3818, 0.0
  %3826 = vadd.xlane.f32.xlu0 %v3825
  %v3827 = vpop.xlane.xlu0 %3826
  %v3828 = vmul.f32 %v3821, %v805
  %v3829 = vmul.f32 %v3824, %v805
  %v3830 = vmul.f32 %v3827, %v805
  %v3831 = vadd.f32 %v3828, 1e-06
  %v3832 = vadd.f32 %v3829, 1e-06
  %v3833 = vadd.f32 %v3830, 1e-06
  %v3834 = vrsqrt.pop %v3831
  %v3835 = vrsqrt.pop %v3832
  %v3836 = vrsqrt.pop %v3833
  %v3837 = vmul.f32 %v3813, %v3834
  %v3838 = vmul.f32 %v3814, %v3835
  %v3839 = vmul.f32 %v3815, %v3836
  %v3841 = vlaneseq
  %v3842 = vshrl.u32 %v3841, 7
  %v3843 = vsub.s32 0, %v3842
  %v3844 = vrot.slane %v3799, %v3843
  %v3846 = vmul.f32 %v3837, %v3844
  %v3847 = vmul.f32 %v3838, %v3844
  %v3848 = vmul.f32 %v3839, %v3844
  %v3850 = vlaneseq
  %v3851 = vshrl.u32 %v3850, 7
  %v3852 = vsub.s32 0, %v3851
  %v3853 = vrot.slane %v3800, %v3852
  %v3855 = vadd.f32 %v3846, %v3853
  %v3856 = vadd.f32 %v3847, %v3853
  %v3857 = vadd.f32 %v3848, %v3853
  %v3858 = vpack.c.bf16 %v3856, %v3855
  %v3859 = vpack.c.bf16 %v3857, %v3857
  %v3860 = vld [vmem:[%s61] sm:$0xff]
  %v3861 = vld [vmem:[%s61 + $0x8] sm:$0xff]
  %v3862 = vld [vmem:[%s61 + $0x10] sm:$0xff]
  %v3863 = vld [vmem:[%s61 + $0x18] sm:$0xff]
  %v3864 = vld [vmem:[%s61 + $0x20] sm:$0xff]
  %v3865 = vld [vmem:[%s61 + $0x28] sm:$0xff]
  %v3866 = vld [vmem:[%s61 + $0x30] sm:$0xff]
  %v3867 = vld [vmem:[%s61 + $0x38] sm:$0xff]
  %v3868 = vld [vmem:[%s63] sm:$0x3]
  %v3870 = vlaneseq
  %v3871 = vshrl.u32 %v3870, 7
  %v3872 = vsub.s32 0, %v3871
  %v3873 = vrot.slane %v3868, %v3872
  %v3874 = vlaneseq
  %v3875 = vshrl.u32 %v3874, 7
  %v3876 = vsub.s32 1, %v3875
  %v3877 = vrot.slane %v3868, %v3876
  %v3888 = vunpack.c.l.b16 %v3860
  %v3889 = vunpack.c.h.b16 %v3860
  %v3890 = vunpack.c.l.b16 %v3861
  %v3891 = vunpack.c.h.b16 %v3861
  %v3892 = vunpack.c.l.b16 %v3862
  %v3893 = vunpack.c.h.b16 %v3862
  %v3894 = vunpack.c.l.b16 %v3863
  %v3895 = vunpack.c.h.b16 %v3863
  %v3896 = vunpack.c.l.b16 %v3864
  %v3897 = vunpack.c.h.b16 %v3864
  %v3898 = vunpack.c.l.b16 %v3865
  %v3899 = vunpack.c.h.b16 %v3865
  %v3900 = vunpack.c.l.b16 %v3866
  %v3901 = vunpack.c.h.b16 %v3866
  %v3902 = vunpack.c.l.b16 %v3867
  %v3903 = vunpack.c.h.b16 %v3867
  %v3904 = vpack.c.b16 %v3890, %v3888
  %v3905 = vpack.c.b16 %v3891, %v3889
  %v3906 = vpack.c.b16 %v3894, %v3892
  %v3907 = vpack.c.b16 %v3895, %v3893
  %v3908 = vpack.c.b16 %v3898, %v3896
  %v3909 = vpack.c.b16 %v3899, %v3897
  %v3910 = vpack.c.b16 %v3902, %v3900
  %v3911 = vpack.c.b16 %v3903, %v3901
  %v3921 = vsel %vm547, %v3858, 0
  %v3924 = vsel %vm547, %v3859, 0
  %3926 = vmatprep.subr.bf16.mxu0 %v3905
  %3927 = vmatpush1.bf16.msra.mxu0 %v3904
  %3928 = vmatprep.subr.bf16.mxu0 %v3907
  %3929 = vmatpush1.bf16.msra.mxu0 %v3906
  %3930 = vmatprep.subr.bf16.mxu0 %v3909
  %3931 = vmatpush1.bf16.msra.mxu0 %v3908
  %3932 = vmatprep.subr.bf16.mxu0 %v3911
  %3933 = vmatpush1.bf16.msra.mxu0 %v3910
  %3934 = vmatprep.subr.bf16.mxu0 0
  %3935 = vmatpush1.bf16.msra.mxu0 0
  %3936 = vmatprep.subr.bf16.mxu0 0
  %3937 = vmatpush1.bf16.msra.mxu0 0
  %3938 = vmatprep.subr.bf16.mxu0 0
  %3939 = vmatpush1.bf16.msra.mxu0 0
  %3940 = vmatprep.subr.bf16.mxu0 0
  %3941 = vmatpush1.bf16.msra.mxu0 0
  %3942 = vmatprep.subr.bf16.mxu0 0
  %3943 = vmatpush1.bf16.msra.mxu0 0
  %3944 = vmatprep.subr.bf16.mxu0 0
  %3945 = vmatpush1.bf16.msra.mxu0 0
  %3946 = vmatprep.subr.bf16.mxu0 0
  %3947 = vmatpush1.bf16.msra.mxu0 0
  %3948 = vmatprep.subr.bf16.mxu0 0
  %3949 = vmatpush1.bf16.msra.mxu0 0
  %3950 = vmatprep.subr.bf16.mxu0 0
  %3951 = vmatpush1.bf16.msra.mxu0 0
  %3952 = vmatprep.subr.bf16.mxu0 0
  %3953 = vmatpush1.bf16.msra.mxu0 0
  %3954 = vmatprep.subr.bf16.mxu0 0
  %3955 = vmatpush1.bf16.msra.mxu0 0
  %3956 = vmatprep.subr.bf16.mxu0 0
  %3957 = vmatpush1.bf16.msra.mxu0 0
  %3958 = vmatprep.mubr.bf16.mxu0 0
  %3959 = vmatmul.mubr.bf16.gmra.mrb[0].mxu0 %v3921
  %v3960 = vpop.f32.mrb[0].mxu0
  %v3961 = vadd.f32 %v3873, %v3960
  %v3962 = vpop.f32.mrb[0].mxu0
  %v3963 = vadd.f32 %v3877, %v3962
  %v3964 = vpop.f32.mrb[0].mxu0
  %v3965 = vadd.f32 %v3873, %v3964
  %v3966 = vpop.f32.mrb[0].mxu0
  %v3967 = vadd.f32 %v3877, %v3966
  %3968 = vmatprep.mubr.bf16.mxu0 0
  %3969 = vmatmul.mubr.bf16.gmra.mrb[0].mxu0 %v3924
  %v3970 = vpop.f32.mrb[0].mxu0
  %v3971 = vadd.f32 %v3873, %v3970
  %v3972 = vpop.f32.mrb[0].mxu0
  %v3973 = vadd.f32 %v3877, %v3972
  %v3974 = vpop.f32.mrb[0].mxu0
  %v3975 = vpop.f32.mrb[0].mxu0
  %3976 = vdwg.mxu0
  %v3977 = vmul.f32 %v3961, %v3961
  %v3978 = vmul.f32 %v3963, %v3963
  %v3979 = vmul.f32 %v3965, %v3965
  %v3980 = vmul.f32 %v3967, %v3967
  %v3981 = vmul.f32 %v3971, %v3971
  %v3982 = vmul.f32 %v3973, %v3973
  %v3983 = vmul.f32 %v3961, %v3977
  %v3984 = vmul.f32 %v3963, %v3978
  %v3985 = vmul.f32 %v3965, %v3979
  %v3986 = vmul.f32 %v3967, %v3980
  %v3987 = vmul.f32 %v3971, %v3981
  %v3988 = vmul.f32 %v3973, %v3982
  %v3989 = vmul.f32 %v3983, 0.044715
  %v3990 = vmul.f32 %v3984, 0.044715
  %v3991 = vmul.f32 %v3985, 0.044715
  %v3992 = vmul.f32 %v3986, 0.044715
  %v3993 = vmul.f32 %v3987, 0.044715
  %v3994 = vmul.f32 %v3988, 0.044715
  %v3995 = vadd.f32 %v3961, %v3989
  %v3996 = vadd.f32 %v3963, %v3990
  %v3997 = vadd.f32 %v3965, %v3991
  %v3998 = vadd.f32 %v3967, %v3992
  %v3999 = vadd.f32 %v3971, %v3993
  %v4000 = vadd.f32 %v3973, %v3994
  %v4001 = vmul.f32 %v3995, 0.7978846
  %v4002 = vmul.f32 %v3996, 0.7978846
  %v4003 = vmul.f32 %v3997, 0.7978846
  %v4004 = vmul.f32 %v3998, 0.7978846
  %v4005 = vmul.f32 %v3999, 0.7978846
  %v4006 = vmul.f32 %v4000, 0.7978846
  %v4007 = vtanh.pop %v4001
  %v4008 = vtanh.pop %v4002
  %v4009 = vtanh.pop %v4003
  %v4010 = vtanh.pop %v4004
  %v4011 = vtanh.pop %v4005
  %v4012 = vtanh.pop %v4006
  %v4013 = vadd.f32 %v4007, 1.0
  %v4014 = vadd.f32 %v4008, 1.0
  %v4015 = vadd.f32 %v4009, 1.0
  %v4016 = vadd.f32 %v4010, 1.0
  %v4017 = vadd.f32 %v4011, 1.0
  %v4018 = vadd.f32 %v4012, 1.0
  %v4019 = vmul.f32 %v4013, 0.5
  %v4020 = vmul.f32 %v4014, 0.5
  %v4021 = vmul.f32 %v4015, 0.5
  %v4022 = vmul.f32 %v4016, 0.5
  %v4023 = vmul.f32 %v4017, 0.5
  %v4024 = vmul.f32 %v4018, 0.5
  %v4025 = vmul.f32 %v3961, %v4019
  %v4026 = vmul.f32 %v3963, %v4020
  %v4027 = vmul.f32 %v3965, %v4021
  %v4028 = vmul.f32 %v3967, %v4022
  %v4029 = vmul.f32 %v3971, %v4023
  %v4030 = vmul.f32 %v3973, %v4024
  %v4031 = vpack.c.bf16 %v4027, %v4025
  %v4032 = vpack.c.bf16 %v4028, %v4026
  %v4033 = vpack.c.bf16 %v4029, %v4029
  %v4034 = vpack.c.bf16 %v4030, %v4030
  %v4035 = vld [vmem:[%s65] sm:$0xf]
  %v4036 = vld [vmem:[%s65 + $0x4] sm:$0xf]
  %v4037 = vld [vmem:[%s65 + $0x8] sm:$0xf]
  %v4038 = vld [vmem:[%s65 + $0xc] sm:$0xf]
  %v4039 = vld [vmem:[%s65 + $0x10] sm:$0xf]
  %v4040 = vld [vmem:[%s65 + $0x14] sm:$0xf]
  %v4041 = vld [vmem:[%s65 + $0x18] sm:$0xf]
  %v4042 = vld [vmem:[%s65 + $0x1c] sm:$0xf]
  %v4043 = vld [vmem:[%s65 + $0x20] sm:$0xf]
  %v4044 = vld [vmem:[%s65 + $0x24] sm:$0xf]
  %v4045 = vld [vmem:[%s65 + $0x28] sm:$0xf]
  %v4046 = vld [vmem:[%s65 + $0x2c] sm:$0xf]
  %v4047 = vld [vmem:[%s65 + $0x30] sm:$0xf]
  %v4048 = vld [vmem:[%s65 + $0x34] sm:$0xf]
  %v4049 = vld [vmem:[%s65 + $0x38] sm:$0xf]
  %v4050 = vld [vmem:[%s65 + $0x3c] sm:$0xf]
  %v4051 = vld [vmem:[%s65 + $0x40] sm:$0xf]
  %v4052 = vld [vmem:[%s65 + $0x44] sm:$0xf]
  %v4053 = vld [vmem:[%s65 + $0x48] sm:$0xf]
  %v4054 = vld [vmem:[%s65 + $0x4c] sm:$0xf]
  %v4055 = vld [vmem:[%s65 + $0x50] sm:$0xf]
  %v4056 = vld [vmem:[%s65 + $0x54] sm:$0xf]
  %v4057 = vld [vmem:[%s65 + $0x58] sm:$0xf]
  %v4058 = vld [vmem:[%s65 + $0x5c] sm:$0xf]
  %v4059 = vld [vmem:[%s65 + $0x60] sm:$0xf]
  %v4060 = vld [vmem:[%s65 + $0x64] sm:$0xf]
  %v4061 = vld [vmem:[%s65 + $0x68] sm:$0xf]
  %v4062 = vld [vmem:[%s65 + $0x6c] sm:$0xf]
  %v4063 = vld [vmem:[%s65 + $0x70] sm:$0xf]
  %v4064 = vld [vmem:[%s65 + $0x74] sm:$0xf]
  %v4065 = vld [vmem:[%s65 + $0x78] sm:$0xf]
  %v4066 = vld [vmem:[%s65 + $0x7c] sm:$0xf]
  %v4099 = vunpack.c.l.b16 %v4035
  %v4100 = vunpack.c.l.b16 %v4036
  %v4101 = vunpack.c.l.b16 %v4037
  %v4102 = vunpack.c.l.b16 %v4038
  %v4103 = vunpack.c.l.b16 %v4039
  %v4104 = vunpack.c.l.b16 %v4040
  %v4105 = vunpack.c.l.b16 %v4041
  %v4106 = vunpack.c.l.b16 %v4042
  %v4107 = vunpack.c.l.b16 %v4043
  %v4108 = vunpack.c.l.b16 %v4044
  %v4109 = vunpack.c.l.b16 %v4045
  %v4110 = vunpack.c.l.b16 %v4046
  %v4111 = vunpack.c.l.b16 %v4047
  %v4112 = vunpack.c.l.b16 %v4048
  %v4113 = vunpack.c.l.b16 %v4049
  %v4114 = vunpack.c.l.b16 %v4050
  %v4115 = vunpack.c.l.b16 %v4051
  %v4116 = vunpack.c.l.b16 %v4052
  %v4117 = vunpack.c.l.b16 %v4053
  %v4118 = vunpack.c.l.b16 %v4054
  %v4119 = vunpack.c.l.b16 %v4055
  %v4120 = vunpack.c.l.b16 %v4056
  %v4121 = vunpack.c.l.b16 %v4057
  %v4122 = vunpack.c.l.b16 %v4058
  %v4123 = vunpack.c.l.b16 %v4059
  %v4124 = vunpack.c.l.b16 %v4060
  %v4125 = vunpack.c.l.b16 %v4061
  %v4126 = vunpack.c.l.b16 %v4062
  %v4127 = vunpack.c.l.b16 %v4063
  %v4128 = vunpack.c.l.b16 %v4064
  %v4129 = vunpack.c.l.b16 %v4065
  %v4130 = vunpack.c.l.b16 %v4066
  %v4131 = vpack.c.b16 %v4100, %v4099
  %v4132 = vpack.c.b16 %v4102, %v4101
  %v4133 = vpack.c.b16 %v4104, %v4103
  %v4134 = vpack.c.b16 %v4106, %v4105
  %v4135 = vpack.c.b16 %v4108, %v4107
  %v4136 = vpack.c.b16 %v4110, %v4109
  %v4137 = vpack.c.b16 %v4112, %v4111
  %v4138 = vpack.c.b16 %v4114, %v4113
  %v4139 = vpack.c.b16 %v4116, %v4115
  %v4140 = vpack.c.b16 %v4118, %v4117
  %v4141 = vpack.c.b16 %v4120, %v4119
  %v4142 = vpack.c.b16 %v4122, %v4121
  %v4143 = vpack.c.b16 %v4124, %v4123
  %v4144 = vpack.c.b16 %v4126, %v4125
  %v4145 = vpack.c.b16 %v4128, %v4127
  %v4146 = vpack.c.b16 %v4130, %v4129
  %4163 = vmatprep.subr.bf16.mxu0 0
  %4164 = vmatpush1.bf16.msra.mxu0 %v4131
  %4165 = vmatprep.subr.bf16.mxu0 0
  %4166 = vmatpush1.bf16.msra.mxu0 %v4132
  %4167 = vmatprep.subr.bf16.mxu0 0
  %4168 = vmatpush1.bf16.msra.mxu0 %v4133
  %4169 = vmatprep.subr.bf16.mxu0 0
  %4170 = vmatpush1.bf16.msra.mxu0 %v4134
  %4171 = vmatprep.subr.bf16.mxu0 0
  %4172 = vmatpush1.bf16.msra.mxu0 %v4135
  %4173 = vmatprep.subr.bf16.mxu0 0
  %4174 = vmatpush1.bf16.msra.mxu0 %v4136
  %4175 = vmatprep.subr.bf16.mxu0 0
  %4176 = vmatpush1.bf16.msra.mxu0 %v4137
  %4177 = vmatprep.subr.bf16.mxu0 0
  %4178 = vmatpush1.bf16.msra.mxu0 %v4138
  %4179 = vmatprep.subr.bf16.mxu0 0
  %4180 = vmatpush1.bf16.msra.mxu0 %v4139
  %4181 = vmatprep.subr.bf16.mxu0 0
  %4182 = vmatpush1.bf16.msra.mxu0 %v4140
  %4183 = vmatprep.subr.bf16.mxu0 0
  %4184 = vmatpush1.bf16.msra.mxu0 %v4141
  %4185 = vmatprep.subr.bf16.mxu0 0
  %4186 = vmatpush1.bf16.msra.mxu0 %v4142
  %4187 = vmatprep.subr.bf16.mxu0 0
  %4188 = vmatpush1.bf16.msra.mxu0 %v4143
  %4189 = vmatprep.subr.bf16.mxu0 0
  %4190 = vmatpush1.bf16.msra.mxu0 %v4144
  %4191 = vmatprep.subr.bf16.mxu0 0
  %4192 = vmatpush1.bf16.msra.mxu0 %v4145
  %4193 = vmatprep.subr.bf16.mxu0 0
  %4194 = vmatpush1.bf16.msra.mxu0 %v4146
  %4195 = vmatprep.mubr.bf16.mxu0 %v4032
  %4196 = vmatmul.mubr.bf16.gmra.mrb[0].mxu0 %v4031
  %v4197 = vpop.f32.mrb[0].mxu0
  %v4198 = vadd.f32 0.0, %v4197
  %v4199 = vpop.f32.mrb[0].mxu0
  %v4200 = vpop.f32.mrb[0].mxu0
  %v4201 = vadd.f32 0.0, %v4200
  %v4202 = vpop.f32.mrb[0].mxu0
  %4203 = vmatprep.mubr.bf16.mxu0 %v4034
  %4204 = vmatmul.mubr.bf16.gmra.mrb[0].mxu0 %v4033
  %v4205 = vpop.f32.mrb[0].mxu0
  %v4206 = vadd.f32 0.0, %v4205
  %v4207 = vpop.f32.mrb[0].mxu0
  %v4208 = vpop.f32.mrb[0].mxu0
  %v4209 = vpop.f32.mrb[0].mxu0
  %4210 = vdwg.mxu0
  %v4211 = vadd.f32 %v3796, %v4198
  %v4212 = vadd.f32 %v3797, %v4201
  %v4213 = vadd.f32 %v3798, %v4206
  %v4214 = vld [vmem:[%s67] sm:$0x1]
  %v4216 = vlaneseq
  %v4217 = vshrl.u32 %v4216, 7
  %v4218 = vsub.s32 0, %v4217
  %v4219 = vrot.slane %v4214, %v4218
  %v4221 = vadd.f32 %v4211, %v4219
  %v4222 = vadd.f32 %v4212, %v4219
  %v4223 = vadd.f32 %v4213, %v4219
  %s4224 = scalar_lea.vmem %s45, 1
  %v4225 = vld [vmem:[%s4224] sm:$0x1]
  %s4226 = scalar_lea.vmem %s47, 1
  %v4227 = vld [vmem:[%s4226] sm:$0x1]
  %v4228 = vsel %vm547, %v4221, 0.0
  %4229 = vadd.xlane.f32.xlu0 %v4228
  %v4230 = vpop.xlane.xlu0 %4229
  %v4231 = vsel %vm547, %v4222, 0.0
  %4232 = vadd.xlane.f32.xlu0 %v4231
  %v4233 = vpop.xlane.xlu0 %4232
  %v4234 = vsel %vm547, %v4223, 0.0
  %4235 = vadd.xlane.f32.xlu0 %v4234
  %v4236 = vpop.xlane.xlu0 %4235
  %v4237 = vmul.f32 %v4230, %v805
  %v4238 = vmul.f32 %v4233, %v805
  %v4239 = vmul.f32 %v4236, %v805
  %v4240 = vsub.f32 %v4221, %v4237
  %v4241 = vsub.f32 %v4222, %v4238
  %v4242 = vsub.f32 %v4223, %v4239
  %v4243 = vmul.f32 %v4240, %v4240
  %v4244 = vmul.f32 %v4241, %v4241
  %v4245 = vmul.f32 %v4242, %v4242
  %v4246 = vsel %vm547, %v4243, 0.0
  %4247 = vadd.xlane.f32.xlu0 %v4246
  %v4248 = vpop.xlane.xlu0 %4247
  %v4249 = vsel %vm547, %v4244, 0.0
  %4250 = vadd.xlane.f32.xlu0 %v4249
  %v4251 = vpop.xlane.xlu0 %4250
  %v4252 = vsel %vm547, %v4245, 0.0
  %4253 = vadd.xlane.f32.xlu0 %v4252
  %v4254 = vpop.xlane.xlu0 %4253
  %v4255 = vmul.f32 %v4248, %v805
  %v4256 = vmul.f32 %v4251, %v805
  %v4257 = vmul.f32 %v4254, %v805
  %v4258 = vadd.f32 %v4255, 1e-06
  %v4259 = vadd.f32 %v4256, 1e-06
  %v4260 = vadd.f32 %v4257, 1e-06
  %v4261 = vrsqrt.pop %v4258
  %v4262 = vrsqrt.pop %v4259
  %v4263 = vrsqrt.pop %v4260
  %v4264 = vmul.f32 %v4240, %v4261
  %v4265 = vmul.f32 %v4241, %v4262
  %v4266 = vmul.f32 %v4242, %v4263
  %v4268 = vlaneseq
  %v4269 = vshrl.u32 %v4268, 7
  %v4270 = vsub.s32 0, %v4269
  %v4271 = vrot.slane %v4225, %v4270
  %v4273 = vmul.f32 %v4264, %v4271
  %v4274 = vmul.f32 %v4265, %v4271
  %v4275 = vmul.f32 %v4266, %v4271
  %v4277 = vlaneseq
  %v4278 = vshrl.u32 %v4277, 7
  %v4279 = vsub.s32 0, %v4278
  %v4280 = vrot.slane %v4227, %v4279
  %v4282 = vadd.f32 %v4273, %v4280
  %v4283 = vadd.f32 %v4274, %v4280
  %v4284 = vadd.f32 %v4275, %v4280
  %v4285 = vpack.c.bf16 %v4283, %v4282
  %v4286 = vpack.c.bf16 %v4284, %v4284
  %s4287 = scalar_lea.vmem %s49, 64
  %v4288 = vld [vmem:[%s4287] sm:$0xff]
  %v4289 = vld [vmem:[%s4287 + $0x8] sm:$0xff]
  %v4290 = vld [vmem:[%s4287 + $0x10] sm:$0xff]
  %v4291 = vld [vmem:[%s4287 + $0x18] sm:$0xff]
  %v4292 = vld [vmem:[%s4287 + $0x20] sm:$0xff]
  %v4293 = vld [vmem:[%s4287 + $0x28] sm:$0xff]
  %v4294 = vld [vmem:[%s4287 + $0x30] sm:$0xff]
  %v4295 = vld [vmem:[%s4287 + $0x38] sm:$0xff]
  %s4296 = scalar_lea.vmem %s51, 2
  %v4297 = vld [vmem:[%s4296] sm:$0x3]
  %s4298 = scalar_lea.vmem %s53, 32
  %v4299 = vld [vmem:[%s4298] sm:$0xf]
  %v4300 = vld [vmem:[%s4298 + $0x4] sm:$0xf]
  %v4301 = vld [vmem:[%s4298 + $0x8] sm:$0xf]
  %v4302 = vld [vmem:[%s4298 + $0xc] sm:$0xf]
  %v4303 = vld [vmem:[%s4298 + $0x10] sm:$0xf]
  %v4304 = vld [vmem:[%s4298 + $0x14] sm:$0xf]
  %v4305 = vld [vmem:[%s4298 + $0x18] sm:$0xf]
  %v4306 = vld [vmem:[%s4298 + $0x1c] sm:$0xf]
  %s4307 = scalar_lea.vmem %s55, 1
  %v4308 = vld [vmem:[%s4307] sm:$0x1]
  %v4310 = vlaneseq
  %v4311 = vshrl.u32 %v4310, 7
  %v4312 = vsub.s32 0, %v4311
  %v4313 = vrot.slane %v4297, %v4312
  %v4314 = vlaneseq
  %v4315 = vshrl.u32 %v4314, 7
  %v4316 = vsub.s32 1, %v4315
  %v4317 = vrot.slane %v4297, %v4316
  %v4328 = vunpack.c.l.b16 %v4288
  %v4329 = vunpack.c.h.b16 %v4288
  %v4330 = vunpack.c.l.b16 %v4289
  %v4331 = vunpack.c.h.b16 %v4289
  %v4332 = vunpack.c.l.b16 %v4290
  %v4333 = vunpack.c.h.b16 %v4290
  %v4334 = vunpack.c.l.b16 %v4291
  %v4335 = vunpack.c.h.b16 %v4291
  %v4336 = vunpack.c.l.b16 %v4292
  %v4337 = vunpack.c.h.b16 %v4292
  %v4338 = vunpack.c.l.b16 %v4293
  %v4339 = vunpack.c.h.b16 %v4293
  %v4340 = vunpack.c.l.b16 %v4294
  %v4341 = vunpack.c.h.b16 %v4294
  %v4342 = vunpack.c.l.b16 %v4295
  %v4343 = vunpack.c.h.b16 %v4295
  %v4344 = vpack.c.b16 %v4330, %v4328
  %v4345 = vpack.c.b16 %v4331, %v4329
  %v4346 = vpack.c.b16 %v4334, %v4332
  %v4347 = vpack.c.b16 %v4335, %v4333
  %v4348 = vpack.c.b16 %v4338, %v4336
  %v4349 = vpack.c.b16 %v4339, %v4337
  %v4350 = vpack.c.b16 %v4342, %v4340
  %v4351 = vpack.c.b16 %v4343, %v4341
  %v4361 = vsel %vm547, %v4285, 0
  %v4364 = vsel %vm547, %v4286, 0
  %4366 = vmatprep.subr.bf16.mxu0 %v4345
  %4367 = vmatpush1.bf16.msra.mxu0 %v4344
  %4368 = vmatprep.subr.bf16.mxu0 %v4347
  %4369 = vmatpush1.bf16.msra.mxu0 %v4346
  %4370 = vmatprep.subr.bf16.mxu0 %v4349
  %4371 = vmatpush1.bf16.msra.mxu0 %v4348
  %4372 = vmatprep.subr.bf16.mxu0 %v4351
  %4373 = vmatpush1.bf16.msra.mxu0 %v4350
  %4374 = vmatprep.subr.bf16.mxu0 0
  %4375 = vmatpush1.bf16.msra.mxu0 0
  %4376 = vmatprep.subr.bf16.mxu0 0
  %4377 = vmatpush1.bf16.msra.mxu0 0
  %4378 = vmatprep.subr.bf16.mxu0 0
  %4379 = vmatpush1.bf16.msra.mxu0 0
  %4380 = vmatprep.subr.bf16.mxu0 0
  %4381 = vmatpush1.bf16.msra.mxu0 0
  %4382 = vmatprep.subr.bf16.mxu0 0
  %4383 = vmatpush1.bf16.msra.mxu0 0
  %4384 = vmatprep.subr.bf16.mxu0 0
  %4385 = vmatpush1.bf16.msra.mxu0 0
  %4386 = vmatprep.subr.bf16.mxu0 0
  %4387 = vmatpush1.bf16.msra.mxu0 0
  %4388 = vmatprep.subr.bf16.mxu0 0
  %4389 = vmatpush1.bf16.msra.mxu0 0
  %4390 = vmatprep.subr.bf16.mxu0 0
  %4391 = vmatpush1.bf16.msra.mxu0 0
  %4392 = vmatprep.subr.bf16.mxu0 0
  %4393 = vmatpush1.bf16.msra.mxu0 0
  %4394 = vmatprep.subr.bf16.mxu0 0
  %4395 = vmatpush1.bf16.msra.mxu0 0
  %4396 = vmatprep.subr.bf16.mxu0 0
  %4397 = vmatpush1.bf16.msra.mxu0 0
  %4398 = vmatprep.mubr.bf16.mxu0 0
  %4399 = vmatmul.mubr.bf16.gmra.mrb[0].mxu0 %v4361
  %v4400 = vpop.f32.mrb[0].mxu0
  %v4401 = vadd.f32 %v4313, %v4400
  %v4402 = vpop.f32.mrb[0].mxu0
  %v4403 = vadd.f32 %v4317, %v4402
  %v4404 = vpop.f32.mrb[0].mxu0
  %v4405 = vadd.f32 %v4313, %v4404
  %v4406 = vpop.f32.mrb[0].mxu0
  %v4407 = vadd.f32 %v4317, %v4406
  %4408 = vmatprep.mubr.bf16.mxu0 0
  %4409 = vmatmul.mubr.bf16.gmra.mrb[0].mxu0 %v4364
  %v4410 = vpop.f32.mrb[0].mxu0
  %v4411 = vadd.f32 %v4313, %v4410
  %v4412 = vpop.f32.mrb[0].mxu0
  %v4413 = vadd.f32 %v4317, %v4412
  %v4414 = vpop.f32.mrb[0].mxu0
  %v4415 = vpop.f32.mrb[0].mxu0
  %4416 = vdwg.mxu0
  %v4417 = vpack.c.bf16 %v4405, %v4401
  %v4418 = vpack.c.bf16 %v4407, %v4403
  %v4419 = vpack.c.bf16 %v4411, %v4411
  %v4420 = vpack.c.bf16 %v4413, %v4413
  %4423 = vrot.lane.b32.xlu0 %v4417, 64
  %v4424 = vpop.permute.xlu0 %4423
  %4425 = vrot.lane.b32.xlu0 %v4419, 64
  %v4426 = vpop.permute.xlu0 %4425
  %v4428 = vsel %vm992, %v4417, 0
  %v4431 = vsel %vm992, %v4419, 0
  %v4434 = vsel %vm992, %v4424, 0
  %v4437 = vsel %vm992, %v4426, 0
  %4439 = vmatprep.subr.bf16.mxu0 0
  %4440 = vmatpush1.bf16.xpose.msra.mxu0 %v4434
  %4441 = vmatprep.subr.bf16.mxu0 0
  %4442 = vmatpush1.bf16.xpose.msra.mxu0 %v4437
  %4443 = vmatprep.subr.bf16.mxu0 0
  %4444 = vmatpush1.bf16.xpose.msra.mxu0 0
  %4445 = vmatprep.subr.bf16.mxu0 0
  %4446 = vmatpush1.bf16.xpose.msra.mxu0 0
  %4447 = vmatprep.subr.bf16.mxu0 0
  %4448 = vmatpush1.bf16.xpose.msra.mxu0 0
  %4449 = vmatprep.subr.bf16.mxu0 0
  %4450 = vmatpush1.bf16.xpose.msra.mxu0 0
  %4451 = vmatprep.subr.bf16.mxu0 0
  %4452 = vmatpush1.bf16.xpose.msra.mxu0 0
  %4453 = vmatprep.subr.bf16.mxu0 0
  %4454 = vmatpush1.bf16.xpose.msra.mxu0 0
  %4455 = vmatprep.subr.bf16.mxu0 0
  %4456 = vmatpush1.bf16.xpose.msra.mxu0 0
  %4457 = vmatprep.subr.bf16.mxu0 0
  %4458 = vmatpush1.bf16.xpose.msra.mxu0 0
  %4459 = vmatprep.subr.bf16.mxu0 0
  %4460 = vmatpush1.bf16.xpose.msra.mxu0 0
  %4461 = vmatprep.subr.bf16.mxu0 0
  %4462 = vmatpush1.bf16.xpose.msra.mxu0 0
  %4463 = vmatprep.subr.bf16.mxu0 0
  %4464 = vmatpush1.bf16.xpose.msra.mxu0 0
  %4465 = vmatprep.subr.bf16.mxu0 0
  %4466 = vmatpush1.bf16.xpose.msra.mxu0 0
  %4467 = vmatprep.subr.bf16.mxu0 0
  %4468 = vmatpush1.bf16.xpose.msra.mxu0 0
  %4469 = vmatprep.subr.bf16.mxu0 0
  %4470 = vmatpush1.bf16.xpose.msra.mxu0 0
  %4471 = vmatprep.mubr.bf16.mxu0 0
  %4472 = vmatmul.mubr.bf16.gmra.mrb[0].mxu0 %v4428
  %v4473 = vpop.f32.mrb[0].mxu0
  %v4474 = vadd.f32 0.0, %v4473
  %v4475 = vpop.f32.mrb[0].mxu0
  %v4476 = vpop.f32.mrb[0].mxu0
  %v4477 = vadd.f32 0.0, %v4476
  %v4478 = vpop.f32.mrb[0].mxu0
  %4479 = vmatprep.mubr.bf16.mxu0 0
  %4480 = vmatmul.mubr.bf16.gmra.mrb[0].mxu0 %v4431
  %v4481 = vpop.f32.mrb[0].mxu0
  %v4482 = vadd.f32 0.0, %v4481
  %v4483 = vpop.f32.mrb[0].mxu0
  %v4484 = vpop.f32.mrb[0].mxu0
  %v4485 = vpop.f32.mrb[0].mxu0
  %4486 = vdwg.mxu0
  %v4487 = vmul.f32 %v4474, 0.17677669
  %v4488 = vmul.f32 %v4477, 0.17677669
  %v4489 = vmul.f32 %v4482, 0.17677669
  %v4490 = vsel %vm3109, %v4487, -1e+30
  %v4491 = vsel %vm3110, %v4488, -1e+30
  %v4492 = vsel %vm3111, %v4489, -1e+30
  %v4493 = vsel %vm3384, %v4490, -inf
  %4494 = vmax.xlane.f32.xlu0 %v4493
  %v4495 = vpop.xlane.xlu0 %4494
  %v4496 = vsel %vm3384, %v4491, -inf
  %4497 = vmax.xlane.f32.xlu0 %v4496
  %v4498 = vpop.xlane.xlu0 %4497
  %v4499 = vsel %vm3384, %v4492, -inf
  %4500 = vmax.xlane.f32.xlu0 %v4499
  %v4501 = vpop.xlane.xlu0 %4500
  %v4502 = vsub.f32 %v4490, %v4495
  %v4503 = vsub.f32 %v4491, %v4498
  %v4504 = vsub.f32 %v4492, %v4501
  %v4505 = vmul.f32 %v4502, 1.442695
  %v4506 = vpow.pop %v4505
  %v4507 = vmul.f32 %v4503, 1.442695
  %v4508 = vpow.pop %v4507
  %v4509 = vmul.f32 %v4504, 1.442695
  %v4510 = vpow.pop %v4509
  %v4511 = vsel %vm3384, %v4506, 0.0
  %4512 = vadd.xlane.f32.xlu0 %v4511
  %v4513 = vpop.xlane.xlu0 %4512
  %v4514 = vsel %vm3384, %v4508, 0.0
  %4515 = vadd.xlane.f32.xlu0 %v4514
  %v4516 = vpop.xlane.xlu0 %4515
  %v4517 = vsel %vm3384, %v4510, 0.0
  %4518 = vadd.xlane.f32.xlu0 %v4517
  %v4519 = vpop.xlane.xlu0 %4518
  %v4520 = vrcp.pop %v4513
  %v4521 = vrcp.pop %v4516
  %v4522 = vrcp.pop %v4519
  %v4523 = vmul.f32 %v4506, %v4520
  %v4524 = vmul.f32 %v4508, %v4521
  %v4525 = vmul.f32 %v4510, %v4522
  %v4526 = vpack.c.bf16 %v4524, %v4523
  %v4527 = vpack.c.bf16 %v4525, %v4525
  %v4529 = vsel %vm3384, %v4526, 0
  %v4532 = vsel %vm3384, %v4527, 0
  %v4535 = vsel %vm3426, %v4420, 0
  %4537 = vmatprep.subr.bf16.mxu0 0
  %4538 = vmatpush1.bf16.msra.mxu0 %v4418
  %4539 = vmatprep.subr.bf16.mxu0 0
  %4540 = vmatpush1.bf16.msra.mxu0 %v4535
  %4541 = vmatprep.subr.bf16.mxu0 0
  %4542 = vmatpush1.bf16.msra.mxu0 0
  %4543 = vmatprep.subr.bf16.mxu0 0
  %4544 = vmatpush1.bf16.msra.mxu0 0
  %4545 = vmatprep.subr.bf16.mxu0 0
  %4546 = vmatpush1.bf16.msra.mxu0 0
  %4547 = vmatprep.subr.bf16.mxu0 0
  %4548 = vmatpush1.bf16.msra.mxu0 0
  %4549 = vmatprep.subr.bf16.mxu0 0
  %4550 = vmatpush1.bf16.msra.mxu0 0
  %4551 = vmatprep.subr.bf16.mxu0 0
  %4552 = vmatpush1.bf16.msra.mxu0 0
  %4553 = vmatprep.subr.bf16.mxu0 0
  %4554 = vmatpush1.bf16.msra.mxu0 0
  %4555 = vmatprep.subr.bf16.mxu0 0
  %4556 = vmatpush1.bf16.msra.mxu0 0
  %4557 = vmatprep.subr.bf16.mxu0 0
  %4558 = vmatpush1.bf16.msra.mxu0 0
  %4559 = vmatprep.subr.bf16.mxu0 0
  %4560 = vmatpush1.bf16.msra.mxu0 0
  %4561 = vmatprep.subr.bf16.mxu0 0
  %4562 = vmatpush1.bf16.msra.mxu0 0
  %4563 = vmatprep.subr.bf16.mxu0 0
  %4564 = vmatpush1.bf16.msra.mxu0 0
  %4565 = vmatprep.subr.bf16.mxu0 0
  %4566 = vmatpush1.bf16.msra.mxu0 0
  %4567 = vmatprep.subr.bf16.mxu0 0
  %4568 = vmatpush1.bf16.msra.mxu0 0
  %4569 = vmatprep.mubr.bf16.mxu0 0
  %4570 = vmatmul.mubr.bf16.gmra.mrb[0].mxu0 %v4529
  %v4571 = vpop.f32.mrb[0].mxu0
  %v4572 = vadd.f32 0.0, %v4571
  %v4573 = vpop.f32.mrb[0].mxu0
  %v4574 = vpop.f32.mrb[0].mxu0
  %v4575 = vadd.f32 0.0, %v4574
  %v4576 = vpop.f32.mrb[0].mxu0
  %4577 = vmatprep.mubr.bf16.mxu0 0
  %4578 = vmatmul.mubr.bf16.gmra.mrb[0].mxu0 %v4532
  %v4579 = vpop.f32.mrb[0].mxu0
  %v4580 = vadd.f32 0.0, %v4579
  %v4581 = vpop.f32.mrb[0].mxu0
  %v4582 = vpop.f32.mrb[0].mxu0
  %v4583 = vpop.f32.mrb[0].mxu0
  %4584 = vdwg.mxu0
  %v4585 = vpack.c.bf16 %v4575, %v4572
  %v4586 = vpack.c.bf16 %v4580, %v4580
  %4587 = vrot.lane.b32.xlu0 %v4417, 96
  %v4588 = vpop.permute.xlu0 %4587
  %4589 = vrot.lane.b32.xlu0 %v4419, 96
  %v4590 = vpop.permute.xlu0 %4589
  %4591 = vrot.lane.b32.xlu0 %v4417, 32
  %v4592 = vpop.permute.xlu0 %4591
  %4593 = vrot.lane.b32.xlu0 %v4419, 32
  %v4594 = vpop.permute.xlu0 %4593
  %v4596 = vsel %vm992, %v4588, 0
  %v4599 = vsel %vm992, %v4590, 0
  %v4602 = vsel %vm992, %v4592, 0
  %v4605 = vsel %vm992, %v4594, 0
  %4607 = vmatprep.subr.bf16.mxu0 0
  %4608 = vmatpush1.bf16.xpose.msra.mxu0 %v4602
  %4609 = vmatprep.subr.bf16.mxu0 0
  %4610 = vmatpush1.bf16.xpose.msra.mxu0 %v4605
  %4611 = vmatprep.subr.bf16.mxu0 0
  %4612 = vmatpush1.bf16.xpose.msra.mxu0 0
  %4613 = vmatprep.subr.bf16.mxu0 0
  %4614 = vmatpush1.bf16.xpose.msra.mxu0 0
  %4615 = vmatprep.subr.bf16.mxu0 0
  %4616 = vmatpush1.bf16.xpose.msra.mxu0 0
  %4617 = vmatprep.subr.bf16.mxu0 0
  %4618 = vmatpush1.bf16.xpose.msra.mxu0 0
  %4619 = vmatprep.subr.bf16.mxu0 0
  %4620 = vmatpush1.bf16.xpose.msra.mxu0 0
  %4621 = vmatprep.subr.bf16.mxu0 0
  %4622 = vmatpush1.bf16.xpose.msra.mxu0 0
  %4623 = vmatprep.subr.bf16.mxu0 0
  %4624 = vmatpush1.bf16.xpose.msra.mxu0 0
  %4625 = vmatprep.subr.bf16.mxu0 0
  %4626 = vmatpush1.bf16.xpose.msra.mxu0 0
  %4627 = vmatprep.subr.bf16.mxu0 0
  %4628 = vmatpush1.bf16.xpose.msra.mxu0 0
  %4629 = vmatprep.subr.bf16.mxu0 0
  %4630 = vmatpush1.bf16.xpose.msra.mxu0 0
  %4631 = vmatprep.subr.bf16.mxu0 0
  %4632 = vmatpush1.bf16.xpose.msra.mxu0 0
  %4633 = vmatprep.subr.bf16.mxu0 0
  %4634 = vmatpush1.bf16.xpose.msra.mxu0 0
  %4635 = vmatprep.subr.bf16.mxu0 0
  %4636 = vmatpush1.bf16.xpose.msra.mxu0 0
  %4637 = vmatprep.subr.bf16.mxu0 0
  %4638 = vmatpush1.bf16.xpose.msra.mxu0 0
  %4639 = vmatprep.mubr.bf16.mxu0 0
  %4640 = vmatmul.mubr.bf16.gmra.mrb[0].mxu0 %v4596
  %v4641 = vpop.f32.mrb[0].mxu0
  %v4642 = vadd.f32 0.0, %v4641
  %v4643 = vpop.f32.mrb[0].mxu0
  %v4644 = vpop.f32.mrb[0].mxu0
  %v4645 = vadd.f32 0.0, %v4644
  %v4646 = vpop.f32.mrb[0].mxu0
  %4647 = vmatprep.mubr.bf16.mxu0 0
  %4648 = vmatmul.mubr.bf16.gmra.mrb[0].mxu0 %v4599
  %v4649 = vpop.f32.mrb[0].mxu0
  %v4650 = vadd.f32 0.0, %v4649
  %v4651 = vpop.f32.mrb[0].mxu0
  %v4652 = vpop.f32.mrb[0].mxu0
  %v4653 = vpop.f32.mrb[0].mxu0
  %4654 = vdwg.mxu0
  %v4655 = vmul.f32 %v4642, 0.17677669
  %v4656 = vmul.f32 %v4645, 0.17677669
  %v4657 = vmul.f32 %v4650, 0.17677669
  %v4658 = vsel %vm3109, %v4655, -1e+30
  %v4659 = vsel %vm3110, %v4656, -1e+30
  %v4660 = vsel %vm3111, %v4657, -1e+30
  %v4661 = vsel %vm3384, %v4658, -inf
  %4662 = vmax.xlane.f32.xlu0 %v4661
  %v4663 = vpop.xlane.xlu0 %4662
  %v4664 = vsel %vm3384, %v4659, -inf
  %4665 = vmax.xlane.f32.xlu0 %v4664
  %v4666 = vpop.xlane.xlu0 %4665
  %v4667 = vsel %vm3384, %v4660, -inf
  %4668 = vmax.xlane.f32.xlu0 %v4667
  %v4669 = vpop.xlane.xlu0 %4668
  %v4670 = vsub.f32 %v4658, %v4663
  %v4671 = vsub.f32 %v4659, %v4666
  %v4672 = vsub.f32 %v4660, %v4669
  %v4673 = vmul.f32 %v4670, 1.442695
  %v4674 = vpow.pop %v4673
  %v4675 = vmul.f32 %v4671, 1.442695
  %v4676 = vpow.pop %v4675
  %v4677 = vmul.f32 %v4672, 1.442695
  %v4678 = vpow.pop %v4677
  %v4679 = vsel %vm3384, %v4674, 0.0
  %4680 = vadd.xlane.f32.xlu0 %v4679
  %v4681 = vpop.xlane.xlu0 %4680
  %v4682 = vsel %vm3384, %v4676, 0.0
  %4683 = vadd.xlane.f32.xlu0 %v4682
  %v4684 = vpop.xlane.xlu0 %4683
  %v4685 = vsel %vm3384, %v4678, 0.0
  %4686 = vadd.xlane.f32.xlu0 %v4685
  %v4687 = vpop.xlane.xlu0 %4686
  %v4688 = vrcp.pop %v4681
  %v4689 = vrcp.pop %v4684
  %v4690 = vrcp.pop %v4687
  %v4691 = vmul.f32 %v4674, %v4688
  %v4692 = vmul.f32 %v4676, %v4689
  %v4693 = vmul.f32 %v4678, %v4690
  %v4694 = vpack.c.bf16 %v4692, %v4691
  %v4695 = vpack.c.bf16 %v4693, %v4693
  %4698 = vrot.lane.b32.xlu0 %v4418, 96
  %v4699 = vpop.permute.xlu0 %4698
  %4700 = vrot.lane.b32.xlu0 %v4420, 96
  %v4701 = vpop.permute.xlu0 %4700
  %v4704 = vsel %vm3384, %v4694, 0
  %v4707 = vsel %vm3384, %v4695, 0
  %v4710 = vsel %vm3426, %v4701, 0
  %4712 = vmatprep.subr.bf16.mxu0 0
  %4713 = vmatpush1.bf16.msra.mxu0 %v4699
  %4714 = vmatprep.subr.bf16.mxu0 0
  %4715 = vmatpush1.bf16.msra.mxu0 %v4710
  %4716 = vmatprep.subr.bf16.mxu0 0
  %4717 = vmatpush1.bf16.msra.mxu0 0
  %4718 = vmatprep.subr.bf16.mxu0 0
  %4719 = vmatpush1.bf16.msra.mxu0 0
  %4720 = vmatprep.subr.bf16.mxu0 0
  %4721 = vmatpush1.bf16.msra.mxu0 0
  %4722 = vmatprep.subr.bf16.mxu0 0
  %4723 = vmatpush1.bf16.msra.mxu0 0
  %4724 = vmatprep.subr.bf16.mxu0 0
  %4725 = vmatpush1.bf16.msra.mxu0 0
  %4726 = vmatprep.subr.bf16.mxu0 0
  %4727 = vmatpush1.bf16.msra.mxu0 0
  %4728 = vmatprep.subr.bf16.mxu0 0
  %4729 = vmatpush1.bf16.msra.mxu0 0
  %4730 = vmatprep.subr.bf16.mxu0 0
  %4731 = vmatpush1.bf16.msra.mxu0 0
  %4732 = vmatprep.subr.bf16.mxu0 0
  %4733 = vmatpush1.bf16.msra.mxu0 0
  %4734 = vmatprep.subr.bf16.mxu0 0
  %4735 = vmatpush1.bf16.msra.mxu0 0
  %4736 = vmatprep.subr.bf16.mxu0 0
  %4737 = vmatpush1.bf16.msra.mxu0 0
  %4738 = vmatprep.subr.bf16.mxu0 0
  %4739 = vmatpush1.bf16.msra.mxu0 0
  %4740 = vmatprep.subr.bf16.mxu0 0
  %4741 = vmatpush1.bf16.msra.mxu0 0
  %4742 = vmatprep.subr.bf16.mxu0 0
  %4743 = vmatpush1.bf16.msra.mxu0 0
  %4744 = vmatprep.mubr.bf16.mxu0 0
  %4745 = vmatmul.mubr.bf16.gmra.mrb[0].mxu0 %v4704
  %v4746 = vpop.f32.mrb[0].mxu0
  %v4747 = vadd.f32 0.0, %v4746
  %v4748 = vpop.f32.mrb[0].mxu0
  %v4749 = vpop.f32.mrb[0].mxu0
  %v4750 = vadd.f32 0.0, %v4749
  %v4751 = vpop.f32.mrb[0].mxu0
  %4752 = vmatprep.mubr.bf16.mxu0 0
  %4753 = vmatmul.mubr.bf16.gmra.mrb[0].mxu0 %v4707
  %v4754 = vpop.f32.mrb[0].mxu0
  %v4755 = vadd.f32 0.0, %v4754
  %v4756 = vpop.f32.mrb[0].mxu0
  %v4757 = vpop.f32.mrb[0].mxu0
  %v4758 = vpop.f32.mrb[0].mxu0
  %4759 = vdwg.mxu0
  %v4760 = vpack.c.bf16 %v4750, %v4747
  %v4761 = vpack.c.bf16 %v4755, %v4755
  %v4766 = vunpack.c.l.b16 %v4303
  %v4767 = vunpack.c.l.b16 %v4304
  %v4768 = vunpack.c.l.b16 %v4305
  %v4769 = vunpack.c.l.b16 %v4306
  %v4770 = vpack.c.b16 %v4767, %v4766
  %v4771 = vpack.c.b16 %v4769, %v4768
  %v4775 = vsel %vm992, %v4760, 0
  %v4778 = vsel %vm992, %v4761, 0
  %4780 = vmatprep.subr.bf16.mxu0 0
  %4781 = vmatpush1.bf16.msra.mxu0 %v4770
  %4782 = vmatprep.subr.bf16.mxu0 0
  %4783 = vmatpush1.bf16.msra.mxu0 %v4771
  %4784 = vmatprep.subr.bf16.mxu0 0
  %4785 = vmatpush1.bf16.msra.mxu0 0
  %4786 = vmatprep.subr.bf16.mxu0 0
  %4787 = vmatpush1.bf16.msra.mxu0 0
  %4788 = vmatprep.subr.bf16.mxu0 0
  %4789 = vmatpush1.bf16.msra.mxu0 0
  %4790 = vmatprep.subr.bf16.mxu0 0
  %4791 = vmatpush1.bf16.msra.mxu0 0
  %4792 = vmatprep.subr.bf16.mxu0 0
  %4793 = vmatpush1.bf16.msra.mxu0 0
  %4794 = vmatprep.subr.bf16.mxu0 0
  %4795 = vmatpush1.bf16.msra.mxu0 0
  %4796 = vmatprep.subr.bf16.mxu0 0
  %4797 = vmatpush1.bf16.msra.mxu0 0
  %4798 = vmatprep.subr.bf16.mxu0 0
  %4799 = vmatpush1.bf16.msra.mxu0 0
  %4800 = vmatprep.subr.bf16.mxu0 0
  %4801 = vmatpush1.bf16.msra.mxu0 0
  %4802 = vmatprep.subr.bf16.mxu0 0
  %4803 = vmatpush1.bf16.msra.mxu0 0
  %4804 = vmatprep.subr.bf16.mxu0 0
  %4805 = vmatpush1.bf16.msra.mxu0 0
  %4806 = vmatprep.subr.bf16.mxu0 0
  %4807 = vmatpush1.bf16.msra.mxu0 0
  %4808 = vmatprep.subr.bf16.mxu0 0
  %4809 = vmatpush1.bf16.msra.mxu0 0
  %4810 = vmatprep.subr.bf16.mxu0 0
  %4811 = vmatpush1.bf16.msra.mxu0 0
  %4812 = vmatprep.mubr.bf16.mxu0 0
  %4813 = vmatmul.mubr.bf16.gmra.mrb[0].mxu0 %v4775
  %v4814 = vpop.f32.mrb[0].mxu0
  %v4815 = vadd.f32 0.0, %v4814
  %v4816 = vpop.f32.mrb[0].mxu0
  %v4817 = vpop.f32.mrb[0].mxu0
  %v4818 = vadd.f32 0.0, %v4817
  %v4819 = vpop.f32.mrb[0].mxu0
  %4820 = vmatprep.mubr.bf16.mxu0 0
  %4821 = vmatmul.mubr.bf16.gmra.mrb[0].mxu0 %v4778
  %v4822 = vpop.f32.mrb[0].mxu0
  %v4823 = vadd.f32 0.0, %v4822
  %v4824 = vpop.f32.mrb[0].mxu0
  %v4825 = vpop.f32.mrb[0].mxu0
  %v4826 = vpop.f32.mrb[0].mxu0
  %4827 = vdwg.mxu0
  %v4832 = vunpack.c.l.b16 %v4299
  %v4833 = vunpack.c.l.b16 %v4300
  %v4834 = vunpack.c.l.b16 %v4301
  %v4835 = vunpack.c.l.b16 %v4302
  %v4836 = vpack.c.b16 %v4833, %v4832
  %v4837 = vpack.c.b16 %v4835, %v4834
  %v4841 = vsel %vm992, %v4585, 0
  %v4844 = vsel %vm992, %v4586, 0
  %4846 = vmatprep.subr.bf16.mxu0 0
  %4847 = vmatpush1.bf16.msra.mxu0 %v4836
  %4848 = vmatprep.subr.bf16.mxu0 0
  %4849 = vmatpush1.bf16.msra.mxu0 %v4837
  %4850 = vmatprep.subr.bf16.mxu0 0
  %4851 = vmatpush1.bf16.msra.mxu0 0
  %4852 = vmatprep.subr.bf16.mxu0 0
  %4853 = vmatpush1.bf16.msra.mxu0 0
  %4854 = vmatprep.subr.bf16.mxu0 0
  %4855 = vmatpush1.bf16.msra.mxu0 0
  %4856 = vmatprep.subr.bf16.mxu0 0
  %4857 = vmatpush1.bf16.msra.mxu0 0
  %4858 = vmatprep.subr.bf16.mxu0 0
  %4859 = vmatpush1.bf16.msra.mxu0 0
  %4860 = vmatprep.subr.bf16.mxu0 0
  %4861 = vmatpush1.bf16.msra.mxu0 0
  %4862 = vmatprep.subr.bf16.mxu0 0
  %4863 = vmatpush1.bf16.msra.mxu0 0
  %4864 = vmatprep.subr.bf16.mxu0 0
  %4865 = vmatpush1.bf16.msra.mxu0 0
  %4866 = vmatprep.subr.bf16.mxu0 0
  %4867 = vmatpush1.bf16.msra.mxu0 0
  %4868 = vmatprep.subr.bf16.mxu0 0
  %4869 = vmatpush1.bf16.msra.mxu0 0
  %4870 = vmatprep.subr.bf16.mxu0 0
  %4871 = vmatpush1.bf16.msra.mxu0 0
  %4872 = vmatprep.subr.bf16.mxu0 0
  %4873 = vmatpush1.bf16.msra.mxu0 0
  %4874 = vmatprep.subr.bf16.mxu0 0
  %4875 = vmatpush1.bf16.msra.mxu0 0
  %4876 = vmatprep.subr.bf16.mxu0 0
  %4877 = vmatpush1.bf16.msra.mxu0 0
  %4878 = vmatprep.mubr.bf16.mxu0 0
  %4879 = vmatmul.mubr.bf16.gmra.mrb[0].mxu0 %v4841
  %v4880 = vpop.f32.mrb[0].mxu0
  %v4881 = vadd.f32 %v4815, %v4880
  %v4882 = vpop.f32.mrb[0].mxu0
  %v4883 = vpop.f32.mrb[0].mxu0
  %v4884 = vadd.f32 %v4818, %v4883
  %v4885 = vpop.f32.mrb[0].mxu0
  %4886 = vmatprep.mubr.bf16.mxu0 0
  %4887 = vmatmul.mubr.bf16.gmra.mrb[0].mxu0 %v4844
  %v4888 = vpop.f32.mrb[0].mxu0
  %v4889 = vadd.f32 %v4823, %v4888
  %v4890 = vpop.f32.mrb[0].mxu0
  %v4891 = vpop.f32.mrb[0].mxu0
  %v4892 = vpop.f32.mrb[0].mxu0
  %4893 = vdwg.mxu0
  %v4895 = vlaneseq
  %v4896 = vshrl.u32 %v4895, 7
  %v4897 = vsub.s32 0, %v4896
  %v4898 = vrot.slane %v4308, %v4897
  %v4900 = vadd.f32 %v4881, %v4898
  %v4901 = vadd.f32 %v4884, %v4898
  %v4902 = vadd.f32 %v4889, %v4898
  %v4903 = vadd.f32 %v4221, %v4900
  %v4904 = vadd.f32 %v4222, %v4901
  %v4905 = vadd.f32 %v4223, %v4902
  %s4906 = scalar_lea.vmem %s57, 1
  %v4907 = vld [vmem:[%s4906] sm:$0x1]
  %s4908 = scalar_lea.vmem %s59, 1
  %v4909 = vld [vmem:[%s4908] sm:$0x1]
  %v4910 = vsel %vm547, %v4903, 0.0
  %4911 = vadd.xlane.f32.xlu0 %v4910
  %v4912 = vpop.xlane.xlu0 %4911
  %v4913 = vsel %vm547, %v4904, 0.0
  %4914 = vadd.xlane.f32.xlu0 %v4913
  %v4915 = vpop.xlane.xlu0 %4914
  %v4916 = vsel %vm547, %v4905, 0.0
  %4917 = vadd.xlane.f32.xlu0 %v4916
  %v4918 = vpop.xlane.xlu0 %4917
  %v4919 = vmul.f32 %v4912, %v805
  %v4920 = vmul.f32 %v4915, %v805
  %v4921 = vmul.f32 %v4918, %v805
  %v4922 = vsub.f32 %v4903, %v4919
  %v4923 = vsub.f32 %v4904, %v4920
  %v4924 = vsub.f32 %v4905, %v4921
  %v4925 = vmul.f32 %v4922, %v4922
  %v4926 = vmul.f32 %v4923, %v4923
  %v4927 = vmul.f32 %v4924, %v4924
  %v4928 = vsel %vm547, %v4925, 0.0
  %4929 = vadd.xlane.f32.xlu0 %v4928
  %v4930 = vpop.xlane.xlu0 %4929
  %v4931 = vsel %vm547, %v4926, 0.0
  %4932 = vadd.xlane.f32.xlu0 %v4931
  %v4933 = vpop.xlane.xlu0 %4932
  %v4934 = vsel %vm547, %v4927, 0.0
  %4935 = vadd.xlane.f32.xlu0 %v4934
  %v4936 = vpop.xlane.xlu0 %4935
  %v4937 = vmul.f32 %v4930, %v805
  %v4938 = vmul.f32 %v4933, %v805
  %v4939 = vmul.f32 %v4936, %v805
  %v4940 = vadd.f32 %v4937, 1e-06
  %v4941 = vadd.f32 %v4938, 1e-06
  %v4942 = vadd.f32 %v4939, 1e-06
  %v4943 = vrsqrt.pop %v4940
  %v4944 = vrsqrt.pop %v4941
  %v4945 = vrsqrt.pop %v4942
  %v4946 = vmul.f32 %v4922, %v4943
  %v4947 = vmul.f32 %v4923, %v4944
  %v4948 = vmul.f32 %v4924, %v4945
  %v4950 = vlaneseq
  %v4951 = vshrl.u32 %v4950, 7
  %v4952 = vsub.s32 0, %v4951
  %v4953 = vrot.slane %v4907, %v4952
  %v4955 = vmul.f32 %v4946, %v4953
  %v4956 = vmul.f32 %v4947, %v4953
  %v4957 = vmul.f32 %v4948, %v4953
  %v4959 = vlaneseq
  %v4960 = vshrl.u32 %v4959, 7
  %v4961 = vsub.s32 0, %v4960
  %v4962 = vrot.slane %v4909, %v4961
  %v4964 = vadd.f32 %v4955, %v4962
  %v4965 = vadd.f32 %v4956, %v4962
  %v4966 = vadd.f32 %v4957, %v4962
  %v4967 = vpack.c.bf16 %v4965, %v4964
  %v4968 = vpack.c.bf16 %v4966, %v4966
  %s4969 = scalar_lea.vmem %s61, 64
  %v4970 = vld [vmem:[%s4969] sm:$0xff]
  %v4971 = vld [vmem:[%s4969 + $0x8] sm:$0xff]
  %v4972 = vld [vmem:[%s4969 + $0x10] sm:$0xff]
  %v4973 = vld [vmem:[%s4969 + $0x18] sm:$0xff]
  %v4974 = vld [vmem:[%s4969 + $0x20] sm:$0xff]
  %v4975 = vld [vmem:[%s4969 + $0x28] sm:$0xff]
  %v4976 = vld [vmem:[%s4969 + $0x30] sm:$0xff]
  %v4977 = vld [vmem:[%s4969 + $0x38] sm:$0xff]
  %s4978 = scalar_lea.vmem %s63, 2
  %v4979 = vld [vmem:[%s4978] sm:$0x3]
  %v4981 = vlaneseq
  %v4982 = vshrl.u32 %v4981, 7
  %v4983 = vsub.s32 0, %v4982
  %v4984 = vrot.slane %v4979, %v4983
  %v4985 = vlaneseq
  %v4986 = vshrl.u32 %v4985, 7
  %v4987 = vsub.s32 1, %v4986
  %v4988 = vrot.slane %v4979, %v4987
  %v4999 = vunpack.c.l.b16 %v4970
  %v5000 = vunpack.c.h.b16 %v4970
  %v5001 = vunpack.c.l.b16 %v4971
  %v5002 = vunpack.c.h.b16 %v4971
  %v5003 = vunpack.c.l.b16 %v4972
  %v5004 = vunpack.c.h.b16 %v4972
  %v5005 = vunpack.c.l.b16 %v4973
  %v5006 = vunpack.c.h.b16 %v4973
  %v5007 = vunpack.c.l.b16 %v4974
  %v5008 = vunpack.c.h.b16 %v4974
  %v5009 = vunpack.c.l.b16 %v4975
  %v5010 = vunpack.c.h.b16 %v4975
  %v5011 = vunpack.c.l.b16 %v4976
  %v5012 = vunpack.c.h.b16 %v4976
  %v5013 = vunpack.c.l.b16 %v4977
  %v5014 = vunpack.c.h.b16 %v4977
  %v5015 = vpack.c.b16 %v5001, %v4999
  %v5016 = vpack.c.b16 %v5002, %v5000
  %v5017 = vpack.c.b16 %v5005, %v5003
  %v5018 = vpack.c.b16 %v5006, %v5004
  %v5019 = vpack.c.b16 %v5009, %v5007
  %v5020 = vpack.c.b16 %v5010, %v5008
  %v5021 = vpack.c.b16 %v5013, %v5011
  %v5022 = vpack.c.b16 %v5014, %v5012
  %v5032 = vsel %vm547, %v4967, 0
  %v5035 = vsel %vm547, %v4968, 0
  %5037 = vmatprep.subr.bf16.mxu0 %v5016
  %5038 = vmatpush1.bf16.msra.mxu0 %v5015
  %5039 = vmatprep.subr.bf16.mxu0 %v5018
  %5040 = vmatpush1.bf16.msra.mxu0 %v5017
  %5041 = vmatprep.subr.bf16.mxu0 %v5020
  %5042 = vmatpush1.bf16.msra.mxu0 %v5019
  %5043 = vmatprep.subr.bf16.mxu0 %v5022
  %5044 = vmatpush1.bf16.msra.mxu0 %v5021
  %5045 = vmatprep.subr.bf16.mxu0 0
  %5046 = vmatpush1.bf16.msra.mxu0 0
  %5047 = vmatprep.subr.bf16.mxu0 0
  %5048 = vmatpush1.bf16.msra.mxu0 0
  %5049 = vmatprep.subr.bf16.mxu0 0
  %5050 = vmatpush1.bf16.msra.mxu0 0
  %5051 = vmatprep.subr.bf16.mxu0 0
  %5052 = vmatpush1.bf16.msra.mxu0 0
  %5053 = vmatprep.subr.bf16.mxu0 0
  %5054 = vmatpush1.bf16.msra.mxu0 0
  %5055 = vmatprep.subr.bf16.mxu0 0
  %5056 = vmatpush1.bf16.msra.mxu0 0
  %5057 = vmatprep.subr.bf16.mxu0 0
  %5058 = vmatpush1.bf16.msra.mxu0 0
  %5059 = vmatprep.subr.bf16.mxu0 0
  %5060 = vmatpush1.bf16.msra.mxu0 0
  %5061 = vmatprep.subr.bf16.mxu0 0
  %5062 = vmatpush1.bf16.msra.mxu0 0
  %5063 = vmatprep.subr.bf16.mxu0 0
  %5064 = vmatpush1.bf16.msra.mxu0 0
  %5065 = vmatprep.subr.bf16.mxu0 0
  %5066 = vmatpush1.bf16.msra.mxu0 0
  %5067 = vmatprep.subr.bf16.mxu0 0
  %5068 = vmatpush1.bf16.msra.mxu0 0
  %5069 = vmatprep.mubr.bf16.mxu0 0
  %5070 = vmatmul.mubr.bf16.gmra.mrb[0].mxu0 %v5032
  %v5071 = vpop.f32.mrb[0].mxu0
  %v5072 = vadd.f32 %v4984, %v5071
  %v5073 = vpop.f32.mrb[0].mxu0
  %v5074 = vadd.f32 %v4988, %v5073
  %v5075 = vpop.f32.mrb[0].mxu0
  %v5076 = vadd.f32 %v4984, %v5075
  %v5077 = vpop.f32.mrb[0].mxu0
  %v5078 = vadd.f32 %v4988, %v5077
  %5079 = vmatprep.mubr.bf16.mxu0 0
  %5080 = vmatmul.mubr.bf16.gmra.mrb[0].mxu0 %v5035
  %v5081 = vpop.f32.mrb[0].mxu0
  %v5082 = vadd.f32 %v4984, %v5081
  %v5083 = vpop.f32.mrb[0].mxu0
  %v5084 = vadd.f32 %v4988, %v5083
  %v5085 = vpop.f32.mrb[0].mxu0
  %v5086 = vpop.f32.mrb[0].mxu0
  %5087 = vdwg.mxu0
  %v5088 = vmul.f32 %v5072, %v5072
  %v5089 = vmul.f32 %v5074, %v5074
  %v5090 = vmul.f32 %v5076, %v5076
  %v5091 = vmul.f32 %v5078, %v5078
  %v5092 = vmul.f32 %v5082, %v5082
  %v5093 = vmul.f32 %v5084, %v5084
  %v5094 = vmul.f32 %v5072, %v5088
  %v5095 = vmul.f32 %v5074, %v5089
  %v5096 = vmul.f32 %v5076, %v5090
  %v5097 = vmul.f32 %v5078, %v5091
  %v5098 = vmul.f32 %v5082, %v5092
  %v5099 = vmul.f32 %v5084, %v5093
  %v5100 = vmul.f32 %v5094, 0.044715
  %v5101 = vmul.f32 %v5095, 0.044715
  %v5102 = vmul.f32 %v5096, 0.044715
  %v5103 = vmul.f32 %v5097, 0.044715
  %v5104 = vmul.f32 %v5098, 0.044715
  %v5105 = vmul.f32 %v5099, 0.044715
  %v5106 = vadd.f32 %v5072, %v5100
  %v5107 = vadd.f32 %v5074, %v5101
  %v5108 = vadd.f32 %v5076, %v5102
  %v5109 = vadd.f32 %v5078, %v5103
  %v5110 = vadd.f32 %v5082, %v5104
  %v5111 = vadd.f32 %v5084, %v5105
  %v5112 = vmul.f32 %v5106, 0.7978846
  %v5113 = vmul.f32 %v5107, 0.7978846
  %v5114 = vmul.f32 %v5108, 0.7978846
  %v5115 = vmul.f32 %v5109, 0.7978846
  %v5116 = vmul.f32 %v5110, 0.7978846
  %v5117 = vmul.f32 %v5111, 0.7978846
  %v5118 = vtanh.pop %v5112
  %v5119 = vtanh.pop %v5113
  %v5120 = vtanh.pop %v5114
  %v5121 = vtanh.pop %v5115
  %v5122 = vtanh.pop %v5116
  %v5123 = vtanh.pop %v5117
  %v5124 = vadd.f32 %v5118, 1.0
  %v5125 = vadd.f32 %v5119, 1.0
  %v5126 = vadd.f32 %v5120, 1.0
  %v5127 = vadd.f32 %v5121, 1.0
  %v5128 = vadd.f32 %v5122, 1.0
  %v5129 = vadd.f32 %v5123, 1.0
  %v5130 = vmul.f32 %v5124, 0.5
  %v5131 = vmul.f32 %v5125, 0.5
  %v5132 = vmul.f32 %v5126, 0.5
  %v5133 = vmul.f32 %v5127, 0.5
  %v5134 = vmul.f32 %v5128, 0.5
  %v5135 = vmul.f32 %v5129, 0.5
  %v5136 = vmul.f32 %v5072, %v5130
  %v5137 = vmul.f32 %v5074, %v5131
  %v5138 = vmul.f32 %v5076, %v5132
  %v5139 = vmul.f32 %v5078, %v5133
  %v5140 = vmul.f32 %v5082, %v5134
  %v5141 = vmul.f32 %v5084, %v5135
  %v5142 = vpack.c.bf16 %v5138, %v5136
  %v5143 = vpack.c.bf16 %v5139, %v5137
  %v5144 = vpack.c.bf16 %v5140, %v5140
  %v5145 = vpack.c.bf16 %v5141, %v5141
  %s5146 = scalar_lea.vmem %s65, 128
  %v5147 = vld [vmem:[%s5146] sm:$0xf]
  %v5148 = vld [vmem:[%s5146 + $0x4] sm:$0xf]
  %v5149 = vld [vmem:[%s5146 + $0x8] sm:$0xf]
  %v5150 = vld [vmem:[%s5146 + $0xc] sm:$0xf]
  %v5151 = vld [vmem:[%s5146 + $0x10] sm:$0xf]
  %v5152 = vld [vmem:[%s5146 + $0x14] sm:$0xf]
  %v5153 = vld [vmem:[%s5146 + $0x18] sm:$0xf]
  %v5154 = vld [vmem:[%s5146 + $0x1c] sm:$0xf]
  %v5155 = vld [vmem:[%s5146 + $0x20] sm:$0xf]
  %v5156 = vld [vmem:[%s5146 + $0x24] sm:$0xf]
  %v5157 = vld [vmem:[%s5146 + $0x28] sm:$0xf]
  %v5158 = vld [vmem:[%s5146 + $0x2c] sm:$0xf]
  %v5159 = vld [vmem:[%s5146 + $0x30] sm:$0xf]
  %v5160 = vld [vmem:[%s5146 + $0x34] sm:$0xf]
  %v5161 = vld [vmem:[%s5146 + $0x38] sm:$0xf]
  %v5162 = vld [vmem:[%s5146 + $0x3c] sm:$0xf]
  %v5163 = vld [vmem:[%s5146 + $0x40] sm:$0xf]
  %v5164 = vld [vmem:[%s5146 + $0x44] sm:$0xf]
  %v5165 = vld [vmem:[%s5146 + $0x48] sm:$0xf]
  %v5166 = vld [vmem:[%s5146 + $0x4c] sm:$0xf]
  %v5167 = vld [vmem:[%s5146 + $0x50] sm:$0xf]
  %v5168 = vld [vmem:[%s5146 + $0x54] sm:$0xf]
  %v5169 = vld [vmem:[%s5146 + $0x58] sm:$0xf]
  %v5170 = vld [vmem:[%s5146 + $0x5c] sm:$0xf]
  %v5171 = vld [vmem:[%s5146 + $0x60] sm:$0xf]
  %v5172 = vld [vmem:[%s5146 + $0x64] sm:$0xf]
  %v5173 = vld [vmem:[%s5146 + $0x68] sm:$0xf]
  %v5174 = vld [vmem:[%s5146 + $0x6c] sm:$0xf]
  %v5175 = vld [vmem:[%s5146 + $0x70] sm:$0xf]
  %v5176 = vld [vmem:[%s5146 + $0x74] sm:$0xf]
  %v5177 = vld [vmem:[%s5146 + $0x78] sm:$0xf]
  %v5178 = vld [vmem:[%s5146 + $0x7c] sm:$0xf]
  %v5211 = vunpack.c.l.b16 %v5147
  %v5212 = vunpack.c.l.b16 %v5148
  %v5213 = vunpack.c.l.b16 %v5149
  %v5214 = vunpack.c.l.b16 %v5150
  %v5215 = vunpack.c.l.b16 %v5151
  %v5216 = vunpack.c.l.b16 %v5152
  %v5217 = vunpack.c.l.b16 %v5153
  %v5218 = vunpack.c.l.b16 %v5154
  %v5219 = vunpack.c.l.b16 %v5155
  %v5220 = vunpack.c.l.b16 %v5156
  %v5221 = vunpack.c.l.b16 %v5157
  %v5222 = vunpack.c.l.b16 %v5158
  %v5223 = vunpack.c.l.b16 %v5159
  %v5224 = vunpack.c.l.b16 %v5160
  %v5225 = vunpack.c.l.b16 %v5161
  %v5226 = vunpack.c.l.b16 %v5162
  %v5227 = vunpack.c.l.b16 %v5163
  %v5228 = vunpack.c.l.b16 %v5164
  %v5229 = vunpack.c.l.b16 %v5165
  %v5230 = vunpack.c.l.b16 %v5166
  %v5231 = vunpack.c.l.b16 %v5167
  %v5232 = vunpack.c.l.b16 %v5168
  %v5233 = vunpack.c.l.b16 %v5169
  %v5234 = vunpack.c.l.b16 %v5170
  %v5235 = vunpack.c.l.b16 %v5171
  %v5236 = vunpack.c.l.b16 %v5172
  %v5237 = vunpack.c.l.b16 %v5173
  %v5238 = vunpack.c.l.b16 %v5174
  %v5239 = vunpack.c.l.b16 %v5175
  %v5240 = vunpack.c.l.b16 %v5176
  %v5241 = vunpack.c.l.b16 %v5177
  %v5242 = vunpack.c.l.b16 %v5178
  %v5243 = vpack.c.b16 %v5212, %v5211
  %v5244 = vpack.c.b16 %v5214, %v5213
  %v5245 = vpack.c.b16 %v5216, %v5215
  %v5246 = vpack.c.b16 %v5218, %v5217
  %v5247 = vpack.c.b16 %v5220, %v5219
  %v5248 = vpack.c.b16 %v5222, %v5221
  %v5249 = vpack.c.b16 %v5224, %v5223
  %v5250 = vpack.c.b16 %v5226, %v5225
  %v5251 = vpack.c.b16 %v5228, %v5227
  %v5252 = vpack.c.b16 %v5230, %v5229
  %v5253 = vpack.c.b16 %v5232, %v5231
  %v5254 = vpack.c.b16 %v5234, %v5233
  %v5255 = vpack.c.b16 %v5236, %v5235
  %v5256 = vpack.c.b16 %v5238, %v5237
  %v5257 = vpack.c.b16 %v5240, %v5239
  %v5258 = vpack.c.b16 %v5242, %v5241
  %5275 = vmatprep.subr.bf16.mxu0 0
  %5276 = vmatpush1.bf16.msra.mxu0 %v5243
  %5277 = vmatprep.subr.bf16.mxu0 0
  %5278 = vmatpush1.bf16.msra.mxu0 %v5244
  %5279 = vmatprep.subr.bf16.mxu0 0
  %5280 = vmatpush1.bf16.msra.mxu0 %v5245
  %5281 = vmatprep.subr.bf16.mxu0 0
  %5282 = vmatpush1.bf16.msra.mxu0 %v5246
  %5283 = vmatprep.subr.bf16.mxu0 0
  %5284 = vmatpush1.bf16.msra.mxu0 %v5247
  %5285 = vmatprep.subr.bf16.mxu0 0
  %5286 = vmatpush1.bf16.msra.mxu0 %v5248
  %5287 = vmatprep.subr.bf16.mxu0 0
  %5288 = vmatpush1.bf16.msra.mxu0 %v5249
  %5289 = vmatprep.subr.bf16.mxu0 0
  %5290 = vmatpush1.bf16.msra.mxu0 %v5250
  %5291 = vmatprep.subr.bf16.mxu0 0
  %5292 = vmatpush1.bf16.msra.mxu0 %v5251
  %5293 = vmatprep.subr.bf16.mxu0 0
  %5294 = vmatpush1.bf16.msra.mxu0 %v5252
  %5295 = vmatprep.subr.bf16.mxu0 0
  %5296 = vmatpush1.bf16.msra.mxu0 %v5253
  %5297 = vmatprep.subr.bf16.mxu0 0
  %5298 = vmatpush1.bf16.msra.mxu0 %v5254
  %5299 = vmatprep.subr.bf16.mxu0 0
  %5300 = vmatpush1.bf16.msra.mxu0 %v5255
  %5301 = vmatprep.subr.bf16.mxu0 0
  %5302 = vmatpush1.bf16.msra.mxu0 %v5256
  %5303 = vmatprep.subr.bf16.mxu0 0
  %5304 = vmatpush1.bf16.msra.mxu0 %v5257
  %5305 = vmatprep.subr.bf16.mxu0 0
  %5306 = vmatpush1.bf16.msra.mxu0 %v5258
  %5307 = vmatprep.mubr.bf16.mxu0 %v5143
  %5308 = vmatmul.mubr.bf16.gmra.mrb[0].mxu0 %v5142
  %v5309 = vpop.f32.mrb[0].mxu0
  %v5310 = vadd.f32 0.0, %v5309
  %v5311 = vpop.f32.mrb[0].mxu0
  %v5312 = vpop.f32.mrb[0].mxu0
  %v5313 = vadd.f32 0.0, %v5312
  %v5314 = vpop.f32.mrb[0].mxu0
  %5315 = vmatprep.mubr.bf16.mxu0 %v5145
  %5316 = vmatmul.mubr.bf16.gmra.mrb[0].mxu0 %v5144
  %v5317 = vpop.f32.mrb[0].mxu0
  %v5318 = vadd.f32 0.0, %v5317
  %v5319 = vpop.f32.mrb[0].mxu0
  %v5320 = vpop.f32.mrb[0].mxu0
  %v5321 = vpop.f32.mrb[0].mxu0
  %5322 = vdwg.mxu0
  %v5323 = vadd.f32 %v4903, %v5310
  %v5324 = vadd.f32 %v4904, %v5313
  %v5325 = vadd.f32 %v4905, %v5318
  %s5326 = scalar_lea.vmem %s67, 1
  %v5327 = vld [vmem:[%s5326] sm:$0x1]
  %v5329 = vlaneseq
  %v5330 = vshrl.u32 %v5329, 7
  %v5331 = vsub.s32 0, %v5330
  %v5332 = vrot.slane %v5327, %v5331
  %v5334 = vadd.f32 %v5323, %v5332
  %v5335 = vadd.f32 %v5324, %v5332
  %v5336 = vadd.f32 %v5325, %v5332
  %5337 = vst.msk [vmem:[%s79] sm:$0xff] %vm547, %v5334
  %5338 = vst.msk [vmem:[%s79 + $0x8] sm:$0xff] %vm547, %v5335
  %5339 = vst.msk [vmem:[%s79 + $0x10] sm:$0xff] %vm547, %v5336
  %v5340 = vld [vmem:[%s69] sm:$0x1]
  %v5341 = vld [vmem:[%s71] sm:$0x1]
  %v5342 = vsel %vm547, %v5334, 0.0
  %5343 = vadd.xlane.f32.xlu0 %v5342
  %v5344 = vpop.xlane.xlu0 %5343
  %v5345 = vsel %vm547, %v5335, 0.0
  %5346 = vadd.xlane.f32.xlu0 %v5345
  %v5347 = vpop.xlane.xlu0 %5346
  %v5348 = vsel %vm547, %v5336, 0.0
  %5349 = vadd.xlane.f32.xlu0 %v5348
  %v5350 = vpop.xlane.xlu0 %5349
  %v5351 = vmul.f32 %v5344, %v805
  %v5352 = vmul.f32 %v5347, %v805
  %v5353 = vmul.f32 %v5350, %v805
  %v5354 = vsub.f32 %v5334, %v5351
  %v5355 = vsub.f32 %v5335, %v5352
  %v5356 = vsub.f32 %v5336, %v5353
  %v5357 = vmul.f32 %v5354, %v5354
  %v5358 = vmul.f32 %v5355, %v5355
  %v5359 = vmul.f32 %v5356, %v5356
  %v5360 = vsel %vm547, %v5357, 0.0
  %5361 = vadd.xlane.f32.xlu0 %v5360
  %v5362 = vpop.xlane.xlu0 %5361
  %v5363 = vsel %vm547, %v5358, 0.0
  %5364 = vadd.xlane.f32.xlu0 %v5363
  %v5365 = vpop.xlane.xlu0 %5364
  %v5366 = vsel %vm547, %v5359, 0.0
  %5367 = vadd.xlane.f32.xlu0 %v5366
  %v5368 = vpop.xlane.xlu0 %5367
  %v5369 = vmul.f32 %v5362, %v805
  %v5370 = vmul.f32 %v5365, %v805
  %v5371 = vmul.f32 %v5368, %v805
  %v5372 = vadd.f32 %v5369, 1e-06
  %v5373 = vadd.f32 %v5370, 1e-06
  %v5374 = vadd.f32 %v5371, 1e-06
  %v5375 = vrsqrt.pop %v5372
  %v5376 = vrsqrt.pop %v5373
  %v5377 = vrsqrt.pop %v5374
  %v5378 = vmul.f32 %v5354, %v5375
  %v5379 = vmul.f32 %v5355, %v5376
  %v5380 = vmul.f32 %v5356, %v5377
  %v5382 = vlaneseq
  %v5383 = vshrl.u32 %v5382, 7
  %v5384 = vsub.s32 0, %v5383
  %v5385 = vrot.slane %v5340, %v5384
  %v5387 = vmul.f32 %v5378, %v5385
  %v5388 = vmul.f32 %v5379, %v5385
  %v5389 = vmul.f32 %v5380, %v5385
  %v5391 = vlaneseq
  %v5392 = vshrl.u32 %v5391, 7
  %v5393 = vsub.s32 0, %v5392
  %v5394 = vrot.slane %v5341, %v5393
  %v5396 = vadd.f32 %v5387, %v5394
  %v5397 = vadd.f32 %v5388, %v5394
  %v5398 = vadd.f32 %v5389, %v5394
  %v5399 = vld [vmem:[%s73] sm:$0xff]
  %v5400 = vld [vmem:[%s73 + $0x8] sm:$0xff]
  %v5401 = vld [vmem:[%s73 + $0x10] sm:$0xff]
  %v5402 = vld [vmem:[%s73 + $0x18] sm:$0xff]
  %v5403 = vld [vmem:[%s73 + $0x20] sm:$0xff]
  %v5404 = vld [vmem:[%s73 + $0x28] sm:$0xff]
  %v5405 = vld [vmem:[%s73 + $0x30] sm:$0xff]
  %v5406 = vld [vmem:[%s73 + $0x38] sm:$0xff]
  %v5407 = vld [vmem:[%s73 + $0x40] sm:$0xff]
  %v5408 = vld [vmem:[%s73 + $0x48] sm:$0xff]
  %v5409 = vld [vmem:[%s73 + $0x50] sm:$0xff]
  %v5410 = vld [vmem:[%s73 + $0x58] sm:$0xff]
  %v5411 = vld [vmem:[%s73 + $0x60] sm:$0xff]
  %v5412 = vld [vmem:[%s73 + $0x68] sm:$0xff]
  %v5413 = vld [vmem:[%s73 + $0x70] sm:$0xff]
  %v5414 = vld [vmem:[%s73 + $0x78] sm:$0xff]
  %v5415 = vpack.c.bf16 %v5397, %v5396
  %v5416 = vpack.c.bf16 %v5398, %v5398
  %v5417 = vld [vmem:[%s75] sm:$0xf]
  %v5419 = vlaneseq
  %v5420 = vshrl.u32 %v5419, 7
  %v5421 = vsub.s32 0, %v5420
  %v5422 = vrot.slane %v5417, %v5421
  %v5423 = vlaneseq
  %v5424 = vshrl.u32 %v5423, 7
  %v5425 = vsub.s32 1, %v5424
  %v5426 = vrot.slane %v5417, %v5425
  %v5427 = vlaneseq
  %v5428 = vshrl.u32 %v5427, 7
  %v5429 = vsub.s32 2, %v5428
  %v5430 = vrot.slane %v5417, %v5429
  %v5431 = vlaneseq
  %v5432 = vshrl.u32 %v5431, 7
  %v5433 = vsub.s32 3, %v5432
  %v5434 = vrot.slane %v5417, %v5433
  %v5455 = vunpack.c.l.b16 %v5399
  %v5456 = vunpack.c.h.b16 %v5399
  %v5457 = vunpack.c.l.b16 %v5400
  %v5458 = vunpack.c.h.b16 %v5400
  %v5459 = vunpack.c.l.b16 %v5401
  %v5460 = vunpack.c.h.b16 %v5401
  %v5461 = vunpack.c.l.b16 %v5402
  %v5462 = vunpack.c.h.b16 %v5402
  %v5463 = vunpack.c.l.b16 %v5403
  %v5464 = vunpack.c.h.b16 %v5403
  %v5465 = vunpack.c.l.b16 %v5404
  %v5466 = vunpack.c.h.b16 %v5404
  %v5467 = vunpack.c.l.b16 %v5405
  %v5468 = vunpack.c.h.b16 %v5405
  %v5469 = vunpack.c.l.b16 %v5406
  %v5470 = vunpack.c.h.b16 %v5406
  %v5471 = vunpack.c.l.b16 %v5407
  %v5472 = vunpack.c.h.b16 %v5407
  %v5473 = vunpack.c.l.b16 %v5408
  %v5474 = vunpack.c.h.b16 %v5408
  %v5475 = vunpack.c.l.b16 %v5409
  %v5476 = vunpack.c.h.b16 %v5409
  %v5477 = vunpack.c.l.b16 %v5410
  %v5478 = vunpack.c.h.b16 %v5410
  %v5479 = vunpack.c.l.b16 %v5411
  %v5480 = vunpack.c.h.b16 %v5411
  %v5481 = vunpack.c.l.b16 %v5412
  %v5482 = vunpack.c.h.b16 %v5412
  %v5483 = vunpack.c.l.b16 %v5413
  %v5484 = vunpack.c.h.b16 %v5413
  %v5485 = vunpack.c.l.b16 %v5414
  %v5486 = vunpack.c.h.b16 %v5414
  %v5487 = vpack.c.b16 %v5459, %v5455
  %v5488 = vpack.c.b16 %v5460, %v5456
  %v5489 = vpack.c.b16 %v5461, %v5457
  %v5490 = vpack.c.b16 %v5462, %v5458
  %v5491 = vpack.c.b16 %v5467, %v5463
  %v5492 = vpack.c.b16 %v5468, %v5464
  %v5493 = vpack.c.b16 %v5469, %v5465
  %v5494 = vpack.c.b16 %v5470, %v5466
  %v5495 = vpack.c.b16 %v5475, %v5471
  %v5496 = vpack.c.b16 %v5476, %v5472
  %v5497 = vpack.c.b16 %v5477, %v5473
  %v5498 = vpack.c.b16 %v5478, %v5474
  %v5499 = vpack.c.b16 %v5483, %v5479
  %v5500 = vpack.c.b16 %v5484, %v5480
  %v5501 = vpack.c.b16 %v5485, %v5481
  %v5502 = vpack.c.b16 %v5486, %v5482
  %v5520 = vsel %vm547, %v5415, 0
  %v5523 = vsel %vm547, %v5416, 0
  %5525 = vmatprep.subr.bf16.mxu0 %v5488
  %5526 = vmatpush1.bf16.msra.mxu0 %v5487
  %5527 = vmatprep.subr.bf16.mxu0 %v5492
  %5528 = vmatpush1.bf16.msra.mxu0 %v5491
  %5529 = vmatprep.subr.bf16.mxu0 %v5496
  %5530 = vmatpush1.bf16.msra.mxu0 %v5495
  %5531 = vmatprep.subr.bf16.mxu0 %v5500
  %5532 = vmatpush1.bf16.msra.mxu0 %v5499
  %5533 = vmatprep.subr.bf16.mxu0 0
  %5534 = vmatpush1.bf16.msra.mxu0 0
  %5535 = vmatprep.subr.bf16.mxu0 0
  %5536 = vmatpush1.bf16.msra.mxu0 0
  %5537 = vmatprep.subr.bf16.mxu0 0
  %5538 = vmatpush1.bf16.msra.mxu0 0
  %5539 = vmatprep.subr.bf16.mxu0 0
  %5540 = vmatpush1.bf16.msra.mxu0 0
  %5541 = vmatprep.subr.bf16.mxu0 0
  %5542 = vmatpush1.bf16.msra.mxu0 0
  %5543 = vmatprep.subr.bf16.mxu0 0
  %5544 = vmatpush1.bf16.msra.mxu0 0
  %5545 = vmatprep.subr.bf16.mxu0 0
  %5546 = vmatpush1.bf16.msra.mxu0 0
  %5547 = vmatprep.subr.bf16.mxu0 0
  %5548 = vmatpush1.bf16.msra.mxu0 0
  %5549 = vmatprep.subr.bf16.mxu0 0
  %5550 = vmatpush1.bf16.msra.mxu0 0
  %5551 = vmatprep.subr.bf16.mxu0 0
  %5552 = vmatpush1.bf16.msra.mxu0 0
  %5553 = vmatprep.subr.bf16.mxu0 0
  %5554 = vmatpush1.bf16.msra.mxu0 0
  %5555 = vmatprep.subr.bf16.mxu0 0
  %5556 = vmatpush1.bf16.msra.mxu0 0
  %5557 = vmatprep.mubr.bf16.mxu0 0
  %5558 = vmatmul.mubr.bf16.gmra.mrb[0].mxu0 %v5520
  %v5559 = vpop.f32.mrb[0].mxu0
  %v5560 = vadd.f32 %v5422, %v5559
  %v5561 = vpop.f32.mrb[0].mxu0
  %v5562 = vadd.f32 %v5426, %v5561
  %v5563 = vpop.f32.mrb[0].mxu0
  %v5564 = vadd.f32 %v5422, %v5563
  %v5565 = vpop.f32.mrb[0].mxu0
  %v5566 = vadd.f32 %v5426, %v5565
  %5567 = vmatprep.mubr.bf16.mxu0 0
  %5568 = vmatmul.mubr.bf16.gmra.mrb[0].mxu0 %v5523
  %v5569 = vpop.f32.mrb[0].mxu0
  %v5570 = vadd.f32 %v5422, %v5569
  %v5571 = vpop.f32.mrb[0].mxu0
  %v5572 = vadd.f32 %v5426, %v5571
  %v5573 = vpop.f32.mrb[0].mxu0
  %v5574 = vpop.f32.mrb[0].mxu0
  %5575 = vdwg.mxu0
  %5576 = vmatprep.subr.bf16.mxu0 %v5490
  %5577 = vmatpush1.bf16.msra.mxu0 %v5489
  %5578 = vmatprep.subr.bf16.mxu0 %v5494
  %5579 = vmatpush1.bf16.msra.mxu0 %v5493
  %5580 = vmatprep.subr.bf16.mxu0 %v5498
  %5581 = vmatpush1.bf16.msra.mxu0 %v5497
  %5582 = vmatprep.subr.bf16.mxu0 %v5502
  %5583 = vmatpush1.bf16.msra.mxu0 %v5501
  %5584 = vmatprep.subr.bf16.mxu0 0
  %5585 = vmatpush1.bf16.msra.mxu0 0
  %5586 = vmatprep.subr.bf16.mxu0 0
  %5587 = vmatpush1.bf16.msra.mxu0 0
  %5588 = vmatprep.subr.bf16.mxu0 0
  %5589 = vmatpush1.bf16.msra.mxu0 0
  %5590 = vmatprep.subr.bf16.mxu0 0
  %5591 = vmatpush1.bf16.msra.mxu0 0
  %5592 = vmatprep.subr.bf16.mxu0 0
  %5593 = vmatpush1.bf16.msra.mxu0 0
  %5594 = vmatprep.subr.bf16.mxu0 0
  %5595 = vmatpush1.bf16.msra.mxu0 0
  %5596 = vmatprep.subr.bf16.mxu0 0
  %5597 = vmatpush1.bf16.msra.mxu0 0
  %5598 = vmatprep.subr.bf16.mxu0 0
  %5599 = vmatpush1.bf16.msra.mxu0 0
  %5600 = vmatprep.subr.bf16.mxu0 0
  %5601 = vmatpush1.bf16.msra.mxu0 0
  %5602 = vmatprep.subr.bf16.mxu0 0
  %5603 = vmatpush1.bf16.msra.mxu0 0
  %5604 = vmatprep.subr.bf16.mxu0 0
  %5605 = vmatpush1.bf16.msra.mxu0 0
  %5606 = vmatprep.subr.bf16.mxu0 0
  %5607 = vmatpush1.bf16.msra.mxu0 0
  %5608 = vmatprep.mubr.bf16.mxu0 0
  %5609 = vmatmul.mubr.bf16.gmra.mrb[0].mxu0 %v5520
  %v5610 = vpop.f32.mrb[0].mxu0
  %v5611 = vadd.f32 %v5430, %v5610
  %v5612 = vpop.f32.mrb[0].mxu0
  %v5613 = vadd.f32 %v5434, %v5612
  %v5614 = vpop.f32.mrb[0].mxu0
  %v5615 = vadd.f32 %v5430, %v5614
  %v5616 = vpop.f32.mrb[0].mxu0
  %v5617 = vadd.f32 %v5434, %v5616
  %5618 = vmatprep.mubr.bf16.mxu0 0
  %5619 = vmatmul.mubr.bf16.gmra.mrb[0].mxu0 %v5523
  %v5620 = vpop.f32.mrb[0].mxu0
  %v5621 = vadd.f32 %v5430, %v5620
  %v5622 = vpop.f32.mrb[0].mxu0
  %v5623 = vadd.f32 %v5434, %v5622
  %v5624 = vpop.f32.mrb[0].mxu0
  %v5625 = vpop.f32.mrb[0].mxu0
  %5626 = vdwg.mxu0
  %5627 = vst [vmem:[%s77] sm:$0xff] %v5560
  %5628 = vst [vmem:[%s77 + $0x8] sm:$0xff] %v5562
  %5629 = vst [vmem:[%s77 + $0x10] sm:$0xff] %v5611
  %5630 = vst [vmem:[%s77 + $0x18] sm:$0xff] %v5613
  %5631 = vst [vmem:[%s77 + $0x20] sm:$0xff] %v5564
  %5632 = vst [vmem:[%s77 + $0x28] sm:$0xff] %v5566
  %5633 = vst [vmem:[%s77 + $0x30] sm:$0xff] %v5615
  %5634 = vst [vmem:[%s77 + $0x38] sm:$0xff] %v5617
  %5635 = vst [vmem:[%s77 + $0x40] sm:$0xff] %v5570
  %5636 = vst [vmem:[%s77 + $0x48] sm:$0xff] %v5572
  %5637 = vst [vmem:[%s77 + $0x50] sm:$0xff] %v5621
  %5638 = vst [vmem:[%s77 + $0x58] sm:$0xff] %v5623
  // Predicated region
  $region154: #{_lambda_.1} parent=0 // pred_check
    _
  $region155: #{_lambda_.1} parent=0 // pred_check_branch
    %5640 = sbr.rel (0) target = $region157
  $region156: #{_lambda_.1} parent=0 // pred_region
    _
  $region157: #{_lambda_.1} parent=0 // pred_fallthru
    _
  // Predicated region
  $region158: #{_lambda_.1} parent=0 // pred_check
    _
  $region159: #{_lambda_.1} parent=0 // pred_check_branch
    %5642 = sbr.rel (0) target = $region161
  $region160: #{_lambda_.1} parent=0 // pred_region
    _
  $region161: #{_lambda_.1} parent=0 // pred_fallthru
    _
  // Predicated region
  $region162: #{_lambda_.1} parent=0 // pred_check
    _
  $region163: #{_lambda_.1} parent=0 // pred_check_branch
    %5644 = sbr.rel (0) target = $region165
  $region164: #{_lambda_.1} parent=0 // pred_region
    _
  $region165: #{_lambda_.1} parent=0 // pred_fallthru
    _
  // Predicated region
  $region166: #{_lambda_.1} parent=0 // pred_check
    _
  $region167: #{_lambda_.1} parent=0 // pred_check_branch
    %5646 = sbr.rel (0) target = $region169
  $region168: #{_lambda_.1} parent=0 // pred_region
    _
  $region169: #{_lambda_.1} parent=0 // pred_fallthru
    _

</llo_original>
